<compile_context>
chip_gen: v7x
topology: tpu7x:2x2x1
jax: 0.10.0
libtpu: 0.0.40
codegen_flags: <defaults>
</compile_context>

<pallas_src>
import jax
import jax.numpy as jnp
from jax.experimental import pallas as pl
from jax.experimental.pallas import tpu as pltpu


# ------------------------------ fused kernel --------------------------------
def _fused_forward_kernel(emb_ref, x_ref, w1_ref, b1_ref, w2_ref, b2_ref,
                          fcw_ref, fcb_ref, o_ref,
                          xp1, pm1, xp2, pm2, h2s, flat):
    # emb_ref : (2,)           SMEM   embedding table (num_ids=2, dim=1)
    # x_ref   : (B, H, W, S)   VMEM   int32 agent-id grid, channels = stack
    # w1_ref  : (9*S,  C1)            conv1 weight, im2col (dy,dx,cin) row order
    # b1_ref  : (1, C1)
    # w2_ref  : (9*C1, C2)
    # b2_ref  : (1, C2)
    # fcw_ref : (H*W*C2, D)           fc weight, NHWC-flatten row order
    # fcb_ref : (1, D)
    # o_ref   : (B, D)
    B, H, W, S = x_ref.shape
    C1 = w1_ref.shape[1]
    C2 = w2_ref.shape[1]
    HW = H * W
    M = B * HW

    # ---- embedding lookup as a select (num_embeddings=2, embedding_dim=1) ---
    # TODO(synk): a general num_embeddings>2 table would need an in-kernel gather.
    e0 = emb_ref[0]
    e1 = emb_ref[1]
    emb = jnp.where(x_ref[...] > 0, e1, e0)                 # (B,H,W,S) f32

    # ---- conv1: 3x3 'same' conv as a single im2col matmul -------------------
    xp1[...] = jnp.zeros_like(xp1)                          # zero border
    xp1[:, 1:H + 1, 1:W + 1, :] = emb
    for k in range(9):
        dy, dx = divmod(k, 3)
        pm1[:, :, :, k * S:(k + 1) * S] = xp1[:, dy:dy + H, dx:dx + W, :]
    p1 = pm1[...].reshape(M, 9 * S)
    h1 = jnp.dot(p1.astype(jnp.bfloat16), w1_ref[...].astype(jnp.bfloat16),
                 preferred_element_type=jnp.float32)
    h1 = jnp.maximum(h1 + b1_ref[...], 0.0)                 # (M, C1) f32

    # ---- conv2 ---------------------------------------------------------------
    xp2[...] = jnp.zeros_like(xp2)
    xp2[:, 1:H + 1, 1:W + 1, :] = h1.reshape(B, H, W, C1)
    for k in range(9):
        dy, dx = divmod(k, 3)
        pm2[:, :, :, k * C1:(k + 1) * C1] = xp2[:, dy:dy + H, dx:dx + W, :]
    p2 = pm2[...].reshape(M, 9 * C1)
    h2 = jnp.dot(p2.astype(jnp.bfloat16), w2_ref[...].astype(jnp.bfloat16),
                 preferred_element_type=jnp.float32)
    h2 = jnp.maximum(h2 + b2_ref[...], 0.0)                 # (M, C2) f32

    # ---- flatten (NHWC order; fc_w rows are permuted to match) + fc + ReLU ---
    h2s[...] = h2.reshape(B, HW, C2)
    for hw in range(HW):
        flat[:, hw * C2:(hw + 1) * C2] = h2s[:, hw, :]
    y = jnp.dot(flat[...].astype(jnp.bfloat16),
                fcw_ref[...].astype(jnp.bfloat16),
                preferred_element_type=jnp.float32)
    o_ref[...] = jnp.maximum(y + fcb_ref[...], 0.0)


# ------------------------- params & forward pass -----------------------------
def init_params(key, stack, h, w, output_dim,
                num_embeddings=2, embedding_dim=1, c1=32, c2=64):
    assert num_embeddings == 2 and embedding_dim == 1
    ks = jax.random.split(key, 4)

    def init(k, shape, fan_in):
        return jax.random.normal(k, shape, jnp.float32) * jnp.sqrt(2.0 / fan_in)

    cin = stack * embedding_dim
    # Conv weights stored in im2col layout (9*Cin, Cout), row order (dy,dx,cin).
    # To import PyTorch OIHW weights: w.permute(2,3,1,0).reshape(9*Cin, Cout).
    conv1_w = init(ks[1], (3, 3, cin, c1), 9 * cin).reshape(9 * cin, c1)
    conv2_w = init(ks[2], (3, 3, c1, c2), 9 * c1).reshape(9 * c1, c2)
    # fc_w rows are in NHWC-flatten order ((h*W+w)*C2 + c).  To import PyTorch
    # weights (NCHW flatten, c*H*W + h*W + w) permute the rows accordingly.
    fc_w = init(ks[3], (h * w * c2, output_dim), c2 * h * w)
    return {
        "embedding": init(ks[0], (num_embeddings,), 1.0),   # embedding_dim == 1
        "conv1_w": conv1_w,
        "conv1_b": jnp.zeros((1, c1), jnp.float32),
        "conv2_w": conv2_w,
        "conv2_b": jnp.zeros((1, c2), jnp.float32),
        "fc_w": fc_w,
        "fc_b": jnp.zeros((1, output_dim), jnp.float32),
    }


def agent_id_stacked_feature_extractor(params, x):
    """x: (B, stack, H, W) integer agent-id grid (stacked frames)."""
    B, S, H, W = x.shape
    C1 = params["conv1_w"].shape[1]
    C2 = params["conv2_w"].shape[1]
    D = params["fc_w"].shape[1]

    # Only layout glue on the tiny int input (x[..., None] + stack*emb_dim ->
    # channels); every activation stays inside the fused kernel's VMEM.
    x_nhwc = jnp.transpose(x, (0, 2, 3, 1)).astype(jnp.int32)   # (B, H, W, S)

    def full(shape):
        return pl.BlockSpec(shape, lambda i, _s=shape: (0,) * len(_s))

    return pl.pallas_call(
        _fused_forward_kernel,
        out_shape=jax.ShapeDtypeStruct((B, D), jnp.float32),
        grid=(1,),
        in_specs=[
            pl.BlockSpec(memory_space=pltpu.MemorySpace.SMEM),  # 2-entry table
            full((B, H, W, S)),
            full((9 * S, C1)),
            full((1, C1)),
            full((9 * C1, C2)),
            full((1, C2)),
            full((H * W * C2, D)),
            full((1, D)),
        ],
        out_specs=full((B, D)),
        scratch_shapes=[
            pltpu.VMEM((B, H + 2, W + 2, S), jnp.float32),      # padded conv1 in
            pltpu.VMEM((B, H, W, 9 * S), jnp.float32),          # conv1 im2col
            pltpu.VMEM((B, H + 2, W + 2, C1), jnp.float32),     # padded conv2 in
            pltpu.VMEM((B, H, W, 9 * C1), jnp.float32),         # conv2 im2col
            pltpu.VMEM((B, H * W, C2), jnp.float32),            # conv2 output
            pltpu.VMEM((B, H * W * C2), jnp.float32),           # flattened feats
        ],
        compiler_params=pltpu.CompilerParams(
            dimension_semantics=("arbitrary",)),
    )(params["embedding"], x_nhwc,
      params["conv1_w"], params["conv1_b"],
      params["conv2_w"], params["conv2_b"],
      params["fc_w"], params["fc_b"])


# ------------------------------ reference ------------------------------------
def _reference_forward(params, x):
    """Pure-JAX (f32) reference for the same weights/flatten order."""
    B, S, H, W = x.shape
    c1 = params["conv1_w"].shape[1]
    c2 = params["conv2_w"].shape[1]
    emb = params["embedding"][x]                               # (B,S,H,W)
    nhwc = jnp.transpose(emb, (0, 2, 3, 1)).astype(jnp.float32)  # (B,H,W,S)
    w1 = params["conv1_w"].reshape(3, 3, S, c1)
    w2 = params["conv2_w"].reshape(3, 3, c1, c2)
    dn1 = jax.lax.conv_dimension_numbers(nhwc.shape, w1.shape,
                                         ("NHWC", "HWIO", "NHWC"))
    h1 = jax.lax.conv_general_dilated(nhwc, w1, (1, 1), "SAME",
                                      dimension_numbers=dn1)
    h1 = jnp.maximum(h1 + params["conv1_b"][0], 0.0)
    dn2 = jax.lax.conv_dimension_numbers(h1.shape, w2.shape,
                                         ("NHWC", "HWIO", "NHWC"))
    h2 = jax.lax.conv_general_dilated(h1, w2, (1, 1), "SAME",
                                      dimension_numbers=dn2)
    h2 = jnp.maximum(h2 + params["conv2_b"][0], 0.0)
    flat = h2.reshape(B, -1)                                   # NHWC flatten
    y = flat @ params["fc_w"] + params["fc_b"][0]
    return jnp.maximum(y, 0.0)


if __name__ == "__main__":
    key = jax.random.PRNGKey(0)
    k_obs, k_par = jax.random.split(key)

    B, S, H, W = 2, 4, 8, 8       # batch, stacked frames, grid height/width
    OUTPUT_DIM = 32

    # agent-id observation: binary grid marking the agent position per frame
    obs = jax.random.randint(k_obs, (B, S, H, W), 0, 2, dtype=jnp.int32)
    params = init_params(k_par, S, H, W, OUTPUT_DIM)

    fwd = jax.jit(agent_id_stacked_feature_extractor)
    out = fwd(params, obs)
    jax.block_until_ready(out)

    assert out.shape == (B, OUTPUT_DIM), out.shape
    assert out.dtype == jnp.float32

    ref = _reference_forward(params, obs)
    rel_err = float(jnp.max(jnp.abs(out - ref)) / (jnp.max(jnp.abs(ref)) + 1e-6))
    assert rel_err < 5e-2, f"mismatch vs reference: rel err {rel_err}"
    print("KERNEL_OK")
</pallas_src>

<mosaic_0001>
module attributes {stable_mosaic.version = 11 : i64} {
  func.func @_fused_forward_kernel(%arg0: i32, %arg1: memref<2xf32, #tpu.memory_space<smem>>, %arg2: memref<2x8x8x4xi32, #tpu.memory_space<vmem>>, %arg3: memref<36x32xf32, #tpu.memory_space<vmem>>, %arg4: memref<1x32xf32, #tpu.memory_space<vmem>>, %arg5: memref<288x64xf32, #tpu.memory_space<vmem>>, %arg6: memref<1x64xf32, #tpu.memory_space<vmem>>, %arg7: memref<4096x32xf32, #tpu.memory_space<vmem>>, %arg8: memref<1x32xf32, #tpu.memory_space<vmem>>, %arg9: memref<2x32xf32, #tpu.memory_space<vmem>>, %arg10: memref<2x10x10x4xf32, #tpu.memory_space<vmem>>, %arg11: memref<2x8x8x36xf32, #tpu.memory_space<vmem>>, %arg12: memref<2x10x10x32xf32, #tpu.memory_space<vmem>>, %arg13: memref<2x8x8x288xf32, #tpu.memory_space<vmem>>, %arg14: memref<2x64x64xf32, #tpu.memory_space<vmem>>, %arg15: memref<2x4096xf32, #tpu.memory_space<vmem>>) attributes {dimension_semantics = [#tpu.dimension_semantics<arbitrary>], iteration_bounds = array<i64: 1>, scalar_prefetch = 0 : i64, scratch_operands = 6 : i64, tpu.core_type = #tpu.core_type<tc>, window_params = [{transform_indices = @transform_0, window_bounds = array<i64: 2>}, {pipeline_mode = #tpu.pipeline_mode<synchronous>, transform_indices = @transform_1, window_bounds = array<i64: 2, 8, 8, 4>}, {pipeline_mode = #tpu.pipeline_mode<synchronous>, transform_indices = @transform_2, window_bounds = array<i64: 36, 32>}, {pipeline_mode = #tpu.pipeline_mode<synchronous>, transform_indices = @transform_3, window_bounds = array<i64: 1, 32>}, {pipeline_mode = #tpu.pipeline_mode<synchronous>, transform_indices = @transform_4, window_bounds = array<i64: 288, 64>}, {pipeline_mode = #tpu.pipeline_mode<synchronous>, transform_indices = @transform_5, window_bounds = array<i64: 1, 64>}, {pipeline_mode = #tpu.pipeline_mode<synchronous>, transform_indices = @transform_6, window_bounds = array<i64: 4096, 32>}, {pipeline_mode = #tpu.pipeline_mode<synchronous>, transform_indices = @transform_7, window_bounds = array<i64: 1, 32>}, {pipeline_mode = #tpu.pipeline_mode<synchronous>, transform_indices = @transform_8, window_bounds = array<i64: 2, 32>}]} {
    %c0 = arith.constant 0 : index
    %0 = memref.load %arg1[%c0] : memref<2xf32, #tpu.memory_space<smem>>
    %c1 = arith.constant 1 : index
    %1 = memref.load %arg1[%c1] : memref<2xf32, #tpu.memory_space<smem>>
    %c0_0 = arith.constant 0 : index
    %c0_1 = arith.constant 0 : index
    %c0_2 = arith.constant 0 : index
    %c0_3 = arith.constant 0 : index
    %2 = vector.load %arg2[%c0_0, %c0_1, %c0_2, %c0_3] : memref<2x8x8x4xi32, #tpu.memory_space<vmem>>, vector<2x8x8x4xi32>
    %c0_i32 = arith.constant 0 : i32
    %3 = vector.broadcast %c0_i32 : i32 to vector<2x8x8x4xi32>
    %4 = arith.cmpi sgt, %2, %3 : vector<2x8x8x4xi32>
    %5 = vector.broadcast %1 : f32 to vector<2x8x8x4xf32>
    %6 = vector.broadcast %0 : f32 to vector<2x8x8x4xf32>
    %7 = arith.select %4, %5, %6 : vector<2x8x8x4xi1>, vector<2x8x8x4xf32>
    %cst = arith.constant 0.000000e+00 : f32
    %8 = vector.broadcast %cst : f32 to vector<2x10x10x4xf32>
    %c0_4 = arith.constant 0 : index
    %c0_5 = arith.constant 0 : index
    %c0_6 = arith.constant 0 : index
    %c0_7 = arith.constant 0 : index
    %9 = vector.load %arg10[%c0_4, %c0_5, %c0_6, %c0_7] : memref<2x10x10x4xf32, #tpu.memory_space<vmem>>, vector<2x10x10x4xf32>
    tpu.vector_store %arg10[%c0_4, %c0_5, %c0_6, %c0_7], %8 {strides = array<i32>} : memref<2x10x10x4xf32, #tpu.memory_space<vmem>>, vector<2x10x10x4xf32>,
    %c0_8 = arith.constant 0 : index
    %c1_9 = arith.constant 1 : index
    %c1_10 = arith.constant 1 : index
    %c0_11 = arith.constant 0 : index
    %10 = vector.load %arg10[%c0_8, %c1_9, %c1_10, %c0_11] : memref<2x10x10x4xf32, #tpu.memory_space<vmem>>, vector<2x8x8x4xf32>
    tpu.vector_store %arg10[%c0_8, %c1_9, %c1_10, %c0_11], %7 {strides = array<i32>} : memref<2x10x10x4xf32, #tpu.memory_space<vmem>>, vector<2x8x8x4xf32>,
    %c0_12 = arith.constant 0 : index
    %c0_13 = arith.constant 0 : index
    %c0_14 = arith.constant 0 : index
    %c0_15 = arith.constant 0 : index
    %11 = vector.load %arg10[%c0_12, %c0_13, %c0_14, %c0_15] : memref<2x10x10x4xf32, #tpu.memory_space<vmem>>, vector<2x8x8x4xf32>
    %c0_16 = arith.constant 0 : index
    %c0_17 = arith.constant 0 : index
    %c0_18 = arith.constant 0 : index
    %c0_19 = arith.constant 0 : index
    %12 = vector.load %arg11[%c0_16, %c0_17, %c0_18, %c0_19] : memref<2x8x8x36xf32, #tpu.memory_space<vmem>>, vector<2x8x8x4xf32>
    tpu.vector_store %arg11[%c0_16, %c0_17, %c0_18, %c0_19], %11 {strides = array<i32>} : memref<2x8x8x36xf32, #tpu.memory_space<vmem>>, vector<2x8x8x4xf32>,
    %c0_20 = arith.constant 0 : index
    %c0_21 = arith.constant 0 : index
    %c1_22 = arith.constant 1 : index
    %c0_23 = arith.constant 0 : index
    %13 = vector.load %arg10[%c0_20, %c0_21, %c1_22, %c0_23] : memref<2x10x10x4xf32, #tpu.memory_space<vmem>>, vector<2x8x8x4xf32>
    %c0_24 = arith.constant 0 : index
    %c0_25 = arith.constant 0 : index
    %c0_26 = arith.constant 0 : index
    %c4 = arith.constant 4 : index
    %14 = vector.load %arg11[%c0_24, %c0_25, %c0_26, %c4] : memref<2x8x8x36xf32, #tpu.memory_space<vmem>>, vector<2x8x8x4xf32>
    tpu.vector_store %arg11[%c0_24, %c0_25, %c0_26, %c4], %13 {strides = array<i32>} : memref<2x8x8x36xf32, #tpu.memory_space<vmem>>, vector<2x8x8x4xf32>,
    %c0_27 = arith.constant 0 : index
    %c0_28 = arith.constant 0 : index
    %c2 = arith.constant 2 : index
    %c0_29 = arith.constant 0 : index
    %15 = vector.load %arg10[%c0_27, %c0_28, %c2, %c0_29] : memref<2x10x10x4xf32, #tpu.memory_space<vmem>>, vector<2x8x8x4xf32>
    %c0_30 = arith.constant 0 : index
    %c0_31 = arith.constant 0 : index
    %c0_32 = arith.constant 0 : index
    %c8 = arith.constant 8 : index
    %16 = vector.load %arg11[%c0_30, %c0_31, %c0_32, %c8] : memref<2x8x8x36xf32, #tpu.memory_space<vmem>>, vector<2x8x8x4xf32>
    tpu.vector_store %arg11[%c0_30, %c0_31, %c0_32, %c8], %15 {strides = array<i32>} : memref<2x8x8x36xf32, #tpu.memory_space<vmem>>, vector<2x8x8x4xf32>,
    %c0_33 = arith.constant 0 : index
    %c1_34 = arith.constant 1 : index
    %c0_35 = arith.constant 0 : index
    %c0_36 = arith.constant 0 : index
    %17 = vector.load %arg10[%c0_33, %c1_34, %c0_35, %c0_36] : memref<2x10x10x4xf32, #tpu.memory_space<vmem>>, vector<2x8x8x4xf32>
    %c0_37 = arith.constant 0 : index
    %c0_38 = arith.constant 0 : index
    %c0_39 = arith.constant 0 : index
    %c12 = arith.constant 12 : index
    %18 = vector.load %arg11[%c0_37, %c0_38, %c0_39, %c12] : memref<2x8x8x36xf32, #tpu.memory_space<vmem>>, vector<2x8x8x4xf32>
    tpu.vector_store %arg11[%c0_37, %c0_38, %c0_39, %c12], %17 {strides = array<i32>} : memref<2x8x8x36xf32, #tpu.memory_space<vmem>>, vector<2x8x8x4xf32>,
    %c0_40 = arith.constant 0 : index
    %c1_41 = arith.constant 1 : index
    %c1_42 = arith.constant 1 : index
    %c0_43 = arith.constant 0 : index
    %19 = vector.load %arg10[%c0_40, %c1_41, %c1_42, %c0_43] : memref<2x10x10x4xf32, #tpu.memory_space<vmem>>, vector<2x8x8x4xf32>
    %c0_44 = arith.constant 0 : index
    %c0_45 = arith.constant 0 : index
    %c0_46 = arith.constant 0 : index
    %c16 = arith.constant 16 : index
    %20 = vector.load %arg11[%c0_44, %c0_45, %c0_46, %c16] : memref<2x8x8x36xf32, #tpu.memory_space<vmem>>, vector<2x8x8x4xf32>
    tpu.vector_store %arg11[%c0_44, %c0_45, %c0_46, %c16], %19 {strides = array<i32>} : memref<2x8x8x36xf32, #tpu.memory_space<vmem>>, vector<2x8x8x4xf32>,
    %c0_47 = arith.constant 0 : index
    %c1_48 = arith.constant 1 : index
    %c2_49 = arith.constant 2 : index
    %c0_50 = arith.constant 0 : index
    %21 = vector.load %arg10[%c0_47, %c1_48, %c2_49, %c0_50] : memref<2x10x10x4xf32, #tpu.memory_space<vmem>>, vector<2x8x8x4xf32>
    %c0_51 = arith.constant 0 : index
    %c0_52 = arith.constant 0 : index
    %c0_53 = arith.constant 0 : index
    %c20 = arith.constant 20 : index
    %22 = vector.load %arg11[%c0_51, %c0_52, %c0_53, %c20] : memref<2x8x8x36xf32, #tpu.memory_space<vmem>>, vector<2x8x8x4xf32>
    tpu.vector_store %arg11[%c0_51, %c0_52, %c0_53, %c20], %21 {strides = array<i32>} : memref<2x8x8x36xf32, #tpu.memory_space<vmem>>, vector<2x8x8x4xf32>,
    %c0_54 = arith.constant 0 : index
    %c2_55 = arith.constant 2 : index
    %c0_56 = arith.constant 0 : index
    %c0_57 = arith.constant 0 : index
    %23 = vector.load %arg10[%c0_54, %c2_55, %c0_56, %c0_57] : memref<2x10x10x4xf32, #tpu.memory_space<vmem>>, vector<2x8x8x4xf32>
    %c0_58 = arith.constant 0 : index
    %c0_59 = arith.constant 0 : index
    %c0_60 = arith.constant 0 : index
    %c24 = arith.constant 24 : index
    %24 = vector.load %arg11[%c0_58, %c0_59, %c0_60, %c24] : memref<2x8x8x36xf32, #tpu.memory_space<vmem>>, vector<2x8x8x4xf32>
    tpu.vector_store %arg11[%c0_58, %c0_59, %c0_60, %c24], %23 {strides = array<i32>} : memref<2x8x8x36xf32, #tpu.memory_space<vmem>>, vector<2x8x8x4xf32>,
    %c0_61 = arith.constant 0 : index
    %c2_62 = arith.constant 2 : index
    %c1_63 = arith.constant 1 : index
    %c0_64 = arith.constant 0 : index
    %25 = vector.load %arg10[%c0_61, %c2_62, %c1_63, %c0_64] : memref<2x10x10x4xf32, #tpu.memory_space<vmem>>, vector<2x8x8x4xf32>
    %c0_65 = arith.constant 0 : index
    %c0_66 = arith.constant 0 : index
    %c0_67 = arith.constant 0 : index
    %c28 = arith.constant 28 : index
    %26 = vector.load %arg11[%c0_65, %c0_66, %c0_67, %c28] : memref<2x8x8x36xf32, #tpu.memory_space<vmem>>, vector<2x8x8x4xf32>
    tpu.vector_store %arg11[%c0_65, %c0_66, %c0_67, %c28], %25 {strides = array<i32>} : memref<2x8x8x36xf32, #tpu.memory_space<vmem>>, vector<2x8x8x4xf32>,
    %c0_68 = arith.constant 0 : index
    %c2_69 = arith.constant 2 : index
    %c2_70 = arith.constant 2 : index
    %c0_71 = arith.constant 0 : index
    %27 = vector.load %arg10[%c0_68, %c2_69, %c2_70, %c0_71] : memref<2x10x10x4xf32, #tpu.memory_space<vmem>>, vector<2x8x8x4xf32>
    %c0_72 = arith.constant 0 : index
    %c0_73 = arith.constant 0 : index
    %c0_74 = arith.constant 0 : index
    %c32 = arith.constant 32 : index
    %28 = vector.load %arg11[%c0_72, %c0_73, %c0_74, %c32] : memref<2x8x8x36xf32, #tpu.memory_space<vmem>>, vector<2x8x8x4xf32>
    tpu.vector_store %arg11[%c0_72, %c0_73, %c0_74, %c32], %27 {strides = array<i32>} : memref<2x8x8x36xf32, #tpu.memory_space<vmem>>, vector<2x8x8x4xf32>,
    %c0_75 = arith.constant 0 : index
    %c0_76 = arith.constant 0 : index
    %c0_77 = arith.constant 0 : index
    %c0_78 = arith.constant 0 : index
    %29 = vector.load %arg11[%c0_75, %c0_76, %c0_77, %c0_78] : memref<2x8x8x36xf32, #tpu.memory_space<vmem>>, vector<2x8x8x36xf32>
    %30 = vector.shape_cast %29 : vector<2x8x8x36xf32> to vector<128x36xf32>
    %31 = arith.truncf %30 : vector<128x36xf32> to vector<128x36xbf16>
    %c0_79 = arith.constant 0 : index
    %c0_80 = arith.constant 0 : index
    %32 = vector.load %arg3[%c0_79, %c0_80] : memref<36x32xf32, #tpu.memory_space<vmem>>, vector<36x32xf32>
    %33 = arith.truncf %32 : vector<36x32xf32> to vector<36x32xbf16>
    %cst_81 = arith.constant dense<0.000000e+00> : vector<128x32xf32>
    %34 = tpu.matmul %31, %33, %cst_81 {dimension_numbers = #tpu.dot_dimension_numbers<[1], [0], [0], [1], [0, 0, 1, 1], [], []>} : vector<128x36xbf16>, vector<36x32xbf16>, vector<128x32xf32> -> vector<128x32xf32>
    %c0_82 = arith.constant 0 : index
    %c0_83 = arith.constant 0 : index
    %35 = vector.load %arg4[%c0_82, %c0_83] : memref<1x32xf32, #tpu.memory_space<vmem>>, vector<1x32xf32>
    %36 = vector.broadcast %35 : vector<1x32xf32> to vector<128x32xf32>
    %37 = arith.addf %34, %36 : vector<128x32xf32>
    %cst_84 = arith.constant 0.000000e+00 : f32
    %38 = vector.broadcast %cst_84 : f32 to vector<128x32xf32>
    %39 = arith.maximumf %37, %38 : vector<128x32xf32>
    %cst_85 = arith.constant 0.000000e+00 : f32
    %40 = vector.broadcast %cst_85 : f32 to vector<2x10x10x32xf32>
    %c0_86 = arith.constant 0 : index
    %c0_87 = arith.constant 0 : index
    %c0_88 = arith.constant 0 : index
    %c0_89 = arith.constant 0 : index
    %41 = vector.load %arg12[%c0_86, %c0_87, %c0_88, %c0_89] : memref<2x10x10x32xf32, #tpu.memory_space<vmem>>, vector<2x10x10x32xf32>
    tpu.vector_store %arg12[%c0_86, %c0_87, %c0_88, %c0_89], %40 {strides = array<i32>} : memref<2x10x10x32xf32, #tpu.memory_space<vmem>>, vector<2x10x10x32xf32>,
    %42 = vector.shape_cast %39 : vector<128x32xf32> to vector<2x8x8x32xf32>
    %c0_90 = arith.constant 0 : index
    %c1_91 = arith.constant 1 : index
    %c1_92 = arith.constant 1 : index
    %c0_93 = arith.constant 0 : index
    %43 = vector.load %arg12[%c0_90, %c1_91, %c1_92, %c0_93] : memref<2x10x10x32xf32, #tpu.memory_space<vmem>>, vector<2x8x8x32xf32>
    tpu.vector_store %arg12[%c0_90, %c1_91, %c1_92, %c0_93], %42 {strides = array<i32>} : memref<2x10x10x32xf32, #tpu.memory_space<vmem>>, vector<2x8x8x32xf32>,
    %c0_94 = arith.constant 0 : index
    %c0_95 = arith.constant 0 : index
    %c0_96 = arith.constant 0 : index
    %c0_97 = arith.constant 0 : index
    %44 = vector.load %arg12[%c0_94, %c0_95, %c0_96, %c0_97] : memref<2x10x10x32xf32, #tpu.memory_space<vmem>>, vector<2x8x8x32xf32>
    %c0_98 = arith.constant 0 : index
    %c0_99 = arith.constant 0 : index
    %c0_100 = arith.constant 0 : index
    %c0_101 = arith.constant 0 : index
    %45 = vector.load %arg13[%c0_98, %c0_99, %c0_100, %c0_101] : memref<2x8x8x288xf32, #tpu.memory_space<vmem>>, vector<2x8x8x32xf32>
    tpu.vector_store %arg13[%c0_98, %c0_99, %c0_100, %c0_101], %44 {strides = array<i32>} : memref<2x8x8x288xf32, #tpu.memory_space<vmem>>, vector<2x8x8x32xf32>,
    %c0_102 = arith.constant 0 : index
    %c0_103 = arith.constant 0 : index
    %c1_104 = arith.constant 1 : index
    %c0_105 = arith.constant 0 : index
    %46 = vector.load %arg12[%c0_102, %c0_103, %c1_104, %c0_105] : memref<2x10x10x32xf32, #tpu.memory_space<vmem>>, vector<2x8x8x32xf32>
    %c0_106 = arith.constant 0 : index
    %c0_107 = arith.constant 0 : index
    %c0_108 = arith.constant 0 : index
    %c32_109 = arith.constant 32 : index
    %47 = vector.load %arg13[%c0_106, %c0_107, %c0_108, %c32_109] : memref<2x8x8x288xf32, #tpu.memory_space<vmem>>, vector<2x8x8x32xf32>
    tpu.vector_store %arg13[%c0_106, %c0_107, %c0_108, %c32_109], %46 {strides = array<i32>} : memref<2x8x8x288xf32, #tpu.memory_space<vmem>>, vector<2x8x8x32xf32>,
    %c0_110 = arith.constant 0 : index
    %c0_111 = arith.constant 0 : index
    %c2_112 = arith.constant 2 : index
    %c0_113 = arith.constant 0 : index
    %48 = vector.load %arg12[%c0_110, %c0_111, %c2_112, %c0_113] : memref<2x10x10x32xf32, #tpu.memory_space<vmem>>, vector<2x8x8x32xf32>
    %c0_114 = arith.constant 0 : index
    %c0_115 = arith.constant 0 : index
    %c0_116 = arith.constant 0 : index
    %c64 = arith.constant 64 : index
    %49 = vector.load %arg13[%c0_114, %c0_115, %c0_116, %c64] : memref<2x8x8x288xf32, #tpu.memory_space<vmem>>, vector<2x8x8x32xf32>
    tpu.vector_store %arg13[%c0_114, %c0_115, %c0_116, %c64], %48 {strides = array<i32>} : memref<2x8x8x288xf32, #tpu.memory_space<vmem>>, vector<2x8x8x32xf32>,
    %c0_117 = arith.constant 0 : index
    %c1_118 = arith.constant 1 : index
    %c0_119 = arith.constant 0 : index
    %c0_120 = arith.constant 0 : index
    %50 = vector.load %arg12[%c0_117, %c1_118, %c0_119, %c0_120] : memref<2x10x10x32xf32, #tpu.memory_space<vmem>>, vector<2x8x8x32xf32>
    %c0_121 = arith.constant 0 : index
    %c0_122 = arith.constant 0 : index
    %c0_123 = arith.constant 0 : index
    %c96 = arith.constant 96 : index
    %51 = vector.load %arg13[%c0_121, %c0_122, %c0_123, %c96] : memref<2x8x8x288xf32, #tpu.memory_space<vmem>>, vector<2x8x8x32xf32>
    tpu.vector_store %arg13[%c0_121, %c0_122, %c0_123, %c96], %50 {strides = array<i32>} : memref<2x8x8x288xf32, #tpu.memory_space<vmem>>, vector<2x8x8x32xf32>,
    %c0_124 = arith.constant 0 : index
    %c1_125 = arith.constant 1 : index
    %c1_126 = arith.constant 1 : index
    %c0_127 = arith.constant 0 : index
    %52 = vector.load %arg12[%c0_124, %c1_125, %c1_126, %c0_127] : memref<2x10x10x32xf32, #tpu.memory_space<vmem>>, vector<2x8x8x32xf32>
    %c0_128 = arith.constant 0 : index
    %c0_129 = arith.constant 0 : index
    %c0_130 = arith.constant 0 : index
    %c128 = arith.constant 128 : index
    %53 = vector.load %arg13[%c0_128, %c0_129, %c0_130, %c128] : memref<2x8x8x288xf32, #tpu.memory_space<vmem>>, vector<2x8x8x32xf32>
    tpu.vector_store %arg13[%c0_128, %c0_129, %c0_130, %c128], %52 {strides = array<i32>} : memref<2x8x8x288xf32, #tpu.memory_space<vmem>>, vector<2x8x8x32xf32>,
    %c0_131 = arith.constant 0 : index
    %c1_132 = arith.constant 1 : index
    %c2_133 = arith.constant 2 : index
    %c0_134 = arith.constant 0 : index
    %54 = vector.load %arg12[%c0_131, %c1_132, %c2_133, %c0_134] : memref<2x10x10x32xf32, #tpu.memory_space<vmem>>, vector<2x8x8x32xf32>
    %c0_135 = arith.constant 0 : index
    %c0_136 = arith.constant 0 : index
    %c0_137 = arith.constant 0 : index
    %c160 = arith.constant 160 : index
    %55 = vector.load %arg13[%c0_135, %c0_136, %c0_137, %c160] : memref<2x8x8x288xf32, #tpu.memory_space<vmem>>, vector<2x8x8x32xf32>
    tpu.vector_store %arg13[%c0_135, %c0_136, %c0_137, %c160], %54 {strides = array<i32>} : memref<2x8x8x288xf32, #tpu.memory_space<vmem>>, vector<2x8x8x32xf32>,
    %c0_138 = arith.constant 0 : index
    %c2_139 = arith.constant 2 : index
    %c0_140 = arith.constant 0 : index
    %c0_141 = arith.constant 0 : index
    %56 = vector.load %arg12[%c0_138, %c2_139, %c0_140, %c0_141] : memref<2x10x10x32xf32, #tpu.memory_space<vmem>>, vector<2x8x8x32xf32>
    %c0_142 = arith.constant 0 : index
    %c0_143 = arith.constant 0 : index
    %c0_144 = arith.constant 0 : index
    %c192 = arith.constant 192 : index
    %57 = vector.load %arg13[%c0_142, %c0_143, %c0_144, %c192] : memref<2x8x8x288xf32, #tpu.memory_space<vmem>>, vector<2x8x8x32xf32>
    tpu.vector_store %arg13[%c0_142, %c0_143, %c0_144, %c192], %56 {strides = array<i32>} : memref<2x8x8x288xf32, #tpu.memory_space<vmem>>, vector<2x8x8x32xf32>,
    %c0_145 = arith.constant 0 : index
    %c2_146 = arith.constant 2 : index
    %c1_147 = arith.constant 1 : index
    %c0_148 = arith.constant 0 : index
    %58 = vector.load %arg12[%c0_145, %c2_146, %c1_147, %c0_148] : memref<2x10x10x32xf32, #tpu.memory_space<vmem>>, vector<2x8x8x32xf32>
    %c0_149 = arith.constant 0 : index
    %c0_150 = arith.constant 0 : index
    %c0_151 = arith.constant 0 : index
    %c224 = arith.constant 224 : index
    %59 = vector.load %arg13[%c0_149, %c0_150, %c0_151, %c224] : memref<2x8x8x288xf32, #tpu.memory_space<vmem>>, vector<2x8x8x32xf32>
    tpu.vector_store %arg13[%c0_149, %c0_150, %c0_151, %c224], %58 {strides = array<i32>} : memref<2x8x8x288xf32, #tpu.memory_space<vmem>>, vector<2x8x8x32xf32>,
    %c0_152 = arith.constant 0 : index
    %c2_153 = arith.constant 2 : index
    %c2_154 = arith.constant 2 : index
    %c0_155 = arith.constant 0 : index
    %60 = vector.load %arg12[%c0_152, %c2_153, %c2_154, %c0_155] : memref<2x10x10x32xf32, #tpu.memory_space<vmem>>, vector<2x8x8x32xf32>
    %c0_156 = arith.constant 0 : index
    %c0_157 = arith.constant 0 : index
    %c0_158 = arith.constant 0 : index
    %c256 = arith.constant 256 : index
    %61 = vector.load %arg13[%c0_156, %c0_157, %c0_158, %c256] : memref<2x8x8x288xf32, #tpu.memory_space<vmem>>, vector<2x8x8x32xf32>
    tpu.vector_store %arg13[%c0_156, %c0_157, %c0_158, %c256], %60 {strides = array<i32>} : memref<2x8x8x288xf32, #tpu.memory_space<vmem>>, vector<2x8x8x32xf32>,
    %c0_159 = arith.constant 0 : index
    %c0_160 = arith.constant 0 : index
    %c0_161 = arith.constant 0 : index
    %c0_162 = arith.constant 0 : index
    %62 = vector.load %arg13[%c0_159, %c0_160, %c0_161, %c0_162] : memref<2x8x8x288xf32, #tpu.memory_space<vmem>>, vector<2x8x8x288xf32>
    %63 = vector.shape_cast %62 : vector<2x8x8x288xf32> to vector<128x288xf32>
    %64 = arith.truncf %63 : vector<128x288xf32> to vector<128x288xbf16>
    %c0_163 = arith.constant 0 : index
    %c0_164 = arith.constant 0 : index
    %65 = vector.load %arg5[%c0_163, %c0_164] : memref<288x64xf32, #tpu.memory_space<vmem>>, vector<288x64xf32>
    %66 = arith.truncf %65 : vector<288x64xf32> to vector<288x64xbf16>
    %cst_165 = arith.constant dense<0.000000e+00> : vector<128x64xf32>
    %67 = tpu.matmul %64, %66, %cst_165 {dimension_numbers = #tpu.dot_dimension_numbers<[1], [0], [0], [1], [0, 0, 1, 1], [], []>} : vector<128x288xbf16>, vector<288x64xbf16>, vector<128x64xf32> -> vector<128x64xf32>
    %c0_166 = arith.constant 0 : index
    %c0_167 = arith.constant 0 : index
    %68 = vector.load %arg6[%c0_166, %c0_167] : memref<1x64xf32, #tpu.memory_space<vmem>>, vector<1x64xf32>
    %69 = vector.broadcast %68 : vector<1x64xf32> to vector<128x64xf32>
    %70 = arith.addf %67, %69 : vector<128x64xf32>
    %cst_168 = arith.constant 0.000000e+00 : f32
    %71 = vector.broadcast %cst_168 : f32 to vector<128x64xf32>
    %72 = arith.maximumf %70, %71 : vector<128x64xf32>
    %73 = vector.shape_cast %72 : vector<128x64xf32> to vector<2x64x64xf32>
    %c0_169 = arith.constant 0 : index
    %c0_170 = arith.constant 0 : index
    %c0_171 = arith.constant 0 : index
    %74 = vector.load %arg14[%c0_169, %c0_170, %c0_171] : memref<2x64x64xf32, #tpu.memory_space<vmem>>, vector<2x64x64xf32>
    tpu.vector_store %arg14[%c0_169, %c0_170, %c0_171], %73 {strides = array<i32>} : memref<2x64x64xf32, #tpu.memory_space<vmem>>, vector<2x64x64xf32>,
    %c0_172 = arith.constant 0 : index
    %c0_173 = arith.constant 0 : index
    %c0_174 = arith.constant 0 : index
    %75 = vector.load %arg14[%c0_172, %c0_173, %c0_174] : memref<2x64x64xf32, #tpu.memory_space<vmem>>, vector<2x1x64xf32>
    %76 = vector.shape_cast %75 : vector<2x1x64xf32> to vector<2x64xf32>
    %c0_175 = arith.constant 0 : index
    %c0_176 = arith.constant 0 : index
    %77 = vector.load %arg15[%c0_175, %c0_176] : memref<2x4096xf32, #tpu.memory_space<vmem>>, vector<2x64xf32>
    tpu.vector_store %arg15[%c0_175, %c0_176], %76 {strides = array<i32>} : memref<2x4096xf32, #tpu.memory_space<vmem>>, vector<2x64xf32>,
    %c0_177 = arith.constant 0 : index
    %c1_178 = arith.constant 1 : index
    %c0_179 = arith.constant 0 : index
    %78 = vector.load %arg14[%c0_177, %c1_178, %c0_179] : memref<2x64x64xf32, #tpu.memory_space<vmem>>, vector<2x1x64xf32>
    %79 = vector.shape_cast %78 : vector<2x1x64xf32> to vector<2x64xf32>
    %c0_180 = arith.constant 0 : index
    %c64_181 = arith.constant 64 : index
    %80 = vector.load %arg15[%c0_180, %c64_181] : memref<2x4096xf32, #tpu.memory_space<vmem>>, vector<2x64xf32>
    tpu.vector_store %arg15[%c0_180, %c64_181], %79 {strides = array<i32>} : memref<2x4096xf32, #tpu.memory_space<vmem>>, vector<2x64xf32>,
    %c0_182 = arith.constant 0 : index
    %c2_183 = arith.constant 2 : index
    %c0_184 = arith.constant 0 : index
    %81 = vector.load %arg14[%c0_182, %c2_183, %c0_184] : memref<2x64x64xf32, #tpu.memory_space<vmem>>, vector<2x1x64xf32>
    %82 = vector.shape_cast %81 : vector<2x1x64xf32> to vector<2x64xf32>
    %c0_185 = arith.constant 0 : index
    %c128_186 = arith.constant 128 : index
    %83 = vector.load %arg15[%c0_185, %c128_186] : memref<2x4096xf32, #tpu.memory_space<vmem>>, vector<2x64xf32>
    tpu.vector_store %arg15[%c0_185, %c128_186], %82 {strides = array<i32>} : memref<2x4096xf32, #tpu.memory_space<vmem>>, vector<2x64xf32>,
    %c0_187 = arith.constant 0 : index
    %c3 = arith.constant 3 : index
    %c0_188 = arith.constant 0 : index
    %84 = vector.load %arg14[%c0_187, %c3, %c0_188] : memref<2x64x64xf32, #tpu.memory_space<vmem>>, vector<2x1x64xf32>
    %85 = vector.shape_cast %84 : vector<2x1x64xf32> to vector<2x64xf32>
    %c0_189 = arith.constant 0 : index
    %c192_190 = arith.constant 192 : index
    %86 = vector.load %arg15[%c0_189, %c192_190] : memref<2x4096xf32, #tpu.memory_space<vmem>>, vector<2x64xf32>
    tpu.vector_store %arg15[%c0_189, %c192_190], %85 {strides = array<i32>} : memref<2x4096xf32, #tpu.memory_space<vmem>>, vector<2x64xf32>,
    %c0_191 = arith.constant 0 : index
    %c4_192 = arith.constant 4 : index
    %c0_193 = arith.constant 0 : index
    %87 = vector.load %arg14[%c0_191, %c4_192, %c0_193] : memref<2x64x64xf32, #tpu.memory_space<vmem>>, vector<2x1x64xf32>
    %88 = vector.shape_cast %87 : vector<2x1x64xf32> to vector<2x64xf32>
    %c0_194 = arith.constant 0 : index
    %c256_195 = arith.constant 256 : index
    %89 = vector.load %arg15[%c0_194, %c256_195] : memref<2x4096xf32, #tpu.memory_space<vmem>>, vector<2x64xf32>
    tpu.vector_store %arg15[%c0_194, %c256_195], %88 {strides = array<i32>} : memref<2x4096xf32, #tpu.memory_space<vmem>>, vector<2x64xf32>,
    %c0_196 = arith.constant 0 : index
    %c5 = arith.constant 5 : index
    %c0_197 = arith.constant 0 : index
    %90 = vector.load %arg14[%c0_196, %c5, %c0_197] : memref<2x64x64xf32, #tpu.memory_space<vmem>>, vector<2x1x64xf32>
    %91 = vector.shape_cast %90 : vector<2x1x64xf32> to vector<2x64xf32>
    %c0_198 = arith.constant 0 : index
    %c320 = arith.constant 320 : index
    %92 = vector.load %arg15[%c0_198, %c320] : memref<2x4096xf32, #tpu.memory_space<vmem>>, vector<2x64xf32>
    tpu.vector_store %arg15[%c0_198, %c320], %91 {strides = array<i32>} : memref<2x4096xf32, #tpu.memory_space<vmem>>, vector<2x64xf32>,
    %c0_199 = arith.constant 0 : index
    %c6 = arith.constant 6 : index
    %c0_200 = arith.constant 0 : index
    %93 = vector.load %arg14[%c0_199, %c6, %c0_200] : memref<2x64x64xf32, #tpu.memory_space<vmem>>, vector<2x1x64xf32>
    %94 = vector.shape_cast %93 : vector<2x1x64xf32> to vector<2x64xf32>
    %c0_201 = arith.constant 0 : index
    %c384 = arith.constant 384 : index
    %95 = vector.load %arg15[%c0_201, %c384] : memref<2x4096xf32, #tpu.memory_space<vmem>>, vector<2x64xf32>
    tpu.vector_store %arg15[%c0_201, %c384], %94 {strides = array<i32>} : memref<2x4096xf32, #tpu.memory_space<vmem>>, vector<2x64xf32>,
    %c0_202 = arith.constant 0 : index
    %c7 = arith.constant 7 : index
    %c0_203 = arith.constant 0 : index
    %96 = vector.load %arg14[%c0_202, %c7, %c0_203] : memref<2x64x64xf32, #tpu.memory_space<vmem>>, vector<2x1x64xf32>
    %97 = vector.shape_cast %96 : vector<2x1x64xf32> to vector<2x64xf32>
    %c0_204 = arith.constant 0 : index
    %c448 = arith.constant 448 : index
    %98 = vector.load %arg15[%c0_204, %c448] : memref<2x4096xf32, #tpu.memory_space<vmem>>, vector<2x64xf32>
    tpu.vector_store %arg15[%c0_204, %c448], %97 {strides = array<i32>} : memref<2x4096xf32, #tpu.memory_space<vmem>>, vector<2x64xf32>,
    %c0_205 = arith.constant 0 : index
    %c8_206 = arith.constant 8 : index
    %c0_207 = arith.constant 0 : index
    %99 = vector.load %arg14[%c0_205, %c8_206, %c0_207] : memref<2x64x64xf32, #tpu.memory_space<vmem>>, vector<2x1x64xf32>
    %100 = vector.shape_cast %99 : vector<2x1x64xf32> to vector<2x64xf32>
    %c0_208 = arith.constant 0 : index
    %c512 = arith.constant 512 : index
    %101 = vector.load %arg15[%c0_208, %c512] : memref<2x4096xf32, #tpu.memory_space<vmem>>, vector<2x64xf32>
    tpu.vector_store %arg15[%c0_208, %c512], %100 {strides = array<i32>} : memref<2x4096xf32, #tpu.memory_space<vmem>>, vector<2x64xf32>,
    %c0_209 = arith.constant 0 : index
    %c9 = arith.constant 9 : index
    %c0_210 = arith.constant 0 : index
    %102 = vector.load %arg14[%c0_209, %c9, %c0_210] : memref<2x64x64xf32, #tpu.memory_space<vmem>>, vector<2x1x64xf32>
    %103 = vector.shape_cast %102 : vector<2x1x64xf32> to vector<2x64xf32>
    %c0_211 = arith.constant 0 : index
    %c576 = arith.constant 576 : index
    %104 = vector.load %arg15[%c0_211, %c576] : memref<2x4096xf32, #tpu.memory_space<vmem>>, vector<2x64xf32>
    tpu.vector_store %arg15[%c0_211, %c576], %103 {strides = array<i32>} : memref<2x4096xf32, #tpu.memory_space<vmem>>, vector<2x64xf32>,
    %c0_212 = arith.constant 0 : index
    %c10 = arith.constant 10 : index
    %c0_213 = arith.constant 0 : index
    %105 = vector.load %arg14[%c0_212, %c10, %c0_213] : memref<2x64x64xf32, #tpu.memory_space<vmem>>, vector<2x1x64xf32>
    %106 = vector.shape_cast %105 : vector<2x1x64xf32> to vector<2x64xf32>
    %c0_214 = arith.constant 0 : index
    %c640 = arith.constant 640 : index
    %107 = vector.load %arg15[%c0_214, %c640] : memref<2x4096xf32, #tpu.memory_space<vmem>>, vector<2x64xf32>
    tpu.vector_store %arg15[%c0_214, %c640], %106 {strides = array<i32>} : memref<2x4096xf32, #tpu.memory_space<vmem>>, vector<2x64xf32>,
    %c0_215 = arith.constant 0 : index
    %c11 = arith.constant 11 : index
    %c0_216 = arith.constant 0 : index
    %108 = vector.load %arg14[%c0_215, %c11, %c0_216] : memref<2x64x64xf32, #tpu.memory_space<vmem>>, vector<2x1x64xf32>
    %109 = vector.shape_cast %108 : vector<2x1x64xf32> to vector<2x64xf32>
    %c0_217 = arith.constant 0 : index
    %c704 = arith.constant 704 : index
    %110 = vector.load %arg15[%c0_217, %c704] : memref<2x4096xf32, #tpu.memory_space<vmem>>, vector<2x64xf32>
    tpu.vector_store %arg15[%c0_217, %c704], %109 {strides = array<i32>} : memref<2x4096xf32, #tpu.memory_space<vmem>>, vector<2x64xf32>,
    %c0_218 = arith.constant 0 : index
    %c12_219 = arith.constant 12 : index
    %c0_220 = arith.constant 0 : index
    %111 = vector.load %arg14[%c0_218, %c12_219, %c0_220] : memref<2x64x64xf32, #tpu.memory_space<vmem>>, vector<2x1x64xf32>
    %112 = vector.shape_cast %111 : vector<2x1x64xf32> to vector<2x64xf32>
    %c0_221 = arith.constant 0 : index
    %c768 = arith.constant 768 : index
    %113 = vector.load %arg15[%c0_221, %c768] : memref<2x4096xf32, #tpu.memory_space<vmem>>, vector<2x64xf32>
    tpu.vector_store %arg15[%c0_221, %c768], %112 {strides = array<i32>} : memref<2x4096xf32, #tpu.memory_space<vmem>>, vector<2x64xf32>,
    %c0_222 = arith.constant 0 : index
    %c13 = arith.constant 13 : index
    %c0_223 = arith.constant 0 : index
    %114 = vector.load %arg14[%c0_222, %c13, %c0_223] : memref<2x64x64xf32, #tpu.memory_space<vmem>>, vector<2x1x64xf32>
    %115 = vector.shape_cast %114 : vector<2x1x64xf32> to vector<2x64xf32>
    %c0_224 = arith.constant 0 : index
    %c832 = arith.constant 832 : index
    %116 = vector.load %arg15[%c0_224, %c832] : memref<2x4096xf32, #tpu.memory_space<vmem>>, vector<2x64xf32>
    tpu.vector_store %arg15[%c0_224, %c832], %115 {strides = array<i32>} : memref<2x4096xf32, #tpu.memory_space<vmem>>, vector<2x64xf32>,
    %c0_225 = arith.constant 0 : index
    %c14 = arith.constant 14 : index
    %c0_226 = arith.constant 0 : index
    %117 = vector.load %arg14[%c0_225, %c14, %c0_226] : memref<2x64x64xf32, #tpu.memory_space<vmem>>, vector<2x1x64xf32>
    %118 = vector.shape_cast %117 : vector<2x1x64xf32> to vector<2x64xf32>
    %c0_227 = arith.constant 0 : index
    %c896 = arith.constant 896 : index
    %119 = vector.load %arg15[%c0_227, %c896] : memref<2x4096xf32, #tpu.memory_space<vmem>>, vector<2x64xf32>
    tpu.vector_store %arg15[%c0_227, %c896], %118 {strides = array<i32>} : memref<2x4096xf32, #tpu.memory_space<vmem>>, vector<2x64xf32>,
    %c0_228 = arith.constant 0 : index
    %c15 = arith.constant 15 : index
    %c0_229 = arith.constant 0 : index
    %120 = vector.load %arg14[%c0_228, %c15, %c0_229] : memref<2x64x64xf32, #tpu.memory_space<vmem>>, vector<2x1x64xf32>
    %121 = vector.shape_cast %120 : vector<2x1x64xf32> to vector<2x64xf32>
    %c0_230 = arith.constant 0 : index
    %c960 = arith.constant 960 : index
    %122 = vector.load %arg15[%c0_230, %c960] : memref<2x4096xf32, #tpu.memory_space<vmem>>, vector<2x64xf32>
    tpu.vector_store %arg15[%c0_230, %c960], %121 {strides = array<i32>} : memref<2x4096xf32, #tpu.memory_space<vmem>>, vector<2x64xf32>,
    %c0_231 = arith.constant 0 : index
    %c16_232 = arith.constant 16 : index
    %c0_233 = arith.constant 0 : index
    %123 = vector.load %arg14[%c0_231, %c16_232, %c0_233] : memref<2x64x64xf32, #tpu.memory_space<vmem>>, vector<2x1x64xf32>
    %124 = vector.shape_cast %123 : vector<2x1x64xf32> to vector<2x64xf32>
    %c0_234 = arith.constant 0 : index
    %c1024 = arith.constant 1024 : index
    %125 = vector.load %arg15[%c0_234, %c1024] : memref<2x4096xf32, #tpu.memory_space<vmem>>, vector<2x64xf32>
    tpu.vector_store %arg15[%c0_234, %c1024], %124 {strides = array<i32>} : memref<2x4096xf32, #tpu.memory_space<vmem>>, vector<2x64xf32>,
    %c0_235 = arith.constant 0 : index
    %c17 = arith.constant 17 : index
    %c0_236 = arith.constant 0 : index
    %126 = vector.load %arg14[%c0_235, %c17, %c0_236] : memref<2x64x64xf32, #tpu.memory_space<vmem>>, vector<2x1x64xf32>
    %127 = vector.shape_cast %126 : vector<2x1x64xf32> to vector<2x64xf32>
    %c0_237 = arith.constant 0 : index
    %c1088 = arith.constant 1088 : index
    %128 = vector.load %arg15[%c0_237, %c1088] : memref<2x4096xf32, #tpu.memory_space<vmem>>, vector<2x64xf32>
    tpu.vector_store %arg15[%c0_237, %c1088], %127 {strides = array<i32>} : memref<2x4096xf32, #tpu.memory_space<vmem>>, vector<2x64xf32>,
    %c0_238 = arith.constant 0 : index
    %c18 = arith.constant 18 : index
    %c0_239 = arith.constant 0 : index
    %129 = vector.load %arg14[%c0_238, %c18, %c0_239] : memref<2x64x64xf32, #tpu.memory_space<vmem>>, vector<2x1x64xf32>
    %130 = vector.shape_cast %129 : vector<2x1x64xf32> to vector<2x64xf32>
    %c0_240 = arith.constant 0 : index
    %c1152 = arith.constant 1152 : index
    %131 = vector.load %arg15[%c0_240, %c1152] : memref<2x4096xf32, #tpu.memory_space<vmem>>, vector<2x64xf32>
    tpu.vector_store %arg15[%c0_240, %c1152], %130 {strides = array<i32>} : memref<2x4096xf32, #tpu.memory_space<vmem>>, vector<2x64xf32>,
    %c0_241 = arith.constant 0 : index
    %c19 = arith.constant 19 : index
    %c0_242 = arith.constant 0 : index
    %132 = vector.load %arg14[%c0_241, %c19, %c0_242] : memref<2x64x64xf32, #tpu.memory_space<vmem>>, vector<2x1x64xf32>
    %133 = vector.shape_cast %132 : vector<2x1x64xf32> to vector<2x64xf32>
    %c0_243 = arith.constant 0 : index
    %c1216 = arith.constant 1216 : index
    %134 = vector.load %arg15[%c0_243, %c1216] : memref<2x4096xf32, #tpu.memory_space<vmem>>, vector<2x64xf32>
    tpu.vector_store %arg15[%c0_243, %c1216], %133 {strides = array<i32>} : memref<2x4096xf32, #tpu.memory_space<vmem>>, vector<2x64xf32>,
    %c0_244 = arith.constant 0 : index
    %c20_245 = arith.constant 20 : index
    %c0_246 = arith.constant 0 : index
    %135 = vector.load %arg14[%c0_244, %c20_245, %c0_246] : memref<2x64x64xf32, #tpu.memory_space<vmem>>, vector<2x1x64xf32>
    %136 = vector.shape_cast %135 : vector<2x1x64xf32> to vector<2x64xf32>
    %c0_247 = arith.constant 0 : index
    %c1280 = arith.constant 1280 : index
    %137 = vector.load %arg15[%c0_247, %c1280] : memref<2x4096xf32, #tpu.memory_space<vmem>>, vector<2x64xf32>
    tpu.vector_store %arg15[%c0_247, %c1280], %136 {strides = array<i32>} : memref<2x4096xf32, #tpu.memory_space<vmem>>, vector<2x64xf32>,
    %c0_248 = arith.constant 0 : index
    %c21 = arith.constant 21 : index
    %c0_249 = arith.constant 0 : index
    %138 = vector.load %arg14[%c0_248, %c21, %c0_249] : memref<2x64x64xf32, #tpu.memory_space<vmem>>, vector<2x1x64xf32>
    %139 = vector.shape_cast %138 : vector<2x1x64xf32> to vector<2x64xf32>
    %c0_250 = arith.constant 0 : index
    %c1344 = arith.constant 1344 : index
    %140 = vector.load %arg15[%c0_250, %c1344] : memref<2x4096xf32, #tpu.memory_space<vmem>>, vector<2x64xf32>
    tpu.vector_store %arg15[%c0_250, %c1344], %139 {strides = array<i32>} : memref<2x4096xf32, #tpu.memory_space<vmem>>, vector<2x64xf32>,
    %c0_251 = arith.constant 0 : index
    %c22 = arith.constant 22 : index
    %c0_252 = arith.constant 0 : index
    %141 = vector.load %arg14[%c0_251, %c22, %c0_252] : memref<2x64x64xf32, #tpu.memory_space<vmem>>, vector<2x1x64xf32>
    %142 = vector.shape_cast %141 : vector<2x1x64xf32> to vector<2x64xf32>
    %c0_253 = arith.constant 0 : index
    %c1408 = arith.constant 1408 : index
    %143 = vector.load %arg15[%c0_253, %c1408] : memref<2x4096xf32, #tpu.memory_space<vmem>>, vector<2x64xf32>
    tpu.vector_store %arg15[%c0_253, %c1408], %142 {strides = array<i32>} : memref<2x4096xf32, #tpu.memory_space<vmem>>, vector<2x64xf32>,
    %c0_254 = arith.constant 0 : index
    %c23 = arith.constant 23 : index
    %c0_255 = arith.constant 0 : index
    %144 = vector.load %arg14[%c0_254, %c23, %c0_255] : memref<2x64x64xf32, #tpu.memory_space<vmem>>, vector<2x1x64xf32>
    %145 = vector.shape_cast %144 : vector<2x1x64xf32> to vector<2x64xf32>
    %c0_256 = arith.constant 0 : index
    %c1472 = arith.constant 1472 : index
    %146 = vector.load %arg15[%c0_256, %c1472] : memref<2x4096xf32, #tpu.memory_space<vmem>>, vector<2x64xf32>
    tpu.vector_store %arg15[%c0_256, %c1472], %145 {strides = array<i32>} : memref<2x4096xf32, #tpu.memory_space<vmem>>, vector<2x64xf32>,
    %c0_257 = arith.constant 0 : index
    %c24_258 = arith.constant 24 : index
    %c0_259 = arith.constant 0 : index
    %147 = vector.load %arg14[%c0_257, %c24_258, %c0_259] : memref<2x64x64xf32, #tpu.memory_space<vmem>>, vector<2x1x64xf32>
    %148 = vector.shape_cast %147 : vector<2x1x64xf32> to vector<2x64xf32>
    %c0_260 = arith.constant 0 : index
    %c1536 = arith.constant 1536 : index
    %149 = vector.load %arg15[%c0_260, %c1536] : memref<2x4096xf32, #tpu.memory_space<vmem>>, vector<2x64xf32>
    tpu.vector_store %arg15[%c0_260, %c1536], %148 {strides = array<i32>} : memref<2x4096xf32, #tpu.memory_space<vmem>>, vector<2x64xf32>,
    %c0_261 = arith.constant 0 : index
    %c25 = arith.constant 25 : index
    %c0_262 = arith.constant 0 : index
    %150 = vector.load %arg14[%c0_261, %c25, %c0_262] : memref<2x64x64xf32, #tpu.memory_space<vmem>>, vector<2x1x64xf32>
    %151 = vector.shape_cast %150 : vector<2x1x64xf32> to vector<2x64xf32>
    %c0_263 = arith.constant 0 : index
    %c1600 = arith.constant 1600 : index
    %152 = vector.load %arg15[%c0_263, %c1600] : memref<2x4096xf32, #tpu.memory_space<vmem>>, vector<2x64xf32>
    tpu.vector_store %arg15[%c0_263, %c1600], %151 {strides = array<i32>} : memref<2x4096xf32, #tpu.memory_space<vmem>>, vector<2x64xf32>,
    %c0_264 = arith.constant 0 : index
    %c26 = arith.constant 26 : index
    %c0_265 = arith.constant 0 : index
    %153 = vector.load %arg14[%c0_264, %c26, %c0_265] : memref<2x64x64xf32, #tpu.memory_space<vmem>>, vector<2x1x64xf32>
    %154 = vector.shape_cast %153 : vector<2x1x64xf32> to vector<2x64xf32>
    %c0_266 = arith.constant 0 : index
    %c1664 = arith.constant 1664 : index
    %155 = vector.load %arg15[%c0_266, %c1664] : memref<2x4096xf32, #tpu.memory_space<vmem>>, vector<2x64xf32>
    tpu.vector_store %arg15[%c0_266, %c1664], %154 {strides = array<i32>} : memref<2x4096xf32, #tpu.memory_space<vmem>>, vector<2x64xf32>,
    %c0_267 = arith.constant 0 : index
    %c27 = arith.constant 27 : index
    %c0_268 = arith.constant 0 : index
    %156 = vector.load %arg14[%c0_267, %c27, %c0_268] : memref<2x64x64xf32, #tpu.memory_space<vmem>>, vector<2x1x64xf32>
    %157 = vector.shape_cast %156 : vector<2x1x64xf32> to vector<2x64xf32>
    %c0_269 = arith.constant 0 : index
    %c1728 = arith.constant 1728 : index
    %158 = vector.load %arg15[%c0_269, %c1728] : memref<2x4096xf32, #tpu.memory_space<vmem>>, vector<2x64xf32>
    tpu.vector_store %arg15[%c0_269, %c1728], %157 {strides = array<i32>} : memref<2x4096xf32, #tpu.memory_space<vmem>>, vector<2x64xf32>,
    %c0_270 = arith.constant 0 : index
    %c28_271 = arith.constant 28 : index
    %c0_272 = arith.constant 0 : index
    %159 = vector.load %arg14[%c0_270, %c28_271, %c0_272] : memref<2x64x64xf32, #tpu.memory_space<vmem>>, vector<2x1x64xf32>
    %160 = vector.shape_cast %159 : vector<2x1x64xf32> to vector<2x64xf32>
    %c0_273 = arith.constant 0 : index
    %c1792 = arith.constant 1792 : index
    %161 = vector.load %arg15[%c0_273, %c1792] : memref<2x4096xf32, #tpu.memory_space<vmem>>, vector<2x64xf32>
    tpu.vector_store %arg15[%c0_273, %c1792], %160 {strides = array<i32>} : memref<2x4096xf32, #tpu.memory_space<vmem>>, vector<2x64xf32>,
    %c0_274 = arith.constant 0 : index
    %c29 = arith.constant 29 : index
    %c0_275 = arith.constant 0 : index
    %162 = vector.load %arg14[%c0_274, %c29, %c0_275] : memref<2x64x64xf32, #tpu.memory_space<vmem>>, vector<2x1x64xf32>
    %163 = vector.shape_cast %162 : vector<2x1x64xf32> to vector<2x64xf32>
    %c0_276 = arith.constant 0 : index
    %c1856 = arith.constant 1856 : index
    %164 = vector.load %arg15[%c0_276, %c1856] : memref<2x4096xf32, #tpu.memory_space<vmem>>, vector<2x64xf32>
    tpu.vector_store %arg15[%c0_276, %c1856], %163 {strides = array<i32>} : memref<2x4096xf32, #tpu.memory_space<vmem>>, vector<2x64xf32>,
    %c0_277 = arith.constant 0 : index
    %c30 = arith.constant 30 : index
    %c0_278 = arith.constant 0 : index
    %165 = vector.load %arg14[%c0_277, %c30, %c0_278] : memref<2x64x64xf32, #tpu.memory_space<vmem>>, vector<2x1x64xf32>
    %166 = vector.shape_cast %165 : vector<2x1x64xf32> to vector<2x64xf32>
    %c0_279 = arith.constant 0 : index
    %c1920 = arith.constant 1920 : index
    %167 = vector.load %arg15[%c0_279, %c1920] : memref<2x4096xf32, #tpu.memory_space<vmem>>, vector<2x64xf32>
    tpu.vector_store %arg15[%c0_279, %c1920], %166 {strides = array<i32>} : memref<2x4096xf32, #tpu.memory_space<vmem>>, vector<2x64xf32>,
    %c0_280 = arith.constant 0 : index
    %c31 = arith.constant 31 : index
    %c0_281 = arith.constant 0 : index
    %168 = vector.load %arg14[%c0_280, %c31, %c0_281] : memref<2x64x64xf32, #tpu.memory_space<vmem>>, vector<2x1x64xf32>
    %169 = vector.shape_cast %168 : vector<2x1x64xf32> to vector<2x64xf32>
    %c0_282 = arith.constant 0 : index
    %c1984 = arith.constant 1984 : index
    %170 = vector.load %arg15[%c0_282, %c1984] : memref<2x4096xf32, #tpu.memory_space<vmem>>, vector<2x64xf32>
    tpu.vector_store %arg15[%c0_282, %c1984], %169 {strides = array<i32>} : memref<2x4096xf32, #tpu.memory_space<vmem>>, vector<2x64xf32>,
    %c0_283 = arith.constant 0 : index
    %c32_284 = arith.constant 32 : index
    %c0_285 = arith.constant 0 : index
    %171 = vector.load %arg14[%c0_283, %c32_284, %c0_285] : memref<2x64x64xf32, #tpu.memory_space<vmem>>, vector<2x1x64xf32>
    %172 = vector.shape_cast %171 : vector<2x1x64xf32> to vector<2x64xf32>
    %c0_286 = arith.constant 0 : index
    %c2048 = arith.constant 2048 : index
    %173 = vector.load %arg15[%c0_286, %c2048] : memref<2x4096xf32, #tpu.memory_space<vmem>>, vector<2x64xf32>
    tpu.vector_store %arg15[%c0_286, %c2048], %172 {strides = array<i32>} : memref<2x4096xf32, #tpu.memory_space<vmem>>, vector<2x64xf32>,
    %c0_287 = arith.constant 0 : index
    %c33 = arith.constant 33 : index
    %c0_288 = arith.constant 0 : index
    %174 = vector.load %arg14[%c0_287, %c33, %c0_288] : memref<2x64x64xf32, #tpu.memory_space<vmem>>, vector<2x1x64xf32>
    %175 = vector.shape_cast %174 : vector<2x1x64xf32> to vector<2x64xf32>
    %c0_289 = arith.constant 0 : index
    %c2112 = arith.constant 2112 : index
    %176 = vector.load %arg15[%c0_289, %c2112] : memref<2x4096xf32, #tpu.memory_space<vmem>>, vector<2x64xf32>
    tpu.vector_store %arg15[%c0_289, %c2112], %175 {strides = array<i32>} : memref<2x4096xf32, #tpu.memory_space<vmem>>, vector<2x64xf32>,
    %c0_290 = arith.constant 0 : index
    %c34 = arith.constant 34 : index
    %c0_291 = arith.constant 0 : index
    %177 = vector.load %arg14[%c0_290, %c34, %c0_291] : memref<2x64x64xf32, #tpu.memory_space<vmem>>, vector<2x1x64xf32>
    %178 = vector.shape_cast %177 : vector<2x1x64xf32> to vector<2x64xf32>
    %c0_292 = arith.constant 0 : index
    %c2176 = arith.constant 2176 : index
    %179 = vector.load %arg15[%c0_292, %c2176] : memref<2x4096xf32, #tpu.memory_space<vmem>>, vector<2x64xf32>
    tpu.vector_store %arg15[%c0_292, %c2176], %178 {strides = array<i32>} : memref<2x4096xf32, #tpu.memory_space<vmem>>, vector<2x64xf32>,
    %c0_293 = arith.constant 0 : index
    %c35 = arith.constant 35 : index
    %c0_294 = arith.constant 0 : index
    %180 = vector.load %arg14[%c0_293, %c35, %c0_294] : memref<2x64x64xf32, #tpu.memory_space<vmem>>, vector<2x1x64xf32>
    %181 = vector.shape_cast %180 : vector<2x1x64xf32> to vector<2x64xf32>
    %c0_295 = arith.constant 0 : index
    %c2240 = arith.constant 2240 : index
    %182 = vector.load %arg15[%c0_295, %c2240] : memref<2x4096xf32, #tpu.memory_space<vmem>>, vector<2x64xf32>
    tpu.vector_store %arg15[%c0_295, %c2240], %181 {strides = array<i32>} : memref<2x4096xf32, #tpu.memory_space<vmem>>, vector<2x64xf32>,
    %c0_296 = arith.constant 0 : index
    %c36 = arith.constant 36 : index
    %c0_297 = arith.constant 0 : index
    %183 = vector.load %arg14[%c0_296, %c36, %c0_297] : memref<2x64x64xf32, #tpu.memory_space<vmem>>, vector<2x1x64xf32>
    %184 = vector.shape_cast %183 : vector<2x1x64xf32> to vector<2x64xf32>
    %c0_298 = arith.constant 0 : index
    %c2304 = arith.constant 2304 : index
    %185 = vector.load %arg15[%c0_298, %c2304] : memref<2x4096xf32, #tpu.memory_space<vmem>>, vector<2x64xf32>
    tpu.vector_store %arg15[%c0_298, %c2304], %184 {strides = array<i32>} : memref<2x4096xf32, #tpu.memory_space<vmem>>, vector<2x64xf32>,
    %c0_299 = arith.constant 0 : index
    %c37 = arith.constant 37 : index
    %c0_300 = arith.constant 0 : index
    %186 = vector.load %arg14[%c0_299, %c37, %c0_300] : memref<2x64x64xf32, #tpu.memory_space<vmem>>, vector<2x1x64xf32>
    %187 = vector.shape_cast %186 : vector<2x1x64xf32> to vector<2x64xf32>
    %c0_301 = arith.constant 0 : index
    %c2368 = arith.constant 2368 : index
    %188 = vector.load %arg15[%c0_301, %c2368] : memref<2x4096xf32, #tpu.memory_space<vmem>>, vector<2x64xf32>
    tpu.vector_store %arg15[%c0_301, %c2368], %187 {strides = array<i32>} : memref<2x4096xf32, #tpu.memory_space<vmem>>, vector<2x64xf32>,
    %c0_302 = arith.constant 0 : index
    %c38 = arith.constant 38 : index
    %c0_303 = arith.constant 0 : index
    %189 = vector.load %arg14[%c0_302, %c38, %c0_303] : memref<2x64x64xf32, #tpu.memory_space<vmem>>, vector<2x1x64xf32>
    %190 = vector.shape_cast %189 : vector<2x1x64xf32> to vector<2x64xf32>
    %c0_304 = arith.constant 0 : index
    %c2432 = arith.constant 2432 : index
    %191 = vector.load %arg15[%c0_304, %c2432] : memref<2x4096xf32, #tpu.memory_space<vmem>>, vector<2x64xf32>
    tpu.vector_store %arg15[%c0_304, %c2432], %190 {strides = array<i32>} : memref<2x4096xf32, #tpu.memory_space<vmem>>, vector<2x64xf32>,
    %c0_305 = arith.constant 0 : index
    %c39 = arith.constant 39 : index
    %c0_306 = arith.constant 0 : index
    %192 = vector.load %arg14[%c0_305, %c39, %c0_306] : memref<2x64x64xf32, #tpu.memory_space<vmem>>, vector<2x1x64xf32>
    %193 = vector.shape_cast %192 : vector<2x1x64xf32> to vector<2x64xf32>
    %c0_307 = arith.constant 0 : index
    %c2496 = arith.constant 2496 : index
    %194 = vector.load %arg15[%c0_307, %c2496] : memref<2x4096xf32, #tpu.memory_space<vmem>>, vector<2x64xf32>
    tpu.vector_store %arg15[%c0_307, %c2496], %193 {strides = array<i32>} : memref<2x4096xf32, #tpu.memory_space<vmem>>, vector<2x64xf32>,
    %c0_308 = arith.constant 0 : index
    %c40 = arith.constant 40 : index
    %c0_309 = arith.constant 0 : index
    %195 = vector.load %arg14[%c0_308, %c40, %c0_309] : memref<2x64x64xf32, #tpu.memory_space<vmem>>, vector<2x1x64xf32>
    %196 = vector.shape_cast %195 : vector<2x1x64xf32> to vector<2x64xf32>
    %c0_310 = arith.constant 0 : index
    %c2560 = arith.constant 2560 : index
    %197 = vector.load %arg15[%c0_310, %c2560] : memref<2x4096xf32, #tpu.memory_space<vmem>>, vector<2x64xf32>
    tpu.vector_store %arg15[%c0_310, %c2560], %196 {strides = array<i32>} : memref<2x4096xf32, #tpu.memory_space<vmem>>, vector<2x64xf32>,
    %c0_311 = arith.constant 0 : index
    %c41 = arith.constant 41 : index
    %c0_312 = arith.constant 0 : index
    %198 = vector.load %arg14[%c0_311, %c41, %c0_312] : memref<2x64x64xf32, #tpu.memory_space<vmem>>, vector<2x1x64xf32>
    %199 = vector.shape_cast %198 : vector<2x1x64xf32> to vector<2x64xf32>
    %c0_313 = arith.constant 0 : index
    %c2624 = arith.constant 2624 : index
    %200 = vector.load %arg15[%c0_313, %c2624] : memref<2x4096xf32, #tpu.memory_space<vmem>>, vector<2x64xf32>
    tpu.vector_store %arg15[%c0_313, %c2624], %199 {strides = array<i32>} : memref<2x4096xf32, #tpu.memory_space<vmem>>, vector<2x64xf32>,
    %c0_314 = arith.constant 0 : index
    %c42 = arith.constant 42 : index
    %c0_315 = arith.constant 0 : index
    %201 = vector.load %arg14[%c0_314, %c42, %c0_315] : memref<2x64x64xf32, #tpu.memory_space<vmem>>, vector<2x1x64xf32>
    %202 = vector.shape_cast %201 : vector<2x1x64xf32> to vector<2x64xf32>
    %c0_316 = arith.constant 0 : index
    %c2688 = arith.constant 2688 : index
    %203 = vector.load %arg15[%c0_316, %c2688] : memref<2x4096xf32, #tpu.memory_space<vmem>>, vector<2x64xf32>
    tpu.vector_store %arg15[%c0_316, %c2688], %202 {strides = array<i32>} : memref<2x4096xf32, #tpu.memory_space<vmem>>, vector<2x64xf32>,
    %c0_317 = arith.constant 0 : index
    %c43 = arith.constant 43 : index
    %c0_318 = arith.constant 0 : index
    %204 = vector.load %arg14[%c0_317, %c43, %c0_318] : memref<2x64x64xf32, #tpu.memory_space<vmem>>, vector<2x1x64xf32>
    %205 = vector.shape_cast %204 : vector<2x1x64xf32> to vector<2x64xf32>
    %c0_319 = arith.constant 0 : index
    %c2752 = arith.constant 2752 : index
    %206 = vector.load %arg15[%c0_319, %c2752] : memref<2x4096xf32, #tpu.memory_space<vmem>>, vector<2x64xf32>
    tpu.vector_store %arg15[%c0_319, %c2752], %205 {strides = array<i32>} : memref<2x4096xf32, #tpu.memory_space<vmem>>, vector<2x64xf32>,
    %c0_320 = arith.constant 0 : index
    %c44 = arith.constant 44 : index
    %c0_321 = arith.constant 0 : index
    %207 = vector.load %arg14[%c0_320, %c44, %c0_321] : memref<2x64x64xf32, #tpu.memory_space<vmem>>, vector<2x1x64xf32>
    %208 = vector.shape_cast %207 : vector<2x1x64xf32> to vector<2x64xf32>
    %c0_322 = arith.constant 0 : index
    %c2816 = arith.constant 2816 : index
    %209 = vector.load %arg15[%c0_322, %c2816] : memref<2x4096xf32, #tpu.memory_space<vmem>>, vector<2x64xf32>
    tpu.vector_store %arg15[%c0_322, %c2816], %208 {strides = array<i32>} : memref<2x4096xf32, #tpu.memory_space<vmem>>, vector<2x64xf32>,
    %c0_323 = arith.constant 0 : index
    %c45 = arith.constant 45 : index
    %c0_324 = arith.constant 0 : index
    %210 = vector.load %arg14[%c0_323, %c45, %c0_324] : memref<2x64x64xf32, #tpu.memory_space<vmem>>, vector<2x1x64xf32>
    %211 = vector.shape_cast %210 : vector<2x1x64xf32> to vector<2x64xf32>
    %c0_325 = arith.constant 0 : index
    %c2880 = arith.constant 2880 : index
    %212 = vector.load %arg15[%c0_325, %c2880] : memref<2x4096xf32, #tpu.memory_space<vmem>>, vector<2x64xf32>
    tpu.vector_store %arg15[%c0_325, %c2880], %211 {strides = array<i32>} : memref<2x4096xf32, #tpu.memory_space<vmem>>, vector<2x64xf32>,
    %c0_326 = arith.constant 0 : index
    %c46 = arith.constant 46 : index
    %c0_327 = arith.constant 0 : index
    %213 = vector.load %arg14[%c0_326, %c46, %c0_327] : memref<2x64x64xf32, #tpu.memory_space<vmem>>, vector<2x1x64xf32>
    %214 = vector.shape_cast %213 : vector<2x1x64xf32> to vector<2x64xf32>
    %c0_328 = arith.constant 0 : index
    %c2944 = arith.constant 2944 : index
    %215 = vector.load %arg15[%c0_328, %c2944] : memref<2x4096xf32, #tpu.memory_space<vmem>>, vector<2x64xf32>
    tpu.vector_store %arg15[%c0_328, %c2944], %214 {strides = array<i32>} : memref<2x4096xf32, #tpu.memory_space<vmem>>, vector<2x64xf32>,
    %c0_329 = arith.constant 0 : index
    %c47 = arith.constant 47 : index
    %c0_330 = arith.constant 0 : index
    %216 = vector.load %arg14[%c0_329, %c47, %c0_330] : memref<2x64x64xf32, #tpu.memory_space<vmem>>, vector<2x1x64xf32>
    %217 = vector.shape_cast %216 : vector<2x1x64xf32> to vector<2x64xf32>
    %c0_331 = arith.constant 0 : index
    %c3008 = arith.constant 3008 : index
    %218 = vector.load %arg15[%c0_331, %c3008] : memref<2x4096xf32, #tpu.memory_space<vmem>>, vector<2x64xf32>
    tpu.vector_store %arg15[%c0_331, %c3008], %217 {strides = array<i32>} : memref<2x4096xf32, #tpu.memory_space<vmem>>, vector<2x64xf32>,
    %c0_332 = arith.constant 0 : index
    %c48 = arith.constant 48 : index
    %c0_333 = arith.constant 0 : index
    %219 = vector.load %arg14[%c0_332, %c48, %c0_333] : memref<2x64x64xf32, #tpu.memory_space<vmem>>, vector<2x1x64xf32>
    %220 = vector.shape_cast %219 : vector<2x1x64xf32> to vector<2x64xf32>
    %c0_334 = arith.constant 0 : index
    %c3072 = arith.constant 3072 : index
    %221 = vector.load %arg15[%c0_334, %c3072] : memref<2x4096xf32, #tpu.memory_space<vmem>>, vector<2x64xf32>
    tpu.vector_store %arg15[%c0_334, %c3072], %220 {strides = array<i32>} : memref<2x4096xf32, #tpu.memory_space<vmem>>, vector<2x64xf32>,
    %c0_335 = arith.constant 0 : index
    %c49 = arith.constant 49 : index
    %c0_336 = arith.constant 0 : index
    %222 = vector.load %arg14[%c0_335, %c49, %c0_336] : memref<2x64x64xf32, #tpu.memory_space<vmem>>, vector<2x1x64xf32>
    %223 = vector.shape_cast %222 : vector<2x1x64xf32> to vector<2x64xf32>
    %c0_337 = arith.constant 0 : index
    %c3136 = arith.constant 3136 : index
    %224 = vector.load %arg15[%c0_337, %c3136] : memref<2x4096xf32, #tpu.memory_space<vmem>>, vector<2x64xf32>
    tpu.vector_store %arg15[%c0_337, %c3136], %223 {strides = array<i32>} : memref<2x4096xf32, #tpu.memory_space<vmem>>, vector<2x64xf32>,
    %c0_338 = arith.constant 0 : index
    %c50 = arith.constant 50 : index
    %c0_339 = arith.constant 0 : index
    %225 = vector.load %arg14[%c0_338, %c50, %c0_339] : memref<2x64x64xf32, #tpu.memory_space<vmem>>, vector<2x1x64xf32>
    %226 = vector.shape_cast %225 : vector<2x1x64xf32> to vector<2x64xf32>
    %c0_340 = arith.constant 0 : index
    %c3200 = arith.constant 3200 : index
    %227 = vector.load %arg15[%c0_340, %c3200] : memref<2x4096xf32, #tpu.memory_space<vmem>>, vector<2x64xf32>
    tpu.vector_store %arg15[%c0_340, %c3200], %226 {strides = array<i32>} : memref<2x4096xf32, #tpu.memory_space<vmem>>, vector<2x64xf32>,
    %c0_341 = arith.constant 0 : index
    %c51 = arith.constant 51 : index
    %c0_342 = arith.constant 0 : index
    %228 = vector.load %arg14[%c0_341, %c51, %c0_342] : memref<2x64x64xf32, #tpu.memory_space<vmem>>, vector<2x1x64xf32>
    %229 = vector.shape_cast %228 : vector<2x1x64xf32> to vector<2x64xf32>
    %c0_343 = arith.constant 0 : index
    %c3264 = arith.constant 3264 : index
    %230 = vector.load %arg15[%c0_343, %c3264] : memref<2x4096xf32, #tpu.memory_space<vmem>>, vector<2x64xf32>
    tpu.vector_store %arg15[%c0_343, %c3264], %229 {strides = array<i32>} : memref<2x4096xf32, #tpu.memory_space<vmem>>, vector<2x64xf32>,
    %c0_344 = arith.constant 0 : index
    %c52 = arith.constant 52 : index
    %c0_345 = arith.constant 0 : index
    %231 = vector.load %arg14[%c0_344, %c52, %c0_345] : memref<2x64x64xf32, #tpu.memory_space<vmem>>, vector<2x1x64xf32>
    %232 = vector.shape_cast %231 : vector<2x1x64xf32> to vector<2x64xf32>
    %c0_346 = arith.constant 0 : index
    %c3328 = arith.constant 3328 : index
    %233 = vector.load %arg15[%c0_346, %c3328] : memref<2x4096xf32, #tpu.memory_space<vmem>>, vector<2x64xf32>
    tpu.vector_store %arg15[%c0_346, %c3328], %232 {strides = array<i32>} : memref<2x4096xf32, #tpu.memory_space<vmem>>, vector<2x64xf32>,
    %c0_347 = arith.constant 0 : index
    %c53 = arith.constant 53 : index
    %c0_348 = arith.constant 0 : index
    %234 = vector.load %arg14[%c0_347, %c53, %c0_348] : memref<2x64x64xf32, #tpu.memory_space<vmem>>, vector<2x1x64xf32>
    %235 = vector.shape_cast %234 : vector<2x1x64xf32> to vector<2x64xf32>
    %c0_349 = arith.constant 0 : index
    %c3392 = arith.constant 3392 : index
    %236 = vector.load %arg15[%c0_349, %c3392] : memref<2x4096xf32, #tpu.memory_space<vmem>>, vector<2x64xf32>
    tpu.vector_store %arg15[%c0_349, %c3392], %235 {strides = array<i32>} : memref<2x4096xf32, #tpu.memory_space<vmem>>, vector<2x64xf32>,
    %c0_350 = arith.constant 0 : index
    %c54 = arith.constant 54 : index
    %c0_351 = arith.constant 0 : index
    %237 = vector.load %arg14[%c0_350, %c54, %c0_351] : memref<2x64x64xf32, #tpu.memory_space<vmem>>, vector<2x1x64xf32>
    %238 = vector.shape_cast %237 : vector<2x1x64xf32> to vector<2x64xf32>
    %c0_352 = arith.constant 0 : index
    %c3456 = arith.constant 3456 : index
    %239 = vector.load %arg15[%c0_352, %c3456] : memref<2x4096xf32, #tpu.memory_space<vmem>>, vector<2x64xf32>
    tpu.vector_store %arg15[%c0_352, %c3456], %238 {strides = array<i32>} : memref<2x4096xf32, #tpu.memory_space<vmem>>, vector<2x64xf32>,
    %c0_353 = arith.constant 0 : index
    %c55 = arith.constant 55 : index
    %c0_354 = arith.constant 0 : index
    %240 = vector.load %arg14[%c0_353, %c55, %c0_354] : memref<2x64x64xf32, #tpu.memory_space<vmem>>, vector<2x1x64xf32>
    %241 = vector.shape_cast %240 : vector<2x1x64xf32> to vector<2x64xf32>
    %c0_355 = arith.constant 0 : index
    %c3520 = arith.constant 3520 : index
    %242 = vector.load %arg15[%c0_355, %c3520] : memref<2x4096xf32, #tpu.memory_space<vmem>>, vector<2x64xf32>
    tpu.vector_store %arg15[%c0_355, %c3520], %241 {strides = array<i32>} : memref<2x4096xf32, #tpu.memory_space<vmem>>, vector<2x64xf32>,
    %c0_356 = arith.constant 0 : index
    %c56 = arith.constant 56 : index
    %c0_357 = arith.constant 0 : index
    %243 = vector.load %arg14[%c0_356, %c56, %c0_357] : memref<2x64x64xf32, #tpu.memory_space<vmem>>, vector<2x1x64xf32>
    %244 = vector.shape_cast %243 : vector<2x1x64xf32> to vector<2x64xf32>
    %c0_358 = arith.constant 0 : index
    %c3584 = arith.constant 3584 : index
    %245 = vector.load %arg15[%c0_358, %c3584] : memref<2x4096xf32, #tpu.memory_space<vmem>>, vector<2x64xf32>
    tpu.vector_store %arg15[%c0_358, %c3584], %244 {strides = array<i32>} : memref<2x4096xf32, #tpu.memory_space<vmem>>, vector<2x64xf32>,
    %c0_359 = arith.constant 0 : index
    %c57 = arith.constant 57 : index
    %c0_360 = arith.constant 0 : index
    %246 = vector.load %arg14[%c0_359, %c57, %c0_360] : memref<2x64x64xf32, #tpu.memory_space<vmem>>, vector<2x1x64xf32>
    %247 = vector.shape_cast %246 : vector<2x1x64xf32> to vector<2x64xf32>
    %c0_361 = arith.constant 0 : index
    %c3648 = arith.constant 3648 : index
    %248 = vector.load %arg15[%c0_361, %c3648] : memref<2x4096xf32, #tpu.memory_space<vmem>>, vector<2x64xf32>
    tpu.vector_store %arg15[%c0_361, %c3648], %247 {strides = array<i32>} : memref<2x4096xf32, #tpu.memory_space<vmem>>, vector<2x64xf32>,
    %c0_362 = arith.constant 0 : index
    %c58 = arith.constant 58 : index
    %c0_363 = arith.constant 0 : index
    %249 = vector.load %arg14[%c0_362, %c58, %c0_363] : memref<2x64x64xf32, #tpu.memory_space<vmem>>, vector<2x1x64xf32>
    %250 = vector.shape_cast %249 : vector<2x1x64xf32> to vector<2x64xf32>
    %c0_364 = arith.constant 0 : index
    %c3712 = arith.constant 3712 : index
    %251 = vector.load %arg15[%c0_364, %c3712] : memref<2x4096xf32, #tpu.memory_space<vmem>>, vector<2x64xf32>
    tpu.vector_store %arg15[%c0_364, %c3712], %250 {strides = array<i32>} : memref<2x4096xf32, #tpu.memory_space<vmem>>, vector<2x64xf32>,
    %c0_365 = arith.constant 0 : index
    %c59 = arith.constant 59 : index
    %c0_366 = arith.constant 0 : index
    %252 = vector.load %arg14[%c0_365, %c59, %c0_366] : memref<2x64x64xf32, #tpu.memory_space<vmem>>, vector<2x1x64xf32>
    %253 = vector.shape_cast %252 : vector<2x1x64xf32> to vector<2x64xf32>
    %c0_367 = arith.constant 0 : index
    %c3776 = arith.constant 3776 : index
    %254 = vector.load %arg15[%c0_367, %c3776] : memref<2x4096xf32, #tpu.memory_space<vmem>>, vector<2x64xf32>
    tpu.vector_store %arg15[%c0_367, %c3776], %253 {strides = array<i32>} : memref<2x4096xf32, #tpu.memory_space<vmem>>, vector<2x64xf32>,
    %c0_368 = arith.constant 0 : index
    %c60 = arith.constant 60 : index
    %c0_369 = arith.constant 0 : index
    %255 = vector.load %arg14[%c0_368, %c60, %c0_369] : memref<2x64x64xf32, #tpu.memory_space<vmem>>, vector<2x1x64xf32>
    %256 = vector.shape_cast %255 : vector<2x1x64xf32> to vector<2x64xf32>
    %c0_370 = arith.constant 0 : index
    %c3840 = arith.constant 3840 : index
    %257 = vector.load %arg15[%c0_370, %c3840] : memref<2x4096xf32, #tpu.memory_space<vmem>>, vector<2x64xf32>
    tpu.vector_store %arg15[%c0_370, %c3840], %256 {strides = array<i32>} : memref<2x4096xf32, #tpu.memory_space<vmem>>, vector<2x64xf32>,
    %c0_371 = arith.constant 0 : index
    %c61 = arith.constant 61 : index
    %c0_372 = arith.constant 0 : index
    %258 = vector.load %arg14[%c0_371, %c61, %c0_372] : memref<2x64x64xf32, #tpu.memory_space<vmem>>, vector<2x1x64xf32>
    %259 = vector.shape_cast %258 : vector<2x1x64xf32> to vector<2x64xf32>
    %c0_373 = arith.constant 0 : index
    %c3904 = arith.constant 3904 : index
    %260 = vector.load %arg15[%c0_373, %c3904] : memref<2x4096xf32, #tpu.memory_space<vmem>>, vector<2x64xf32>
    tpu.vector_store %arg15[%c0_373, %c3904], %259 {strides = array<i32>} : memref<2x4096xf32, #tpu.memory_space<vmem>>, vector<2x64xf32>,
    %c0_374 = arith.constant 0 : index
    %c62 = arith.constant 62 : index
    %c0_375 = arith.constant 0 : index
    %261 = vector.load %arg14[%c0_374, %c62, %c0_375] : memref<2x64x64xf32, #tpu.memory_space<vmem>>, vector<2x1x64xf32>
    %262 = vector.shape_cast %261 : vector<2x1x64xf32> to vector<2x64xf32>
    %c0_376 = arith.constant 0 : index
    %c3968 = arith.constant 3968 : index
    %263 = vector.load %arg15[%c0_376, %c3968] : memref<2x4096xf32, #tpu.memory_space<vmem>>, vector<2x64xf32>
    tpu.vector_store %arg15[%c0_376, %c3968], %262 {strides = array<i32>} : memref<2x4096xf32, #tpu.memory_space<vmem>>, vector<2x64xf32>,
    %c0_377 = arith.constant 0 : index
    %c63 = arith.constant 63 : index
    %c0_378 = arith.constant 0 : index
    %264 = vector.load %arg14[%c0_377, %c63, %c0_378] : memref<2x64x64xf32, #tpu.memory_space<vmem>>, vector<2x1x64xf32>
    %265 = vector.shape_cast %264 : vector<2x1x64xf32> to vector<2x64xf32>
    %c0_379 = arith.constant 0 : index
    %c4032 = arith.constant 4032 : index
    %266 = vector.load %arg15[%c0_379, %c4032] : memref<2x4096xf32, #tpu.memory_space<vmem>>, vector<2x64xf32>
    tpu.vector_store %arg15[%c0_379, %c4032], %265 {strides = array<i32>} : memref<2x4096xf32, #tpu.memory_space<vmem>>, vector<2x64xf32>,
    %c0_380 = arith.constant 0 : index
    %c0_381 = arith.constant 0 : index
    %267 = vector.load %arg15[%c0_380, %c0_381] : memref<2x4096xf32, #tpu.memory_space<vmem>>, vector<2x4096xf32>
    %268 = arith.truncf %267 : vector<2x4096xf32> to vector<2x4096xbf16>
    %c0_382 = arith.constant 0 : index
    %c0_383 = arith.constant 0 : index
    %269 = vector.load %arg7[%c0_382, %c0_383] : memref<4096x32xf32, #tpu.memory_space<vmem>>, vector<4096x32xf32>
    %270 = arith.truncf %269 : vector<4096x32xf32> to vector<4096x32xbf16>
    %cst_384 = arith.constant dense<0.000000e+00> : vector<2x32xf32>
    %271 = tpu.matmul %268, %270, %cst_384 {dimension_numbers = #tpu.dot_dimension_numbers<[1], [0], [0], [1], [0, 0, 1, 1], [], []>} : vector<2x4096xbf16>, vector<4096x32xbf16>, vector<2x32xf32> -> vector<2x32xf32>
    %c0_385 = arith.constant 0 : index
    %c0_386 = arith.constant 0 : index
    %272 = vector.load %arg8[%c0_385, %c0_386] : memref<1x32xf32, #tpu.memory_space<vmem>>, vector<1x32xf32>
    %273 = vector.broadcast %272 : vector<1x32xf32> to vector<2x32xf32>
    %274 = arith.addf %271, %273 : vector<2x32xf32>
    %cst_387 = arith.constant 0.000000e+00 : f32
    %275 = vector.broadcast %cst_387 : f32 to vector<2x32xf32>
    %276 = arith.maximumf %274, %275 : vector<2x32xf32>
    %c0_388 = arith.constant 0 : index
    %c0_389 = arith.constant 0 : index
    %277 = vector.load %arg9[%c0_388, %c0_389] : memref<2x32xf32, #tpu.memory_space<vmem>>, vector<2x32xf32>
    tpu.vector_store %arg9[%c0_388, %c0_389], %276 {strides = array<i32>} : memref<2x32xf32, #tpu.memory_space<vmem>>, vector<2x32xf32>,
    return
  }
  func.func @transform_0(%arg0: i32) -> i32 {
    %c0_i32 = arith.constant 0 : i32
    %c0_i32_0 = arith.constant 0 : i32
    return %c0_i32 : i32
  }
  func.func @transform_1(%arg0: i32) -> (i32, i32, i32, i32) {
    %c0_i32 = arith.constant 0 : i32
    %c0_i32_0 = arith.constant 0 : i32
    %c0_i32_1 = arith.constant 0 : i32
    %c0_i32_2 = arith.constant 0 : i32
    %c0_i32_3 = arith.constant 0 : i32
    return %c0_i32, %c0_i32_0, %c0_i32_1, %c0_i32_2 : i32, i32, i32, i32
  }
  func.func @transform_2(%arg0: i32) -> (i32, i32) {
    %c0_i32 = arith.constant 0 : i32
    %c0_i32_0 = arith.constant 0 : i32
    %c0_i32_1 = arith.constant 0 : i32
    return %c0_i32, %c0_i32_0 : i32, i32
  }
  func.func @transform_3(%arg0: i32) -> (i32, i32) {
    %c0_i32 = arith.constant 0 : i32
    %c0_i32_0 = arith.constant 0 : i32
    %c0_i32_1 = arith.constant 0 : i32
    return %c0_i32, %c0_i32_0 : i32, i32
  }
  func.func @transform_4(%arg0: i32) -> (i32, i32) {
    %c0_i32 = arith.constant 0 : i32
    %c0_i32_0 = arith.constant 0 : i32
    %c0_i32_1 = arith.constant 0 : i32
    return %c0_i32, %c0_i32_0 : i32, i32
  }
  func.func @transform_5(%arg0: i32) -> (i32, i32) {
    %c0_i32 = arith.constant 0 : i32
    %c0_i32_0 = arith.constant 0 : i32
    %c0_i32_1 = arith.constant 0 : i32
    return %c0_i32, %c0_i32_0 : i32, i32
  }
  func.func @transform_6(%arg0: i32) -> (i32, i32) {
    %c0_i32 = arith.constant 0 : i32
    %c0_i32_0 = arith.constant 0 : i32
    %c0_i32_1 = arith.constant 0 : i32
    return %c0_i32, %c0_i32_0 : i32, i32
  }
  func.func @transform_7(%arg0: i32) -> (i32, i32) {
    %c0_i32 = arith.constant 0 : i32
    %c0_i32_0 = arith.constant 0 : i32
    %c0_i32_1 = arith.constant 0 : i32
    return %c0_i32, %c0_i32_0 : i32, i32
  }
  func.func @transform_8(%arg0: i32) -> (i32, i32) {
    %c0_i32 = arith.constant 0 : i32
    %c0_i32_0 = arith.constant 0 : i32
    %c0_i32_1 = arith.constant 0 : i32
    return %c0_i32, %c0_i32_0 : i32, i32
  }
}

</mosaic_0001>

<llo_original>
// kernel: agent_id_stacked_feature_extractor.1
$region0: #{agent_id_stacked_feature_extractor.1}
  #allocation0 [shape = 'u32[]', space=smem, size = 0x4, offset = 0x4, fixed_abs, tag = 'smem constant byte address 0x4 - core index']
  #allocation1 [shape = 'u32[144,128]{1,0:T(1,128)}', space=vmem, size = 0x12000, scoped, tag = 'internal scratch']
  #allocation2 [shape = 'f32[2,10,10,4]{3,2,1,0:T(8,128)}', space=vmem, size = 0x28000, scoped, tag = 'scratch operand']
  #allocation3 [shape = 'f32[2,8,8,36]{3,2,1,0:T(8,128)}', space=vmem, size = 0x10000, scoped, tag = 'scratch operand']
  #allocation4 [shape = 'f32[2,10,10,32]{3,2,1,0:T(8,128)}', space=vmem, size = 0x28000, scoped, tag = 'scratch operand']
  #allocation5 [shape = 'f32[2,8,8,288]{3,2,1,0:T(8,128)}', space=vmem, size = 0x30000, scoped, tag = 'scratch operand']
  #allocation6 [shape = 'f32[2,64,64]{2,1,0:T(8,128)}', space=vmem, size = 0x10000, scoped, tag = 'scratch operand']
  #allocation7 [shape = 'f32[2,4096]{1,0:T(2,128)}', space=vmem, size = 0x8000, scoped, tag = 'scratch operand']
  %s0 = inlined_call_operand.vmem [shape: f32[2], index: 0, kind: input, shape index: {}]
  %s1 = inlined_call_operand.vmem [shape: s32[2,8,8,4], index: 1, kind: input, shape index: {}]
  %s2 = inlined_call_operand.vmem [shape: f32[36,32], index: 2, kind: input, shape index: {}]
  %s3 = inlined_call_operand.vmem [shape: f32[1,32], index: 3, kind: input, shape index: {}]
  %s4 = inlined_call_operand.vmem [shape: f32[288,64], index: 4, kind: input, shape index: {}]
  %s5 = inlined_call_operand.vmem [shape: f32[1,64], index: 5, kind: input, shape index: {}]
  %s6 = inlined_call_operand.vmem [shape: f32[4096,32], index: 6, kind: input, shape index: {}]
  %s7 = inlined_call_operand.vmem [shape: f32[1,32], index: 7, kind: input, shape index: {}]
  %s8 = inlined_call_operand.hbm [shape: f32[2,32], index: 8, kind: output, shape index: {}]
  %s9 = sld [smem:[#allocation0]]
  $region46: #{agent_id_stacked_feature_extractor.1} parent=0
    _
  %s11 = ssub.s32 1, %s9
  %s12 = scalar_select 0, %s11, %s9
  $region1: #{agent_id_stacked_feature_extractor.1} parent=0
    #allocation8 [shape = 'u8[512]{0}', space=smem, size = 0x200, scoped, tag = 'input window, operand 0, single buffered']
    #allocation9 [shape = 's32[1]{0}', space=sflag, size = 0x4, scoped, tag = 'scoped memory for agent_id_stacked_feature_extractor.1']
    #allocation10 [shape = 's32[1]{0}', space=sflag, size = 0x4, scoped, tag = 'scoped memory for agent_id_stacked_feature_extractor.1']
    #allocation11 [shape = 'u8[1024]{0}', space=vmem, size = 0x400, scoped, tag = 'output window, operand 0, single buffered']
    %13 = vsyncpa [#allocation10], 0
    %14 = vsyncpa [#allocation9], 0
    // Predicated region
    $region2: #{agent_id_stacked_feature_extractor.1} parent=1 // pred_check
      _
    $region3: #{agent_id_stacked_feature_extractor.1} parent=1 // pred_check_branch
      %16 = sbr.rel (0) target = $region5
    $region4: #{agent_id_stacked_feature_extractor.1} parent=1 // pred_region
      %s18 = ssub.s32 16, 16
      %19 = vsyncadd [#allocation10], %s18
      %s21 = sshll.u32 %s0, 4
      %s22 = int_to_ptr.vmem [resolvable:$true] %s21
      %24 = dma.vmem_to_smem %s22, 16, [#allocation8], [#allocation10]
    $region5: #{agent_id_stacked_feature_extractor.1} parent=1 // pred_fallthru
      _
    // Predicated region
    $region6: #{agent_id_stacked_feature_extractor.1} parent=1 // pred_check
      _
    $region7: #{agent_id_stacked_feature_extractor.1} parent=1 // pred_check_branch
      %26 = sbr.rel (0) target = $region9
    $region8: #{agent_id_stacked_feature_extractor.1} parent=1 // pred_region
      _
    $region9: #{agent_id_stacked_feature_extractor.1} parent=1 // pred_fallthru
      _
    // Predicated region
    $region10: #{agent_id_stacked_feature_extractor.1} parent=1 // pred_check
      _
    $region11: #{agent_id_stacked_feature_extractor.1} parent=1 // pred_check_branch
      %28 = sbr.rel (0) target = $region13
    $region12: #{agent_id_stacked_feature_extractor.1} parent=1 // pred_region
      _
    $region13: #{agent_id_stacked_feature_extractor.1} parent=1 // pred_fallthru
      _
    // Predicated region
    $region14: #{agent_id_stacked_feature_extractor.1} parent=1 // pred_check
      _
    $region15: #{agent_id_stacked_feature_extractor.1} parent=1 // pred_check_branch
      %30 = sbr.rel (0) target = $region17
    $region16: #{agent_id_stacked_feature_extractor.1} parent=1 // pred_region
      _
    $region17: #{agent_id_stacked_feature_extractor.1} parent=1 // pred_fallthru
      _
    // Predicated region
    $region18: #{agent_id_stacked_feature_extractor.1} parent=1 // pred_check
      _
    $region19: #{agent_id_stacked_feature_extractor.1} parent=1 // pred_check_branch
      %32 = sbr.rel (0) target = $region21
    $region20: #{agent_id_stacked_feature_extractor.1} parent=1 // pred_region
      _
    $region21: #{agent_id_stacked_feature_extractor.1} parent=1 // pred_fallthru
      _
    // Predicated region
    $region22: #{agent_id_stacked_feature_extractor.1} parent=1 // pred_check
      _
    $region23: #{agent_id_stacked_feature_extractor.1} parent=1 // pred_check_branch
      %34 = sbr.rel (0) target = $region25
    $region24: #{agent_id_stacked_feature_extractor.1} parent=1 // pred_region
      _
    $region25: #{agent_id_stacked_feature_extractor.1} parent=1 // pred_fallthru
      _
    // Predicated region
    $region26: #{agent_id_stacked_feature_extractor.1} parent=1 // pred_check
      _
    $region27: #{agent_id_stacked_feature_extractor.1} parent=1 // pred_check_branch
      %36 = sbr.rel (0) target = $region29
    $region28: #{agent_id_stacked_feature_extractor.1} parent=1 // pred_region
      _
    $region29: #{agent_id_stacked_feature_extractor.1} parent=1 // pred_fallthru
      _
    // Predicated region
    $region30: #{agent_id_stacked_feature_extractor.1} parent=1 // pred_check
      _
    $region31: #{agent_id_stacked_feature_extractor.1} parent=1 // pred_check_branch
      %38 = sbr.rel (0) target = $region33
    $region32: #{agent_id_stacked_feature_extractor.1} parent=1 // pred_region
      _
    $region33: #{agent_id_stacked_feature_extractor.1} parent=1 // pred_fallthru
      _
    // Predicated region
    $region34: #{agent_id_stacked_feature_extractor.1} parent=1 // pred_check
      _
    $region35: #{agent_id_stacked_feature_extractor.1} parent=1 // pred_check_branch
      %40 = sbr.rel (0) target = $region37
    $region36: #{agent_id_stacked_feature_extractor.1} parent=1 // pred_region
      %41 = dma.done [#allocation10], 16
    $region37: #{agent_id_stacked_feature_extractor.1} parent=1 // pred_fallthru
      _
    %42 = sfence
    %s44 = sld [smem:[#allocation8]]
    %s45 = sld [smem:[#allocation8 + $0x1]]
    %v46 = vld [vmem:[%s1] sm:$0xff]
    %v47 = vld [vmem:[%s1 + $0x8] sm:$0xff]
    %v48 = vld [vmem:[%s1 + $0x10] sm:$0xff]
    %v49 = vld [vmem:[%s1 + $0x18] sm:$0xff]
    %v50 = vld [vmem:[%s1 + $0x20] sm:$0xff]
    %v51 = vld [vmem:[%s1 + $0x28] sm:$0xff]
    %v52 = vld [vmem:[%s1 + $0x30] sm:$0xff]
    %v53 = vld [vmem:[%s1 + $0x38] sm:$0xff]
    %v54 = vld [vmem:[%s1 + $0x40] sm:$0xff]
    %v55 = vld [vmem:[%s1 + $0x48] sm:$0xff]
    %v56 = vld [vmem:[%s1 + $0x50] sm:$0xff]
    %v57 = vld [vmem:[%s1 + $0x58] sm:$0xff]
    %v58 = vld [vmem:[%s1 + $0x60] sm:$0xff]
    %v59 = vld [vmem:[%s1 + $0x68] sm:$0xff]
    %v60 = vld [vmem:[%s1 + $0x70] sm:$0xff]
    %v61 = vld [vmem:[%s1 + $0x78] sm:$0xff]
    %vm62 = vcmp.gt.s32.totalorder %v46, 0
    %vm63 = vcmp.gt.s32.totalorder %v47, 0
    %vm64 = vcmp.gt.s32.totalorder %v48, 0
    %vm65 = vcmp.gt.s32.totalorder %v49, 0
    %vm66 = vcmp.gt.s32.totalorder %v50, 0
    %vm67 = vcmp.gt.s32.totalorder %v51, 0
    %vm68 = vcmp.gt.s32.totalorder %v52, 0
    %vm69 = vcmp.gt.s32.totalorder %v53, 0
    %vm70 = vcmp.gt.s32.totalorder %v54, 0
    %vm71 = vcmp.gt.s32.totalorder %v55, 0
    %vm72 = vcmp.gt.s32.totalorder %v56, 0
    %vm73 = vcmp.gt.s32.totalorder %v57, 0
    %vm74 = vcmp.gt.s32.totalorder %v58, 0
    %vm75 = vcmp.gt.s32.totalorder %v59, 0
    %vm76 = vcmp.gt.s32.totalorder %v60, 0
    %vm77 = vcmp.gt.s32.totalorder %v61, 0
    %v78 = vstv %s45
    %v79 = vstv %s44
    %v80 = vsel %vm62, %v78, %v79
    %v81 = vsel %vm63, %v78, %v79
    %v82 = vsel %vm64, %v78, %v79
    %v83 = vsel %vm65, %v78, %v79
    %v84 = vsel %vm66, %v78, %v79
    %v85 = vsel %vm67, %v78, %v79
    %v86 = vsel %vm68, %v78, %v79
    %v87 = vsel %vm69, %v78, %v79
    %v88 = vsel %vm70, %v78, %v79
    %v89 = vsel %vm71, %v78, %v79
    %v90 = vsel %vm72, %v78, %v79
    %v91 = vsel %vm73, %v78, %v79
    %v92 = vsel %vm74, %v78, %v79
    %v93 = vsel %vm75, %v78, %v79
    %v94 = vsel %vm76, %v78, %v79
    %v95 = vsel %vm77, %v78, %v79
    %vm96 = vcmask 31744
    %97 = vst.msk [vmem:[#allocation2] sm:$0xff] %vm96, 0.0
    %vm98 = vcmask 25600
    %99 = vst.msk [vmem:[#allocation2 + $0x8] sm:$0x3] %vm98, 0.0
    %100 = vst.msk [vmem:[#allocation2 + $0x10] sm:$0xff] %vm96, 0.0
    %101 = vst.msk [vmem:[#allocation2 + $0x18] sm:$0x3] %vm98, 0.0
    %102 = vst.msk [vmem:[#allocation2 + $0x20] sm:$0xff] %vm96, 0.0
    %103 = vst.msk [vmem:[#allocation2 + $0x28] sm:$0x3] %vm98, 0.0
    %104 = vst.msk [vmem:[#allocation2 + $0x30] sm:$0xff] %vm96, 0.0
    %105 = vst.msk [vmem:[#allocation2 + $0x38] sm:$0x3] %vm98, 0.0
    %106 = vst.msk [vmem:[#allocation2 + $0x40] sm:$0xff] %vm96, 0.0
    %107 = vst.msk [vmem:[#allocation2 + $0x48] sm:$0x3] %vm98, 0.0
    %108 = vst.msk [vmem:[#allocation2 + $0x50] sm:$0xff] %vm96, 0.0
    %109 = vst.msk [vmem:[#allocation2 + $0x58] sm:$0x3] %vm98, 0.0
    %110 = vst.msk [vmem:[#allocation2 + $0x60] sm:$0xff] %vm96, 0.0
    %111 = vst.msk [vmem:[#allocation2 + $0x68] sm:$0x3] %vm98, 0.0
    %112 = vst.msk [vmem:[#allocation2 + $0x70] sm:$0xff] %vm96, 0.0
    %113 = vst.msk [vmem:[#allocation2 + $0x78] sm:$0x3] %vm98, 0.0
    %114 = vst.msk [vmem:[#allocation2 + $0x80] sm:$0xff] %vm96, 0.0
    %115 = vst.msk [vmem:[#allocation2 + $0x88] sm:$0x3] %vm98, 0.0
    %116 = vst.msk [vmem:[#allocation2 + $0x90] sm:$0xff] %vm96, 0.0
    %117 = vst.msk [vmem:[#allocation2 + $0x98] sm:$0x3] %vm98, 0.0
    %118 = vst.msk [vmem:[#allocation2 + $0xa0] sm:$0xff] %vm96, 0.0
    %119 = vst.msk [vmem:[#allocation2 + $0xa8] sm:$0x3] %vm98, 0.0
    %120 = vst.msk [vmem:[#allocation2 + $0xb0] sm:$0xff] %vm96, 0.0
    %121 = vst.msk [vmem:[#allocation2 + $0xb8] sm:$0x3] %vm98, 0.0
    %122 = vst.msk [vmem:[#allocation2 + $0xc0] sm:$0xff] %vm96, 0.0
    %123 = vst.msk [vmem:[#allocation2 + $0xc8] sm:$0x3] %vm98, 0.0
    %124 = vst.msk [vmem:[#allocation2 + $0xd0] sm:$0xff] %vm96, 0.0
    %125 = vst.msk [vmem:[#allocation2 + $0xd8] sm:$0x3] %vm98, 0.0
    %126 = vst.msk [vmem:[#allocation2 + $0xe0] sm:$0xff] %vm96, 0.0
    %127 = vst.msk [vmem:[#allocation2 + $0xe8] sm:$0x3] %vm98, 0.0
    %128 = vst.msk [vmem:[#allocation2 + $0xf0] sm:$0xff] %vm96, 0.0
    %129 = vst.msk [vmem:[#allocation2 + $0xf8] sm:$0x3] %vm98, 0.0
    %130 = vst.msk [vmem:[#allocation2 + $0x100] sm:$0xff] %vm96, 0.0
    %131 = vst.msk [vmem:[#allocation2 + $0x108] sm:$0x3] %vm98, 0.0
    %132 = vst.msk [vmem:[#allocation2 + $0x110] sm:$0xff] %vm96, 0.0
    %133 = vst.msk [vmem:[#allocation2 + $0x118] sm:$0x3] %vm98, 0.0
    %134 = vst.msk [vmem:[#allocation2 + $0x120] sm:$0xff] %vm96, 0.0
    %135 = vst.msk [vmem:[#allocation2 + $0x128] sm:$0x3] %vm98, 0.0
    %136 = vst.msk [vmem:[#allocation2 + $0x130] sm:$0xff] %vm96, 0.0
    %137 = vst.msk [vmem:[#allocation2 + $0x138] sm:$0x3] %vm98, 0.0
    %s138 = scalar_lea.vmem [#allocation2], 16
    %139 = vst.msk [vmem:[%s138 + $0x1] sm:$0xff] %vm96, %v80
    %140 = vst.msk [vmem:[%s138 + $0x11] sm:$0xff] %vm96, %v81
    %141 = vst.msk [vmem:[%s138 + $0x21] sm:$0xff] %vm96, %v82
    %142 = vst.msk [vmem:[%s138 + $0x31] sm:$0xff] %vm96, %v83
    %143 = vst.msk [vmem:[%s138 + $0x41] sm:$0xff] %vm96, %v84
    %144 = vst.msk [vmem:[%s138 + $0x51] sm:$0xff] %vm96, %v85
    %145 = vst.msk [vmem:[%s138 + $0x61] sm:$0xff] %vm96, %v86
    %146 = vst.msk [vmem:[%s138 + $0x71] sm:$0xff] %vm96, %v87
    %147 = vst.msk [vmem:[%s138 + $0xa1] sm:$0xff] %vm96, %v88
    %148 = vst.msk [vmem:[%s138 + $0xb1] sm:$0xff] %vm96, %v89
    %149 = vst.msk [vmem:[%s138 + $0xc1] sm:$0xff] %vm96, %v90
    %150 = vst.msk [vmem:[%s138 + $0xd1] sm:$0xff] %vm96, %v91
    %151 = vst.msk [vmem:[%s138 + $0xe1] sm:$0xff] %vm96, %v92
    %152 = vst.msk [vmem:[%s138 + $0xf1] sm:$0xff] %vm96, %v93
    %153 = vst.msk [vmem:[%s138 + $0x101] sm:$0xff] %vm96, %v94
    %154 = vst.msk [vmem:[%s138 + $0x111] sm:$0xff] %vm96, %v95
    %v155 = vld [vmem:[#allocation2] sm:$0xff]
    %v156 = vld [vmem:[#allocation2 + $0x10] sm:$0xff]
    %v157 = vld [vmem:[#allocation2 + $0x20] sm:$0xff]
    %v158 = vld [vmem:[#allocation2 + $0x30] sm:$0xff]
    %v159 = vld [vmem:[#allocation2 + $0x40] sm:$0xff]
    %v160 = vld [vmem:[#allocation2 + $0x50] sm:$0xff]
    %v161 = vld [vmem:[#allocation2 + $0x60] sm:$0xff]
    %v162 = vld [vmem:[#allocation2 + $0x70] sm:$0xff]
    %v163 = vld [vmem:[#allocation2 + $0xa0] sm:$0xff]
    %v164 = vld [vmem:[#allocation2 + $0xb0] sm:$0xff]
    %v165 = vld [vmem:[#allocation2 + $0xc0] sm:$0xff]
    %v166 = vld [vmem:[#allocation2 + $0xd0] sm:$0xff]
    %v167 = vld [vmem:[#allocation2 + $0xe0] sm:$0xff]
    %v168 = vld [vmem:[#allocation2 + $0xf0] sm:$0xff]
    %v169 = vld [vmem:[#allocation2 + $0x100] sm:$0xff]
    %v170 = vld [vmem:[#allocation2 + $0x110] sm:$0xff]
    %171 = vst.msk [vmem:[#allocation3] sm:$0xff] %vm96, %v155
    %172 = vst.msk [vmem:[#allocation3 + $0x8] sm:$0xff] %vm96, %v156
    %173 = vst.msk [vmem:[#allocation3 + $0x10] sm:$0xff] %vm96, %v157
    %174 = vst.msk [vmem:[#allocation3 + $0x18] sm:$0xff] %vm96, %v158
    %175 = vst.msk [vmem:[#allocation3 + $0x20] sm:$0xff] %vm96, %v159
    %176 = vst.msk [vmem:[#allocation3 + $0x28] sm:$0xff] %vm96, %v160
    %177 = vst.msk [vmem:[#allocation3 + $0x30] sm:$0xff] %vm96, %v161
    %178 = vst.msk [vmem:[#allocation3 + $0x38] sm:$0xff] %vm96, %v162
    %179 = vst.msk [vmem:[#allocation3 + $0x40] sm:$0xff] %vm96, %v163
    %180 = vst.msk [vmem:[#allocation3 + $0x48] sm:$0xff] %vm96, %v164
    %181 = vst.msk [vmem:[#allocation3 + $0x50] sm:$0xff] %vm96, %v165
    %182 = vst.msk [vmem:[#allocation3 + $0x58] sm:$0xff] %vm96, %v166
    %183 = vst.msk [vmem:[#allocation3 + $0x60] sm:$0xff] %vm96, %v167
    %184 = vst.msk [vmem:[#allocation3 + $0x68] sm:$0xff] %vm96, %v168
    %185 = vst.msk [vmem:[#allocation3 + $0x70] sm:$0xff] %vm96, %v169
    %186 = vst.msk [vmem:[#allocation3 + $0x78] sm:$0xff] %vm96, %v170
    %v187 = vld [vmem:[#allocation2 + $0x1] sm:$0xff]
    %v188 = vld [vmem:[#allocation2 + $0x11] sm:$0xff]
    %v189 = vld [vmem:[#allocation2 + $0x21] sm:$0xff]
    %v190 = vld [vmem:[#allocation2 + $0x31] sm:$0xff]
    %v191 = vld [vmem:[#allocation2 + $0x41] sm:$0xff]
    %v192 = vld [vmem:[#allocation2 + $0x51] sm:$0xff]
    %v193 = vld [vmem:[#allocation2 + $0x61] sm:$0xff]
    %v194 = vld [vmem:[#allocation2 + $0x71] sm:$0xff]
    %v195 = vld [vmem:[#allocation2 + $0xa1] sm:$0xff]
    %v196 = vld [vmem:[#allocation2 + $0xb1] sm:$0xff]
    %v197 = vld [vmem:[#allocation2 + $0xc1] sm:$0xff]
    %v198 = vld [vmem:[#allocation2 + $0xd1] sm:$0xff]
    %v199 = vld [vmem:[#allocation2 + $0xe1] sm:$0xff]
    %v200 = vld [vmem:[#allocation2 + $0xf1] sm:$0xff]
    %v201 = vld [vmem:[#allocation2 + $0x101] sm:$0xff]
    %v202 = vld [vmem:[#allocation2 + $0x111] sm:$0xff]
    %219 = vrot.lane.b32.xlu0 %v187, 4
    %v220 = vpop.permute.xlu0 %219
    %221 = vrot.lane.b32.xlu0 %v188, 4
    %v222 = vpop.permute.xlu0 %221
    %223 = vrot.lane.b32.xlu0 %v189, 4
    %v224 = vpop.permute.xlu0 %223
    %225 = vrot.lane.b32.xlu0 %v190, 4
    %v226 = vpop.permute.xlu0 %225
    %227 = vrot.lane.b32.xlu0 %v191, 4
    %v228 = vpop.permute.xlu0 %227
    %229 = vrot.lane.b32.xlu0 %v192, 4
    %v230 = vpop.permute.xlu0 %229
    %231 = vrot.lane.b32.xlu0 %v193, 4
    %v232 = vpop.permute.xlu0 %231
    %233 = vrot.lane.b32.xlu0 %v194, 4
    %v234 = vpop.permute.xlu0 %233
    %235 = vrot.lane.b32.xlu0 %v195, 4
    %v236 = vpop.permute.xlu0 %235
    %237 = vrot.lane.b32.xlu0 %v196, 4
    %v238 = vpop.permute.xlu0 %237
    %239 = vrot.lane.b32.xlu0 %v197, 4
    %v240 = vpop.permute.xlu0 %239
    %241 = vrot.lane.b32.xlu0 %v198, 4
    %v242 = vpop.permute.xlu0 %241
    %243 = vrot.lane.b32.xlu0 %v199, 4
    %v244 = vpop.permute.xlu0 %243
    %245 = vrot.lane.b32.xlu0 %v200, 4
    %v246 = vpop.permute.xlu0 %245
    %247 = vrot.lane.b32.xlu0 %v201, 4
    %v248 = vpop.permute.xlu0 %247
    %249 = vrot.lane.b32.xlu0 %v202, 4
    %v250 = vpop.permute.xlu0 %249
    %vm267 = vcmask 64544
    %268 = vst.msk [vmem:[#allocation3] sm:$0xff] %vm267, %v220
    %269 = vst.msk [vmem:[#allocation3 + $0x8] sm:$0xff] %vm267, %v222
    %270 = vst.msk [vmem:[#allocation3 + $0x10] sm:$0xff] %vm267, %v224
    %271 = vst.msk [vmem:[#allocation3 + $0x18] sm:$0xff] %vm267, %v226
    %272 = vst.msk [vmem:[#allocation3 + $0x20] sm:$0xff] %vm267, %v228
    %273 = vst.msk [vmem:[#allocation3 + $0x28] sm:$0xff] %vm267, %v230
    %274 = vst.msk [vmem:[#allocation3 + $0x30] sm:$0xff] %vm267, %v232
    %275 = vst.msk [vmem:[#allocation3 + $0x38] sm:$0xff] %vm267, %v234
    %276 = vst.msk [vmem:[#allocation3 + $0x40] sm:$0xff] %vm267, %v236
    %277 = vst.msk [vmem:[#allocation3 + $0x48] sm:$0xff] %vm267, %v238
    %278 = vst.msk [vmem:[#allocation3 + $0x50] sm:$0xff] %vm267, %v240
    %279 = vst.msk [vmem:[#allocation3 + $0x58] sm:$0xff] %vm267, %v242
    %280 = vst.msk [vmem:[#allocation3 + $0x60] sm:$0xff] %vm267, %v244
    %281 = vst.msk [vmem:[#allocation3 + $0x68] sm:$0xff] %vm267, %v246
    %282 = vst.msk [vmem:[#allocation3 + $0x70] sm:$0xff] %vm267, %v248
    %283 = vst.msk [vmem:[#allocation3 + $0x78] sm:$0xff] %vm267, %v250
    %v284 = vld [vmem:[#allocation2 + $0x2] sm:$0xff]
    %v285 = vld [vmem:[#allocation2 + $0x12] sm:$0xff]
    %v286 = vld [vmem:[#allocation2 + $0x22] sm:$0xff]
    %v287 = vld [vmem:[#allocation2 + $0x32] sm:$0xff]
    %v288 = vld [vmem:[#allocation2 + $0x42] sm:$0xff]
    %v289 = vld [vmem:[#allocation2 + $0x52] sm:$0xff]
    %v290 = vld [vmem:[#allocation2 + $0x62] sm:$0xff]
    %v291 = vld [vmem:[#allocation2 + $0x72] sm:$0xff]
    %v292 = vld [vmem:[#allocation2 + $0xa2] sm:$0xff]
    %v293 = vld [vmem:[#allocation2 + $0xb2] sm:$0xff]
    %v294 = vld [vmem:[#allocation2 + $0xc2] sm:$0xff]
    %v295 = vld [vmem:[#allocation2 + $0xd2] sm:$0xff]
    %v296 = vld [vmem:[#allocation2 + $0xe2] sm:$0xff]
    %v297 = vld [vmem:[#allocation2 + $0xf2] sm:$0xff]
    %v298 = vld [vmem:[#allocation2 + $0x102] sm:$0xff]
    %v299 = vld [vmem:[#allocation2 + $0x112] sm:$0xff]
    %316 = vrot.lane.b32.xlu0 %v284, 8
    %v317 = vpop.permute.xlu0 %316
    %318 = vrot.lane.b32.xlu0 %v285, 8
    %v319 = vpop.permute.xlu0 %318
    %320 = vrot.lane.b32.xlu0 %v286, 8
    %v321 = vpop.permute.xlu0 %320
    %322 = vrot.lane.b32.xlu0 %v287, 8
    %v323 = vpop.permute.xlu0 %322
    %324 = vrot.lane.b32.xlu0 %v288, 8
    %v325 = vpop.permute.xlu0 %324
    %326 = vrot.lane.b32.xlu0 %v289, 8
    %v327 = vpop.permute.xlu0 %326
    %328 = vrot.lane.b32.xlu0 %v290, 8
    %v329 = vpop.permute.xlu0 %328
    %330 = vrot.lane.b32.xlu0 %v291, 8
    %v331 = vpop.permute.xlu0 %330
    %332 = vrot.lane.b32.xlu0 %v292, 8
    %v333 = vpop.permute.xlu0 %332
    %334 = vrot.lane.b32.xlu0 %v293, 8
    %v335 = vpop.permute.xlu0 %334
    %336 = vrot.lane.b32.xlu0 %v294, 8
    %v337 = vpop.permute.xlu0 %336
    %338 = vrot.lane.b32.xlu0 %v295, 8
    %v339 = vpop.permute.xlu0 %338
    %340 = vrot.lane.b32.xlu0 %v296, 8
    %v341 = vpop.permute.xlu0 %340
    %342 = vrot.lane.b32.xlu0 %v297, 8
    %v343 = vpop.permute.xlu0 %342
    %344 = vrot.lane.b32.xlu0 %v298, 8
    %v345 = vpop.permute.xlu0 %344
    %346 = vrot.lane.b32.xlu0 %v299, 8
    %v347 = vpop.permute.xlu0 %346
    %vm364 = vcmask 97344
    %365 = vst.msk [vmem:[#allocation3] sm:$0xff] %vm364, %v317
    %366 = vst.msk [vmem:[#allocation3 + $0x8] sm:$0xff] %vm364, %v319
    %367 = vst.msk [vmem:[#allocation3 + $0x10] sm:$0xff] %vm364, %v321
    %368 = vst.msk [vmem:[#allocation3 + $0x18] sm:$0xff] %vm364, %v323
    %369 = vst.msk [vmem:[#allocation3 + $0x20] sm:$0xff] %vm364, %v325
    %370 = vst.msk [vmem:[#allocation3 + $0x28] sm:$0xff] %vm364, %v327
    %371 = vst.msk [vmem:[#allocation3 + $0x30] sm:$0xff] %vm364, %v329
    %372 = vst.msk [vmem:[#allocation3 + $0x38] sm:$0xff] %vm364, %v331
    %373 = vst.msk [vmem:[#allocation3 + $0x40] sm:$0xff] %vm364, %v333
    %374 = vst.msk [vmem:[#allocation3 + $0x48] sm:$0xff] %vm364, %v335
    %375 = vst.msk [vmem:[#allocation3 + $0x50] sm:$0xff] %vm364, %v337
    %376 = vst.msk [vmem:[#allocation3 + $0x58] sm:$0xff] %vm364, %v339
    %377 = vst.msk [vmem:[#allocation3 + $0x60] sm:$0xff] %vm364, %v341
    %378 = vst.msk [vmem:[#allocation3 + $0x68] sm:$0xff] %vm364, %v343
    %379 = vst.msk [vmem:[#allocation3 + $0x70] sm:$0xff] %vm364, %v345
    %380 = vst.msk [vmem:[#allocation3 + $0x78] sm:$0xff] %vm364, %v347
    %v381 = vld [vmem:[%s138] sm:$0xff]
    %v382 = vld [vmem:[%s138 + $0x10] sm:$0xff]
    %v383 = vld [vmem:[%s138 + $0x20] sm:$0xff]
    %v384 = vld [vmem:[%s138 + $0x30] sm:$0xff]
    %v385 = vld [vmem:[%s138 + $0x40] sm:$0xff]
    %v386 = vld [vmem:[%s138 + $0x50] sm:$0xff]
    %v387 = vld [vmem:[%s138 + $0x60] sm:$0xff]
    %v388 = vld [vmem:[%s138 + $0x70] sm:$0xff]
    %v389 = vld [vmem:[%s138 + $0xa0] sm:$0xff]
    %v390 = vld [vmem:[%s138 + $0xb0] sm:$0xff]
    %v391 = vld [vmem:[%s138 + $0xc0] sm:$0xff]
    %v392 = vld [vmem:[%s138 + $0xd0] sm:$0xff]
    %v393 = vld [vmem:[%s138 + $0xe0] sm:$0xff]
    %v394 = vld [vmem:[%s138 + $0xf0] sm:$0xff]
    %v395 = vld [vmem:[%s138 + $0x100] sm:$0xff]
    %v396 = vld [vmem:[%s138 + $0x110] sm:$0xff]
    %413 = vrot.lane.b32.xlu0 %v381, 12
    %v414 = vpop.permute.xlu0 %413
    %415 = vrot.lane.b32.xlu0 %v382, 12
    %v416 = vpop.permute.xlu0 %415
    %417 = vrot.lane.b32.xlu0 %v383, 12
    %v418 = vpop.permute.xlu0 %417
    %419 = vrot.lane.b32.xlu0 %v384, 12
    %v420 = vpop.permute.xlu0 %419
    %421 = vrot.lane.b32.xlu0 %v385, 12
    %v422 = vpop.permute.xlu0 %421
    %423 = vrot.lane.b32.xlu0 %v386, 12
    %v424 = vpop.permute.xlu0 %423
    %425 = vrot.lane.b32.xlu0 %v387, 12
    %v426 = vpop.permute.xlu0 %425
    %427 = vrot.lane.b32.xlu0 %v388, 12
    %v428 = vpop.permute.xlu0 %427
    %429 = vrot.lane.b32.xlu0 %v389, 12
    %v430 = vpop.permute.xlu0 %429
    %431 = vrot.lane.b32.xlu0 %v390, 12
    %v432 = vpop.permute.xlu0 %431
    %433 = vrot.lane.b32.xlu0 %v391, 12
    %v434 = vpop.permute.xlu0 %433
    %435 = vrot.lane.b32.xlu0 %v392, 12
    %v436 = vpop.permute.xlu0 %435
    %437 = vrot.lane.b32.xlu0 %v393, 12
    %v438 = vpop.permute.xlu0 %437
    %439 = vrot.lane.b32.xlu0 %v394, 12
    %v440 = vpop.permute.xlu0 %439
    %441 = vrot.lane.b32.xlu0 %v395, 12
    %v442 = vpop.permute.xlu0 %441
    %443 = vrot.lane.b32.xlu0 %v396, 12
    %v444 = vpop.permute.xlu0 %443
    %vm461 = vcmask 130144
    %462 = vst.msk [vmem:[#allocation3] sm:$0xff] %vm461, %v414
    %463 = vst.msk [vmem:[#allocation3 + $0x8] sm:$0xff] %vm461, %v416
    %464 = vst.msk [vmem:[#allocation3 + $0x10] sm:$0xff] %vm461, %v418
    %465 = vst.msk [vmem:[#allocation3 + $0x18] sm:$0xff] %vm461, %v420
    %466 = vst.msk [vmem:[#allocation3 + $0x20] sm:$0xff] %vm461, %v422
    %467 = vst.msk [vmem:[#allocation3 + $0x28] sm:$0xff] %vm461, %v424
    %468 = vst.msk [vmem:[#allocation3 + $0x30] sm:$0xff] %vm461, %v426
    %469 = vst.msk [vmem:[#allocation3 + $0x38] sm:$0xff] %vm461, %v428
    %470 = vst.msk [vmem:[#allocation3 + $0x40] sm:$0xff] %vm461, %v430
    %471 = vst.msk [vmem:[#allocation3 + $0x48] sm:$0xff] %vm461, %v432
    %472 = vst.msk [vmem:[#allocation3 + $0x50] sm:$0xff] %vm461, %v434
    %473 = vst.msk [vmem:[#allocation3 + $0x58] sm:$0xff] %vm461, %v436
    %474 = vst.msk [vmem:[#allocation3 + $0x60] sm:$0xff] %vm461, %v438
    %475 = vst.msk [vmem:[#allocation3 + $0x68] sm:$0xff] %vm461, %v440
    %476 = vst.msk [vmem:[#allocation3 + $0x70] sm:$0xff] %vm461, %v442
    %477 = vst.msk [vmem:[#allocation3 + $0x78] sm:$0xff] %vm461, %v444
    %v478 = vld [vmem:[%s138 + $0x1] sm:$0xff]
    %v479 = vld [vmem:[%s138 + $0x11] sm:$0xff]
    %v480 = vld [vmem:[%s138 + $0x21] sm:$0xff]
    %v481 = vld [vmem:[%s138 + $0x31] sm:$0xff]
    %v482 = vld [vmem:[%s138 + $0x41] sm:$0xff]
    %v483 = vld [vmem:[%s138 + $0x51] sm:$0xff]
    %v484 = vld [vmem:[%s138 + $0x61] sm:$0xff]
    %v485 = vld [vmem:[%s138 + $0x71] sm:$0xff]
    %v486 = vld [vmem:[%s138 + $0xa1] sm:$0xff]
    %v487 = vld [vmem:[%s138 + $0xb1] sm:$0xff]
    %v488 = vld [vmem:[%s138 + $0xc1] sm:$0xff]
    %v489 = vld [vmem:[%s138 + $0xd1] sm:$0xff]
    %v490 = vld [vmem:[%s138 + $0xe1] sm:$0xff]
    %v491 = vld [vmem:[%s138 + $0xf1] sm:$0xff]
    %v492 = vld [vmem:[%s138 + $0x101] sm:$0xff]
    %v493 = vld [vmem:[%s138 + $0x111] sm:$0xff]
    %510 = vrot.lane.b32.xlu0 %v478, 16
    %v511 = vpop.permute.xlu0 %510
    %512 = vrot.lane.b32.xlu0 %v479, 16
    %v513 = vpop.permute.xlu0 %512
    %514 = vrot.lane.b32.xlu0 %v480, 16
    %v515 = vpop.permute.xlu0 %514
    %516 = vrot.lane.b32.xlu0 %v481, 16
    %v517 = vpop.permute.xlu0 %516
    %518 = vrot.lane.b32.xlu0 %v482, 16
    %v519 = vpop.permute.xlu0 %518
    %520 = vrot.lane.b32.xlu0 %v483, 16
    %v521 = vpop.permute.xlu0 %520
    %522 = vrot.lane.b32.xlu0 %v484, 16
    %v523 = vpop.permute.xlu0 %522
    %524 = vrot.lane.b32.xlu0 %v485, 16
    %v525 = vpop.permute.xlu0 %524
    %526 = vrot.lane.b32.xlu0 %v486, 16
    %v527 = vpop.permute.xlu0 %526
    %528 = vrot.lane.b32.xlu0 %v487, 16
    %v529 = vpop.permute.xlu0 %528
    %530 = vrot.lane.b32.xlu0 %v488, 16
    %v531 = vpop.permute.xlu0 %530
    %532 = vrot.lane.b32.xlu0 %v489, 16
    %v533 = vpop.permute.xlu0 %532
    %534 = vrot.lane.b32.xlu0 %v490, 16
    %v535 = vpop.permute.xlu0 %534
    %536 = vrot.lane.b32.xlu0 %v491, 16
    %v537 = vpop.permute.xlu0 %536
    %538 = vrot.lane.b32.xlu0 %v492, 16
    %v539 = vpop.permute.xlu0 %538
    %540 = vrot.lane.b32.xlu0 %v493, 16
    %v541 = vpop.permute.xlu0 %540
    %vm558 = vcmask 162944
    %559 = vst.msk [vmem:[#allocation3] sm:$0xff] %vm558, %v511
    %560 = vst.msk [vmem:[#allocation3 + $0x8] sm:$0xff] %vm558, %v513
    %561 = vst.msk [vmem:[#allocation3 + $0x10] sm:$0xff] %vm558, %v515
    %562 = vst.msk [vmem:[#allocation3 + $0x18] sm:$0xff] %vm558, %v517
    %563 = vst.msk [vmem:[#allocation3 + $0x20] sm:$0xff] %vm558, %v519
    %564 = vst.msk [vmem:[#allocation3 + $0x28] sm:$0xff] %vm558, %v521
    %565 = vst.msk [vmem:[#allocation3 + $0x30] sm:$0xff] %vm558, %v523
    %566 = vst.msk [vmem:[#allocation3 + $0x38] sm:$0xff] %vm558, %v525
    %567 = vst.msk [vmem:[#allocation3 + $0x40] sm:$0xff] %vm558, %v527
    %568 = vst.msk [vmem:[#allocation3 + $0x48] sm:$0xff] %vm558, %v529
    %569 = vst.msk [vmem:[#allocation3 + $0x50] sm:$0xff] %vm558, %v531
    %570 = vst.msk [vmem:[#allocation3 + $0x58] sm:$0xff] %vm558, %v533
    %571 = vst.msk [vmem:[#allocation3 + $0x60] sm:$0xff] %vm558, %v535
    %572 = vst.msk [vmem:[#allocation3 + $0x68] sm:$0xff] %vm558, %v537
    %573 = vst.msk [vmem:[#allocation3 + $0x70] sm:$0xff] %vm558, %v539
    %574 = vst.msk [vmem:[#allocation3 + $0x78] sm:$0xff] %vm558, %v541
    %v575 = vld [vmem:[%s138 + $0x2] sm:$0xff]
    %v576 = vld [vmem:[%s138 + $0x12] sm:$0xff]
    %v577 = vld [vmem:[%s138 + $0x22] sm:$0xff]
    %v578 = vld [vmem:[%s138 + $0x32] sm:$0xff]
    %v579 = vld [vmem:[%s138 + $0x42] sm:$0xff]
    %v580 = vld [vmem:[%s138 + $0x52] sm:$0xff]
    %v581 = vld [vmem:[%s138 + $0x62] sm:$0xff]
    %v582 = vld [vmem:[%s138 + $0x72] sm:$0xff]
    %v583 = vld [vmem:[%s138 + $0xa2] sm:$0xff]
    %v584 = vld [vmem:[%s138 + $0xb2] sm:$0xff]
    %v585 = vld [vmem:[%s138 + $0xc2] sm:$0xff]
    %v586 = vld [vmem:[%s138 + $0xd2] sm:$0xff]
    %v587 = vld [vmem:[%s138 + $0xe2] sm:$0xff]
    %v588 = vld [vmem:[%s138 + $0xf2] sm:$0xff]
    %v589 = vld [vmem:[%s138 + $0x102] sm:$0xff]
    %v590 = vld [vmem:[%s138 + $0x112] sm:$0xff]
    %607 = vrot.lane.b32.xlu0 %v575, 20
    %v608 = vpop.permute.xlu0 %607
    %609 = vrot.lane.b32.xlu0 %v576, 20
    %v610 = vpop.permute.xlu0 %609
    %611 = vrot.lane.b32.xlu0 %v577, 20
    %v612 = vpop.permute.xlu0 %611
    %613 = vrot.lane.b32.xlu0 %v578, 20
    %v614 = vpop.permute.xlu0 %613
    %615 = vrot.lane.b32.xlu0 %v579, 20
    %v616 = vpop.permute.xlu0 %615
    %617 = vrot.lane.b32.xlu0 %v580, 20
    %v618 = vpop.permute.xlu0 %617
    %619 = vrot.lane.b32.xlu0 %v581, 20
    %v620 = vpop.permute.xlu0 %619
    %621 = vrot.lane.b32.xlu0 %v582, 20
    %v622 = vpop.permute.xlu0 %621
    %623 = vrot.lane.b32.xlu0 %v583, 20
    %v624 = vpop.permute.xlu0 %623
    %625 = vrot.lane.b32.xlu0 %v584, 20
    %v626 = vpop.permute.xlu0 %625
    %627 = vrot.lane.b32.xlu0 %v585, 20
    %v628 = vpop.permute.xlu0 %627
    %629 = vrot.lane.b32.xlu0 %v586, 20
    %v630 = vpop.permute.xlu0 %629
    %631 = vrot.lane.b32.xlu0 %v587, 20
    %v632 = vpop.permute.xlu0 %631
    %633 = vrot.lane.b32.xlu0 %v588, 20
    %v634 = vpop.permute.xlu0 %633
    %635 = vrot.lane.b32.xlu0 %v589, 20
    %v636 = vpop.permute.xlu0 %635
    %637 = vrot.lane.b32.xlu0 %v590, 20
    %v638 = vpop.permute.xlu0 %637
    %vm655 = vcmask 195744
    %656 = vst.msk [vmem:[#allocation3] sm:$0xff] %vm655, %v608
    %657 = vst.msk [vmem:[#allocation3 + $0x8] sm:$0xff] %vm655, %v610
    %658 = vst.msk [vmem:[#allocation3 + $0x10] sm:$0xff] %vm655, %v612
    %659 = vst.msk [vmem:[#allocation3 + $0x18] sm:$0xff] %vm655, %v614
    %660 = vst.msk [vmem:[#allocation3 + $0x20] sm:$0xff] %vm655, %v616
    %661 = vst.msk [vmem:[#allocation3 + $0x28] sm:$0xff] %vm655, %v618
    %662 = vst.msk [vmem:[#allocation3 + $0x30] sm:$0xff] %vm655, %v620
    %663 = vst.msk [vmem:[#allocation3 + $0x38] sm:$0xff] %vm655, %v622
    %664 = vst.msk [vmem:[#allocation3 + $0x40] sm:$0xff] %vm655, %v624
    %665 = vst.msk [vmem:[#allocation3 + $0x48] sm:$0xff] %vm655, %v626
    %666 = vst.msk [vmem:[#allocation3 + $0x50] sm:$0xff] %vm655, %v628
    %667 = vst.msk [vmem:[#allocation3 + $0x58] sm:$0xff] %vm655, %v630
    %668 = vst.msk [vmem:[#allocation3 + $0x60] sm:$0xff] %vm655, %v632
    %669 = vst.msk [vmem:[#allocation3 + $0x68] sm:$0xff] %vm655, %v634
    %670 = vst.msk [vmem:[#allocation3 + $0x70] sm:$0xff] %vm655, %v636
    %671 = vst.msk [vmem:[#allocation3 + $0x78] sm:$0xff] %vm655, %v638
    %s672 = scalar_lea.vmem [#allocation2], 32
    %v673 = vld [vmem:[%s672] sm:$0xff]
    %v674 = vld [vmem:[%s672 + $0x10] sm:$0xff]
    %v675 = vld [vmem:[%s672 + $0x20] sm:$0xff]
    %v676 = vld [vmem:[%s672 + $0x30] sm:$0xff]
    %v677 = vld [vmem:[%s672 + $0x40] sm:$0xff]
    %v678 = vld [vmem:[%s672 + $0x50] sm:$0xff]
    %v679 = vld [vmem:[%s672 + $0x60] sm:$0xff]
    %v680 = vld [vmem:[%s672 + $0x70] sm:$0xff]
    %v681 = vld [vmem:[%s672 + $0xa0] sm:$0xff]
    %v682 = vld [vmem:[%s672 + $0xb0] sm:$0xff]
    %v683 = vld [vmem:[%s672 + $0xc0] sm:$0xff]
    %v684 = vld [vmem:[%s672 + $0xd0] sm:$0xff]
    %v685 = vld [vmem:[%s672 + $0xe0] sm:$0xff]
    %v686 = vld [vmem:[%s672 + $0xf0] sm:$0xff]
    %v687 = vld [vmem:[%s672 + $0x100] sm:$0xff]
    %v688 = vld [vmem:[%s672 + $0x110] sm:$0xff]
    %705 = vrot.lane.b32.xlu0 %v673, 24
    %v706 = vpop.permute.xlu0 %705
    %707 = vrot.lane.b32.xlu0 %v674, 24
    %v708 = vpop.permute.xlu0 %707
    %709 = vrot.lane.b32.xlu0 %v675, 24
    %v710 = vpop.permute.xlu0 %709
    %711 = vrot.lane.b32.xlu0 %v676, 24
    %v712 = vpop.permute.xlu0 %711
    %713 = vrot.lane.b32.xlu0 %v677, 24
    %v714 = vpop.permute.xlu0 %713
    %715 = vrot.lane.b32.xlu0 %v678, 24
    %v716 = vpop.permute.xlu0 %715
    %717 = vrot.lane.b32.xlu0 %v679, 24
    %v718 = vpop.permute.xlu0 %717
    %719 = vrot.lane.b32.xlu0 %v680, 24
    %v720 = vpop.permute.xlu0 %719
    %721 = vrot.lane.b32.xlu0 %v681, 24
    %v722 = vpop.permute.xlu0 %721
    %723 = vrot.lane.b32.xlu0 %v682, 24
    %v724 = vpop.permute.xlu0 %723
    %725 = vrot.lane.b32.xlu0 %v683, 24
    %v726 = vpop.permute.xlu0 %725
    %727 = vrot.lane.b32.xlu0 %v684, 24
    %v728 = vpop.permute.xlu0 %727
    %729 = vrot.lane.b32.xlu0 %v685, 24
    %v730 = vpop.permute.xlu0 %729
    %731 = vrot.lane.b32.xlu0 %v686, 24
    %v732 = vpop.permute.xlu0 %731
    %733 = vrot.lane.b32.xlu0 %v687, 24
    %v734 = vpop.permute.xlu0 %733
    %735 = vrot.lane.b32.xlu0 %v688, 24
    %v736 = vpop.permute.xlu0 %735
    %vm753 = vcmask 228544
    %754 = vst.msk [vmem:[#allocation3] sm:$0xff] %vm753, %v706
    %755 = vst.msk [vmem:[#allocation3 + $0x8] sm:$0xff] %vm753, %v708
    %756 = vst.msk [vmem:[#allocation3 + $0x10] sm:$0xff] %vm753, %v710
    %757 = vst.msk [vmem:[#allocation3 + $0x18] sm:$0xff] %vm753, %v712
    %758 = vst.msk [vmem:[#allocation3 + $0x20] sm:$0xff] %vm753, %v714
    %759 = vst.msk [vmem:[#allocation3 + $0x28] sm:$0xff] %vm753, %v716
    %760 = vst.msk [vmem:[#allocation3 + $0x30] sm:$0xff] %vm753, %v718
    %761 = vst.msk [vmem:[#allocation3 + $0x38] sm:$0xff] %vm753, %v720
    %762 = vst.msk [vmem:[#allocation3 + $0x40] sm:$0xff] %vm753, %v722
    %763 = vst.msk [vmem:[#allocation3 + $0x48] sm:$0xff] %vm753, %v724
    %764 = vst.msk [vmem:[#allocation3 + $0x50] sm:$0xff] %vm753, %v726
    %765 = vst.msk [vmem:[#allocation3 + $0x58] sm:$0xff] %vm753, %v728
    %766 = vst.msk [vmem:[#allocation3 + $0x60] sm:$0xff] %vm753, %v730
    %767 = vst.msk [vmem:[#allocation3 + $0x68] sm:$0xff] %vm753, %v732
    %768 = vst.msk [vmem:[#allocation3 + $0x70] sm:$0xff] %vm753, %v734
    %769 = vst.msk [vmem:[#allocation3 + $0x78] sm:$0xff] %vm753, %v736
    %v770 = vld [vmem:[%s672 + $0x1] sm:$0xff]
    %v771 = vld [vmem:[%s672 + $0x11] sm:$0xff]
    %v772 = vld [vmem:[%s672 + $0x21] sm:$0xff]
    %v773 = vld [vmem:[%s672 + $0x31] sm:$0xff]
    %v774 = vld [vmem:[%s672 + $0x41] sm:$0xff]
    %v775 = vld [vmem:[%s672 + $0x51] sm:$0xff]
    %v776 = vld [vmem:[%s672 + $0x61] sm:$0xff]
    %v777 = vld [vmem:[%s672 + $0x71] sm:$0xff]
    %v778 = vld [vmem:[%s672 + $0xa1] sm:$0xff]
    %v779 = vld [vmem:[%s672 + $0xb1] sm:$0xff]
    %v780 = vld [vmem:[%s672 + $0xc1] sm:$0xff]
    %v781 = vld [vmem:[%s672 + $0xd1] sm:$0xff]
    %v782 = vld [vmem:[%s672 + $0xe1] sm:$0xff]
    %v783 = vld [vmem:[%s672 + $0xf1] sm:$0xff]
    %v784 = vld [vmem:[%s672 + $0x101] sm:$0xff]
    %v785 = vld [vmem:[%s672 + $0x111] sm:$0xff]
    %802 = vrot.lane.b32.xlu0 %v770, 28
    %v803 = vpop.permute.xlu0 %802
    %804 = vrot.lane.b32.xlu0 %v771, 28
    %v805 = vpop.permute.xlu0 %804
    %806 = vrot.lane.b32.xlu0 %v772, 28
    %v807 = vpop.permute.xlu0 %806
    %808 = vrot.lane.b32.xlu0 %v773, 28
    %v809 = vpop.permute.xlu0 %808
    %810 = vrot.lane.b32.xlu0 %v774, 28
    %v811 = vpop.permute.xlu0 %810
    %812 = vrot.lane.b32.xlu0 %v775, 28
    %v813 = vpop.permute.xlu0 %812
    %814 = vrot.lane.b32.xlu0 %v776, 28
    %v815 = vpop.permute.xlu0 %814
    %816 = vrot.lane.b32.xlu0 %v777, 28
    %v817 = vpop.permute.xlu0 %816
    %818 = vrot.lane.b32.xlu0 %v778, 28
    %v819 = vpop.permute.xlu0 %818
    %820 = vrot.lane.b32.xlu0 %v779, 28
    %v821 = vpop.permute.xlu0 %820
    %822 = vrot.lane.b32.xlu0 %v780, 28
    %v823 = vpop.permute.xlu0 %822
    %824 = vrot.lane.b32.xlu0 %v781, 28
    %v825 = vpop.permute.xlu0 %824
    %826 = vrot.lane.b32.xlu0 %v782, 28
    %v827 = vpop.permute.xlu0 %826
    %828 = vrot.lane.b32.xlu0 %v783, 28
    %v829 = vpop.permute.xlu0 %828
    %830 = vrot.lane.b32.xlu0 %v784, 28
    %v831 = vpop.permute.xlu0 %830
    %832 = vrot.lane.b32.xlu0 %v785, 28
    %v833 = vpop.permute.xlu0 %832
    %vm850 = vcmask 261344
    %851 = vst.msk [vmem:[#allocation3] sm:$0xff] %vm850, %v803
    %852 = vst.msk [vmem:[#allocation3 + $0x8] sm:$0xff] %vm850, %v805
    %853 = vst.msk [vmem:[#allocation3 + $0x10] sm:$0xff] %vm850, %v807
    %854 = vst.msk [vmem:[#allocation3 + $0x18] sm:$0xff] %vm850, %v809
    %855 = vst.msk [vmem:[#allocation3 + $0x20] sm:$0xff] %vm850, %v811
    %856 = vst.msk [vmem:[#allocation3 + $0x28] sm:$0xff] %vm850, %v813
    %857 = vst.msk [vmem:[#allocation3 + $0x30] sm:$0xff] %vm850, %v815
    %858 = vst.msk [vmem:[#allocation3 + $0x38] sm:$0xff] %vm850, %v817
    %859 = vst.msk [vmem:[#allocation3 + $0x40] sm:$0xff] %vm850, %v819
    %860 = vst.msk [vmem:[#allocation3 + $0x48] sm:$0xff] %vm850, %v821
    %861 = vst.msk [vmem:[#allocation3 + $0x50] sm:$0xff] %vm850, %v823
    %862 = vst.msk [vmem:[#allocation3 + $0x58] sm:$0xff] %vm850, %v825
    %863 = vst.msk [vmem:[#allocation3 + $0x60] sm:$0xff] %vm850, %v827
    %864 = vst.msk [vmem:[#allocation3 + $0x68] sm:$0xff] %vm850, %v829
    %865 = vst.msk [vmem:[#allocation3 + $0x70] sm:$0xff] %vm850, %v831
    %866 = vst.msk [vmem:[#allocation3 + $0x78] sm:$0xff] %vm850, %v833
    %v867 = vld [vmem:[%s672 + $0x2] sm:$0xff]
    %v868 = vld [vmem:[%s672 + $0x12] sm:$0xff]
    %v869 = vld [vmem:[%s672 + $0x22] sm:$0xff]
    %v870 = vld [vmem:[%s672 + $0x32] sm:$0xff]
    %v871 = vld [vmem:[%s672 + $0x42] sm:$0xff]
    %v872 = vld [vmem:[%s672 + $0x52] sm:$0xff]
    %v873 = vld [vmem:[%s672 + $0x62] sm:$0xff]
    %v874 = vld [vmem:[%s672 + $0x72] sm:$0xff]
    %v875 = vld [vmem:[%s672 + $0xa2] sm:$0xff]
    %v876 = vld [vmem:[%s672 + $0xb2] sm:$0xff]
    %v877 = vld [vmem:[%s672 + $0xc2] sm:$0xff]
    %v878 = vld [vmem:[%s672 + $0xd2] sm:$0xff]
    %v879 = vld [vmem:[%s672 + $0xe2] sm:$0xff]
    %v880 = vld [vmem:[%s672 + $0xf2] sm:$0xff]
    %v881 = vld [vmem:[%s672 + $0x102] sm:$0xff]
    %v882 = vld [vmem:[%s672 + $0x112] sm:$0xff]
    %899 = vrot.lane.b32.xlu0 %v867, 32
    %v900 = vpop.permute.xlu0 %899
    %901 = vrot.lane.b32.xlu0 %v868, 32
    %v902 = vpop.permute.xlu0 %901
    %903 = vrot.lane.b32.xlu0 %v869, 32
    %v904 = vpop.permute.xlu0 %903
    %905 = vrot.lane.b32.xlu0 %v870, 32
    %v906 = vpop.permute.xlu0 %905
    %907 = vrot.lane.b32.xlu0 %v871, 32
    %v908 = vpop.permute.xlu0 %907
    %909 = vrot.lane.b32.xlu0 %v872, 32
    %v910 = vpop.permute.xlu0 %909
    %911 = vrot.lane.b32.xlu0 %v873, 32
    %v912 = vpop.permute.xlu0 %911
    %913 = vrot.lane.b32.xlu0 %v874, 32
    %v914 = vpop.permute.xlu0 %913
    %915 = vrot.lane.b32.xlu0 %v875, 32
    %v916 = vpop.permute.xlu0 %915
    %917 = vrot.lane.b32.xlu0 %v876, 32
    %v918 = vpop.permute.xlu0 %917
    %919 = vrot.lane.b32.xlu0 %v877, 32
    %v920 = vpop.permute.xlu0 %919
    %921 = vrot.lane.b32.xlu0 %v878, 32
    %v922 = vpop.permute.xlu0 %921
    %923 = vrot.lane.b32.xlu0 %v879, 32
    %v924 = vpop.permute.xlu0 %923
    %925 = vrot.lane.b32.xlu0 %v880, 32
    %v926 = vpop.permute.xlu0 %925
    %927 = vrot.lane.b32.xlu0 %v881, 32
    %v928 = vpop.permute.xlu0 %927
    %929 = vrot.lane.b32.xlu0 %v882, 32
    %v930 = vpop.permute.xlu0 %929
    %vm947 = vcmask 294144
    %948 = vst.msk [vmem:[#allocation3] sm:$0xff] %vm947, %v900
    %949 = vst.msk [vmem:[#allocation3 + $0x8] sm:$0xff] %vm947, %v902
    %950 = vst.msk [vmem:[#allocation3 + $0x10] sm:$0xff] %vm947, %v904
    %951 = vst.msk [vmem:[#allocation3 + $0x18] sm:$0xff] %vm947, %v906
    %952 = vst.msk [vmem:[#allocation3 + $0x20] sm:$0xff] %vm947, %v908
    %953 = vst.msk [vmem:[#allocation3 + $0x28] sm:$0xff] %vm947, %v910
    %954 = vst.msk [vmem:[#allocation3 + $0x30] sm:$0xff] %vm947, %v912
    %955 = vst.msk [vmem:[#allocation3 + $0x38] sm:$0xff] %vm947, %v914
    %956 = vst.msk [vmem:[#allocation3 + $0x40] sm:$0xff] %vm947, %v916
    %957 = vst.msk [vmem:[#allocation3 + $0x48] sm:$0xff] %vm947, %v918
    %958 = vst.msk [vmem:[#allocation3 + $0x50] sm:$0xff] %vm947, %v920
    %959 = vst.msk [vmem:[#allocation3 + $0x58] sm:$0xff] %vm947, %v922
    %960 = vst.msk [vmem:[#allocation3 + $0x60] sm:$0xff] %vm947, %v924
    %961 = vst.msk [vmem:[#allocation3 + $0x68] sm:$0xff] %vm947, %v926
    %962 = vst.msk [vmem:[#allocation3 + $0x70] sm:$0xff] %vm947, %v928
    %963 = vst.msk [vmem:[#allocation3 + $0x78] sm:$0xff] %vm947, %v930
    %v964 = vld [vmem:[#allocation3] sm:$0xff]
    %v965 = vld [vmem:[#allocation3 + $0x8] sm:$0xff]
    %v966 = vld [vmem:[#allocation3 + $0x10] sm:$0xff]
    %v967 = vld [vmem:[#allocation3 + $0x18] sm:$0xff]
    %v968 = vld [vmem:[#allocation3 + $0x20] sm:$0xff]
    %v969 = vld [vmem:[#allocation3 + $0x28] sm:$0xff]
    %v970 = vld [vmem:[#allocation3 + $0x30] sm:$0xff]
    %v971 = vld [vmem:[#allocation3 + $0x38] sm:$0xff]
    %v972 = vld [vmem:[#allocation3 + $0x40] sm:$0xff]
    %v973 = vld [vmem:[#allocation3 + $0x48] sm:$0xff]
    %v974 = vld [vmem:[#allocation3 + $0x50] sm:$0xff]
    %v975 = vld [vmem:[#allocation3 + $0x58] sm:$0xff]
    %v976 = vld [vmem:[#allocation3 + $0x60] sm:$0xff]
    %v977 = vld [vmem:[#allocation3 + $0x68] sm:$0xff]
    %v978 = vld [vmem:[#allocation3 + $0x70] sm:$0xff]
    %v979 = vld [vmem:[#allocation3 + $0x78] sm:$0xff]
    %v980 = vpack.c.bf16 %v965, %v964
    %v981 = vpack.c.bf16 %v967, %v966
    %v982 = vpack.c.bf16 %v969, %v968
    %v983 = vpack.c.bf16 %v971, %v970
    %v984 = vpack.c.bf16 %v973, %v972
    %v985 = vpack.c.bf16 %v975, %v974
    %v986 = vpack.c.bf16 %v977, %v976
    %v987 = vpack.c.bf16 %v979, %v978
    %v988 = vld [vmem:[%s2] sm:$0xff]
    %v989 = vld [vmem:[%s2 + $0x8] sm:$0xff]
    %v990 = vld [vmem:[%s2 + $0x10] sm:$0xff]
    %v991 = vld [vmem:[%s2 + $0x18] sm:$0xff]
    %v992 = vld [vmem:[%s2 + $0x20] sm:$0xf]
    %v993 = vpack.c.bf16 %v989, %v988
    %v994 = vpack.c.bf16 %v991, %v990
    %v995 = vpack.c.bf16 %v992, %v992
    %v996 = vld [vmem:[%s3] sm:$0x1]
    %v998 = vlaneseq
    %v999 = vshrl.u32 %v998, 7
    %v1000 = vsub.s32 0, %v999
    %v1001 = vrot.slane %v996, %v1000
    %vm1003 = vcmask 293888
    %v1005 = vsel %vm1003, %v980, 0
    %v1008 = vsel %vm1003, %v981, 0
    %v1011 = vsel %vm1003, %v982, 0
    %v1014 = vsel %vm1003, %v983, 0
    %v1017 = vsel %vm1003, %v984, 0
    %v1020 = vsel %vm1003, %v985, 0
    %v1023 = vsel %vm1003, %v986, 0
    %v1026 = vsel %vm1003, %v987, 0
    %vm1028 = vcmask 1041408
    %v1030 = vsel %vm1028, %v995, 0
    %1032 = vmatprep.subr.bf16.mxu0 0
    %1033 = vmatpush1.bf16.msra.mxu0 %v993
    %1034 = vmatprep.subr.bf16.mxu0 0
    %1035 = vmatpush1.bf16.msra.mxu0 %v994
    %1036 = vmatprep.subr.bf16.mxu0 0
    %1037 = vmatpush1.bf16.msra.mxu0 %v1030
    %1038 = vmatprep.subr.bf16.mxu0 0
    %1039 = vmatpush1.bf16.msra.mxu0 0
    %1040 = vmatprep.subr.bf16.mxu0 0
    %1041 = vmatpush1.bf16.msra.mxu0 0
    %1042 = vmatprep.subr.bf16.mxu0 0
    %1043 = vmatpush1.bf16.msra.mxu0 0
    %1044 = vmatprep.subr.bf16.mxu0 0
    %1045 = vmatpush1.bf16.msra.mxu0 0
    %1046 = vmatprep.subr.bf16.mxu0 0
    %1047 = vmatpush1.bf16.msra.mxu0 0
    %1048 = vmatprep.subr.bf16.mxu0 0
    %1049 = vmatpush1.bf16.msra.mxu0 0
    %1050 = vmatprep.subr.bf16.mxu0 0
    %1051 = vmatpush1.bf16.msra.mxu0 0
    %1052 = vmatprep.subr.bf16.mxu0 0
    %1053 = vmatpush1.bf16.msra.mxu0 0
    %1054 = vmatprep.subr.bf16.mxu0 0
    %1055 = vmatpush1.bf16.msra.mxu0 0
    %1056 = vmatprep.subr.bf16.mxu0 0
    %1057 = vmatpush1.bf16.msra.mxu0 0
    %1058 = vmatprep.subr.bf16.mxu0 0
    %1059 = vmatpush1.bf16.msra.mxu0 0
    %1060 = vmatprep.subr.bf16.mxu0 0
    %1061 = vmatpush1.bf16.msra.mxu0 0
    %1062 = vmatprep.subr.bf16.mxu0 0
    %1063 = vmatpush1.bf16.msra.mxu0 0
    %1064 = vmatprep.mubr.bf16.mxu0 0
    %1065 = vmatmul.mubr.bf16.gmra.mrb[0].mxu0 %v1005
    %v1066 = vpop.f32.mrb[0].mxu0
    %v1067 = vadd.f32 %v1001, %v1066
    %v1068 = vpop.f32.mrb[0].mxu0
    %v1069 = vpop.f32.mrb[0].mxu0
    %v1070 = vadd.f32 %v1001, %v1069
    %v1071 = vpop.f32.mrb[0].mxu0
    %1072 = vmatprep.mubr.bf16.mxu0 0
    %1073 = vmatmul.mubr.bf16.gmra.mrb[0].mxu0 %v1008
    %v1074 = vpop.f32.mrb[0].mxu0
    %v1075 = vadd.f32 %v1001, %v1074
    %v1076 = vpop.f32.mrb[0].mxu0
    %v1077 = vpop.f32.mrb[0].mxu0
    %v1078 = vadd.f32 %v1001, %v1077
    %v1079 = vpop.f32.mrb[0].mxu0
    %1080 = vmatprep.mubr.bf16.mxu0 0
    %1081 = vmatmul.mubr.bf16.gmra.mrb[0].mxu0 %v1011
    %v1082 = vpop.f32.mrb[0].mxu0
    %v1083 = vadd.f32 %v1001, %v1082
    %v1084 = vpop.f32.mrb[0].mxu0
    %v1085 = vpop.f32.mrb[0].mxu0
    %v1086 = vadd.f32 %v1001, %v1085
    %v1087 = vpop.f32.mrb[0].mxu0
    %1088 = vmatprep.mubr.bf16.mxu0 0
    %1089 = vmatmul.mubr.bf16.gmra.mrb[0].mxu0 %v1014
    %v1090 = vpop.f32.mrb[0].mxu0
    %v1091 = vadd.f32 %v1001, %v1090
    %v1092 = vpop.f32.mrb[0].mxu0
    %v1093 = vpop.f32.mrb[0].mxu0
    %v1094 = vadd.f32 %v1001, %v1093
    %v1095 = vpop.f32.mrb[0].mxu0
    %1096 = vmatprep.mubr.bf16.mxu0 0
    %1097 = vmatmul.mubr.bf16.gmra.mrb[0].mxu0 %v1017
    %v1098 = vpop.f32.mrb[0].mxu0
    %v1099 = vadd.f32 %v1001, %v1098
    %v1100 = vpop.f32.mrb[0].mxu0
    %v1101 = vpop.f32.mrb[0].mxu0
    %v1102 = vadd.f32 %v1001, %v1101
    %v1103 = vpop.f32.mrb[0].mxu0
    %1104 = vmatprep.mubr.bf16.mxu0 0
    %1105 = vmatmul.mubr.bf16.gmra.mrb[0].mxu0 %v1020
    %v1106 = vpop.f32.mrb[0].mxu0
    %v1107 = vadd.f32 %v1001, %v1106
    %v1108 = vpop.f32.mrb[0].mxu0
    %v1109 = vpop.f32.mrb[0].mxu0
    %v1110 = vadd.f32 %v1001, %v1109
    %v1111 = vpop.f32.mrb[0].mxu0
    %1112 = vmatprep.mubr.bf16.mxu0 0
    %1113 = vmatmul.mubr.bf16.gmra.mrb[0].mxu0 %v1023
    %v1114 = vpop.f32.mrb[0].mxu0
    %v1115 = vadd.f32 %v1001, %v1114
    %v1116 = vpop.f32.mrb[0].mxu0
    %v1117 = vpop.f32.mrb[0].mxu0
    %v1118 = vadd.f32 %v1001, %v1117
    %v1119 = vpop.f32.mrb[0].mxu0
    %1120 = vmatprep.mubr.bf16.mxu0 0
    %1121 = vmatmul.mubr.bf16.gmra.mrb[0].mxu0 %v1026
    %v1122 = vpop.f32.mrb[0].mxu0
    %v1123 = vadd.f32 %v1001, %v1122
    %v1124 = vpop.f32.mrb[0].mxu0
    %v1125 = vpop.f32.mrb[0].mxu0
    %v1126 = vadd.f32 %v1001, %v1125
    %v1127 = vpop.f32.mrb[0].mxu0
    %1128 = vdwg.mxu0
    %v1129 = vmax.f32 %v1067, 0.0
    %v1130 = vmax.f32 %v1070, 0.0
    %v1131 = vmax.f32 %v1075, 0.0
    %v1132 = vmax.f32 %v1078, 0.0
    %v1133 = vmax.f32 %v1083, 0.0
    %v1134 = vmax.f32 %v1086, 0.0
    %v1135 = vmax.f32 %v1091, 0.0
    %v1136 = vmax.f32 %v1094, 0.0
    %v1137 = vmax.f32 %v1099, 0.0
    %v1138 = vmax.f32 %v1102, 0.0
    %v1139 = vmax.f32 %v1107, 0.0
    %v1140 = vmax.f32 %v1110, 0.0
    %v1141 = vmax.f32 %v1115, 0.0
    %v1142 = vmax.f32 %v1118, 0.0
    %v1143 = vmax.f32 %v1123, 0.0
    %v1144 = vmax.f32 %v1126, 0.0
    %vm1145 = vcmask 261120
    %1146 = vst.msk [vmem:[#allocation4] sm:$0xff] %vm1145, 0.0
    %vm1147 = vcmask 254976
    %1148 = vst.msk [vmem:[#allocation4 + $0x8] sm:$0x3] %vm1147, 0.0
    %1149 = vst.msk [vmem:[#allocation4 + $0x10] sm:$0xff] %vm1145, 0.0
    %1150 = vst.msk [vmem:[#allocation4 + $0x18] sm:$0x3] %vm1147, 0.0
    %1151 = vst.msk [vmem:[#allocation4 + $0x20] sm:$0xff] %vm1145, 0.0
    %1152 = vst.msk [vmem:[#allocation4 + $0x28] sm:$0x3] %vm1147, 0.0
    %1153 = vst.msk [vmem:[#allocation4 + $0x30] sm:$0xff] %vm1145, 0.0
    %1154 = vst.msk [vmem:[#allocation4 + $0x38] sm:$0x3] %vm1147, 0.0
    %1155 = vst.msk [vmem:[#allocation4 + $0x40] sm:$0xff] %vm1145, 0.0
    %1156 = vst.msk [vmem:[#allocation4 + $0x48] sm:$0x3] %vm1147, 0.0
    %1157 = vst.msk [vmem:[#allocation4 + $0x50] sm:$0xff] %vm1145, 0.0
    %1158 = vst.msk [vmem:[#allocation4 + $0x58] sm:$0x3] %vm1147, 0.0
    %1159 = vst.msk [vmem:[#allocation4 + $0x60] sm:$0xff] %vm1145, 0.0
    %1160 = vst.msk [vmem:[#allocation4 + $0x68] sm:$0x3] %vm1147, 0.0
    %1161 = vst.msk [vmem:[#allocation4 + $0x70] sm:$0xff] %vm1145, 0.0
    %1162 = vst.msk [vmem:[#allocation4 + $0x78] sm:$0x3] %vm1147, 0.0
    %1163 = vst.msk [vmem:[#allocation4 + $0x80] sm:$0xff] %vm1145, 0.0
    %1164 = vst.msk [vmem:[#allocation4 + $0x88] sm:$0x3] %vm1147, 0.0
    %1165 = vst.msk [vmem:[#allocation4 + $0x90] sm:$0xff] %vm1145, 0.0
    %1166 = vst.msk [vmem:[#allocation4 + $0x98] sm:$0x3] %vm1147, 0.0
    %1167 = vst.msk [vmem:[#allocation4 + $0xa0] sm:$0xff] %vm1145, 0.0
    %1168 = vst.msk [vmem:[#allocation4 + $0xa8] sm:$0x3] %vm1147, 0.0
    %1169 = vst.msk [vmem:[#allocation4 + $0xb0] sm:$0xff] %vm1145, 0.0
    %1170 = vst.msk [vmem:[#allocation4 + $0xb8] sm:$0x3] %vm1147, 0.0
    %1171 = vst.msk [vmem:[#allocation4 + $0xc0] sm:$0xff] %vm1145, 0.0
    %1172 = vst.msk [vmem:[#allocation4 + $0xc8] sm:$0x3] %vm1147, 0.0
    %1173 = vst.msk [vmem:[#allocation4 + $0xd0] sm:$0xff] %vm1145, 0.0
    %1174 = vst.msk [vmem:[#allocation4 + $0xd8] sm:$0x3] %vm1147, 0.0
    %1175 = vst.msk [vmem:[#allocation4 + $0xe0] sm:$0xff] %vm1145, 0.0
    %1176 = vst.msk [vmem:[#allocation4 + $0xe8] sm:$0x3] %vm1147, 0.0
    %1177 = vst.msk [vmem:[#allocation4 + $0xf0] sm:$0xff] %vm1145, 0.0
    %1178 = vst.msk [vmem:[#allocation4 + $0xf8] sm:$0x3] %vm1147, 0.0
    %1179 = vst.msk [vmem:[#allocation4 + $0x100] sm:$0xff] %vm1145, 0.0
    %1180 = vst.msk [vmem:[#allocation4 + $0x108] sm:$0x3] %vm1147, 0.0
    %1181 = vst.msk [vmem:[#allocation4 + $0x110] sm:$0xff] %vm1145, 0.0
    %1182 = vst.msk [vmem:[#allocation4 + $0x118] sm:$0x3] %vm1147, 0.0
    %1183 = vst.msk [vmem:[#allocation4 + $0x120] sm:$0xff] %vm1145, 0.0
    %1184 = vst.msk [vmem:[#allocation4 + $0x128] sm:$0x3] %vm1147, 0.0
    %1185 = vst.msk [vmem:[#allocation4 + $0x130] sm:$0xff] %vm1145, 0.0
    %1186 = vst.msk [vmem:[#allocation4 + $0x138] sm:$0x3] %vm1147, 0.0
    %s1187 = scalar_lea.vmem [#allocation4], 16
    %1188 = vst.msk [vmem:[%s1187 + $0x1] sm:$0xff] %vm1145, %v1129
    %1189 = vst.msk [vmem:[%s1187 + $0x11] sm:$0xff] %vm1145, %v1130
    %1190 = vst.msk [vmem:[%s1187 + $0x21] sm:$0xff] %vm1145, %v1131
    %1191 = vst.msk [vmem:[%s1187 + $0x31] sm:$0xff] %vm1145, %v1132
    %1192 = vst.msk [vmem:[%s1187 + $0x41] sm:$0xff] %vm1145, %v1133
    %1193 = vst.msk [vmem:[%s1187 + $0x51] sm:$0xff] %vm1145, %v1134
    %1194 = vst.msk [vmem:[%s1187 + $0x61] sm:$0xff] %vm1145, %v1135
    %1195 = vst.msk [vmem:[%s1187 + $0x71] sm:$0xff] %vm1145, %v1136
    %1196 = vst.msk [vmem:[%s1187 + $0xa1] sm:$0xff] %vm1145, %v1137
    %1197 = vst.msk [vmem:[%s1187 + $0xb1] sm:$0xff] %vm1145, %v1138
    %1198 = vst.msk [vmem:[%s1187 + $0xc1] sm:$0xff] %vm1145, %v1139
    %1199 = vst.msk [vmem:[%s1187 + $0xd1] sm:$0xff] %vm1145, %v1140
    %1200 = vst.msk [vmem:[%s1187 + $0xe1] sm:$0xff] %vm1145, %v1141
    %1201 = vst.msk [vmem:[%s1187 + $0xf1] sm:$0xff] %vm1145, %v1142
    %1202 = vst.msk [vmem:[%s1187 + $0x101] sm:$0xff] %vm1145, %v1143
    %1203 = vst.msk [vmem:[%s1187 + $0x111] sm:$0xff] %vm1145, %v1144
    %v1204 = vld [vmem:[#allocation4] sm:$0xff]
    %v1205 = vld [vmem:[#allocation4 + $0x10] sm:$0xff]
    %v1206 = vld [vmem:[#allocation4 + $0x20] sm:$0xff]
    %v1207 = vld [vmem:[#allocation4 + $0x30] sm:$0xff]
    %v1208 = vld [vmem:[#allocation4 + $0x40] sm:$0xff]
    %v1209 = vld [vmem:[#allocation4 + $0x50] sm:$0xff]
    %v1210 = vld [vmem:[#allocation4 + $0x60] sm:$0xff]
    %v1211 = vld [vmem:[#allocation4 + $0x70] sm:$0xff]
    %v1212 = vld [vmem:[#allocation4 + $0xa0] sm:$0xff]
    %v1213 = vld [vmem:[#allocation4 + $0xb0] sm:$0xff]
    %v1214 = vld [vmem:[#allocation4 + $0xc0] sm:$0xff]
    %v1215 = vld [vmem:[#allocation4 + $0xd0] sm:$0xff]
    %v1216 = vld [vmem:[#allocation4 + $0xe0] sm:$0xff]
    %v1217 = vld [vmem:[#allocation4 + $0xf0] sm:$0xff]
    %v1218 = vld [vmem:[#allocation4 + $0x100] sm:$0xff]
    %v1219 = vld [vmem:[#allocation4 + $0x110] sm:$0xff]
    %1220 = vst.msk [vmem:[#allocation5] sm:$0xff] %vm1145, %v1204
    %1221 = vst.msk [vmem:[#allocation5 + $0x18] sm:$0xff] %vm1145, %v1205
    %1222 = vst.msk [vmem:[#allocation5 + $0x30] sm:$0xff] %vm1145, %v1206
    %1223 = vst.msk [vmem:[#allocation5 + $0x48] sm:$0xff] %vm1145, %v1207
    %1224 = vst.msk [vmem:[#allocation5 + $0x60] sm:$0xff] %vm1145, %v1208
    %1225 = vst.msk [vmem:[#allocation5 + $0x78] sm:$0xff] %vm1145, %v1209
    %1226 = vst.msk [vmem:[#allocation5 + $0x90] sm:$0xff] %vm1145, %v1210
    %1227 = vst.msk [vmem:[#allocation5 + $0xa8] sm:$0xff] %vm1145, %v1211
    %1228 = vst.msk [vmem:[#allocation5 + $0xc0] sm:$0xff] %vm1145, %v1212
    %1229 = vst.msk [vmem:[#allocation5 + $0xd8] sm:$0xff] %vm1145, %v1213
    %1230 = vst.msk [vmem:[#allocation5 + $0xf0] sm:$0xff] %vm1145, %v1214
    %1231 = vst.msk [vmem:[#allocation5 + $0x108] sm:$0xff] %vm1145, %v1215
    %1232 = vst.msk [vmem:[#allocation5 + $0x120] sm:$0xff] %vm1145, %v1216
    %1233 = vst.msk [vmem:[#allocation5 + $0x138] sm:$0xff] %vm1145, %v1217
    %1234 = vst.msk [vmem:[#allocation5 + $0x150] sm:$0xff] %vm1145, %v1218
    %1235 = vst.msk [vmem:[#allocation5 + $0x168] sm:$0xff] %vm1145, %v1219
    %v1236 = vld [vmem:[#allocation4 + $0x1] sm:$0xff]
    %v1237 = vld [vmem:[#allocation4 + $0x11] sm:$0xff]
    %v1238 = vld [vmem:[#allocation4 + $0x21] sm:$0xff]
    %v1239 = vld [vmem:[#allocation4 + $0x31] sm:$0xff]
    %v1240 = vld [vmem:[#allocation4 + $0x41] sm:$0xff]
    %v1241 = vld [vmem:[#allocation4 + $0x51] sm:$0xff]
    %v1242 = vld [vmem:[#allocation4 + $0x61] sm:$0xff]
    %v1243 = vld [vmem:[#allocation4 + $0x71] sm:$0xff]
    %v1244 = vld [vmem:[#allocation4 + $0xa1] sm:$0xff]
    %v1245 = vld [vmem:[#allocation4 + $0xb1] sm:$0xff]
    %v1246 = vld [vmem:[#allocation4 + $0xc1] sm:$0xff]
    %v1247 = vld [vmem:[#allocation4 + $0xd1] sm:$0xff]
    %v1248 = vld [vmem:[#allocation4 + $0xe1] sm:$0xff]
    %v1249 = vld [vmem:[#allocation4 + $0xf1] sm:$0xff]
    %v1250 = vld [vmem:[#allocation4 + $0x101] sm:$0xff]
    %v1251 = vld [vmem:[#allocation4 + $0x111] sm:$0xff]
    %1268 = vrot.lane.b32.xlu0 %v1236, 32
    %v1269 = vpop.permute.xlu0 %1268
    %1270 = vrot.lane.b32.xlu0 %v1237, 32
    %v1271 = vpop.permute.xlu0 %1270
    %1272 = vrot.lane.b32.xlu0 %v1238, 32
    %v1273 = vpop.permute.xlu0 %1272
    %1274 = vrot.lane.b32.xlu0 %v1239, 32
    %v1275 = vpop.permute.xlu0 %1274
    %1276 = vrot.lane.b32.xlu0 %v1240, 32
    %v1277 = vpop.permute.xlu0 %1276
    %1278 = vrot.lane.b32.xlu0 %v1241, 32
    %v1279 = vpop.permute.xlu0 %1278
    %1280 = vrot.lane.b32.xlu0 %v1242, 32
    %v1281 = vpop.permute.xlu0 %1280
    %1282 = vrot.lane.b32.xlu0 %v1243, 32
    %v1283 = vpop.permute.xlu0 %1282
    %1284 = vrot.lane.b32.xlu0 %v1244, 32
    %v1285 = vpop.permute.xlu0 %1284
    %1286 = vrot.lane.b32.xlu0 %v1245, 32
    %v1287 = vpop.permute.xlu0 %1286
    %1288 = vrot.lane.b32.xlu0 %v1246, 32
    %v1289 = vpop.permute.xlu0 %1288
    %1290 = vrot.lane.b32.xlu0 %v1247, 32
    %v1291 = vpop.permute.xlu0 %1290
    %1292 = vrot.lane.b32.xlu0 %v1248, 32
    %v1293 = vpop.permute.xlu0 %1292
    %1294 = vrot.lane.b32.xlu0 %v1249, 32
    %v1295 = vpop.permute.xlu0 %1294
    %1296 = vrot.lane.b32.xlu0 %v1250, 32
    %v1297 = vpop.permute.xlu0 %1296
    %1298 = vrot.lane.b32.xlu0 %v1251, 32
    %v1299 = vpop.permute.xlu0 %1298
    %vm1316 = vcmask 523520
    %1317 = vst.msk [vmem:[#allocation5] sm:$0xff] %vm1316, %v1269
    %1318 = vst.msk [vmem:[#allocation5 + $0x18] sm:$0xff] %vm1316, %v1271
    %1319 = vst.msk [vmem:[#allocation5 + $0x30] sm:$0xff] %vm1316, %v1273
    %1320 = vst.msk [vmem:[#allocation5 + $0x48] sm:$0xff] %vm1316, %v1275
    %1321 = vst.msk [vmem:[#allocation5 + $0x60] sm:$0xff] %vm1316, %v1277
    %1322 = vst.msk [vmem:[#allocation5 + $0x78] sm:$0xff] %vm1316, %v1279
    %1323 = vst.msk [vmem:[#allocation5 + $0x90] sm:$0xff] %vm1316, %v1281
    %1324 = vst.msk [vmem:[#allocation5 + $0xa8] sm:$0xff] %vm1316, %v1283
    %1325 = vst.msk [vmem:[#allocation5 + $0xc0] sm:$0xff] %vm1316, %v1285
    %1326 = vst.msk [vmem:[#allocation5 + $0xd8] sm:$0xff] %vm1316, %v1287
    %1327 = vst.msk [vmem:[#allocation5 + $0xf0] sm:$0xff] %vm1316, %v1289
    %1328 = vst.msk [vmem:[#allocation5 + $0x108] sm:$0xff] %vm1316, %v1291
    %1329 = vst.msk [vmem:[#allocation5 + $0x120] sm:$0xff] %vm1316, %v1293
    %1330 = vst.msk [vmem:[#allocation5 + $0x138] sm:$0xff] %vm1316, %v1295
    %1331 = vst.msk [vmem:[#allocation5 + $0x150] sm:$0xff] %vm1316, %v1297
    %1332 = vst.msk [vmem:[#allocation5 + $0x168] sm:$0xff] %vm1316, %v1299
    %v1333 = vld [vmem:[#allocation4 + $0x2] sm:$0xff]
    %v1334 = vld [vmem:[#allocation4 + $0x12] sm:$0xff]
    %v1335 = vld [vmem:[#allocation4 + $0x22] sm:$0xff]
    %v1336 = vld [vmem:[#allocation4 + $0x32] sm:$0xff]
    %v1337 = vld [vmem:[#allocation4 + $0x42] sm:$0xff]
    %v1338 = vld [vmem:[#allocation4 + $0x52] sm:$0xff]
    %v1339 = vld [vmem:[#allocation4 + $0x62] sm:$0xff]
    %v1340 = vld [vmem:[#allocation4 + $0x72] sm:$0xff]
    %v1341 = vld [vmem:[#allocation4 + $0xa2] sm:$0xff]
    %v1342 = vld [vmem:[#allocation4 + $0xb2] sm:$0xff]
    %v1343 = vld [vmem:[#allocation4 + $0xc2] sm:$0xff]
    %v1344 = vld [vmem:[#allocation4 + $0xd2] sm:$0xff]
    %v1345 = vld [vmem:[#allocation4 + $0xe2] sm:$0xff]
    %v1346 = vld [vmem:[#allocation4 + $0xf2] sm:$0xff]
    %v1347 = vld [vmem:[#allocation4 + $0x102] sm:$0xff]
    %v1348 = vld [vmem:[#allocation4 + $0x112] sm:$0xff]
    %1365 = vrot.lane.b32.xlu0 %v1333, 64
    %v1366 = vpop.permute.xlu0 %1365
    %1367 = vrot.lane.b32.xlu0 %v1334, 64
    %v1368 = vpop.permute.xlu0 %1367
    %1369 = vrot.lane.b32.xlu0 %v1335, 64
    %v1370 = vpop.permute.xlu0 %1369
    %1371 = vrot.lane.b32.xlu0 %v1336, 64
    %v1372 = vpop.permute.xlu0 %1371
    %1373 = vrot.lane.b32.xlu0 %v1337, 64
    %v1374 = vpop.permute.xlu0 %1373
    %1375 = vrot.lane.b32.xlu0 %v1338, 64
    %v1376 = vpop.permute.xlu0 %1375
    %1377 = vrot.lane.b32.xlu0 %v1339, 64
    %v1378 = vpop.permute.xlu0 %1377
    %1379 = vrot.lane.b32.xlu0 %v1340, 64
    %v1380 = vpop.permute.xlu0 %1379
    %1381 = vrot.lane.b32.xlu0 %v1341, 64
    %v1382 = vpop.permute.xlu0 %1381
    %1383 = vrot.lane.b32.xlu0 %v1342, 64
    %v1384 = vpop.permute.xlu0 %1383
    %1385 = vrot.lane.b32.xlu0 %v1343, 64
    %v1386 = vpop.permute.xlu0 %1385
    %1387 = vrot.lane.b32.xlu0 %v1344, 64
    %v1388 = vpop.permute.xlu0 %1387
    %1389 = vrot.lane.b32.xlu0 %v1345, 64
    %v1390 = vpop.permute.xlu0 %1389
    %1391 = vrot.lane.b32.xlu0 %v1346, 64
    %v1392 = vpop.permute.xlu0 %1391
    %1393 = vrot.lane.b32.xlu0 %v1347, 64
    %v1394 = vpop.permute.xlu0 %1393
    %1395 = vrot.lane.b32.xlu0 %v1348, 64
    %v1396 = vpop.permute.xlu0 %1395
    %vm1413 = vcmask 785920
    %1414 = vst.msk [vmem:[#allocation5] sm:$0xff] %vm1413, %v1366
    %1415 = vst.msk [vmem:[#allocation5 + $0x18] sm:$0xff] %vm1413, %v1368
    %1416 = vst.msk [vmem:[#allocation5 + $0x30] sm:$0xff] %vm1413, %v1370
    %1417 = vst.msk [vmem:[#allocation5 + $0x48] sm:$0xff] %vm1413, %v1372
    %1418 = vst.msk [vmem:[#allocation5 + $0x60] sm:$0xff] %vm1413, %v1374
    %1419 = vst.msk [vmem:[#allocation5 + $0x78] sm:$0xff] %vm1413, %v1376
    %1420 = vst.msk [vmem:[#allocation5 + $0x90] sm:$0xff] %vm1413, %v1378
    %1421 = vst.msk [vmem:[#allocation5 + $0xa8] sm:$0xff] %vm1413, %v1380
    %1422 = vst.msk [vmem:[#allocation5 + $0xc0] sm:$0xff] %vm1413, %v1382
    %1423 = vst.msk [vmem:[#allocation5 + $0xd8] sm:$0xff] %vm1413, %v1384
    %1424 = vst.msk [vmem:[#allocation5 + $0xf0] sm:$0xff] %vm1413, %v1386
    %1425 = vst.msk [vmem:[#allocation5 + $0x108] sm:$0xff] %vm1413, %v1388
    %1426 = vst.msk [vmem:[#allocation5 + $0x120] sm:$0xff] %vm1413, %v1390
    %1427 = vst.msk [vmem:[#allocation5 + $0x138] sm:$0xff] %vm1413, %v1392
    %1428 = vst.msk [vmem:[#allocation5 + $0x150] sm:$0xff] %vm1413, %v1394
    %1429 = vst.msk [vmem:[#allocation5 + $0x168] sm:$0xff] %vm1413, %v1396
    %v1430 = vld [vmem:[%s1187] sm:$0xff]
    %v1431 = vld [vmem:[%s1187 + $0x10] sm:$0xff]
    %v1432 = vld [vmem:[%s1187 + $0x20] sm:$0xff]
    %v1433 = vld [vmem:[%s1187 + $0x30] sm:$0xff]
    %v1434 = vld [vmem:[%s1187 + $0x40] sm:$0xff]
    %v1435 = vld [vmem:[%s1187 + $0x50] sm:$0xff]
    %v1436 = vld [vmem:[%s1187 + $0x60] sm:$0xff]
    %v1437 = vld [vmem:[%s1187 + $0x70] sm:$0xff]
    %v1438 = vld [vmem:[%s1187 + $0xa0] sm:$0xff]
    %v1439 = vld [vmem:[%s1187 + $0xb0] sm:$0xff]
    %v1440 = vld [vmem:[%s1187 + $0xc0] sm:$0xff]
    %v1441 = vld [vmem:[%s1187 + $0xd0] sm:$0xff]
    %v1442 = vld [vmem:[%s1187 + $0xe0] sm:$0xff]
    %v1443 = vld [vmem:[%s1187 + $0xf0] sm:$0xff]
    %v1444 = vld [vmem:[%s1187 + $0x100] sm:$0xff]
    %v1445 = vld [vmem:[%s1187 + $0x110] sm:$0xff]
    %1462 = vrot.lane.b32.xlu0 %v1430, 96
    %v1463 = vpop.permute.xlu0 %1462
    %1464 = vrot.lane.b32.xlu0 %v1431, 96
    %v1465 = vpop.permute.xlu0 %1464
    %1466 = vrot.lane.b32.xlu0 %v1432, 96
    %v1467 = vpop.permute.xlu0 %1466
    %1468 = vrot.lane.b32.xlu0 %v1433, 96
    %v1469 = vpop.permute.xlu0 %1468
    %1470 = vrot.lane.b32.xlu0 %v1434, 96
    %v1471 = vpop.permute.xlu0 %1470
    %1472 = vrot.lane.b32.xlu0 %v1435, 96
    %v1473 = vpop.permute.xlu0 %1472
    %1474 = vrot.lane.b32.xlu0 %v1436, 96
    %v1475 = vpop.permute.xlu0 %1474
    %1476 = vrot.lane.b32.xlu0 %v1437, 96
    %v1477 = vpop.permute.xlu0 %1476
    %1478 = vrot.lane.b32.xlu0 %v1438, 96
    %v1479 = vpop.permute.xlu0 %1478
    %1480 = vrot.lane.b32.xlu0 %v1439, 96
    %v1481 = vpop.permute.xlu0 %1480
    %1482 = vrot.lane.b32.xlu0 %v1440, 96
    %v1483 = vpop.permute.xlu0 %1482
    %1484 = vrot.lane.b32.xlu0 %v1441, 96
    %v1485 = vpop.permute.xlu0 %1484
    %1486 = vrot.lane.b32.xlu0 %v1442, 96
    %v1487 = vpop.permute.xlu0 %1486
    %1488 = vrot.lane.b32.xlu0 %v1443, 96
    %v1489 = vpop.permute.xlu0 %1488
    %1490 = vrot.lane.b32.xlu0 %v1444, 96
    %v1491 = vpop.permute.xlu0 %1490
    %1492 = vrot.lane.b32.xlu0 %v1445, 96
    %v1493 = vpop.permute.xlu0 %1492
    %vm1510 = vcmask 1048320
    %1511 = vst.msk [vmem:[#allocation5] sm:$0xff] %vm1510, %v1463
    %1512 = vst.msk [vmem:[#allocation5 + $0x18] sm:$0xff] %vm1510, %v1465
    %1513 = vst.msk [vmem:[#allocation5 + $0x30] sm:$0xff] %vm1510, %v1467
    %1514 = vst.msk [vmem:[#allocation5 + $0x48] sm:$0xff] %vm1510, %v1469
    %1515 = vst.msk [vmem:[#allocation5 + $0x60] sm:$0xff] %vm1510, %v1471
    %1516 = vst.msk [vmem:[#allocation5 + $0x78] sm:$0xff] %vm1510, %v1473
    %1517 = vst.msk [vmem:[#allocation5 + $0x90] sm:$0xff] %vm1510, %v1475
    %1518 = vst.msk [vmem:[#allocation5 + $0xa8] sm:$0xff] %vm1510, %v1477
    %1519 = vst.msk [vmem:[#allocation5 + $0xc0] sm:$0xff] %vm1510, %v1479
    %1520 = vst.msk [vmem:[#allocation5 + $0xd8] sm:$0xff] %vm1510, %v1481
    %1521 = vst.msk [vmem:[#allocation5 + $0xf0] sm:$0xff] %vm1510, %v1483
    %1522 = vst.msk [vmem:[#allocation5 + $0x108] sm:$0xff] %vm1510, %v1485
    %1523 = vst.msk [vmem:[#allocation5 + $0x120] sm:$0xff] %vm1510, %v1487
    %1524 = vst.msk [vmem:[#allocation5 + $0x138] sm:$0xff] %vm1510, %v1489
    %1525 = vst.msk [vmem:[#allocation5 + $0x150] sm:$0xff] %vm1510, %v1491
    %1526 = vst.msk [vmem:[#allocation5 + $0x168] sm:$0xff] %vm1510, %v1493
    %v1527 = vld [vmem:[%s1187 + $0x1] sm:$0xff]
    %v1528 = vld [vmem:[%s1187 + $0x11] sm:$0xff]
    %v1529 = vld [vmem:[%s1187 + $0x21] sm:$0xff]
    %v1530 = vld [vmem:[%s1187 + $0x31] sm:$0xff]
    %v1531 = vld [vmem:[%s1187 + $0x41] sm:$0xff]
    %v1532 = vld [vmem:[%s1187 + $0x51] sm:$0xff]
    %v1533 = vld [vmem:[%s1187 + $0x61] sm:$0xff]
    %v1534 = vld [vmem:[%s1187 + $0x71] sm:$0xff]
    %v1535 = vld [vmem:[%s1187 + $0xa1] sm:$0xff]
    %v1536 = vld [vmem:[%s1187 + $0xb1] sm:$0xff]
    %v1537 = vld [vmem:[%s1187 + $0xc1] sm:$0xff]
    %v1538 = vld [vmem:[%s1187 + $0xd1] sm:$0xff]
    %v1539 = vld [vmem:[%s1187 + $0xe1] sm:$0xff]
    %v1540 = vld [vmem:[%s1187 + $0xf1] sm:$0xff]
    %v1541 = vld [vmem:[%s1187 + $0x101] sm:$0xff]
    %v1542 = vld [vmem:[%s1187 + $0x111] sm:$0xff]
    %1543 = vst.msk [vmem:[#allocation5 + $0x8] sm:$0xff] %vm1145, %v1527
    %1544 = vst.msk [vmem:[#allocation5 + $0x20] sm:$0xff] %vm1145, %v1528
    %1545 = vst.msk [vmem:[#allocation5 + $0x38] sm:$0xff] %vm1145, %v1529
    %1546 = vst.msk [vmem:[#allocation5 + $0x50] sm:$0xff] %vm1145, %v1530
    %1547 = vst.msk [vmem:[#allocation5 + $0x68] sm:$0xff] %vm1145, %v1531
    %1548 = vst.msk [vmem:[#allocation5 + $0x80] sm:$0xff] %vm1145, %v1532
    %1549 = vst.msk [vmem:[#allocation5 + $0x98] sm:$0xff] %vm1145, %v1533
    %1550 = vst.msk [vmem:[#allocation5 + $0xb0] sm:$0xff] %vm1145, %v1534
    %1551 = vst.msk [vmem:[#allocation5 + $0xc8] sm:$0xff] %vm1145, %v1535
    %1552 = vst.msk [vmem:[#allocation5 + $0xe0] sm:$0xff] %vm1145, %v1536
    %1553 = vst.msk [vmem:[#allocation5 + $0xf8] sm:$0xff] %vm1145, %v1537
    %1554 = vst.msk [vmem:[#allocation5 + $0x110] sm:$0xff] %vm1145, %v1538
    %1555 = vst.msk [vmem:[#allocation5 + $0x128] sm:$0xff] %vm1145, %v1539
    %1556 = vst.msk [vmem:[#allocation5 + $0x140] sm:$0xff] %vm1145, %v1540
    %1557 = vst.msk [vmem:[#allocation5 + $0x158] sm:$0xff] %vm1145, %v1541
    %1558 = vst.msk [vmem:[#allocation5 + $0x170] sm:$0xff] %vm1145, %v1542
    %v1559 = vld [vmem:[%s1187 + $0x2] sm:$0xff]
    %v1560 = vld [vmem:[%s1187 + $0x12] sm:$0xff]
    %v1561 = vld [vmem:[%s1187 + $0x22] sm:$0xff]
    %v1562 = vld [vmem:[%s1187 + $0x32] sm:$0xff]
    %v1563 = vld [vmem:[%s1187 + $0x42] sm:$0xff]
    %v1564 = vld [vmem:[%s1187 + $0x52] sm:$0xff]
    %v1565 = vld [vmem:[%s1187 + $0x62] sm:$0xff]
    %v1566 = vld [vmem:[%s1187 + $0x72] sm:$0xff]
    %v1567 = vld [vmem:[%s1187 + $0xa2] sm:$0xff]
    %v1568 = vld [vmem:[%s1187 + $0xb2] sm:$0xff]
    %v1569 = vld [vmem:[%s1187 + $0xc2] sm:$0xff]
    %v1570 = vld [vmem:[%s1187 + $0xd2] sm:$0xff]
    %v1571 = vld [vmem:[%s1187 + $0xe2] sm:$0xff]
    %v1572 = vld [vmem:[%s1187 + $0xf2] sm:$0xff]
    %v1573 = vld [vmem:[%s1187 + $0x102] sm:$0xff]
    %v1574 = vld [vmem:[%s1187 + $0x112] sm:$0xff]
    %1591 = vrot.lane.b32.xlu0 %v1559, 32
    %v1592 = vpop.permute.xlu0 %1591
    %1593 = vrot.lane.b32.xlu0 %v1560, 32
    %v1594 = vpop.permute.xlu0 %1593
    %1595 = vrot.lane.b32.xlu0 %v1561, 32
    %v1596 = vpop.permute.xlu0 %1595
    %1597 = vrot.lane.b32.xlu0 %v1562, 32
    %v1598 = vpop.permute.xlu0 %1597
    %1599 = vrot.lane.b32.xlu0 %v1563, 32
    %v1600 = vpop.permute.xlu0 %1599
    %1601 = vrot.lane.b32.xlu0 %v1564, 32
    %v1602 = vpop.permute.xlu0 %1601
    %1603 = vrot.lane.b32.xlu0 %v1565, 32
    %v1604 = vpop.permute.xlu0 %1603
    %1605 = vrot.lane.b32.xlu0 %v1566, 32
    %v1606 = vpop.permute.xlu0 %1605
    %1607 = vrot.lane.b32.xlu0 %v1567, 32
    %v1608 = vpop.permute.xlu0 %1607
    %1609 = vrot.lane.b32.xlu0 %v1568, 32
    %v1610 = vpop.permute.xlu0 %1609
    %1611 = vrot.lane.b32.xlu0 %v1569, 32
    %v1612 = vpop.permute.xlu0 %1611
    %1613 = vrot.lane.b32.xlu0 %v1570, 32
    %v1614 = vpop.permute.xlu0 %1613
    %1615 = vrot.lane.b32.xlu0 %v1571, 32
    %v1616 = vpop.permute.xlu0 %1615
    %1617 = vrot.lane.b32.xlu0 %v1572, 32
    %v1618 = vpop.permute.xlu0 %1617
    %1619 = vrot.lane.b32.xlu0 %v1573, 32
    %v1620 = vpop.permute.xlu0 %1619
    %1621 = vrot.lane.b32.xlu0 %v1574, 32
    %v1622 = vpop.permute.xlu0 %1621
    %1639 = vst.msk [vmem:[#allocation5 + $0x8] sm:$0xff] %vm1316, %v1592
    %1640 = vst.msk [vmem:[#allocation5 + $0x20] sm:$0xff] %vm1316, %v1594
    %1641 = vst.msk [vmem:[#allocation5 + $0x38] sm:$0xff] %vm1316, %v1596
    %1642 = vst.msk [vmem:[#allocation5 + $0x50] sm:$0xff] %vm1316, %v1598
    %1643 = vst.msk [vmem:[#allocation5 + $0x68] sm:$0xff] %vm1316, %v1600
    %1644 = vst.msk [vmem:[#allocation5 + $0x80] sm:$0xff] %vm1316, %v1602
    %1645 = vst.msk [vmem:[#allocation5 + $0x98] sm:$0xff] %vm1316, %v1604
    %1646 = vst.msk [vmem:[#allocation5 + $0xb0] sm:$0xff] %vm1316, %v1606
    %1647 = vst.msk [vmem:[#allocation5 + $0xc8] sm:$0xff] %vm1316, %v1608
    %1648 = vst.msk [vmem:[#allocation5 + $0xe0] sm:$0xff] %vm1316, %v1610
    %1649 = vst.msk [vmem:[#allocation5 + $0xf8] sm:$0xff] %vm1316, %v1612
    %1650 = vst.msk [vmem:[#allocation5 + $0x110] sm:$0xff] %vm1316, %v1614
    %1651 = vst.msk [vmem:[#allocation5 + $0x128] sm:$0xff] %vm1316, %v1616
    %1652 = vst.msk [vmem:[#allocation5 + $0x140] sm:$0xff] %vm1316, %v1618
    %1653 = vst.msk [vmem:[#allocation5 + $0x158] sm:$0xff] %vm1316, %v1620
    %1654 = vst.msk [vmem:[#allocation5 + $0x170] sm:$0xff] %vm1316, %v1622
    %s1655 = scalar_lea.vmem [#allocation4], 32
    %v1656 = vld [vmem:[%s1655] sm:$0xff]
    %v1657 = vld [vmem:[%s1655 + $0x10] sm:$0xff]
    %v1658 = vld [vmem:[%s1655 + $0x20] sm:$0xff]
    %v1659 = vld [vmem:[%s1655 + $0x30] sm:$0xff]
    %v1660 = vld [vmem:[%s1655 + $0x40] sm:$0xff]
    %v1661 = vld [vmem:[%s1655 + $0x50] sm:$0xff]
    %v1662 = vld [vmem:[%s1655 + $0x60] sm:$0xff]
    %v1663 = vld [vmem:[%s1655 + $0x70] sm:$0xff]
    %v1664 = vld [vmem:[%s1655 + $0xa0] sm:$0xff]
    %v1665 = vld [vmem:[%s1655 + $0xb0] sm:$0xff]
    %v1666 = vld [vmem:[%s1655 + $0xc0] sm:$0xff]
    %v1667 = vld [vmem:[%s1655 + $0xd0] sm:$0xff]
    %v1668 = vld [vmem:[%s1655 + $0xe0] sm:$0xff]
    %v1669 = vld [vmem:[%s1655 + $0xf0] sm:$0xff]
    %v1670 = vld [vmem:[%s1655 + $0x100] sm:$0xff]
    %v1671 = vld [vmem:[%s1655 + $0x110] sm:$0xff]
    %1688 = vrot.lane.b32.xlu0 %v1656, 64
    %v1689 = vpop.permute.xlu0 %1688
    %1690 = vrot.lane.b32.xlu0 %v1657, 64
    %v1691 = vpop.permute.xlu0 %1690
    %1692 = vrot.lane.b32.xlu0 %v1658, 64
    %v1693 = vpop.permute.xlu0 %1692
    %1694 = vrot.lane.b32.xlu0 %v1659, 64
    %v1695 = vpop.permute.xlu0 %1694
    %1696 = vrot.lane.b32.xlu0 %v1660, 64
    %v1697 = vpop.permute.xlu0 %1696
    %1698 = vrot.lane.b32.xlu0 %v1661, 64
    %v1699 = vpop.permute.xlu0 %1698
    %1700 = vrot.lane.b32.xlu0 %v1662, 64
    %v1701 = vpop.permute.xlu0 %1700
    %1702 = vrot.lane.b32.xlu0 %v1663, 64
    %v1703 = vpop.permute.xlu0 %1702
    %1704 = vrot.lane.b32.xlu0 %v1664, 64
    %v1705 = vpop.permute.xlu0 %1704
    %1706 = vrot.lane.b32.xlu0 %v1665, 64
    %v1707 = vpop.permute.xlu0 %1706
    %1708 = vrot.lane.b32.xlu0 %v1666, 64
    %v1709 = vpop.permute.xlu0 %1708
    %1710 = vrot.lane.b32.xlu0 %v1667, 64
    %v1711 = vpop.permute.xlu0 %1710
    %1712 = vrot.lane.b32.xlu0 %v1668, 64
    %v1713 = vpop.permute.xlu0 %1712
    %1714 = vrot.lane.b32.xlu0 %v1669, 64
    %v1715 = vpop.permute.xlu0 %1714
    %1716 = vrot.lane.b32.xlu0 %v1670, 64
    %v1717 = vpop.permute.xlu0 %1716
    %1718 = vrot.lane.b32.xlu0 %v1671, 64
    %v1719 = vpop.permute.xlu0 %1718
    %1736 = vst.msk [vmem:[#allocation5 + $0x8] sm:$0xff] %vm1413, %v1689
    %1737 = vst.msk [vmem:[#allocation5 + $0x20] sm:$0xff] %vm1413, %v1691
    %1738 = vst.msk [vmem:[#allocation5 + $0x38] sm:$0xff] %vm1413, %v1693
    %1739 = vst.msk [vmem:[#allocation5 + $0x50] sm:$0xff] %vm1413, %v1695
    %1740 = vst.msk [vmem:[#allocation5 + $0x68] sm:$0xff] %vm1413, %v1697
    %1741 = vst.msk [vmem:[#allocation5 + $0x80] sm:$0xff] %vm1413, %v1699
    %1742 = vst.msk [vmem:[#allocation5 + $0x98] sm:$0xff] %vm1413, %v1701
    %1743 = vst.msk [vmem:[#allocation5 + $0xb0] sm:$0xff] %vm1413, %v1703
    %1744 = vst.msk [vmem:[#allocation5 + $0xc8] sm:$0xff] %vm1413, %v1705
    %1745 = vst.msk [vmem:[#allocation5 + $0xe0] sm:$0xff] %vm1413, %v1707
    %1746 = vst.msk [vmem:[#allocation5 + $0xf8] sm:$0xff] %vm1413, %v1709
    %1747 = vst.msk [vmem:[#allocation5 + $0x110] sm:$0xff] %vm1413, %v1711
    %1748 = vst.msk [vmem:[#allocation5 + $0x128] sm:$0xff] %vm1413, %v1713
    %1749 = vst.msk [vmem:[#allocation5 + $0x140] sm:$0xff] %vm1413, %v1715
    %1750 = vst.msk [vmem:[#allocation5 + $0x158] sm:$0xff] %vm1413, %v1717
    %1751 = vst.msk [vmem:[#allocation5 + $0x170] sm:$0xff] %vm1413, %v1719
    %v1752 = vld [vmem:[%s1655 + $0x1] sm:$0xff]
    %v1753 = vld [vmem:[%s1655 + $0x11] sm:$0xff]
    %v1754 = vld [vmem:[%s1655 + $0x21] sm:$0xff]
    %v1755 = vld [vmem:[%s1655 + $0x31] sm:$0xff]
    %v1756 = vld [vmem:[%s1655 + $0x41] sm:$0xff]
    %v1757 = vld [vmem:[%s1655 + $0x51] sm:$0xff]
    %v1758 = vld [vmem:[%s1655 + $0x61] sm:$0xff]
    %v1759 = vld [vmem:[%s1655 + $0x71] sm:$0xff]
    %v1760 = vld [vmem:[%s1655 + $0xa1] sm:$0xff]
    %v1761 = vld [vmem:[%s1655 + $0xb1] sm:$0xff]
    %v1762 = vld [vmem:[%s1655 + $0xc1] sm:$0xff]
    %v1763 = vld [vmem:[%s1655 + $0xd1] sm:$0xff]
    %v1764 = vld [vmem:[%s1655 + $0xe1] sm:$0xff]
    %v1765 = vld [vmem:[%s1655 + $0xf1] sm:$0xff]
    %v1766 = vld [vmem:[%s1655 + $0x101] sm:$0xff]
    %v1767 = vld [vmem:[%s1655 + $0x111] sm:$0xff]
    %1784 = vrot.lane.b32.xlu0 %v1752, 96
    %v1785 = vpop.permute.xlu0 %1784
    %1786 = vrot.lane.b32.xlu0 %v1753, 96
    %v1787 = vpop.permute.xlu0 %1786
    %1788 = vrot.lane.b32.xlu0 %v1754, 96
    %v1789 = vpop.permute.xlu0 %1788
    %1790 = vrot.lane.b32.xlu0 %v1755, 96
    %v1791 = vpop.permute.xlu0 %1790
    %1792 = vrot.lane.b32.xlu0 %v1756, 96
    %v1793 = vpop.permute.xlu0 %1792
    %1794 = vrot.lane.b32.xlu0 %v1757, 96
    %v1795 = vpop.permute.xlu0 %1794
    %1796 = vrot.lane.b32.xlu0 %v1758, 96
    %v1797 = vpop.permute.xlu0 %1796
    %1798 = vrot.lane.b32.xlu0 %v1759, 96
    %v1799 = vpop.permute.xlu0 %1798
    %1800 = vrot.lane.b32.xlu0 %v1760, 96
    %v1801 = vpop.permute.xlu0 %1800
    %1802 = vrot.lane.b32.xlu0 %v1761, 96
    %v1803 = vpop.permute.xlu0 %1802
    %1804 = vrot.lane.b32.xlu0 %v1762, 96
    %v1805 = vpop.permute.xlu0 %1804
    %1806 = vrot.lane.b32.xlu0 %v1763, 96
    %v1807 = vpop.permute.xlu0 %1806
    %1808 = vrot.lane.b32.xlu0 %v1764, 96
    %v1809 = vpop.permute.xlu0 %1808
    %1810 = vrot.lane.b32.xlu0 %v1765, 96
    %v1811 = vpop.permute.xlu0 %1810
    %1812 = vrot.lane.b32.xlu0 %v1766, 96
    %v1813 = vpop.permute.xlu0 %1812
    %1814 = vrot.lane.b32.xlu0 %v1767, 96
    %v1815 = vpop.permute.xlu0 %1814
    %1832 = vst.msk [vmem:[#allocation5 + $0x8] sm:$0xff] %vm1510, %v1785
    %1833 = vst.msk [vmem:[#allocation5 + $0x20] sm:$0xff] %vm1510, %v1787
    %1834 = vst.msk [vmem:[#allocation5 + $0x38] sm:$0xff] %vm1510, %v1789
    %1835 = vst.msk [vmem:[#allocation5 + $0x50] sm:$0xff] %vm1510, %v1791
    %1836 = vst.msk [vmem:[#allocation5 + $0x68] sm:$0xff] %vm1510, %v1793
    %1837 = vst.msk [vmem:[#allocation5 + $0x80] sm:$0xff] %vm1510, %v1795
    %1838 = vst.msk [vmem:[#allocation5 + $0x98] sm:$0xff] %vm1510, %v1797
    %1839 = vst.msk [vmem:[#allocation5 + $0xb0] sm:$0xff] %vm1510, %v1799
    %1840 = vst.msk [vmem:[#allocation5 + $0xc8] sm:$0xff] %vm1510, %v1801
    %1841 = vst.msk [vmem:[#allocation5 + $0xe0] sm:$0xff] %vm1510, %v1803
    %1842 = vst.msk [vmem:[#allocation5 + $0xf8] sm:$0xff] %vm1510, %v1805
    %1843 = vst.msk [vmem:[#allocation5 + $0x110] sm:$0xff] %vm1510, %v1807
    %1844 = vst.msk [vmem:[#allocation5 + $0x128] sm:$0xff] %vm1510, %v1809
    %1845 = vst.msk [vmem:[#allocation5 + $0x140] sm:$0xff] %vm1510, %v1811
    %1846 = vst.msk [vmem:[#allocation5 + $0x158] sm:$0xff] %vm1510, %v1813
    %1847 = vst.msk [vmem:[#allocation5 + $0x170] sm:$0xff] %vm1510, %v1815
    %v1848 = vld [vmem:[%s1655 + $0x2] sm:$0xff]
    %v1849 = vld [vmem:[%s1655 + $0x12] sm:$0xff]
    %v1850 = vld [vmem:[%s1655 + $0x22] sm:$0xff]
    %v1851 = vld [vmem:[%s1655 + $0x32] sm:$0xff]
    %v1852 = vld [vmem:[%s1655 + $0x42] sm:$0xff]
    %v1853 = vld [vmem:[%s1655 + $0x52] sm:$0xff]
    %v1854 = vld [vmem:[%s1655 + $0x62] sm:$0xff]
    %v1855 = vld [vmem:[%s1655 + $0x72] sm:$0xff]
    %v1856 = vld [vmem:[%s1655 + $0xa2] sm:$0xff]
    %v1857 = vld [vmem:[%s1655 + $0xb2] sm:$0xff]
    %v1858 = vld [vmem:[%s1655 + $0xc2] sm:$0xff]
    %v1859 = vld [vmem:[%s1655 + $0xd2] sm:$0xff]
    %v1860 = vld [vmem:[%s1655 + $0xe2] sm:$0xff]
    %v1861 = vld [vmem:[%s1655 + $0xf2] sm:$0xff]
    %v1862 = vld [vmem:[%s1655 + $0x102] sm:$0xff]
    %v1863 = vld [vmem:[%s1655 + $0x112] sm:$0xff]
    %1864 = vst.msk [vmem:[#allocation5 + $0x10] sm:$0xff] %vm1145, %v1848
    %1865 = vst.msk [vmem:[#allocation5 + $0x28] sm:$0xff] %vm1145, %v1849
    %1866 = vst.msk [vmem:[#allocation5 + $0x40] sm:$0xff] %vm1145, %v1850
    %1867 = vst.msk [vmem:[#allocation5 + $0x58] sm:$0xff] %vm1145, %v1851
    %1868 = vst.msk [vmem:[#allocation5 + $0x70] sm:$0xff] %vm1145, %v1852
    %1869 = vst.msk [vmem:[#allocation5 + $0x88] sm:$0xff] %vm1145, %v1853
    %1870 = vst.msk [vmem:[#allocation5 + $0xa0] sm:$0xff] %vm1145, %v1854
    %1871 = vst.msk [vmem:[#allocation5 + $0xb8] sm:$0xff] %vm1145, %v1855
    %1872 = vst.msk [vmem:[#allocation5 + $0xd0] sm:$0xff] %vm1145, %v1856
    %1873 = vst.msk [vmem:[#allocation5 + $0xe8] sm:$0xff] %vm1145, %v1857
    %1874 = vst.msk [vmem:[#allocation5 + $0x100] sm:$0xff] %vm1145, %v1858
    %1875 = vst.msk [vmem:[#allocation5 + $0x118] sm:$0xff] %vm1145, %v1859
    %1876 = vst.msk [vmem:[#allocation5 + $0x130] sm:$0xff] %vm1145, %v1860
    %1877 = vst.msk [vmem:[#allocation5 + $0x148] sm:$0xff] %vm1145, %v1861
    %1878 = vst.msk [vmem:[#allocation5 + $0x160] sm:$0xff] %vm1145, %v1862
    %1879 = vst.msk [vmem:[#allocation5 + $0x178] sm:$0xff] %vm1145, %v1863
    %v1880 = vld [vmem:[#allocation5] sm:$0xff]
    %v1881 = vld [vmem:[#allocation5 + $0x8] sm:$0xff]
    %v1882 = vld [vmem:[#allocation5 + $0x10] sm:$0xff]
    %v1883 = vld [vmem:[#allocation5 + $0x18] sm:$0xff]
    %v1884 = vld [vmem:[#allocation5 + $0x20] sm:$0xff]
    %v1885 = vld [vmem:[#allocation5 + $0x28] sm:$0xff]
    %v1886 = vld [vmem:[#allocation5 + $0x30] sm:$0xff]
    %v1887 = vld [vmem:[#allocation5 + $0x38] sm:$0xff]
    %v1888 = vld [vmem:[#allocation5 + $0x40] sm:$0xff]
    %v1889 = vld [vmem:[#allocation5 + $0x48] sm:$0xff]
    %v1890 = vld [vmem:[#allocation5 + $0x50] sm:$0xff]
    %v1891 = vld [vmem:[#allocation5 + $0x58] sm:$0xff]
    %v1892 = vld [vmem:[#allocation5 + $0x60] sm:$0xff]
    %v1893 = vld [vmem:[#allocation5 + $0x68] sm:$0xff]
    %v1894 = vld [vmem:[#allocation5 + $0x70] sm:$0xff]
    %v1895 = vld [vmem:[#allocation5 + $0x78] sm:$0xff]
    %v1896 = vld [vmem:[#allocation5 + $0x80] sm:$0xff]
    %v1897 = vld [vmem:[#allocation5 + $0x88] sm:$0xff]
    %v1898 = vld [vmem:[#allocation5 + $0x90] sm:$0xff]
    %v1899 = vld [vmem:[#allocation5 + $0x98] sm:$0xff]
    %v1900 = vld [vmem:[#allocation5 + $0xa0] sm:$0xff]
    %v1901 = vld [vmem:[#allocation5 + $0xa8] sm:$0xff]
    %v1902 = vld [vmem:[#allocation5 + $0xb0] sm:$0xff]
    %v1903 = vld [vmem:[#allocation5 + $0xb8] sm:$0xff]
    %v1904 = vld [vmem:[#allocation5 + $0xc0] sm:$0xff]
    %v1905 = vld [vmem:[#allocation5 + $0xc8] sm:$0xff]
    %v1906 = vld [vmem:[#allocation5 + $0xd0] sm:$0xff]
    %v1907 = vld [vmem:[#allocation5 + $0xd8] sm:$0xff]
    %v1908 = vld [vmem:[#allocation5 + $0xe0] sm:$0xff]
    %v1909 = vld [vmem:[#allocation5 + $0xe8] sm:$0xff]
    %v1910 = vld [vmem:[#allocation5 + $0xf0] sm:$0xff]
    %v1911 = vld [vmem:[#allocation5 + $0xf8] sm:$0xff]
    %v1912 = vld [vmem:[#allocation5 + $0x100] sm:$0xff]
    %v1913 = vld [vmem:[#allocation5 + $0x108] sm:$0xff]
    %v1914 = vld [vmem:[#allocation5 + $0x110] sm:$0xff]
    %v1915 = vld [vmem:[#allocation5 + $0x118] sm:$0xff]
    %v1916 = vld [vmem:[#allocation5 + $0x120] sm:$0xff]
    %v1917 = vld [vmem:[#allocation5 + $0x128] sm:$0xff]
    %v1918 = vld [vmem:[#allocation5 + $0x130] sm:$0xff]
    %v1919 = vld [vmem:[#allocation5 + $0x138] sm:$0xff]
    %v1920 = vld [vmem:[#allocation5 + $0x140] sm:$0xff]
    %v1921 = vld [vmem:[#allocation5 + $0x148] sm:$0xff]
    %v1922 = vld [vmem:[#allocation5 + $0x150] sm:$0xff]
    %v1923 = vld [vmem:[#allocation5 + $0x158] sm:$0xff]
    %v1924 = vld [vmem:[#allocation5 + $0x160] sm:$0xff]
    %v1925 = vld [vmem:[#allocation5 + $0x168] sm:$0xff]
    %v1926 = vld [vmem:[#allocation5 + $0x170] sm:$0xff]
    %v1927 = vld [vmem:[#allocation5 + $0x178] sm:$0xff]
    %v1928 = vpack.c.bf16 %v1883, %v1880
    %v1929 = vpack.c.bf16 %v1884, %v1881
    %v1930 = vpack.c.bf16 %v1885, %v1882
    %v1931 = vpack.c.bf16 %v1889, %v1886
    %v1932 = vpack.c.bf16 %v1890, %v1887
    %v1933 = vpack.c.bf16 %v1891, %v1888
    %v1934 = vpack.c.bf16 %v1895, %v1892
    %v1935 = vpack.c.bf16 %v1896, %v1893
    %v1936 = vpack.c.bf16 %v1897, %v1894
    %v1937 = vpack.c.bf16 %v1901, %v1898
    %v1938 = vpack.c.bf16 %v1902, %v1899
    %v1939 = vpack.c.bf16 %v1903, %v1900
    %v1940 = vpack.c.bf16 %v1907, %v1904
    %v1941 = vpack.c.bf16 %v1908, %v1905
    %v1942 = vpack.c.bf16 %v1909, %v1906
    %v1943 = vpack.c.bf16 %v1913, %v1910
    %v1944 = vpack.c.bf16 %v1914, %v1911
    %v1945 = vpack.c.bf16 %v1915, %v1912
    %v1946 = vpack.c.bf16 %v1919, %v1916
    %v1947 = vpack.c.bf16 %v1920, %v1917
    %v1948 = vpack.c.bf16 %v1921, %v1918
    %v1949 = vpack.c.bf16 %v1925, %v1922
    %v1950 = vpack.c.bf16 %v1926, %v1923
    %v1951 = vpack.c.bf16 %v1927, %v1924
    %v1952 = vld [vmem:[%s4] sm:$0xff]
    %v1953 = vld [vmem:[%s4 + $0x8] sm:$0xff]
    %v1954 = vld [vmem:[%s4 + $0x10] sm:$0xff]
    %v1955 = vld [vmem:[%s4 + $0x18] sm:$0xff]
    %v1956 = vld [vmem:[%s4 + $0x20] sm:$0xff]
    %v1957 = vld [vmem:[%s4 + $0x28] sm:$0xff]
    %v1958 = vld [vmem:[%s4 + $0x30] sm:$0xff]
    %v1959 = vld [vmem:[%s4 + $0x38] sm:$0xff]
    %v1960 = vld [vmem:[%s4 + $0x40] sm:$0xff]
    %v1961 = vld [vmem:[%s4 + $0x48] sm:$0xff]
    %v1962 = vld [vmem:[%s4 + $0x50] sm:$0xff]
    %v1963 = vld [vmem:[%s4 + $0x58] sm:$0xff]
    %v1964 = vld [vmem:[%s4 + $0x60] sm:$0xff]
    %v1965 = vld [vmem:[%s4 + $0x68] sm:$0xff]
    %v1966 = vld [vmem:[%s4 + $0x70] sm:$0xff]
    %v1967 = vld [vmem:[%s4 + $0x78] sm:$0xff]
    %v1968 = vld [vmem:[%s4 + $0x80] sm:$0xff]
    %v1969 = vld [vmem:[%s4 + $0x88] sm:$0xff]
    %v1970 = vld [vmem:[%s4 + $0x90] sm:$0xff]
    %v1971 = vld [vmem:[%s4 + $0x98] sm:$0xff]
    %v1972 = vld [vmem:[%s4 + $0xa0] sm:$0xff]
    %v1973 = vld [vmem:[%s4 + $0xa8] sm:$0xff]
    %v1974 = vld [vmem:[%s4 + $0xb0] sm:$0xff]
    %v1975 = vld [vmem:[%s4 + $0xb8] sm:$0xff]
    %v1976 = vld [vmem:[%s4 + $0xc0] sm:$0xff]
    %v1977 = vld [vmem:[%s4 + $0xc8] sm:$0xff]
    %v1978 = vld [vmem:[%s4 + $0xd0] sm:$0xff]
    %v1979 = vld [vmem:[%s4 + $0xd8] sm:$0xff]
    %v1980 = vld [vmem:[%s4 + $0xe0] sm:$0xff]
    %v1981 = vld [vmem:[%s4 + $0xe8] sm:$0xff]
    %v1982 = vld [vmem:[%s4 + $0xf0] sm:$0xff]
    %v1983 = vld [vmem:[%s4 + $0xf8] sm:$0xff]
    %v1984 = vld [vmem:[%s4 + $0x100] sm:$0xff]
    %v1985 = vld [vmem:[%s4 + $0x108] sm:$0xff]
    %v1986 = vld [vmem:[%s4 + $0x110] sm:$0xff]
    %v1987 = vld [vmem:[%s4 + $0x118] sm:$0xff]
    %v1988 = vpack.c.bf16 %v1953, %v1952
    %v1989 = vpack.c.bf16 %v1955, %v1954
    %v1990 = vpack.c.bf16 %v1957, %v1956
    %v1991 = vpack.c.bf16 %v1959, %v1958
    %v1992 = vpack.c.bf16 %v1961, %v1960
    %v1993 = vpack.c.bf16 %v1963, %v1962
    %v1994 = vpack.c.bf16 %v1965, %v1964
    %v1995 = vpack.c.bf16 %v1967, %v1966
    %v1996 = vpack.c.bf16 %v1969, %v1968
    %v1997 = vpack.c.bf16 %v1971, %v1970
    %v1998 = vpack.c.bf16 %v1973, %v1972
    %v1999 = vpack.c.bf16 %v1975, %v1974
    %v2000 = vpack.c.bf16 %v1977, %v1976
    %v2001 = vpack.c.bf16 %v1979, %v1978
    %v2002 = vpack.c.bf16 %v1981, %v1980
    %v2003 = vpack.c.bf16 %v1983, %v1982
    %v2004 = vpack.c.bf16 %v1985, %v1984
    %v2005 = vpack.c.bf16 %v1987, %v1986
    %v2006 = vld [vmem:[%s5] sm:$0x1]
    %v2008 = vlaneseq
    %v2009 = vshrl.u32 %v2008, 7
    %v2010 = vsub.s32 0, %v2009
    %v2011 = vrot.slane %v2006, %v2010
    %v2014 = vsel %vm1145, %v1930, 0
    %v2017 = vsel %vm1145, %v1933, 0
    %v2020 = vsel %vm1145, %v1936, 0
    %v2023 = vsel %vm1145, %v1939, 0
    %v2026 = vsel %vm1145, %v1942, 0
    %v2029 = vsel %vm1145, %v1945, 0
    %v2032 = vsel %vm1145, %v1948, 0
    %v2035 = vsel %vm1145, %v1951, 0
    %2037 = vmatprep.subr.bf16.mxu0 0
    %2038 = vmatpush1.bf16.msra.mxu0 %v1988
    %2039 = vmatprep.subr.bf16.mxu0 0
    %2040 = vmatpush1.bf16.msra.mxu0 %v1989
    %2041 = vmatprep.subr.bf16.mxu0 0
    %2042 = vmatpush1.bf16.msra.mxu0 %v1990
    %2043 = vmatprep.subr.bf16.mxu0 0
    %2044 = vmatpush1.bf16.msra.mxu0 %v1991
    %2045 = vmatprep.subr.bf16.mxu0 0
    %2046 = vmatpush1.bf16.msra.mxu0 %v1992
    %2047 = vmatprep.subr.bf16.mxu0 0
    %2048 = vmatpush1.bf16.msra.mxu0 %v1993
    %2049 = vmatprep.subr.bf16.mxu0 0
    %2050 = vmatpush1.bf16.msra.mxu0 %v1994
    %2051 = vmatprep.subr.bf16.mxu0 0
    %2052 = vmatpush1.bf16.msra.mxu0 %v1995
    %2053 = vmatprep.subr.bf16.mxu0 0
    %2054 = vmatpush1.bf16.msra.mxu0 %v1996
    %2055 = vmatprep.subr.bf16.mxu0 0
    %2056 = vmatpush1.bf16.msra.mxu0 %v1997
    %2057 = vmatprep.subr.bf16.mxu0 0
    %2058 = vmatpush1.bf16.msra.mxu0 %v1998
    %2059 = vmatprep.subr.bf16.mxu0 0
    %2060 = vmatpush1.bf16.msra.mxu0 %v1999
    %2061 = vmatprep.subr.bf16.mxu0 0
    %2062 = vmatpush1.bf16.msra.mxu0 %v2000
    %2063 = vmatprep.subr.bf16.mxu0 0
    %2064 = vmatpush1.bf16.msra.mxu0 %v2001
    %2065 = vmatprep.subr.bf16.mxu0 0
    %2066 = vmatpush1.bf16.msra.mxu0 %v2002
    %2067 = vmatprep.subr.bf16.mxu0 0
    %2068 = vmatpush1.bf16.msra.mxu0 %v2003
    %2069 = vmatprep.mubr.bf16.mxu0 %v1929
    %2070 = vmatmul.mubr.bf16.gmra.mrb[0].mxu0 %v1928
    %v2071 = vpop.f32.mrb[0].mxu0
    %v2072 = vadd.f32 %v2011, %v2071
    %v2073 = vpop.f32.mrb[0].mxu0
    %v2074 = vpop.f32.mrb[0].mxu0
    %v2075 = vadd.f32 %v2011, %v2074
    %v2076 = vpop.f32.mrb[0].mxu0
    %2077 = vmatprep.mubr.bf16.mxu0 %v1932
    %2078 = vmatmul.mubr.bf16.gmra.mrb[0].mxu0 %v1931
    %v2079 = vpop.f32.mrb[0].mxu0
    %v2080 = vadd.f32 %v2011, %v2079
    %v2081 = vpop.f32.mrb[0].mxu0
    %v2082 = vpop.f32.mrb[0].mxu0
    %v2083 = vadd.f32 %v2011, %v2082
    %v2084 = vpop.f32.mrb[0].mxu0
    %2085 = vmatprep.mubr.bf16.mxu0 %v1935
    %2086 = vmatmul.mubr.bf16.gmra.mrb[0].mxu0 %v1934
    %v2087 = vpop.f32.mrb[0].mxu0
    %v2088 = vadd.f32 %v2011, %v2087
    %v2089 = vpop.f32.mrb[0].mxu0
    %v2090 = vpop.f32.mrb[0].mxu0
    %v2091 = vadd.f32 %v2011, %v2090
    %v2092 = vpop.f32.mrb[0].mxu0
    %2093 = vmatprep.mubr.bf16.mxu0 %v1938
    %2094 = vmatmul.mubr.bf16.gmra.mrb[0].mxu0 %v1937
    %v2095 = vpop.f32.mrb[0].mxu0
    %v2096 = vadd.f32 %v2011, %v2095
    %v2097 = vpop.f32.mrb[0].mxu0
    %v2098 = vpop.f32.mrb[0].mxu0
    %v2099 = vadd.f32 %v2011, %v2098
    %v2100 = vpop.f32.mrb[0].mxu0
    %2101 = vmatprep.mubr.bf16.mxu0 %v1941
    %2102 = vmatmul.mubr.bf16.gmra.mrb[0].mxu0 %v1940
    %v2103 = vpop.f32.mrb[0].mxu0
    %v2104 = vadd.f32 %v2011, %v2103
    %v2105 = vpop.f32.mrb[0].mxu0
    %v2106 = vpop.f32.mrb[0].mxu0
    %v2107 = vadd.f32 %v2011, %v2106
    %v2108 = vpop.f32.mrb[0].mxu0
    %2109 = vmatprep.mubr.bf16.mxu0 %v1944
    %2110 = vmatmul.mubr.bf16.gmra.mrb[0].mxu0 %v1943
    %v2111 = vpop.f32.mrb[0].mxu0
    %v2112 = vadd.f32 %v2011, %v2111
    %v2113 = vpop.f32.mrb[0].mxu0
    %v2114 = vpop.f32.mrb[0].mxu0
    %v2115 = vadd.f32 %v2011, %v2114
    %v2116 = vpop.f32.mrb[0].mxu0
    %2117 = vmatprep.mubr.bf16.mxu0 %v1947
    %2118 = vmatmul.mubr.bf16.gmra.mrb[0].mxu0 %v1946
    %v2119 = vpop.f32.mrb[0].mxu0
    %v2120 = vadd.f32 %v2011, %v2119
    %v2121 = vpop.f32.mrb[0].mxu0
    %v2122 = vpop.f32.mrb[0].mxu0
    %v2123 = vadd.f32 %v2011, %v2122
    %v2124 = vpop.f32.mrb[0].mxu0
    %2125 = vmatprep.mubr.bf16.mxu0 %v1950
    %2126 = vmatmul.mubr.bf16.gmra.mrb[0].mxu0 %v1949
    %v2127 = vpop.f32.mrb[0].mxu0
    %v2128 = vadd.f32 %v2011, %v2127
    %v2129 = vpop.f32.mrb[0].mxu0
    %v2130 = vpop.f32.mrb[0].mxu0
    %v2131 = vadd.f32 %v2011, %v2130
    %v2132 = vpop.f32.mrb[0].mxu0
    %2133 = vdwg.mxu0
    %2134 = vmatprep.subr.bf16.mxu0 0
    %2135 = vmatpush1.bf16.msra.mxu0 %v2004
    %2136 = vmatprep.subr.bf16.mxu0 0
    %2137 = vmatpush1.bf16.msra.mxu0 %v2005
    %2138 = vmatprep.subr.bf16.mxu0 0
    %2139 = vmatpush1.bf16.msra.mxu0 0
    %2140 = vmatprep.subr.bf16.mxu0 0
    %2141 = vmatpush1.bf16.msra.mxu0 0
    %2142 = vmatprep.subr.bf16.mxu0 0
    %2143 = vmatpush1.bf16.msra.mxu0 0
    %2144 = vmatprep.subr.bf16.mxu0 0
    %2145 = vmatpush1.bf16.msra.mxu0 0
    %2146 = vmatprep.subr.bf16.mxu0 0
    %2147 = vmatpush1.bf16.msra.mxu0 0
    %2148 = vmatprep.subr.bf16.mxu0 0
    %2149 = vmatpush1.bf16.msra.mxu0 0
    %2150 = vmatprep.subr.bf16.mxu0 0
    %2151 = vmatpush1.bf16.msra.mxu0 0
    %2152 = vmatprep.subr.bf16.mxu0 0
    %2153 = vmatpush1.bf16.msra.mxu0 0
    %2154 = vmatprep.subr.bf16.mxu0 0
    %2155 = vmatpush1.bf16.msra.mxu0 0
    %2156 = vmatprep.subr.bf16.mxu0 0
    %2157 = vmatpush1.bf16.msra.mxu0 0
    %2158 = vmatprep.subr.bf16.mxu0 0
    %2159 = vmatpush1.bf16.msra.mxu0 0
    %2160 = vmatprep.subr.bf16.mxu0 0
    %2161 = vmatpush1.bf16.msra.mxu0 0
    %2162 = vmatprep.subr.bf16.mxu0 0
    %2163 = vmatpush1.bf16.msra.mxu0 0
    %2164 = vmatprep.subr.bf16.mxu0 0
    %2165 = vmatpush1.bf16.msra.mxu0 0
    %2166 = vmatprep.mubr.bf16.mxu0 0
    %2167 = vmatmul.mubr.bf16.gmra.mrb[0].mxu0 %v2014
    %v2168 = vpop.f32.mrb[0].mxu0
    %v2169 = vadd.f32 %v2072, %v2168
    %v2170 = vpop.f32.mrb[0].mxu0
    %v2171 = vpop.f32.mrb[0].mxu0
    %v2172 = vadd.f32 %v2075, %v2171
    %v2173 = vpop.f32.mrb[0].mxu0
    %2174 = vmatprep.mubr.bf16.mxu0 0
    %2175 = vmatmul.mubr.bf16.gmra.mrb[0].mxu0 %v2017
    %v2176 = vpop.f32.mrb[0].mxu0
    %v2177 = vadd.f32 %v2080, %v2176
    %v2178 = vpop.f32.mrb[0].mxu0
    %v2179 = vpop.f32.mrb[0].mxu0
    %v2180 = vadd.f32 %v2083, %v2179
    %v2181 = vpop.f32.mrb[0].mxu0
    %2182 = vmatprep.mubr.bf16.mxu0 0
    %2183 = vmatmul.mubr.bf16.gmra.mrb[0].mxu0 %v2020
    %v2184 = vpop.f32.mrb[0].mxu0
    %v2185 = vadd.f32 %v2088, %v2184
    %v2186 = vpop.f32.mrb[0].mxu0
    %v2187 = vpop.f32.mrb[0].mxu0
    %v2188 = vadd.f32 %v2091, %v2187
    %v2189 = vpop.f32.mrb[0].mxu0
    %2190 = vmatprep.mubr.bf16.mxu0 0
    %2191 = vmatmul.mubr.bf16.gmra.mrb[0].mxu0 %v2023
    %v2192 = vpop.f32.mrb[0].mxu0
    %v2193 = vadd.f32 %v2096, %v2192
    %v2194 = vpop.f32.mrb[0].mxu0
    %v2195 = vpop.f32.mrb[0].mxu0
    %v2196 = vadd.f32 %v2099, %v2195
    %v2197 = vpop.f32.mrb[0].mxu0
    %2198 = vmatprep.mubr.bf16.mxu0 0
    %2199 = vmatmul.mubr.bf16.gmra.mrb[0].mxu0 %v2026
    %v2200 = vpop.f32.mrb[0].mxu0
    %v2201 = vadd.f32 %v2104, %v2200
    %v2202 = vpop.f32.mrb[0].mxu0
    %v2203 = vpop.f32.mrb[0].mxu0
    %v2204 = vadd.f32 %v2107, %v2203
    %v2205 = vpop.f32.mrb[0].mxu0
    %2206 = vmatprep.mubr.bf16.mxu0 0
    %2207 = vmatmul.mubr.bf16.gmra.mrb[0].mxu0 %v2029
    %v2208 = vpop.f32.mrb[0].mxu0
    %v2209 = vadd.f32 %v2112, %v2208
    %v2210 = vpop.f32.mrb[0].mxu0
    %v2211 = vpop.f32.mrb[0].mxu0
    %v2212 = vadd.f32 %v2115, %v2211
    %v2213 = vpop.f32.mrb[0].mxu0
    %2214 = vmatprep.mubr.bf16.mxu0 0
    %2215 = vmatmul.mubr.bf16.gmra.mrb[0].mxu0 %v2032
    %v2216 = vpop.f32.mrb[0].mxu0
    %v2217 = vadd.f32 %v2120, %v2216
    %v2218 = vpop.f32.mrb[0].mxu0
    %v2219 = vpop.f32.mrb[0].mxu0
    %v2220 = vadd.f32 %v2123, %v2219
    %v2221 = vpop.f32.mrb[0].mxu0
    %2222 = vmatprep.mubr.bf16.mxu0 0
    %2223 = vmatmul.mubr.bf16.gmra.mrb[0].mxu0 %v2035
    %v2224 = vpop.f32.mrb[0].mxu0
    %v2225 = vadd.f32 %v2128, %v2224
    %v2226 = vpop.f32.mrb[0].mxu0
    %v2227 = vpop.f32.mrb[0].mxu0
    %v2228 = vadd.f32 %v2131, %v2227
    %v2229 = vpop.f32.mrb[0].mxu0
    %2230 = vdwg.mxu0
    %v2231 = vmax.f32 %v2169, 0.0
    %v2232 = vmax.f32 %v2172, 0.0
    %v2233 = vmax.f32 %v2177, 0.0
    %v2234 = vmax.f32 %v2180, 0.0
    %v2235 = vmax.f32 %v2185, 0.0
    %v2236 = vmax.f32 %v2188, 0.0
    %v2237 = vmax.f32 %v2193, 0.0
    %v2238 = vmax.f32 %v2196, 0.0
    %v2239 = vmax.f32 %v2201, 0.0
    %v2240 = vmax.f32 %v2204, 0.0
    %v2241 = vmax.f32 %v2209, 0.0
    %v2242 = vmax.f32 %v2212, 0.0
    %v2243 = vmax.f32 %v2217, 0.0
    %v2244 = vmax.f32 %v2220, 0.0
    %v2245 = vmax.f32 %v2225, 0.0
    %v2246 = vmax.f32 %v2228, 0.0
    %vm2247 = vcmask 523264
    %2248 = vst.msk [vmem:[#allocation6] sm:$0xff] %vm2247, %v2231
    %2249 = vst.msk [vmem:[#allocation6 + $0x8] sm:$0xff] %vm2247, %v2232
    %2250 = vst.msk [vmem:[#allocation6 + $0x10] sm:$0xff] %vm2247, %v2233
    %2251 = vst.msk [vmem:[#allocation6 + $0x18] sm:$0xff] %vm2247, %v2234
    %2252 = vst.msk [vmem:[#allocation6 + $0x20] sm:$0xff] %vm2247, %v2235
    %2253 = vst.msk [vmem:[#allocation6 + $0x28] sm:$0xff] %vm2247, %v2236
    %2254 = vst.msk [vmem:[#allocation6 + $0x30] sm:$0xff] %vm2247, %v2237
    %2255 = vst.msk [vmem:[#allocation6 + $0x38] sm:$0xff] %vm2247, %v2238
    %2256 = vst.msk [vmem:[#allocation6 + $0x40] sm:$0xff] %vm2247, %v2239
    %2257 = vst.msk [vmem:[#allocation6 + $0x48] sm:$0xff] %vm2247, %v2240
    %2258 = vst.msk [vmem:[#allocation6 + $0x50] sm:$0xff] %vm2247, %v2241
    %2259 = vst.msk [vmem:[#allocation6 + $0x58] sm:$0xff] %vm2247, %v2242
    %2260 = vst.msk [vmem:[#allocation6 + $0x60] sm:$0xff] %vm2247, %v2243
    %2261 = vst.msk [vmem:[#allocation6 + $0x68] sm:$0xff] %vm2247, %v2244
    %2262 = vst.msk [vmem:[#allocation6 + $0x70] sm:$0xff] %vm2247, %v2245
    %2263 = vst.msk [vmem:[#allocation6 + $0x78] sm:$0xff] %vm2247, %v2246
    %v2264 = vld [vmem:[#allocation6] sm:$0x1]
    %v2265 = vld [vmem:[#allocation6 + $0x40] sm:$0x1]
    %v2269 = vunpack.c.l.s4 1983009808
    %v2270 = vunpack.c.0.s8 %v2269
    %v2271 = vlaneseq
    %v2272 = vshrl.u32 %v2271, 7
    %v2273 = vsub.s32 %v2270, %v2272
    %v2274 = vrot.slane %v2264, %v2273
    %v2276 = vunpack.c.l.s4 1983009808
    %v2277 = vunpack.c.0.s8 %v2276
    %v2278 = vlaneseq
    %v2279 = vshrl.u32 %v2278, 7
    %v2280 = vsub.s32 %v2277, %v2279
    %v2281 = vrot.slane %v2265, %v2280
    %vm2282 = vcmask 1044484
    %v2283 = vsel %vm2282, %v2274, %v2274
    %vm2284 = vcmask 1046534
    %v2285 = vsel %vm2284, %v2274, %v2283
    %v2286 = vrot.slane %v2281, 7
    %vm2287 = vcmask 1041409
    %v2288 = vsel %vm2287, %v2286, %v2285
    %vm2289 = vcmask 1043459
    %v2290 = vsel %vm2289, %v2286, %v2288
    %vm2291 = vcmask 1045509
    %v2292 = vsel %vm2291, %v2286, %v2290
    %vm2293 = vcmask 1047559
    %v2294 = vsel %vm2293, %v2286, %v2292
    %vm2296 = vcmask 517120
    %2297 = vst.msk [vmem:[#allocation7] sm:$0x3] %vm2296, %v2294
    %v2298 = vld [vmem:[#allocation6 + $0x1] sm:$0x1]
    %v2299 = vld [vmem:[#allocation6 + $0x41] sm:$0x1]
    %v2303 = vunpack.c.l.s4 1983009808
    %v2304 = vunpack.c.0.s8 %v2303
    %v2305 = vlaneseq
    %v2306 = vshrl.u32 %v2305, 7
    %v2307 = vsub.s32 %v2304, %v2306
    %v2308 = vrot.slane %v2298, %v2307
    %v2310 = vunpack.c.l.s4 1983009808
    %v2311 = vunpack.c.0.s8 %v2310
    %v2312 = vlaneseq
    %v2313 = vshrl.u32 %v2312, 7
    %v2314 = vsub.s32 %v2311, %v2313
    %v2315 = vrot.slane %v2299, %v2314
    %v2316 = vsel %vm2282, %v2308, %v2308
    %v2317 = vsel %vm2284, %v2308, %v2316
    %v2318 = vrot.slane %v2315, 7
    %v2319 = vsel %vm2287, %v2318, %v2317
    %v2320 = vsel %vm2289, %v2318, %v2319
    %v2321 = vsel %vm2291, %v2318, %v2320
    %v2322 = vsel %vm2293, %v2318, %v2321
    %2323 = vrot.lane.b32.xlu0 %v2322, 64
    %v2324 = vpop.permute.xlu0 %2323
    %vm2326 = vcmask 1041920
    %2327 = vst.msk [vmem:[#allocation7] sm:$0x3] %vm2326, %v2324
    %v2328 = vld [vmem:[#allocation6 + $0x2] sm:$0x1]
    %v2329 = vld [vmem:[#allocation6 + $0x42] sm:$0x1]
    %v2333 = vunpack.c.l.s4 1983009808
    %v2334 = vunpack.c.0.s8 %v2333
    %v2335 = vlaneseq
    %v2336 = vshrl.u32 %v2335, 7
    %v2337 = vsub.s32 %v2334, %v2336
    %v2338 = vrot.slane %v2328, %v2337
    %v2340 = vunpack.c.l.s4 1983009808
    %v2341 = vunpack.c.0.s8 %v2340
    %v2342 = vlaneseq
    %v2343 = vshrl.u32 %v2342, 7
    %v2344 = vsub.s32 %v2341, %v2343
    %v2345 = vrot.slane %v2329, %v2344
    %v2346 = vsel %vm2282, %v2338, %v2338
    %v2347 = vsel %vm2284, %v2338, %v2346
    %v2348 = vrot.slane %v2345, 7
    %v2349 = vsel %vm2287, %v2348, %v2347
    %v2350 = vsel %vm2289, %v2348, %v2349
    %v2351 = vsel %vm2291, %v2348, %v2350
    %v2352 = vsel %vm2293, %v2348, %v2351
    %2354 = vst.msk [vmem:[#allocation7 + $0x2] sm:$0x3] %vm2296, %v2352
    %v2355 = vld [vmem:[#allocation6 + $0x3] sm:$0x1]
    %v2356 = vld [vmem:[#allocation6 + $0x43] sm:$0x1]
    %v2360 = vunpack.c.l.s4 1983009808
    %v2361 = vunpack.c.0.s8 %v2360
    %v2362 = vlaneseq
    %v2363 = vshrl.u32 %v2362, 7
    %v2364 = vsub.s32 %v2361, %v2363
    %v2365 = vrot.slane %v2355, %v2364
    %v2367 = vunpack.c.l.s4 1983009808
    %v2368 = vunpack.c.0.s8 %v2367
    %v2369 = vlaneseq
    %v2370 = vshrl.u32 %v2369, 7
    %v2371 = vsub.s32 %v2368, %v2370
    %v2372 = vrot.slane %v2356, %v2371
    %v2373 = vsel %vm2282, %v2365, %v2365
    %v2374 = vsel %vm2284, %v2365, %v2373
    %v2375 = vrot.slane %v2372, 7
    %v2376 = vsel %vm2287, %v2375, %v2374
    %v2377 = vsel %vm2289, %v2375, %v2376
    %v2378 = vsel %vm2291, %v2375, %v2377
    %v2379 = vsel %vm2293, %v2375, %v2378
    %2380 = vrot.lane.b32.xlu0 %v2379, 64
    %v2381 = vpop.permute.xlu0 %2380
    %2383 = vst.msk [vmem:[#allocation7 + $0x2] sm:$0x3] %vm2326, %v2381
    %v2384 = vld [vmem:[#allocation6 + $0x4] sm:$0x1]
    %v2385 = vld [vmem:[#allocation6 + $0x44] sm:$0x1]
    %v2389 = vunpack.c.l.s4 1983009808
    %v2390 = vunpack.c.0.s8 %v2389
    %v2391 = vlaneseq
    %v2392 = vshrl.u32 %v2391, 7
    %v2393 = vsub.s32 %v2390, %v2392
    %v2394 = vrot.slane %v2384, %v2393
    %v2396 = vunpack.c.l.s4 1983009808
    %v2397 = vunpack.c.0.s8 %v2396
    %v2398 = vlaneseq
    %v2399 = vshrl.u32 %v2398, 7
    %v2400 = vsub.s32 %v2397, %v2399
    %v2401 = vrot.slane %v2385, %v2400
    %v2402 = vsel %vm2282, %v2394, %v2394
    %v2403 = vsel %vm2284, %v2394, %v2402
    %v2404 = vrot.slane %v2401, 7
    %v2405 = vsel %vm2287, %v2404, %v2403
    %v2406 = vsel %vm2289, %v2404, %v2405
    %v2407 = vsel %vm2291, %v2404, %v2406
    %v2408 = vsel %vm2293, %v2404, %v2407
    %2410 = vst.msk [vmem:[#allocation7 + $0x4] sm:$0x3] %vm2296, %v2408
    %v2411 = vld [vmem:[#allocation6 + $0x5] sm:$0x1]
    %v2412 = vld [vmem:[#allocation6 + $0x45] sm:$0x1]
    %v2416 = vunpack.c.l.s4 1983009808
    %v2417 = vunpack.c.0.s8 %v2416
    %v2418 = vlaneseq
    %v2419 = vshrl.u32 %v2418, 7
    %v2420 = vsub.s32 %v2417, %v2419
    %v2421 = vrot.slane %v2411, %v2420
    %v2423 = vunpack.c.l.s4 1983009808
    %v2424 = vunpack.c.0.s8 %v2423
    %v2425 = vlaneseq
    %v2426 = vshrl.u32 %v2425, 7
    %v2427 = vsub.s32 %v2424, %v2426
    %v2428 = vrot.slane %v2412, %v2427
    %v2429 = vsel %vm2282, %v2421, %v2421
    %v2430 = vsel %vm2284, %v2421, %v2429
    %v2431 = vrot.slane %v2428, 7
    %v2432 = vsel %vm2287, %v2431, %v2430
    %v2433 = vsel %vm2289, %v2431, %v2432
    %v2434 = vsel %vm2291, %v2431, %v2433
    %v2435 = vsel %vm2293, %v2431, %v2434
    %2436 = vrot.lane.b32.xlu0 %v2435, 64
    %v2437 = vpop.permute.xlu0 %2436
    %2439 = vst.msk [vmem:[#allocation7 + $0x4] sm:$0x3] %vm2326, %v2437
    %v2440 = vld [vmem:[#allocation6 + $0x6] sm:$0x1]
    %v2441 = vld [vmem:[#allocation6 + $0x46] sm:$0x1]
    %v2445 = vunpack.c.l.s4 1983009808
    %v2446 = vunpack.c.0.s8 %v2445
    %v2447 = vlaneseq
    %v2448 = vshrl.u32 %v2447, 7
    %v2449 = vsub.s32 %v2446, %v2448
    %v2450 = vrot.slane %v2440, %v2449
    %v2452 = vunpack.c.l.s4 1983009808
    %v2453 = vunpack.c.0.s8 %v2452
    %v2454 = vlaneseq
    %v2455 = vshrl.u32 %v2454, 7
    %v2456 = vsub.s32 %v2453, %v2455
    %v2457 = vrot.slane %v2441, %v2456
    %v2458 = vsel %vm2282, %v2450, %v2450
    %v2459 = vsel %vm2284, %v2450, %v2458
    %v2460 = vrot.slane %v2457, 7
    %v2461 = vsel %vm2287, %v2460, %v2459
    %v2462 = vsel %vm2289, %v2460, %v2461
    %v2463 = vsel %vm2291, %v2460, %v2462
    %v2464 = vsel %vm2293, %v2460, %v2463
    %2466 = vst.msk [vmem:[#allocation7 + $0x6] sm:$0x3] %vm2296, %v2464
    %v2467 = vld [vmem:[#allocation6 + $0x7] sm:$0x1]
    %v2468 = vld [vmem:[#allocation6 + $0x47] sm:$0x1]
    %v2472 = vunpack.c.l.s4 1983009808
    %v2473 = vunpack.c.0.s8 %v2472
    %v2474 = vlaneseq
    %v2475 = vshrl.u32 %v2474, 7
    %v2476 = vsub.s32 %v2473, %v2475
    %v2477 = vrot.slane %v2467, %v2476
    %v2479 = vunpack.c.l.s4 1983009808
    %v2480 = vunpack.c.0.s8 %v2479
    %v2481 = vlaneseq
    %v2482 = vshrl.u32 %v2481, 7
    %v2483 = vsub.s32 %v2480, %v2482
    %v2484 = vrot.slane %v2468, %v2483
    %v2485 = vsel %vm2282, %v2477, %v2477
    %v2486 = vsel %vm2284, %v2477, %v2485
    %v2487 = vrot.slane %v2484, 7
    %v2488 = vsel %vm2287, %v2487, %v2486
    %v2489 = vsel %vm2289, %v2487, %v2488
    %v2490 = vsel %vm2291, %v2487, %v2489
    %v2491 = vsel %vm2293, %v2487, %v2490
    %2492 = vrot.lane.b32.xlu0 %v2491, 64
    %v2493 = vpop.permute.xlu0 %2492
    %2495 = vst.msk [vmem:[#allocation7 + $0x6] sm:$0x3] %vm2326, %v2493
    %v2496 = vld [vmem:[#allocation6 + $0x8] sm:$0x1]
    %v2497 = vld [vmem:[#allocation6 + $0x48] sm:$0x1]
    %v2501 = vunpack.c.l.s4 1983009808
    %v2502 = vunpack.c.0.s8 %v2501
    %v2503 = vlaneseq
    %v2504 = vshrl.u32 %v2503, 7
    %v2505 = vsub.s32 %v2502, %v2504
    %v2506 = vrot.slane %v2496, %v2505
    %v2508 = vunpack.c.l.s4 1983009808
    %v2509 = vunpack.c.0.s8 %v2508
    %v2510 = vlaneseq
    %v2511 = vshrl.u32 %v2510, 7
    %v2512 = vsub.s32 %v2509, %v2511
    %v2513 = vrot.slane %v2497, %v2512
    %v2514 = vsel %vm2282, %v2506, %v2506
    %v2515 = vsel %vm2284, %v2506, %v2514
    %v2516 = vrot.slane %v2513, 7
    %v2517 = vsel %vm2287, %v2516, %v2515
    %v2518 = vsel %vm2289, %v2516, %v2517
    %v2519 = vsel %vm2291, %v2516, %v2518
    %v2520 = vsel %vm2293, %v2516, %v2519
    %2522 = vst.msk [vmem:[#allocation7 + $0x8] sm:$0x3] %vm2296, %v2520
    %v2523 = vld [vmem:[#allocation6 + $0x9] sm:$0x1]
    %v2524 = vld [vmem:[#allocation6 + $0x49] sm:$0x1]
    %v2528 = vunpack.c.l.s4 1983009808
    %v2529 = vunpack.c.0.s8 %v2528
    %v2530 = vlaneseq
    %v2531 = vshrl.u32 %v2530, 7
    %v2532 = vsub.s32 %v2529, %v2531
    %v2533 = vrot.slane %v2523, %v2532
    %v2535 = vunpack.c.l.s4 1983009808
    %v2536 = vunpack.c.0.s8 %v2535
    %v2537 = vlaneseq
    %v2538 = vshrl.u32 %v2537, 7
    %v2539 = vsub.s32 %v2536, %v2538
    %v2540 = vrot.slane %v2524, %v2539
    %v2541 = vsel %vm2282, %v2533, %v2533
    %v2542 = vsel %vm2284, %v2533, %v2541
    %v2543 = vrot.slane %v2540, 7
    %v2544 = vsel %vm2287, %v2543, %v2542
    %v2545 = vsel %vm2289, %v2543, %v2544
    %v2546 = vsel %vm2291, %v2543, %v2545
    %v2547 = vsel %vm2293, %v2543, %v2546
    %2548 = vrot.lane.b32.xlu0 %v2547, 64
    %v2549 = vpop.permute.xlu0 %2548
    %2551 = vst.msk [vmem:[#allocation7 + $0x8] sm:$0x3] %vm2326, %v2549
    %v2552 = vld [vmem:[#allocation6 + $0xa] sm:$0x1]
    %v2553 = vld [vmem:[#allocation6 + $0x4a] sm:$0x1]
    %v2557 = vunpack.c.l.s4 1983009808
    %v2558 = vunpack.c.0.s8 %v2557
    %v2559 = vlaneseq
    %v2560 = vshrl.u32 %v2559, 7
    %v2561 = vsub.s32 %v2558, %v2560
    %v2562 = vrot.slane %v2552, %v2561
    %v2564 = vunpack.c.l.s4 1983009808
    %v2565 = vunpack.c.0.s8 %v2564
    %v2566 = vlaneseq
    %v2567 = vshrl.u32 %v2566, 7
    %v2568 = vsub.s32 %v2565, %v2567
    %v2569 = vrot.slane %v2553, %v2568
    %v2570 = vsel %vm2282, %v2562, %v2562
    %v2571 = vsel %vm2284, %v2562, %v2570
    %v2572 = vrot.slane %v2569, 7
    %v2573 = vsel %vm2287, %v2572, %v2571
    %v2574 = vsel %vm2289, %v2572, %v2573
    %v2575 = vsel %vm2291, %v2572, %v2574
    %v2576 = vsel %vm2293, %v2572, %v2575
    %2578 = vst.msk [vmem:[#allocation7 + $0xa] sm:$0x3] %vm2296, %v2576
    %v2579 = vld [vmem:[#allocation6 + $0xb] sm:$0x1]
    %v2580 = vld [vmem:[#allocation6 + $0x4b] sm:$0x1]
    %v2584 = vunpack.c.l.s4 1983009808
    %v2585 = vunpack.c.0.s8 %v2584
    %v2586 = vlaneseq
    %v2587 = vshrl.u32 %v2586, 7
    %v2588 = vsub.s32 %v2585, %v2587
    %v2589 = vrot.slane %v2579, %v2588
    %v2591 = vunpack.c.l.s4 1983009808
    %v2592 = vunpack.c.0.s8 %v2591
    %v2593 = vlaneseq
    %v2594 = vshrl.u32 %v2593, 7
    %v2595 = vsub.s32 %v2592, %v2594
    %v2596 = vrot.slane %v2580, %v2595
    %v2597 = vsel %vm2282, %v2589, %v2589
    %v2598 = vsel %vm2284, %v2589, %v2597
    %v2599 = vrot.slane %v2596, 7
    %v2600 = vsel %vm2287, %v2599, %v2598
    %v2601 = vsel %vm2289, %v2599, %v2600
    %v2602 = vsel %vm2291, %v2599, %v2601
    %v2603 = vsel %vm2293, %v2599, %v2602
    %2604 = vrot.lane.b32.xlu0 %v2603, 64
    %v2605 = vpop.permute.xlu0 %2604
    %2607 = vst.msk [vmem:[#allocation7 + $0xa] sm:$0x3] %vm2326, %v2605
    %v2608 = vld [vmem:[#allocation6 + $0xc] sm:$0x1]
    %v2609 = vld [vmem:[#allocation6 + $0x4c] sm:$0x1]
    %v2613 = vunpack.c.l.s4 1983009808
    %v2614 = vunpack.c.0.s8 %v2613
    %v2615 = vlaneseq
    %v2616 = vshrl.u32 %v2615, 7
    %v2617 = vsub.s32 %v2614, %v2616
    %v2618 = vrot.slane %v2608, %v2617
    %v2620 = vunpack.c.l.s4 1983009808
    %v2621 = vunpack.c.0.s8 %v2620
    %v2622 = vlaneseq
    %v2623 = vshrl.u32 %v2622, 7
    %v2624 = vsub.s32 %v2621, %v2623
    %v2625 = vrot.slane %v2609, %v2624
    %v2626 = vsel %vm2282, %v2618, %v2618
    %v2627 = vsel %vm2284, %v2618, %v2626
    %v2628 = vrot.slane %v2625, 7
    %v2629 = vsel %vm2287, %v2628, %v2627
    %v2630 = vsel %vm2289, %v2628, %v2629
    %v2631 = vsel %vm2291, %v2628, %v2630
    %v2632 = vsel %vm2293, %v2628, %v2631
    %2634 = vst.msk [vmem:[#allocation7 + $0xc] sm:$0x3] %vm2296, %v2632
    %v2635 = vld [vmem:[#allocation6 + $0xd] sm:$0x1]
    %v2636 = vld [vmem:[#allocation6 + $0x4d] sm:$0x1]
    %v2640 = vunpack.c.l.s4 1983009808
    %v2641 = vunpack.c.0.s8 %v2640
    %v2642 = vlaneseq
    %v2643 = vshrl.u32 %v2642, 7
    %v2644 = vsub.s32 %v2641, %v2643
    %v2645 = vrot.slane %v2635, %v2644
    %v2647 = vunpack.c.l.s4 1983009808
    %v2648 = vunpack.c.0.s8 %v2647
    %v2649 = vlaneseq
    %v2650 = vshrl.u32 %v2649, 7
    %v2651 = vsub.s32 %v2648, %v2650
    %v2652 = vrot.slane %v2636, %v2651
    %v2653 = vsel %vm2282, %v2645, %v2645
    %v2654 = vsel %vm2284, %v2645, %v2653
    %v2655 = vrot.slane %v2652, 7
    %v2656 = vsel %vm2287, %v2655, %v2654
    %v2657 = vsel %vm2289, %v2655, %v2656
    %v2658 = vsel %vm2291, %v2655, %v2657
    %v2659 = vsel %vm2293, %v2655, %v2658
    %2660 = vrot.lane.b32.xlu0 %v2659, 64
    %v2661 = vpop.permute.xlu0 %2660
    %2663 = vst.msk [vmem:[#allocation7 + $0xc] sm:$0x3] %vm2326, %v2661
    %v2664 = vld [vmem:[#allocation6 + $0xe] sm:$0x1]
    %v2665 = vld [vmem:[#allocation6 + $0x4e] sm:$0x1]
    %v2669 = vunpack.c.l.s4 1983009808
    %v2670 = vunpack.c.0.s8 %v2669
    %v2671 = vlaneseq
    %v2672 = vshrl.u32 %v2671, 7
    %v2673 = vsub.s32 %v2670, %v2672
    %v2674 = vrot.slane %v2664, %v2673
    %v2676 = vunpack.c.l.s4 1983009808
    %v2677 = vunpack.c.0.s8 %v2676
    %v2678 = vlaneseq
    %v2679 = vshrl.u32 %v2678, 7
    %v2680 = vsub.s32 %v2677, %v2679
    %v2681 = vrot.slane %v2665, %v2680
    %v2682 = vsel %vm2282, %v2674, %v2674
    %v2683 = vsel %vm2284, %v2674, %v2682
    %v2684 = vrot.slane %v2681, 7
    %v2685 = vsel %vm2287, %v2684, %v2683
    %v2686 = vsel %vm2289, %v2684, %v2685
    %v2687 = vsel %vm2291, %v2684, %v2686
    %v2688 = vsel %vm2293, %v2684, %v2687
    %2690 = vst.msk [vmem:[#allocation7 + $0xe] sm:$0x3] %vm2296, %v2688
    %v2691 = vld [vmem:[#allocation6 + $0xf] sm:$0x1]
    %v2692 = vld [vmem:[#allocation6 + $0x4f] sm:$0x1]
    %v2696 = vunpack.c.l.s4 1983009808
    %v2697 = vunpack.c.0.s8 %v2696
    %v2698 = vlaneseq
    %v2699 = vshrl.u32 %v2698, 7
    %v2700 = vsub.s32 %v2697, %v2699
    %v2701 = vrot.slane %v2691, %v2700
    %v2703 = vunpack.c.l.s4 1983009808
    %v2704 = vunpack.c.0.s8 %v2703
    %v2705 = vlaneseq
    %v2706 = vshrl.u32 %v2705, 7
    %v2707 = vsub.s32 %v2704, %v2706
    %v2708 = vrot.slane %v2692, %v2707
    %v2709 = vsel %vm2282, %v2701, %v2701
    %v2710 = vsel %vm2284, %v2701, %v2709
    %v2711 = vrot.slane %v2708, 7
    %v2712 = vsel %vm2287, %v2711, %v2710
    %v2713 = vsel %vm2289, %v2711, %v2712
    %v2714 = vsel %vm2291, %v2711, %v2713
    %v2715 = vsel %vm2293, %v2711, %v2714
    %2716 = vrot.lane.b32.xlu0 %v2715, 64
    %v2717 = vpop.permute.xlu0 %2716
    %2719 = vst.msk [vmem:[#allocation7 + $0xe] sm:$0x3] %vm2326, %v2717
    %v2720 = vld [vmem:[#allocation6 + $0x10] sm:$0x1]
    %v2721 = vld [vmem:[#allocation6 + $0x50] sm:$0x1]
    %v2725 = vunpack.c.l.s4 1983009808
    %v2726 = vunpack.c.0.s8 %v2725
    %v2727 = vlaneseq
    %v2728 = vshrl.u32 %v2727, 7
    %v2729 = vsub.s32 %v2726, %v2728
    %v2730 = vrot.slane %v2720, %v2729
    %v2732 = vunpack.c.l.s4 1983009808
    %v2733 = vunpack.c.0.s8 %v2732
    %v2734 = vlaneseq
    %v2735 = vshrl.u32 %v2734, 7
    %v2736 = vsub.s32 %v2733, %v2735
    %v2737 = vrot.slane %v2721, %v2736
    %v2738 = vsel %vm2282, %v2730, %v2730
    %v2739 = vsel %vm2284, %v2730, %v2738
    %v2740 = vrot.slane %v2737, 7
    %v2741 = vsel %vm2287, %v2740, %v2739
    %v2742 = vsel %vm2289, %v2740, %v2741
    %v2743 = vsel %vm2291, %v2740, %v2742
    %v2744 = vsel %vm2293, %v2740, %v2743
    %2746 = vst.msk [vmem:[#allocation7 + $0x10] sm:$0x3] %vm2296, %v2744
    %v2747 = vld [vmem:[#allocation6 + $0x11] sm:$0x1]
    %v2748 = vld [vmem:[#allocation6 + $0x51] sm:$0x1]
    %v2752 = vunpack.c.l.s4 1983009808
    %v2753 = vunpack.c.0.s8 %v2752
    %v2754 = vlaneseq
    %v2755 = vshrl.u32 %v2754, 7
    %v2756 = vsub.s32 %v2753, %v2755
    %v2757 = vrot.slane %v2747, %v2756
    %v2759 = vunpack.c.l.s4 1983009808
    %v2760 = vunpack.c.0.s8 %v2759
    %v2761 = vlaneseq
    %v2762 = vshrl.u32 %v2761, 7
    %v2763 = vsub.s32 %v2760, %v2762
    %v2764 = vrot.slane %v2748, %v2763
    %v2765 = vsel %vm2282, %v2757, %v2757
    %v2766 = vsel %vm2284, %v2757, %v2765
    %v2767 = vrot.slane %v2764, 7
    %v2768 = vsel %vm2287, %v2767, %v2766
    %v2769 = vsel %vm2289, %v2767, %v2768
    %v2770 = vsel %vm2291, %v2767, %v2769
    %v2771 = vsel %vm2293, %v2767, %v2770
    %2772 = vrot.lane.b32.xlu0 %v2771, 64
    %v2773 = vpop.permute.xlu0 %2772
    %2775 = vst.msk [vmem:[#allocation7 + $0x10] sm:$0x3] %vm2326, %v2773
    %v2776 = vld [vmem:[#allocation6 + $0x12] sm:$0x1]
    %v2777 = vld [vmem:[#allocation6 + $0x52] sm:$0x1]
    %v2781 = vunpack.c.l.s4 1983009808
    %v2782 = vunpack.c.0.s8 %v2781
    %v2783 = vlaneseq
    %v2784 = vshrl.u32 %v2783, 7
    %v2785 = vsub.s32 %v2782, %v2784
    %v2786 = vrot.slane %v2776, %v2785
    %v2788 = vunpack.c.l.s4 1983009808
    %v2789 = vunpack.c.0.s8 %v2788
    %v2790 = vlaneseq
    %v2791 = vshrl.u32 %v2790, 7
    %v2792 = vsub.s32 %v2789, %v2791
    %v2793 = vrot.slane %v2777, %v2792
    %v2794 = vsel %vm2282, %v2786, %v2786
    %v2795 = vsel %vm2284, %v2786, %v2794
    %v2796 = vrot.slane %v2793, 7
    %v2797 = vsel %vm2287, %v2796, %v2795
    %v2798 = vsel %vm2289, %v2796, %v2797
    %v2799 = vsel %vm2291, %v2796, %v2798
    %v2800 = vsel %vm2293, %v2796, %v2799
    %2802 = vst.msk [vmem:[#allocation7 + $0x12] sm:$0x3] %vm2296, %v2800
    %v2803 = vld [vmem:[#allocation6 + $0x13] sm:$0x1]
    %v2804 = vld [vmem:[#allocation6 + $0x53] sm:$0x1]
    %v2808 = vunpack.c.l.s4 1983009808
    %v2809 = vunpack.c.0.s8 %v2808
    %v2810 = vlaneseq
    %v2811 = vshrl.u32 %v2810, 7
    %v2812 = vsub.s32 %v2809, %v2811
    %v2813 = vrot.slane %v2803, %v2812
    %v2815 = vunpack.c.l.s4 1983009808
    %v2816 = vunpack.c.0.s8 %v2815
    %v2817 = vlaneseq
    %v2818 = vshrl.u32 %v2817, 7
    %v2819 = vsub.s32 %v2816, %v2818
    %v2820 = vrot.slane %v2804, %v2819
    %v2821 = vsel %vm2282, %v2813, %v2813
    %v2822 = vsel %vm2284, %v2813, %v2821
    %v2823 = vrot.slane %v2820, 7
    %v2824 = vsel %vm2287, %v2823, %v2822
    %v2825 = vsel %vm2289, %v2823, %v2824
    %v2826 = vsel %vm2291, %v2823, %v2825
    %v2827 = vsel %vm2293, %v2823, %v2826
    %2828 = vrot.lane.b32.xlu0 %v2827, 64
    %v2829 = vpop.permute.xlu0 %2828
    %2831 = vst.msk [vmem:[#allocation7 + $0x12] sm:$0x3] %vm2326, %v2829
    %v2832 = vld [vmem:[#allocation6 + $0x14] sm:$0x1]
    %v2833 = vld [vmem:[#allocation6 + $0x54] sm:$0x1]
    %v2837 = vunpack.c.l.s4 1983009808
    %v2838 = vunpack.c.0.s8 %v2837
    %v2839 = vlaneseq
    %v2840 = vshrl.u32 %v2839, 7
    %v2841 = vsub.s32 %v2838, %v2840
    %v2842 = vrot.slane %v2832, %v2841
    %v2844 = vunpack.c.l.s4 1983009808
    %v2845 = vunpack.c.0.s8 %v2844
    %v2846 = vlaneseq
    %v2847 = vshrl.u32 %v2846, 7
    %v2848 = vsub.s32 %v2845, %v2847
    %v2849 = vrot.slane %v2833, %v2848
    %v2850 = vsel %vm2282, %v2842, %v2842
    %v2851 = vsel %vm2284, %v2842, %v2850
    %v2852 = vrot.slane %v2849, 7
    %v2853 = vsel %vm2287, %v2852, %v2851
    %v2854 = vsel %vm2289, %v2852, %v2853
    %v2855 = vsel %vm2291, %v2852, %v2854
    %v2856 = vsel %vm2293, %v2852, %v2855
    %2858 = vst.msk [vmem:[#allocation7 + $0x14] sm:$0x3] %vm2296, %v2856
    %v2859 = vld [vmem:[#allocation6 + $0x15] sm:$0x1]
    %v2860 = vld [vmem:[#allocation6 + $0x55] sm:$0x1]
    %v2864 = vunpack.c.l.s4 1983009808
    %v2865 = vunpack.c.0.s8 %v2864
    %v2866 = vlaneseq
    %v2867 = vshrl.u32 %v2866, 7
    %v2868 = vsub.s32 %v2865, %v2867
    %v2869 = vrot.slane %v2859, %v2868
    %v2871 = vunpack.c.l.s4 1983009808
    %v2872 = vunpack.c.0.s8 %v2871
    %v2873 = vlaneseq
    %v2874 = vshrl.u32 %v2873, 7
    %v2875 = vsub.s32 %v2872, %v2874
    %v2876 = vrot.slane %v2860, %v2875
    %v2877 = vsel %vm2282, %v2869, %v2869
    %v2878 = vsel %vm2284, %v2869, %v2877
    %v2879 = vrot.slane %v2876, 7
    %v2880 = vsel %vm2287, %v2879, %v2878
    %v2881 = vsel %vm2289, %v2879, %v2880
    %v2882 = vsel %vm2291, %v2879, %v2881
    %v2883 = vsel %vm2293, %v2879, %v2882
    %2884 = vrot.lane.b32.xlu0 %v2883, 64
    %v2885 = vpop.permute.xlu0 %2884
    %2887 = vst.msk [vmem:[#allocation7 + $0x14] sm:$0x3] %vm2326, %v2885
    %v2888 = vld [vmem:[#allocation6 + $0x16] sm:$0x1]
    %v2889 = vld [vmem:[#allocation6 + $0x56] sm:$0x1]
    %v2893 = vunpack.c.l.s4 1983009808
    %v2894 = vunpack.c.0.s8 %v2893
    %v2895 = vlaneseq
    %v2896 = vshrl.u32 %v2895, 7
    %v2897 = vsub.s32 %v2894, %v2896
    %v2898 = vrot.slane %v2888, %v2897
    %v2900 = vunpack.c.l.s4 1983009808
    %v2901 = vunpack.c.0.s8 %v2900
    %v2902 = vlaneseq
    %v2903 = vshrl.u32 %v2902, 7
    %v2904 = vsub.s32 %v2901, %v2903
    %v2905 = vrot.slane %v2889, %v2904
    %v2906 = vsel %vm2282, %v2898, %v2898
    %v2907 = vsel %vm2284, %v2898, %v2906
    %v2908 = vrot.slane %v2905, 7
    %v2909 = vsel %vm2287, %v2908, %v2907
    %v2910 = vsel %vm2289, %v2908, %v2909
    %v2911 = vsel %vm2291, %v2908, %v2910
    %v2912 = vsel %vm2293, %v2908, %v2911
    %2914 = vst.msk [vmem:[#allocation7 + $0x16] sm:$0x3] %vm2296, %v2912
    %v2915 = vld [vmem:[#allocation6 + $0x17] sm:$0x1]
    %v2916 = vld [vmem:[#allocation6 + $0x57] sm:$0x1]
    %v2920 = vunpack.c.l.s4 1983009808
    %v2921 = vunpack.c.0.s8 %v2920
    %v2922 = vlaneseq
    %v2923 = vshrl.u32 %v2922, 7
    %v2924 = vsub.s32 %v2921, %v2923
    %v2925 = vrot.slane %v2915, %v2924
    %v2927 = vunpack.c.l.s4 1983009808
    %v2928 = vunpack.c.0.s8 %v2927
    %v2929 = vlaneseq
    %v2930 = vshrl.u32 %v2929, 7
    %v2931 = vsub.s32 %v2928, %v2930
    %v2932 = vrot.slane %v2916, %v2931
    %v2933 = vsel %vm2282, %v2925, %v2925
    %v2934 = vsel %vm2284, %v2925, %v2933
    %v2935 = vrot.slane %v2932, 7
    %v2936 = vsel %vm2287, %v2935, %v2934
    %v2937 = vsel %vm2289, %v2935, %v2936
    %v2938 = vsel %vm2291, %v2935, %v2937
    %v2939 = vsel %vm2293, %v2935, %v2938
    %2940 = vrot.lane.b32.xlu0 %v2939, 64
    %v2941 = vpop.permute.xlu0 %2940
    %2943 = vst.msk [vmem:[#allocation7 + $0x16] sm:$0x3] %vm2326, %v2941
    %v2944 = vld [vmem:[#allocation6 + $0x18] sm:$0x1]
    %v2945 = vld [vmem:[#allocation6 + $0x58] sm:$0x1]
    %v2949 = vunpack.c.l.s4 1983009808
    %v2950 = vunpack.c.0.s8 %v2949
    %v2951 = vlaneseq
    %v2952 = vshrl.u32 %v2951, 7
    %v2953 = vsub.s32 %v2950, %v2952
    %v2954 = vrot.slane %v2944, %v2953
    %v2956 = vunpack.c.l.s4 1983009808
    %v2957 = vunpack.c.0.s8 %v2956
    %v2958 = vlaneseq
    %v2959 = vshrl.u32 %v2958, 7
    %v2960 = vsub.s32 %v2957, %v2959
    %v2961 = vrot.slane %v2945, %v2960
    %v2962 = vsel %vm2282, %v2954, %v2954
    %v2963 = vsel %vm2284, %v2954, %v2962
    %v2964 = vrot.slane %v2961, 7
    %v2965 = vsel %vm2287, %v2964, %v2963
    %v2966 = vsel %vm2289, %v2964, %v2965
    %v2967 = vsel %vm2291, %v2964, %v2966
    %v2968 = vsel %vm2293, %v2964, %v2967
    %2970 = vst.msk [vmem:[#allocation7 + $0x18] sm:$0x3] %vm2296, %v2968
    %v2971 = vld [vmem:[#allocation6 + $0x19] sm:$0x1]
    %v2972 = vld [vmem:[#allocation6 + $0x59] sm:$0x1]
    %v2976 = vunpack.c.l.s4 1983009808
    %v2977 = vunpack.c.0.s8 %v2976
    %v2978 = vlaneseq
    %v2979 = vshrl.u32 %v2978, 7
    %v2980 = vsub.s32 %v2977, %v2979
    %v2981 = vrot.slane %v2971, %v2980
    %v2983 = vunpack.c.l.s4 1983009808
    %v2984 = vunpack.c.0.s8 %v2983
    %v2985 = vlaneseq
    %v2986 = vshrl.u32 %v2985, 7
    %v2987 = vsub.s32 %v2984, %v2986
    %v2988 = vrot.slane %v2972, %v2987
    %v2989 = vsel %vm2282, %v2981, %v2981
    %v2990 = vsel %vm2284, %v2981, %v2989
    %v2991 = vrot.slane %v2988, 7
    %v2992 = vsel %vm2287, %v2991, %v2990
    %v2993 = vsel %vm2289, %v2991, %v2992
    %v2994 = vsel %vm2291, %v2991, %v2993
    %v2995 = vsel %vm2293, %v2991, %v2994
    %2996 = vrot.lane.b32.xlu0 %v2995, 64
    %v2997 = vpop.permute.xlu0 %2996
    %2999 = vst.msk [vmem:[#allocation7 + $0x18] sm:$0x3] %vm2326, %v2997
    %v3000 = vld [vmem:[#allocation6 + $0x1a] sm:$0x1]
    %v3001 = vld [vmem:[#allocation6 + $0x5a] sm:$0x1]
    %v3005 = vunpack.c.l.s4 1983009808
    %v3006 = vunpack.c.0.s8 %v3005
    %v3007 = vlaneseq
    %v3008 = vshrl.u32 %v3007, 7
    %v3009 = vsub.s32 %v3006, %v3008
    %v3010 = vrot.slane %v3000, %v3009
    %v3012 = vunpack.c.l.s4 1983009808
    %v3013 = vunpack.c.0.s8 %v3012
    %v3014 = vlaneseq
    %v3015 = vshrl.u32 %v3014, 7
    %v3016 = vsub.s32 %v3013, %v3015
    %v3017 = vrot.slane %v3001, %v3016
    %v3018 = vsel %vm2282, %v3010, %v3010
    %v3019 = vsel %vm2284, %v3010, %v3018
    %v3020 = vrot.slane %v3017, 7
    %v3021 = vsel %vm2287, %v3020, %v3019
    %v3022 = vsel %vm2289, %v3020, %v3021
    %v3023 = vsel %vm2291, %v3020, %v3022
    %v3024 = vsel %vm2293, %v3020, %v3023
    %3026 = vst.msk [vmem:[#allocation7 + $0x1a] sm:$0x3] %vm2296, %v3024
    %v3027 = vld [vmem:[#allocation6 + $0x1b] sm:$0x1]
    %v3028 = vld [vmem:[#allocation6 + $0x5b] sm:$0x1]
    %v3032 = vunpack.c.l.s4 1983009808
    %v3033 = vunpack.c.0.s8 %v3032
    %v3034 = vlaneseq
    %v3035 = vshrl.u32 %v3034, 7
    %v3036 = vsub.s32 %v3033, %v3035
    %v3037 = vrot.slane %v3027, %v3036
    %v3039 = vunpack.c.l.s4 1983009808
    %v3040 = vunpack.c.0.s8 %v3039
    %v3041 = vlaneseq
    %v3042 = vshrl.u32 %v3041, 7
    %v3043 = vsub.s32 %v3040, %v3042
    %v3044 = vrot.slane %v3028, %v3043
    %v3045 = vsel %vm2282, %v3037, %v3037
    %v3046 = vsel %vm2284, %v3037, %v3045
    %v3047 = vrot.slane %v3044, 7
    %v3048 = vsel %vm2287, %v3047, %v3046
    %v3049 = vsel %vm2289, %v3047, %v3048
    %v3050 = vsel %vm2291, %v3047, %v3049
    %v3051 = vsel %vm2293, %v3047, %v3050
    %3052 = vrot.lane.b32.xlu0 %v3051, 64
    %v3053 = vpop.permute.xlu0 %3052
    %3055 = vst.msk [vmem:[#allocation7 + $0x1a] sm:$0x3] %vm2326, %v3053
    %v3056 = vld [vmem:[#allocation6 + $0x1c] sm:$0x1]
    %v3057 = vld [vmem:[#allocation6 + $0x5c] sm:$0x1]
    %v3061 = vunpack.c.l.s4 1983009808
    %v3062 = vunpack.c.0.s8 %v3061
    %v3063 = vlaneseq
    %v3064 = vshrl.u32 %v3063, 7
    %v3065 = vsub.s32 %v3062, %v3064
    %v3066 = vrot.slane %v3056, %v3065
    %v3068 = vunpack.c.l.s4 1983009808
    %v3069 = vunpack.c.0.s8 %v3068
    %v3070 = vlaneseq
    %v3071 = vshrl.u32 %v3070, 7
    %v3072 = vsub.s32 %v3069, %v3071
    %v3073 = vrot.slane %v3057, %v3072
    %v3074 = vsel %vm2282, %v3066, %v3066
    %v3075 = vsel %vm2284, %v3066, %v3074
    %v3076 = vrot.slane %v3073, 7
    %v3077 = vsel %vm2287, %v3076, %v3075
    %v3078 = vsel %vm2289, %v3076, %v3077
    %v3079 = vsel %vm2291, %v3076, %v3078
    %v3080 = vsel %vm2293, %v3076, %v3079
    %3082 = vst.msk [vmem:[#allocation7 + $0x1c] sm:$0x3] %vm2296, %v3080
    %v3083 = vld [vmem:[#allocation6 + $0x1d] sm:$0x1]
    %v3084 = vld [vmem:[#allocation6 + $0x5d] sm:$0x1]
    %v3088 = vunpack.c.l.s4 1983009808
    %v3089 = vunpack.c.0.s8 %v3088
    %v3090 = vlaneseq
    %v3091 = vshrl.u32 %v3090, 7
    %v3092 = vsub.s32 %v3089, %v3091
    %v3093 = vrot.slane %v3083, %v3092
    %v3095 = vunpack.c.l.s4 1983009808
    %v3096 = vunpack.c.0.s8 %v3095
    %v3097 = vlaneseq
    %v3098 = vshrl.u32 %v3097, 7
    %v3099 = vsub.s32 %v3096, %v3098
    %v3100 = vrot.slane %v3084, %v3099
    %v3101 = vsel %vm2282, %v3093, %v3093
    %v3102 = vsel %vm2284, %v3093, %v3101
    %v3103 = vrot.slane %v3100, 7
    %v3104 = vsel %vm2287, %v3103, %v3102
    %v3105 = vsel %vm2289, %v3103, %v3104
    %v3106 = vsel %vm2291, %v3103, %v3105
    %v3107 = vsel %vm2293, %v3103, %v3106
    %3108 = vrot.lane.b32.xlu0 %v3107, 64
    %v3109 = vpop.permute.xlu0 %3108
    %3111 = vst.msk [vmem:[#allocation7 + $0x1c] sm:$0x3] %vm2326, %v3109
    %v3112 = vld [vmem:[#allocation6 + $0x1e] sm:$0x1]
    %v3113 = vld [vmem:[#allocation6 + $0x5e] sm:$0x1]
    %v3117 = vunpack.c.l.s4 1983009808
    %v3118 = vunpack.c.0.s8 %v3117
    %v3119 = vlaneseq
    %v3120 = vshrl.u32 %v3119, 7
    %v3121 = vsub.s32 %v3118, %v3120
    %v3122 = vrot.slane %v3112, %v3121
    %v3124 = vunpack.c.l.s4 1983009808
    %v3125 = vunpack.c.0.s8 %v3124
    %v3126 = vlaneseq
    %v3127 = vshrl.u32 %v3126, 7
    %v3128 = vsub.s32 %v3125, %v3127
    %v3129 = vrot.slane %v3113, %v3128
    %v3130 = vsel %vm2282, %v3122, %v3122
    %v3131 = vsel %vm2284, %v3122, %v3130
    %v3132 = vrot.slane %v3129, 7
    %v3133 = vsel %vm2287, %v3132, %v3131
    %v3134 = vsel %vm2289, %v3132, %v3133
    %v3135 = vsel %vm2291, %v3132, %v3134
    %v3136 = vsel %vm2293, %v3132, %v3135
    %3138 = vst.msk [vmem:[#allocation7 + $0x1e] sm:$0x3] %vm2296, %v3136
    %v3139 = vld [vmem:[#allocation6 + $0x1f] sm:$0x1]
    %v3140 = vld [vmem:[#allocation6 + $0x5f] sm:$0x1]
    %v3144 = vunpack.c.l.s4 1983009808
    %v3145 = vunpack.c.0.s8 %v3144
    %v3146 = vlaneseq
    %v3147 = vshrl.u32 %v3146, 7
    %v3148 = vsub.s32 %v3145, %v3147
    %v3149 = vrot.slane %v3139, %v3148
    %v3151 = vunpack.c.l.s4 1983009808
    %v3152 = vunpack.c.0.s8 %v3151
    %v3153 = vlaneseq
    %v3154 = vshrl.u32 %v3153, 7
    %v3155 = vsub.s32 %v3152, %v3154
    %v3156 = vrot.slane %v3140, %v3155
    %v3157 = vsel %vm2282, %v3149, %v3149
    %v3158 = vsel %vm2284, %v3149, %v3157
    %v3159 = vrot.slane %v3156, 7
    %v3160 = vsel %vm2287, %v3159, %v3158
    %v3161 = vsel %vm2289, %v3159, %v3160
    %v3162 = vsel %vm2291, %v3159, %v3161
    %v3163 = vsel %vm2293, %v3159, %v3162
    %3164 = vrot.lane.b32.xlu0 %v3163, 64
    %v3165 = vpop.permute.xlu0 %3164
    %3167 = vst.msk [vmem:[#allocation7 + $0x1e] sm:$0x3] %vm2326, %v3165
    %v3168 = vld [vmem:[#allocation6 + $0x20] sm:$0x1]
    %v3169 = vld [vmem:[#allocation6 + $0x60] sm:$0x1]
    %v3173 = vunpack.c.l.s4 1983009808
    %v3174 = vunpack.c.0.s8 %v3173
    %v3175 = vlaneseq
    %v3176 = vshrl.u32 %v3175, 7
    %v3177 = vsub.s32 %v3174, %v3176
    %v3178 = vrot.slane %v3168, %v3177
    %v3180 = vunpack.c.l.s4 1983009808
    %v3181 = vunpack.c.0.s8 %v3180
    %v3182 = vlaneseq
    %v3183 = vshrl.u32 %v3182, 7
    %v3184 = vsub.s32 %v3181, %v3183
    %v3185 = vrot.slane %v3169, %v3184
    %v3186 = vsel %vm2282, %v3178, %v3178
    %v3187 = vsel %vm2284, %v3178, %v3186
    %v3188 = vrot.slane %v3185, 7
    %v3189 = vsel %vm2287, %v3188, %v3187
    %v3190 = vsel %vm2289, %v3188, %v3189
    %v3191 = vsel %vm2291, %v3188, %v3190
    %v3192 = vsel %vm2293, %v3188, %v3191
    %3194 = vst.msk [vmem:[#allocation7 + $0x20] sm:$0x3] %vm2296, %v3192
    %v3195 = vld [vmem:[#allocation6 + $0x21] sm:$0x1]
    %v3196 = vld [vmem:[#allocation6 + $0x61] sm:$0x1]
    %v3200 = vunpack.c.l.s4 1983009808
    %v3201 = vunpack.c.0.s8 %v3200
    %v3202 = vlaneseq
    %v3203 = vshrl.u32 %v3202, 7
    %v3204 = vsub.s32 %v3201, %v3203
    %v3205 = vrot.slane %v3195, %v3204
    %v3207 = vunpack.c.l.s4 1983009808
    %v3208 = vunpack.c.0.s8 %v3207
    %v3209 = vlaneseq
    %v3210 = vshrl.u32 %v3209, 7
    %v3211 = vsub.s32 %v3208, %v3210
    %v3212 = vrot.slane %v3196, %v3211
    %v3213 = vsel %vm2282, %v3205, %v3205
    %v3214 = vsel %vm2284, %v3205, %v3213
    %v3215 = vrot.slane %v3212, 7
    %v3216 = vsel %vm2287, %v3215, %v3214
    %v3217 = vsel %vm2289, %v3215, %v3216
    %v3218 = vsel %vm2291, %v3215, %v3217
    %v3219 = vsel %vm2293, %v3215, %v3218
    %3220 = vrot.lane.b32.xlu0 %v3219, 64
    %v3221 = vpop.permute.xlu0 %3220
    %3223 = vst.msk [vmem:[#allocation7 + $0x20] sm:$0x3] %vm2326, %v3221
    %v3224 = vld [vmem:[#allocation6 + $0x22] sm:$0x1]
    %v3225 = vld [vmem:[#allocation6 + $0x62] sm:$0x1]
    %v3229 = vunpack.c.l.s4 1983009808
    %v3230 = vunpack.c.0.s8 %v3229
    %v3231 = vlaneseq
    %v3232 = vshrl.u32 %v3231, 7
    %v3233 = vsub.s32 %v3230, %v3232
    %v3234 = vrot.slane %v3224, %v3233
    %v3236 = vunpack.c.l.s4 1983009808
    %v3237 = vunpack.c.0.s8 %v3236
    %v3238 = vlaneseq
    %v3239 = vshrl.u32 %v3238, 7
    %v3240 = vsub.s32 %v3237, %v3239
    %v3241 = vrot.slane %v3225, %v3240
    %v3242 = vsel %vm2282, %v3234, %v3234
    %v3243 = vsel %vm2284, %v3234, %v3242
    %v3244 = vrot.slane %v3241, 7
    %v3245 = vsel %vm2287, %v3244, %v3243
    %v3246 = vsel %vm2289, %v3244, %v3245
    %v3247 = vsel %vm2291, %v3244, %v3246
    %v3248 = vsel %vm2293, %v3244, %v3247
    %3250 = vst.msk [vmem:[#allocation7 + $0x22] sm:$0x3] %vm2296, %v3248
    %v3251 = vld [vmem:[#allocation6 + $0x23] sm:$0x1]
    %v3252 = vld [vmem:[#allocation6 + $0x63] sm:$0x1]
    %v3256 = vunpack.c.l.s4 1983009808
    %v3257 = vunpack.c.0.s8 %v3256
    %v3258 = vlaneseq
    %v3259 = vshrl.u32 %v3258, 7
    %v3260 = vsub.s32 %v3257, %v3259
    %v3261 = vrot.slane %v3251, %v3260
    %v3263 = vunpack.c.l.s4 1983009808
    %v3264 = vunpack.c.0.s8 %v3263
    %v3265 = vlaneseq
    %v3266 = vshrl.u32 %v3265, 7
    %v3267 = vsub.s32 %v3264, %v3266
    %v3268 = vrot.slane %v3252, %v3267
    %v3269 = vsel %vm2282, %v3261, %v3261
    %v3270 = vsel %vm2284, %v3261, %v3269
    %v3271 = vrot.slane %v3268, 7
    %v3272 = vsel %vm2287, %v3271, %v3270
    %v3273 = vsel %vm2289, %v3271, %v3272
    %v3274 = vsel %vm2291, %v3271, %v3273
    %v3275 = vsel %vm2293, %v3271, %v3274
    %3276 = vrot.lane.b32.xlu0 %v3275, 64
    %v3277 = vpop.permute.xlu0 %3276
    %3279 = vst.msk [vmem:[#allocation7 + $0x22] sm:$0x3] %vm2326, %v3277
    %v3280 = vld [vmem:[#allocation6 + $0x24] sm:$0x1]
    %v3281 = vld [vmem:[#allocation6 + $0x64] sm:$0x1]
    %v3285 = vunpack.c.l.s4 1983009808
    %v3286 = vunpack.c.0.s8 %v3285
    %v3287 = vlaneseq
    %v3288 = vshrl.u32 %v3287, 7
    %v3289 = vsub.s32 %v3286, %v3288
    %v3290 = vrot.slane %v3280, %v3289
    %v3292 = vunpack.c.l.s4 1983009808
    %v3293 = vunpack.c.0.s8 %v3292
    %v3294 = vlaneseq
    %v3295 = vshrl.u32 %v3294, 7
    %v3296 = vsub.s32 %v3293, %v3295
    %v3297 = vrot.slane %v3281, %v3296
    %v3298 = vsel %vm2282, %v3290, %v3290
    %v3299 = vsel %vm2284, %v3290, %v3298
    %v3300 = vrot.slane %v3297, 7
    %v3301 = vsel %vm2287, %v3300, %v3299
    %v3302 = vsel %vm2289, %v3300, %v3301
    %v3303 = vsel %vm2291, %v3300, %v3302
    %v3304 = vsel %vm2293, %v3300, %v3303
    %3306 = vst.msk [vmem:[#allocation7 + $0x24] sm:$0x3] %vm2296, %v3304
    %v3307 = vld [vmem:[#allocation6 + $0x25] sm:$0x1]
    %v3308 = vld [vmem:[#allocation6 + $0x65] sm:$0x1]
    %v3312 = vunpack.c.l.s4 1983009808
    %v3313 = vunpack.c.0.s8 %v3312
    %v3314 = vlaneseq
    %v3315 = vshrl.u32 %v3314, 7
    %v3316 = vsub.s32 %v3313, %v3315
    %v3317 = vrot.slane %v3307, %v3316
    %v3319 = vunpack.c.l.s4 1983009808
    %v3320 = vunpack.c.0.s8 %v3319
    %v3321 = vlaneseq
    %v3322 = vshrl.u32 %v3321, 7
    %v3323 = vsub.s32 %v3320, %v3322
    %v3324 = vrot.slane %v3308, %v3323
    %v3325 = vsel %vm2282, %v3317, %v3317
    %v3326 = vsel %vm2284, %v3317, %v3325
    %v3327 = vrot.slane %v3324, 7
    %v3328 = vsel %vm2287, %v3327, %v3326
    %v3329 = vsel %vm2289, %v3327, %v3328
    %v3330 = vsel %vm2291, %v3327, %v3329
    %v3331 = vsel %vm2293, %v3327, %v3330
    %3332 = vrot.lane.b32.xlu0 %v3331, 64
    %v3333 = vpop.permute.xlu0 %3332
    %3335 = vst.msk [vmem:[#allocation7 + $0x24] sm:$0x3] %vm2326, %v3333
    %v3336 = vld [vmem:[#allocation6 + $0x26] sm:$0x1]
    %v3337 = vld [vmem:[#allocation6 + $0x66] sm:$0x1]
    %v3341 = vunpack.c.l.s4 1983009808
    %v3342 = vunpack.c.0.s8 %v3341
    %v3343 = vlaneseq
    %v3344 = vshrl.u32 %v3343, 7
    %v3345 = vsub.s32 %v3342, %v3344
    %v3346 = vrot.slane %v3336, %v3345
    %v3348 = vunpack.c.l.s4 1983009808
    %v3349 = vunpack.c.0.s8 %v3348
    %v3350 = vlaneseq
    %v3351 = vshrl.u32 %v3350, 7
    %v3352 = vsub.s32 %v3349, %v3351
    %v3353 = vrot.slane %v3337, %v3352
    %v3354 = vsel %vm2282, %v3346, %v3346
    %v3355 = vsel %vm2284, %v3346, %v3354
    %v3356 = vrot.slane %v3353, 7
    %v3357 = vsel %vm2287, %v3356, %v3355
    %v3358 = vsel %vm2289, %v3356, %v3357
    %v3359 = vsel %vm2291, %v3356, %v3358
    %v3360 = vsel %vm2293, %v3356, %v3359
    %3362 = vst.msk [vmem:[#allocation7 + $0x26] sm:$0x3] %vm2296, %v3360
    %v3363 = vld [vmem:[#allocation6 + $0x27] sm:$0x1]
    %v3364 = vld [vmem:[#allocation6 + $0x67] sm:$0x1]
    %v3368 = vunpack.c.l.s4 1983009808
    %v3369 = vunpack.c.0.s8 %v3368
    %v3370 = vlaneseq
    %v3371 = vshrl.u32 %v3370, 7
    %v3372 = vsub.s32 %v3369, %v3371
    %v3373 = vrot.slane %v3363, %v3372
    %v3375 = vunpack.c.l.s4 1983009808
    %v3376 = vunpack.c.0.s8 %v3375
    %v3377 = vlaneseq
    %v3378 = vshrl.u32 %v3377, 7
    %v3379 = vsub.s32 %v3376, %v3378
    %v3380 = vrot.slane %v3364, %v3379
    %v3381 = vsel %vm2282, %v3373, %v3373
    %v3382 = vsel %vm2284, %v3373, %v3381
    %v3383 = vrot.slane %v3380, 7
    %v3384 = vsel %vm2287, %v3383, %v3382
    %v3385 = vsel %vm2289, %v3383, %v3384
    %v3386 = vsel %vm2291, %v3383, %v3385
    %v3387 = vsel %vm2293, %v3383, %v3386
    %3388 = vrot.lane.b32.xlu0 %v3387, 64
    %v3389 = vpop.permute.xlu0 %3388
    %3391 = vst.msk [vmem:[#allocation7 + $0x26] sm:$0x3] %vm2326, %v3389
    %v3392 = vld [vmem:[#allocation6 + $0x28] sm:$0x1]
    %v3393 = vld [vmem:[#allocation6 + $0x68] sm:$0x1]
    %v3397 = vunpack.c.l.s4 1983009808
    %v3398 = vunpack.c.0.s8 %v3397
    %v3399 = vlaneseq
    %v3400 = vshrl.u32 %v3399, 7
    %v3401 = vsub.s32 %v3398, %v3400
    %v3402 = vrot.slane %v3392, %v3401
    %v3404 = vunpack.c.l.s4 1983009808
    %v3405 = vunpack.c.0.s8 %v3404
    %v3406 = vlaneseq
    %v3407 = vshrl.u32 %v3406, 7
    %v3408 = vsub.s32 %v3405, %v3407
    %v3409 = vrot.slane %v3393, %v3408
    %v3410 = vsel %vm2282, %v3402, %v3402
    %v3411 = vsel %vm2284, %v3402, %v3410
    %v3412 = vrot.slane %v3409, 7
    %v3413 = vsel %vm2287, %v3412, %v3411
    %v3414 = vsel %vm2289, %v3412, %v3413
    %v3415 = vsel %vm2291, %v3412, %v3414
    %v3416 = vsel %vm2293, %v3412, %v3415
    %3418 = vst.msk [vmem:[#allocation7 + $0x28] sm:$0x3] %vm2296, %v3416
    %v3419 = vld [vmem:[#allocation6 + $0x29] sm:$0x1]
    %v3420 = vld [vmem:[#allocation6 + $0x69] sm:$0x1]
    %v3424 = vunpack.c.l.s4 1983009808
    %v3425 = vunpack.c.0.s8 %v3424
    %v3426 = vlaneseq
    %v3427 = vshrl.u32 %v3426, 7
    %v3428 = vsub.s32 %v3425, %v3427
    %v3429 = vrot.slane %v3419, %v3428
    %v3431 = vunpack.c.l.s4 1983009808
    %v3432 = vunpack.c.0.s8 %v3431
    %v3433 = vlaneseq
    %v3434 = vshrl.u32 %v3433, 7
    %v3435 = vsub.s32 %v3432, %v3434
    %v3436 = vrot.slane %v3420, %v3435
    %v3437 = vsel %vm2282, %v3429, %v3429
    %v3438 = vsel %vm2284, %v3429, %v3437
    %v3439 = vrot.slane %v3436, 7
    %v3440 = vsel %vm2287, %v3439, %v3438
    %v3441 = vsel %vm2289, %v3439, %v3440
    %v3442 = vsel %vm2291, %v3439, %v3441
    %v3443 = vsel %vm2293, %v3439, %v3442
    %3444 = vrot.lane.b32.xlu0 %v3443, 64
    %v3445 = vpop.permute.xlu0 %3444
    %3447 = vst.msk [vmem:[#allocation7 + $0x28] sm:$0x3] %vm2326, %v3445
    %v3448 = vld [vmem:[#allocation6 + $0x2a] sm:$0x1]
    %v3449 = vld [vmem:[#allocation6 + $0x6a] sm:$0x1]
    %v3453 = vunpack.c.l.s4 1983009808
    %v3454 = vunpack.c.0.s8 %v3453
    %v3455 = vlaneseq
    %v3456 = vshrl.u32 %v3455, 7
    %v3457 = vsub.s32 %v3454, %v3456
    %v3458 = vrot.slane %v3448, %v3457
    %v3460 = vunpack.c.l.s4 1983009808
    %v3461 = vunpack.c.0.s8 %v3460
    %v3462 = vlaneseq
    %v3463 = vshrl.u32 %v3462, 7
    %v3464 = vsub.s32 %v3461, %v3463
    %v3465 = vrot.slane %v3449, %v3464
    %v3466 = vsel %vm2282, %v3458, %v3458
    %v3467 = vsel %vm2284, %v3458, %v3466
    %v3468 = vrot.slane %v3465, 7
    %v3469 = vsel %vm2287, %v3468, %v3467
    %v3470 = vsel %vm2289, %v3468, %v3469
    %v3471 = vsel %vm2291, %v3468, %v3470
    %v3472 = vsel %vm2293, %v3468, %v3471
    %3474 = vst.msk [vmem:[#allocation7 + $0x2a] sm:$0x3] %vm2296, %v3472
    %v3475 = vld [vmem:[#allocation6 + $0x2b] sm:$0x1]
    %v3476 = vld [vmem:[#allocation6 + $0x6b] sm:$0x1]
    %v3480 = vunpack.c.l.s4 1983009808
    %v3481 = vunpack.c.0.s8 %v3480
    %v3482 = vlaneseq
    %v3483 = vshrl.u32 %v3482, 7
    %v3484 = vsub.s32 %v3481, %v3483
    %v3485 = vrot.slane %v3475, %v3484
    %v3487 = vunpack.c.l.s4 1983009808
    %v3488 = vunpack.c.0.s8 %v3487
    %v3489 = vlaneseq
    %v3490 = vshrl.u32 %v3489, 7
    %v3491 = vsub.s32 %v3488, %v3490
    %v3492 = vrot.slane %v3476, %v3491
    %v3493 = vsel %vm2282, %v3485, %v3485
    %v3494 = vsel %vm2284, %v3485, %v3493
    %v3495 = vrot.slane %v3492, 7
    %v3496 = vsel %vm2287, %v3495, %v3494
    %v3497 = vsel %vm2289, %v3495, %v3496
    %v3498 = vsel %vm2291, %v3495, %v3497
    %v3499 = vsel %vm2293, %v3495, %v3498
    %3500 = vrot.lane.b32.xlu0 %v3499, 64
    %v3501 = vpop.permute.xlu0 %3500
    %3503 = vst.msk [vmem:[#allocation7 + $0x2a] sm:$0x3] %vm2326, %v3501
    %v3504 = vld [vmem:[#allocation6 + $0x2c] sm:$0x1]
    %v3505 = vld [vmem:[#allocation6 + $0x6c] sm:$0x1]
    %v3509 = vunpack.c.l.s4 1983009808
    %v3510 = vunpack.c.0.s8 %v3509
    %v3511 = vlaneseq
    %v3512 = vshrl.u32 %v3511, 7
    %v3513 = vsub.s32 %v3510, %v3512
    %v3514 = vrot.slane %v3504, %v3513
    %v3516 = vunpack.c.l.s4 1983009808
    %v3517 = vunpack.c.0.s8 %v3516
    %v3518 = vlaneseq
    %v3519 = vshrl.u32 %v3518, 7
    %v3520 = vsub.s32 %v3517, %v3519
    %v3521 = vrot.slane %v3505, %v3520
    %v3522 = vsel %vm2282, %v3514, %v3514
    %v3523 = vsel %vm2284, %v3514, %v3522
    %v3524 = vrot.slane %v3521, 7
    %v3525 = vsel %vm2287, %v3524, %v3523
    %v3526 = vsel %vm2289, %v3524, %v3525
    %v3527 = vsel %vm2291, %v3524, %v3526
    %v3528 = vsel %vm2293, %v3524, %v3527
    %3530 = vst.msk [vmem:[#allocation7 + $0x2c] sm:$0x3] %vm2296, %v3528
    %v3531 = vld [vmem:[#allocation6 + $0x2d] sm:$0x1]
    %v3532 = vld [vmem:[#allocation6 + $0x6d] sm:$0x1]
    %v3536 = vunpack.c.l.s4 1983009808
    %v3537 = vunpack.c.0.s8 %v3536
    %v3538 = vlaneseq
    %v3539 = vshrl.u32 %v3538, 7
    %v3540 = vsub.s32 %v3537, %v3539
    %v3541 = vrot.slane %v3531, %v3540
    %v3543 = vunpack.c.l.s4 1983009808
    %v3544 = vunpack.c.0.s8 %v3543
    %v3545 = vlaneseq
    %v3546 = vshrl.u32 %v3545, 7
    %v3547 = vsub.s32 %v3544, %v3546
    %v3548 = vrot.slane %v3532, %v3547
    %v3549 = vsel %vm2282, %v3541, %v3541
    %v3550 = vsel %vm2284, %v3541, %v3549
    %v3551 = vrot.slane %v3548, 7
    %v3552 = vsel %vm2287, %v3551, %v3550
    %v3553 = vsel %vm2289, %v3551, %v3552
    %v3554 = vsel %vm2291, %v3551, %v3553
    %v3555 = vsel %vm2293, %v3551, %v3554
    %3556 = vrot.lane.b32.xlu0 %v3555, 64
    %v3557 = vpop.permute.xlu0 %3556
    %3559 = vst.msk [vmem:[#allocation7 + $0x2c] sm:$0x3] %vm2326, %v3557
    %v3560 = vld [vmem:[#allocation6 + $0x2e] sm:$0x1]
    %v3561 = vld [vmem:[#allocation6 + $0x6e] sm:$0x1]
    %v3565 = vunpack.c.l.s4 1983009808
    %v3566 = vunpack.c.0.s8 %v3565
    %v3567 = vlaneseq
    %v3568 = vshrl.u32 %v3567, 7
    %v3569 = vsub.s32 %v3566, %v3568
    %v3570 = vrot.slane %v3560, %v3569
    %v3572 = vunpack.c.l.s4 1983009808
    %v3573 = vunpack.c.0.s8 %v3572
    %v3574 = vlaneseq
    %v3575 = vshrl.u32 %v3574, 7
    %v3576 = vsub.s32 %v3573, %v3575
    %v3577 = vrot.slane %v3561, %v3576
    %v3578 = vsel %vm2282, %v3570, %v3570
    %v3579 = vsel %vm2284, %v3570, %v3578
    %v3580 = vrot.slane %v3577, 7
    %v3581 = vsel %vm2287, %v3580, %v3579
    %v3582 = vsel %vm2289, %v3580, %v3581
    %v3583 = vsel %vm2291, %v3580, %v3582
    %v3584 = vsel %vm2293, %v3580, %v3583
    %3586 = vst.msk [vmem:[#allocation7 + $0x2e] sm:$0x3] %vm2296, %v3584
    %v3587 = vld [vmem:[#allocation6 + $0x2f] sm:$0x1]
    %v3588 = vld [vmem:[#allocation6 + $0x6f] sm:$0x1]
    %v3592 = vunpack.c.l.s4 1983009808
    %v3593 = vunpack.c.0.s8 %v3592
    %v3594 = vlaneseq
    %v3595 = vshrl.u32 %v3594, 7
    %v3596 = vsub.s32 %v3593, %v3595
    %v3597 = vrot.slane %v3587, %v3596
    %v3599 = vunpack.c.l.s4 1983009808
    %v3600 = vunpack.c.0.s8 %v3599
    %v3601 = vlaneseq
    %v3602 = vshrl.u32 %v3601, 7
    %v3603 = vsub.s32 %v3600, %v3602
    %v3604 = vrot.slane %v3588, %v3603
    %v3605 = vsel %vm2282, %v3597, %v3597
    %v3606 = vsel %vm2284, %v3597, %v3605
    %v3607 = vrot.slane %v3604, 7
    %v3608 = vsel %vm2287, %v3607, %v3606
    %v3609 = vsel %vm2289, %v3607, %v3608
    %v3610 = vsel %vm2291, %v3607, %v3609
    %v3611 = vsel %vm2293, %v3607, %v3610
    %3612 = vrot.lane.b32.xlu0 %v3611, 64
    %v3613 = vpop.permute.xlu0 %3612
    %3615 = vst.msk [vmem:[#allocation7 + $0x2e] sm:$0x3] %vm2326, %v3613
    %v3616 = vld [vmem:[#allocation6 + $0x30] sm:$0x1]
    %v3617 = vld [vmem:[#allocation6 + $0x70] sm:$0x1]
    %v3621 = vunpack.c.l.s4 1983009808
    %v3622 = vunpack.c.0.s8 %v3621
    %v3623 = vlaneseq
    %v3624 = vshrl.u32 %v3623, 7
    %v3625 = vsub.s32 %v3622, %v3624
    %v3626 = vrot.slane %v3616, %v3625
    %v3628 = vunpack.c.l.s4 1983009808
    %v3629 = vunpack.c.0.s8 %v3628
    %v3630 = vlaneseq
    %v3631 = vshrl.u32 %v3630, 7
    %v3632 = vsub.s32 %v3629, %v3631
    %v3633 = vrot.slane %v3617, %v3632
    %v3634 = vsel %vm2282, %v3626, %v3626
    %v3635 = vsel %vm2284, %v3626, %v3634
    %v3636 = vrot.slane %v3633, 7
    %v3637 = vsel %vm2287, %v3636, %v3635
    %v3638 = vsel %vm2289, %v3636, %v3637
    %v3639 = vsel %vm2291, %v3636, %v3638
    %v3640 = vsel %vm2293, %v3636, %v3639
    %3642 = vst.msk [vmem:[#allocation7 + $0x30] sm:$0x3] %vm2296, %v3640
    %v3643 = vld [vmem:[#allocation6 + $0x31] sm:$0x1]
    %v3644 = vld [vmem:[#allocation6 + $0x71] sm:$0x1]
    %v3648 = vunpack.c.l.s4 1983009808
    %v3649 = vunpack.c.0.s8 %v3648
    %v3650 = vlaneseq
    %v3651 = vshrl.u32 %v3650, 7
    %v3652 = vsub.s32 %v3649, %v3651
    %v3653 = vrot.slane %v3643, %v3652
    %v3655 = vunpack.c.l.s4 1983009808
    %v3656 = vunpack.c.0.s8 %v3655
    %v3657 = vlaneseq
    %v3658 = vshrl.u32 %v3657, 7
    %v3659 = vsub.s32 %v3656, %v3658
    %v3660 = vrot.slane %v3644, %v3659
    %v3661 = vsel %vm2282, %v3653, %v3653
    %v3662 = vsel %vm2284, %v3653, %v3661
    %v3663 = vrot.slane %v3660, 7
    %v3664 = vsel %vm2287, %v3663, %v3662
    %v3665 = vsel %vm2289, %v3663, %v3664
    %v3666 = vsel %vm2291, %v3663, %v3665
    %v3667 = vsel %vm2293, %v3663, %v3666
    %3668 = vrot.lane.b32.xlu0 %v3667, 64
    %v3669 = vpop.permute.xlu0 %3668
    %3671 = vst.msk [vmem:[#allocation7 + $0x30] sm:$0x3] %vm2326, %v3669
    %v3672 = vld [vmem:[#allocation6 + $0x32] sm:$0x1]
    %v3673 = vld [vmem:[#allocation6 + $0x72] sm:$0x1]
    %v3677 = vunpack.c.l.s4 1983009808
    %v3678 = vunpack.c.0.s8 %v3677
    %v3679 = vlaneseq
    %v3680 = vshrl.u32 %v3679, 7
    %v3681 = vsub.s32 %v3678, %v3680
    %v3682 = vrot.slane %v3672, %v3681
    %v3684 = vunpack.c.l.s4 1983009808
    %v3685 = vunpack.c.0.s8 %v3684
    %v3686 = vlaneseq
    %v3687 = vshrl.u32 %v3686, 7
    %v3688 = vsub.s32 %v3685, %v3687
    %v3689 = vrot.slane %v3673, %v3688
    %v3690 = vsel %vm2282, %v3682, %v3682
    %v3691 = vsel %vm2284, %v3682, %v3690
    %v3692 = vrot.slane %v3689, 7
    %v3693 = vsel %vm2287, %v3692, %v3691
    %v3694 = vsel %vm2289, %v3692, %v3693
    %v3695 = vsel %vm2291, %v3692, %v3694
    %v3696 = vsel %vm2293, %v3692, %v3695
    %3698 = vst.msk [vmem:[#allocation7 + $0x32] sm:$0x3] %vm2296, %v3696
    %v3699 = vld [vmem:[#allocation6 + $0x33] sm:$0x1]
    %v3700 = vld [vmem:[#allocation6 + $0x73] sm:$0x1]
    %v3704 = vunpack.c.l.s4 1983009808
    %v3705 = vunpack.c.0.s8 %v3704
    %v3706 = vlaneseq
    %v3707 = vshrl.u32 %v3706, 7
    %v3708 = vsub.s32 %v3705, %v3707
    %v3709 = vrot.slane %v3699, %v3708
    %v3711 = vunpack.c.l.s4 1983009808
    %v3712 = vunpack.c.0.s8 %v3711
    %v3713 = vlaneseq
    %v3714 = vshrl.u32 %v3713, 7
    %v3715 = vsub.s32 %v3712, %v3714
    %v3716 = vrot.slane %v3700, %v3715
    %v3717 = vsel %vm2282, %v3709, %v3709
    %v3718 = vsel %vm2284, %v3709, %v3717
    %v3719 = vrot.slane %v3716, 7
    %v3720 = vsel %vm2287, %v3719, %v3718
    %v3721 = vsel %vm2289, %v3719, %v3720
    %v3722 = vsel %vm2291, %v3719, %v3721
    %v3723 = vsel %vm2293, %v3719, %v3722
    %3724 = vrot.lane.b32.xlu0 %v3723, 64
    %v3725 = vpop.permute.xlu0 %3724
    %3727 = vst.msk [vmem:[#allocation7 + $0x32] sm:$0x3] %vm2326, %v3725
    %v3728 = vld [vmem:[#allocation6 + $0x34] sm:$0x1]
    %v3729 = vld [vmem:[#allocation6 + $0x74] sm:$0x1]
    %v3733 = vunpack.c.l.s4 1983009808
    %v3734 = vunpack.c.0.s8 %v3733
    %v3735 = vlaneseq
    %v3736 = vshrl.u32 %v3735, 7
    %v3737 = vsub.s32 %v3734, %v3736
    %v3738 = vrot.slane %v3728, %v3737
    %v3740 = vunpack.c.l.s4 1983009808
    %v3741 = vunpack.c.0.s8 %v3740
    %v3742 = vlaneseq
    %v3743 = vshrl.u32 %v3742, 7
    %v3744 = vsub.s32 %v3741, %v3743
    %v3745 = vrot.slane %v3729, %v3744
    %v3746 = vsel %vm2282, %v3738, %v3738
    %v3747 = vsel %vm2284, %v3738, %v3746
    %v3748 = vrot.slane %v3745, 7
    %v3749 = vsel %vm2287, %v3748, %v3747
    %v3750 = vsel %vm2289, %v3748, %v3749
    %v3751 = vsel %vm2291, %v3748, %v3750
    %v3752 = vsel %vm2293, %v3748, %v3751
    %3754 = vst.msk [vmem:[#allocation7 + $0x34] sm:$0x3] %vm2296, %v3752
    %v3755 = vld [vmem:[#allocation6 + $0x35] sm:$0x1]
    %v3756 = vld [vmem:[#allocation6 + $0x75] sm:$0x1]
    %v3760 = vunpack.c.l.s4 1983009808
    %v3761 = vunpack.c.0.s8 %v3760
    %v3762 = vlaneseq
    %v3763 = vshrl.u32 %v3762, 7
    %v3764 = vsub.s32 %v3761, %v3763
    %v3765 = vrot.slane %v3755, %v3764
    %v3767 = vunpack.c.l.s4 1983009808
    %v3768 = vunpack.c.0.s8 %v3767
    %v3769 = vlaneseq
    %v3770 = vshrl.u32 %v3769, 7
    %v3771 = vsub.s32 %v3768, %v3770
    %v3772 = vrot.slane %v3756, %v3771
    %v3773 = vsel %vm2282, %v3765, %v3765
    %v3774 = vsel %vm2284, %v3765, %v3773
    %v3775 = vrot.slane %v3772, 7
    %v3776 = vsel %vm2287, %v3775, %v3774
    %v3777 = vsel %vm2289, %v3775, %v3776
    %v3778 = vsel %vm2291, %v3775, %v3777
    %v3779 = vsel %vm2293, %v3775, %v3778
    %3780 = vrot.lane.b32.xlu0 %v3779, 64
    %v3781 = vpop.permute.xlu0 %3780
    %3783 = vst.msk [vmem:[#allocation7 + $0x34] sm:$0x3] %vm2326, %v3781
    %v3784 = vld [vmem:[#allocation6 + $0x36] sm:$0x1]
    %v3785 = vld [vmem:[#allocation6 + $0x76] sm:$0x1]
    %v3789 = vunpack.c.l.s4 1983009808
    %v3790 = vunpack.c.0.s8 %v3789
    %v3791 = vlaneseq
    %v3792 = vshrl.u32 %v3791, 7
    %v3793 = vsub.s32 %v3790, %v3792
    %v3794 = vrot.slane %v3784, %v3793
    %v3796 = vunpack.c.l.s4 1983009808
    %v3797 = vunpack.c.0.s8 %v3796
    %v3798 = vlaneseq
    %v3799 = vshrl.u32 %v3798, 7
    %v3800 = vsub.s32 %v3797, %v3799
    %v3801 = vrot.slane %v3785, %v3800
    %v3802 = vsel %vm2282, %v3794, %v3794
    %v3803 = vsel %vm2284, %v3794, %v3802
    %v3804 = vrot.slane %v3801, 7
    %v3805 = vsel %vm2287, %v3804, %v3803
    %v3806 = vsel %vm2289, %v3804, %v3805
    %v3807 = vsel %vm2291, %v3804, %v3806
    %v3808 = vsel %vm2293, %v3804, %v3807
    %3810 = vst.msk [vmem:[#allocation7 + $0x36] sm:$0x3] %vm2296, %v3808
    %v3811 = vld [vmem:[#allocation6 + $0x37] sm:$0x1]
    %v3812 = vld [vmem:[#allocation6 + $0x77] sm:$0x1]
    %v3816 = vunpack.c.l.s4 1983009808
    %v3817 = vunpack.c.0.s8 %v3816
    %v3818 = vlaneseq
    %v3819 = vshrl.u32 %v3818, 7
    %v3820 = vsub.s32 %v3817, %v3819
    %v3821 = vrot.slane %v3811, %v3820
    %v3823 = vunpack.c.l.s4 1983009808
    %v3824 = vunpack.c.0.s8 %v3823
    %v3825 = vlaneseq
    %v3826 = vshrl.u32 %v3825, 7
    %v3827 = vsub.s32 %v3824, %v3826
    %v3828 = vrot.slane %v3812, %v3827
    %v3829 = vsel %vm2282, %v3821, %v3821
    %v3830 = vsel %vm2284, %v3821, %v3829
    %v3831 = vrot.slane %v3828, 7
    %v3832 = vsel %vm2287, %v3831, %v3830
    %v3833 = vsel %vm2289, %v3831, %v3832
    %v3834 = vsel %vm2291, %v3831, %v3833
    %v3835 = vsel %vm2293, %v3831, %v3834
    %3836 = vrot.lane.b32.xlu0 %v3835, 64
    %v3837 = vpop.permute.xlu0 %3836
    %3839 = vst.msk [vmem:[#allocation7 + $0x36] sm:$0x3] %vm2326, %v3837
    %v3840 = vld [vmem:[#allocation6 + $0x38] sm:$0x1]
    %v3841 = vld [vmem:[#allocation6 + $0x78] sm:$0x1]
    %v3845 = vunpack.c.l.s4 1983009808
    %v3846 = vunpack.c.0.s8 %v3845
    %v3847 = vlaneseq
    %v3848 = vshrl.u32 %v3847, 7
    %v3849 = vsub.s32 %v3846, %v3848
    %v3850 = vrot.slane %v3840, %v3849
    %v3852 = vunpack.c.l.s4 1983009808
    %v3853 = vunpack.c.0.s8 %v3852
    %v3854 = vlaneseq
    %v3855 = vshrl.u32 %v3854, 7
    %v3856 = vsub.s32 %v3853, %v3855
    %v3857 = vrot.slane %v3841, %v3856
    %v3858 = vsel %vm2282, %v3850, %v3850
    %v3859 = vsel %vm2284, %v3850, %v3858
    %v3860 = vrot.slane %v3857, 7
    %v3861 = vsel %vm2287, %v3860, %v3859
    %v3862 = vsel %vm2289, %v3860, %v3861
    %v3863 = vsel %vm2291, %v3860, %v3862
    %v3864 = vsel %vm2293, %v3860, %v3863
    %3866 = vst.msk [vmem:[#allocation7 + $0x38] sm:$0x3] %vm2296, %v3864
    %v3867 = vld [vmem:[#allocation6 + $0x39] sm:$0x1]
    %v3868 = vld [vmem:[#allocation6 + $0x79] sm:$0x1]
    %v3872 = vunpack.c.l.s4 1983009808
    %v3873 = vunpack.c.0.s8 %v3872
    %v3874 = vlaneseq
    %v3875 = vshrl.u32 %v3874, 7
    %v3876 = vsub.s32 %v3873, %v3875
    %v3877 = vrot.slane %v3867, %v3876
    %v3879 = vunpack.c.l.s4 1983009808
    %v3880 = vunpack.c.0.s8 %v3879
    %v3881 = vlaneseq
    %v3882 = vshrl.u32 %v3881, 7
    %v3883 = vsub.s32 %v3880, %v3882
    %v3884 = vrot.slane %v3868, %v3883
    %v3885 = vsel %vm2282, %v3877, %v3877
    %v3886 = vsel %vm2284, %v3877, %v3885
    %v3887 = vrot.slane %v3884, 7
    %v3888 = vsel %vm2287, %v3887, %v3886
    %v3889 = vsel %vm2289, %v3887, %v3888
    %v3890 = vsel %vm2291, %v3887, %v3889
    %v3891 = vsel %vm2293, %v3887, %v3890
    %3892 = vrot.lane.b32.xlu0 %v3891, 64
    %v3893 = vpop.permute.xlu0 %3892
    %3895 = vst.msk [vmem:[#allocation7 + $0x38] sm:$0x3] %vm2326, %v3893
    %v3896 = vld [vmem:[#allocation6 + $0x3a] sm:$0x1]
    %v3897 = vld [vmem:[#allocation6 + $0x7a] sm:$0x1]
    %v3901 = vunpack.c.l.s4 1983009808
    %v3902 = vunpack.c.0.s8 %v3901
    %v3903 = vlaneseq
    %v3904 = vshrl.u32 %v3903, 7
    %v3905 = vsub.s32 %v3902, %v3904
    %v3906 = vrot.slane %v3896, %v3905
    %v3908 = vunpack.c.l.s4 1983009808
    %v3909 = vunpack.c.0.s8 %v3908
    %v3910 = vlaneseq
    %v3911 = vshrl.u32 %v3910, 7
    %v3912 = vsub.s32 %v3909, %v3911
    %v3913 = vrot.slane %v3897, %v3912
    %v3914 = vsel %vm2282, %v3906, %v3906
    %v3915 = vsel %vm2284, %v3906, %v3914
    %v3916 = vrot.slane %v3913, 7
    %v3917 = vsel %vm2287, %v3916, %v3915
    %v3918 = vsel %vm2289, %v3916, %v3917
    %v3919 = vsel %vm2291, %v3916, %v3918
    %v3920 = vsel %vm2293, %v3916, %v3919
    %3922 = vst.msk [vmem:[#allocation7 + $0x3a] sm:$0x3] %vm2296, %v3920
    %v3923 = vld [vmem:[#allocation6 + $0x3b] sm:$0x1]
    %v3924 = vld [vmem:[#allocation6 + $0x7b] sm:$0x1]
    %v3928 = vunpack.c.l.s4 1983009808
    %v3929 = vunpack.c.0.s8 %v3928
    %v3930 = vlaneseq
    %v3931 = vshrl.u32 %v3930, 7
    %v3932 = vsub.s32 %v3929, %v3931
    %v3933 = vrot.slane %v3923, %v3932
    %v3935 = vunpack.c.l.s4 1983009808
    %v3936 = vunpack.c.0.s8 %v3935
    %v3937 = vlaneseq
    %v3938 = vshrl.u32 %v3937, 7
    %v3939 = vsub.s32 %v3936, %v3938
    %v3940 = vrot.slane %v3924, %v3939
    %v3941 = vsel %vm2282, %v3933, %v3933
    %v3942 = vsel %vm2284, %v3933, %v3941
    %v3943 = vrot.slane %v3940, 7
    %v3944 = vsel %vm2287, %v3943, %v3942
    %v3945 = vsel %vm2289, %v3943, %v3944
    %v3946 = vsel %vm2291, %v3943, %v3945
    %v3947 = vsel %vm2293, %v3943, %v3946
    %3948 = vrot.lane.b32.xlu0 %v3947, 64
    %v3949 = vpop.permute.xlu0 %3948
    %3951 = vst.msk [vmem:[#allocation7 + $0x3a] sm:$0x3] %vm2326, %v3949
    %v3952 = vld [vmem:[#allocation6 + $0x3c] sm:$0x1]
    %v3953 = vld [vmem:[#allocation6 + $0x7c] sm:$0x1]
    %v3957 = vunpack.c.l.s4 1983009808
    %v3958 = vunpack.c.0.s8 %v3957
    %v3959 = vlaneseq
    %v3960 = vshrl.u32 %v3959, 7
    %v3961 = vsub.s32 %v3958, %v3960
    %v3962 = vrot.slane %v3952, %v3961
    %v3964 = vunpack.c.l.s4 1983009808
    %v3965 = vunpack.c.0.s8 %v3964
    %v3966 = vlaneseq
    %v3967 = vshrl.u32 %v3966, 7
    %v3968 = vsub.s32 %v3965, %v3967
    %v3969 = vrot.slane %v3953, %v3968
    %v3970 = vsel %vm2282, %v3962, %v3962
    %v3971 = vsel %vm2284, %v3962, %v3970
    %v3972 = vrot.slane %v3969, 7
    %v3973 = vsel %vm2287, %v3972, %v3971
    %v3974 = vsel %vm2289, %v3972, %v3973
    %v3975 = vsel %vm2291, %v3972, %v3974
    %v3976 = vsel %vm2293, %v3972, %v3975
    %3978 = vst.msk [vmem:[#allocation7 + $0x3c] sm:$0x3] %vm2296, %v3976
    %v3979 = vld [vmem:[#allocation6 + $0x3d] sm:$0x1]
    %v3980 = vld [vmem:[#allocation6 + $0x7d] sm:$0x1]
    %v3984 = vunpack.c.l.s4 1983009808
    %v3985 = vunpack.c.0.s8 %v3984
    %v3986 = vlaneseq
    %v3987 = vshrl.u32 %v3986, 7
    %v3988 = vsub.s32 %v3985, %v3987
    %v3989 = vrot.slane %v3979, %v3988
    %v3991 = vunpack.c.l.s4 1983009808
    %v3992 = vunpack.c.0.s8 %v3991
    %v3993 = vlaneseq
    %v3994 = vshrl.u32 %v3993, 7
    %v3995 = vsub.s32 %v3992, %v3994
    %v3996 = vrot.slane %v3980, %v3995
    %v3997 = vsel %vm2282, %v3989, %v3989
    %v3998 = vsel %vm2284, %v3989, %v3997
    %v3999 = vrot.slane %v3996, 7
    %v4000 = vsel %vm2287, %v3999, %v3998
    %v4001 = vsel %vm2289, %v3999, %v4000
    %v4002 = vsel %vm2291, %v3999, %v4001
    %v4003 = vsel %vm2293, %v3999, %v4002
    %4004 = vrot.lane.b32.xlu0 %v4003, 64
    %v4005 = vpop.permute.xlu0 %4004
    %4007 = vst.msk [vmem:[#allocation7 + $0x3c] sm:$0x3] %vm2326, %v4005
    %v4008 = vld [vmem:[#allocation6 + $0x3e] sm:$0x1]
    %v4009 = vld [vmem:[#allocation6 + $0x7e] sm:$0x1]
    %v4013 = vunpack.c.l.s4 1983009808
    %v4014 = vunpack.c.0.s8 %v4013
    %v4015 = vlaneseq
    %v4016 = vshrl.u32 %v4015, 7
    %v4017 = vsub.s32 %v4014, %v4016
    %v4018 = vrot.slane %v4008, %v4017
    %v4020 = vunpack.c.l.s4 1983009808
    %v4021 = vunpack.c.0.s8 %v4020
    %v4022 = vlaneseq
    %v4023 = vshrl.u32 %v4022, 7
    %v4024 = vsub.s32 %v4021, %v4023
    %v4025 = vrot.slane %v4009, %v4024
    %v4026 = vsel %vm2282, %v4018, %v4018
    %v4027 = vsel %vm2284, %v4018, %v4026
    %v4028 = vrot.slane %v4025, 7
    %v4029 = vsel %vm2287, %v4028, %v4027
    %v4030 = vsel %vm2289, %v4028, %v4029
    %v4031 = vsel %vm2291, %v4028, %v4030
    %v4032 = vsel %vm2293, %v4028, %v4031
    %4034 = vst.msk [vmem:[#allocation7 + $0x3e] sm:$0x3] %vm2296, %v4032
    %v4035 = vld [vmem:[#allocation6 + $0x3f] sm:$0x1]
    %v4036 = vld [vmem:[#allocation6 + $0x7f] sm:$0x1]
    %v4040 = vunpack.c.l.s4 1983009808
    %v4041 = vunpack.c.0.s8 %v4040
    %v4042 = vlaneseq
    %v4043 = vshrl.u32 %v4042, 7
    %v4044 = vsub.s32 %v4041, %v4043
    %v4045 = vrot.slane %v4035, %v4044
    %v4047 = vunpack.c.l.s4 1983009808
    %v4048 = vunpack.c.0.s8 %v4047
    %v4049 = vlaneseq
    %v4050 = vshrl.u32 %v4049, 7
    %v4051 = vsub.s32 %v4048, %v4050
    %v4052 = vrot.slane %v4036, %v4051
    %v4053 = vsel %vm2282, %v4045, %v4045
    %v4054 = vsel %vm2284, %v4045, %v4053
    %v4055 = vrot.slane %v4052, 7
    %v4056 = vsel %vm2287, %v4055, %v4054
    %v4057 = vsel %vm2289, %v4055, %v4056
    %v4058 = vsel %vm2291, %v4055, %v4057
    %v4059 = vsel %vm2293, %v4055, %v4058
    %4060 = vrot.lane.b32.xlu0 %v4059, 64
    %v4061 = vpop.permute.xlu0 %4060
    %4063 = vst.msk [vmem:[#allocation7 + $0x3e] sm:$0x3] %vm2326, %v4061
    %v4064 = vld [vmem:[#allocation7] sm:$0xff]
    %v4065 = vld [vmem:[#allocation7 + $0x8] sm:$0xff]
    %v4066 = vld [vmem:[#allocation7 + $0x10] sm:$0xff]
    %v4067 = vld [vmem:[#allocation7 + $0x18] sm:$0xff]
    %v4068 = vld [vmem:[#allocation7 + $0x20] sm:$0xff]
    %v4069 = vld [vmem:[#allocation7 + $0x28] sm:$0xff]
    %v4070 = vld [vmem:[#allocation7 + $0x30] sm:$0xff]
    %v4071 = vld [vmem:[#allocation7 + $0x38] sm:$0xff]
    %v4080 = vcombine.high %v4064, %v4064
    %v4082 = vunpack.c.l.s4 1983009808
    %v4083 = vunpack.c.0.s8 %v4082
    %v4084 = vlaneseq
    %v4085 = vshrl.u32 %v4084, 7
    %v4086 = vsub.s32 %v4083, %v4085
    %v4087 = vrot.slane %v4064, %v4086
    %v4089 = vunpack.c.l.s4 1983009808
    %v4090 = vunpack.c.0.s8 %v4089
    %v4091 = vlaneseq
    %v4092 = vshrl.u32 %v4091, 7
    %v4093 = vsub.s32 %v4090, %v4092
    %v4094 = vrot.slane %v4080, %v4093
    %v4095 = vcombine.high %v4087, %v4087
    %v4096 = vcombine.high %v4094, %v4094
    %v4097 = vcombine.high %v4065, %v4065
    %v4099 = vunpack.c.l.s4 1983009808
    %v4100 = vunpack.c.0.s8 %v4099
    %v4101 = vlaneseq
    %v4102 = vshrl.u32 %v4101, 7
    %v4103 = vsub.s32 %v4100, %v4102
    %v4104 = vrot.slane %v4065, %v4103
    %v4106 = vunpack.c.l.s4 1983009808
    %v4107 = vunpack.c.0.s8 %v4106
    %v4108 = vlaneseq
    %v4109 = vshrl.u32 %v4108, 7
    %v4110 = vsub.s32 %v4107, %v4109
    %v4111 = vrot.slane %v4097, %v4110
    %v4112 = vcombine.high %v4104, %v4104
    %v4113 = vcombine.high %v4111, %v4111
    %v4114 = vcombine.high %v4066, %v4066
    %v4116 = vunpack.c.l.s4 1983009808
    %v4117 = vunpack.c.0.s8 %v4116
    %v4118 = vlaneseq
    %v4119 = vshrl.u32 %v4118, 7
    %v4120 = vsub.s32 %v4117, %v4119
    %v4121 = vrot.slane %v4066, %v4120
    %v4123 = vunpack.c.l.s4 1983009808
    %v4124 = vunpack.c.0.s8 %v4123
    %v4125 = vlaneseq
    %v4126 = vshrl.u32 %v4125, 7
    %v4127 = vsub.s32 %v4124, %v4126
    %v4128 = vrot.slane %v4114, %v4127
    %v4129 = vcombine.high %v4121, %v4121
    %v4130 = vcombine.high %v4128, %v4128
    %v4131 = vcombine.high %v4067, %v4067
    %v4133 = vunpack.c.l.s4 1983009808
    %v4134 = vunpack.c.0.s8 %v4133
    %v4135 = vlaneseq
    %v4136 = vshrl.u32 %v4135, 7
    %v4137 = vsub.s32 %v4134, %v4136
    %v4138 = vrot.slane %v4067, %v4137
    %v4140 = vunpack.c.l.s4 1983009808
    %v4141 = vunpack.c.0.s8 %v4140
    %v4142 = vlaneseq
    %v4143 = vshrl.u32 %v4142, 7
    %v4144 = vsub.s32 %v4141, %v4143
    %v4145 = vrot.slane %v4131, %v4144
    %v4146 = vcombine.high %v4138, %v4138
    %v4147 = vcombine.high %v4145, %v4145
    %v4148 = vcombine.high %v4068, %v4068
    %v4150 = vunpack.c.l.s4 1983009808
    %v4151 = vunpack.c.0.s8 %v4150
    %v4152 = vlaneseq
    %v4153 = vshrl.u32 %v4152, 7
    %v4154 = vsub.s32 %v4151, %v4153
    %v4155 = vrot.slane %v4068, %v4154
    %v4157 = vunpack.c.l.s4 1983009808
    %v4158 = vunpack.c.0.s8 %v4157
    %v4159 = vlaneseq
    %v4160 = vshrl.u32 %v4159, 7
    %v4161 = vsub.s32 %v4158, %v4160
    %v4162 = vrot.slane %v4148, %v4161
    %v4163 = vcombine.high %v4155, %v4155
    %v4164 = vcombine.high %v4162, %v4162
    %v4165 = vcombine.high %v4069, %v4069
    %v4167 = vunpack.c.l.s4 1983009808
    %v4168 = vunpack.c.0.s8 %v4167
    %v4169 = vlaneseq
    %v4170 = vshrl.u32 %v4169, 7
    %v4171 = vsub.s32 %v4168, %v4170
    %v4172 = vrot.slane %v4069, %v4171
    %v4174 = vunpack.c.l.s4 1983009808
    %v4175 = vunpack.c.0.s8 %v4174
    %v4176 = vlaneseq
    %v4177 = vshrl.u32 %v4176, 7
    %v4178 = vsub.s32 %v4175, %v4177
    %v4179 = vrot.slane %v4165, %v4178
    %v4180 = vcombine.high %v4172, %v4172
    %v4181 = vcombine.high %v4179, %v4179
    %v4182 = vcombine.high %v4070, %v4070
    %v4184 = vunpack.c.l.s4 1983009808
    %v4185 = vunpack.c.0.s8 %v4184
    %v4186 = vlaneseq
    %v4187 = vshrl.u32 %v4186, 7
    %v4188 = vsub.s32 %v4185, %v4187
    %v4189 = vrot.slane %v4070, %v4188
    %v4191 = vunpack.c.l.s4 1983009808
    %v4192 = vunpack.c.0.s8 %v4191
    %v4193 = vlaneseq
    %v4194 = vshrl.u32 %v4193, 7
    %v4195 = vsub.s32 %v4192, %v4194
    %v4196 = vrot.slane %v4182, %v4195
    %v4197 = vcombine.high %v4189, %v4189
    %v4198 = vcombine.high %v4196, %v4196
    %v4199 = vcombine.high %v4071, %v4071
    %v4201 = vunpack.c.l.s4 1983009808
    %v4202 = vunpack.c.0.s8 %v4201
    %v4203 = vlaneseq
    %v4204 = vshrl.u32 %v4203, 7
    %v4205 = vsub.s32 %v4202, %v4204
    %v4206 = vrot.slane %v4071, %v4205
    %v4208 = vunpack.c.l.s4 1983009808
    %v4209 = vunpack.c.0.s8 %v4208
    %v4210 = vlaneseq
    %v4211 = vshrl.u32 %v4210, 7
    %v4212 = vsub.s32 %v4209, %v4211
    %v4213 = vrot.slane %v4199, %v4212
    %v4214 = vcombine.high %v4206, %v4206
    %v4215 = vcombine.high %v4213, %v4213
    %v4248 = vpack.c.bf16 %v4087, %v4087
    %v4249 = vpack.c.bf16 %v4095, %v4095
    %v4250 = vpack.c.bf16 %v4094, %v4094
    %v4251 = vpack.c.bf16 %v4096, %v4096
    %v4252 = vpack.c.bf16 %v4104, %v4104
    %v4253 = vpack.c.bf16 %v4112, %v4112
    %v4254 = vpack.c.bf16 %v4111, %v4111
    %v4255 = vpack.c.bf16 %v4113, %v4113
    %v4256 = vpack.c.bf16 %v4121, %v4121
    %v4257 = vpack.c.bf16 %v4129, %v4129
    %v4258 = vpack.c.bf16 %v4128, %v4128
    %v4259 = vpack.c.bf16 %v4130, %v4130
    %v4260 = vpack.c.bf16 %v4138, %v4138
    %v4261 = vpack.c.bf16 %v4146, %v4146
    %v4262 = vpack.c.bf16 %v4145, %v4145
    %v4263 = vpack.c.bf16 %v4147, %v4147
    %v4264 = vpack.c.bf16 %v4155, %v4155
    %v4265 = vpack.c.bf16 %v4163, %v4163
    %v4266 = vpack.c.bf16 %v4162, %v4162
    %v4267 = vpack.c.bf16 %v4164, %v4164
    %v4268 = vpack.c.bf16 %v4172, %v4172
    %v4269 = vpack.c.bf16 %v4180, %v4180
    %v4270 = vpack.c.bf16 %v4179, %v4179
    %v4271 = vpack.c.bf16 %v4181, %v4181
    %v4272 = vpack.c.bf16 %v4189, %v4189
    %v4273 = vpack.c.bf16 %v4197, %v4197
    %v4274 = vpack.c.bf16 %v4196, %v4196
    %v4275 = vpack.c.bf16 %v4198, %v4198
    %v4276 = vpack.c.bf16 %v4206, %v4206
    %v4277 = vpack.c.bf16 %v4214, %v4214
    %v4278 = vpack.c.bf16 %v4213, %v4213
    %v4279 = vpack.c.bf16 %v4215, %v4215
    %v4280 = vld [vmem:[%s6] sm:$0xff]
    %v4281 = vld [vmem:[%s6 + $0x8] sm:$0xff]
    %v4282 = vld [vmem:[%s6 + $0x10] sm:$0xff]
    %v4283 = vld [vmem:[%s6 + $0x18] sm:$0xff]
    %v4284 = vld [vmem:[%s6 + $0x20] sm:$0xff]
    %v4285 = vld [vmem:[%s6 + $0x28] sm:$0xff]
    %v4286 = vld [vmem:[%s6 + $0x30] sm:$0xff]
    %v4287 = vld [vmem:[%s6 + $0x38] sm:$0xff]
    %v4288 = vld [vmem:[%s6 + $0x40] sm:$0xff]
    %v4289 = vld [vmem:[%s6 + $0x48] sm:$0xff]
    %v4290 = vld [vmem:[%s6 + $0x50] sm:$0xff]
    %v4291 = vld [vmem:[%s6 + $0x58] sm:$0xff]
    %v4292 = vld [vmem:[%s6 + $0x60] sm:$0xff]
    %v4293 = vld [vmem:[%s6 + $0x68] sm:$0xff]
    %v4294 = vld [vmem:[%s6 + $0x70] sm:$0xff]
    %v4295 = vld [vmem:[%s6 + $0x78] sm:$0xff]
    %v4296 = vld [vmem:[%s6 + $0x80] sm:$0xff]
    %v4297 = vld [vmem:[%s6 + $0x88] sm:$0xff]
    %v4298 = vld [vmem:[%s6 + $0x90] sm:$0xff]
    %v4299 = vld [vmem:[%s6 + $0x98] sm:$0xff]
    %v4300 = vld [vmem:[%s6 + $0xa0] sm:$0xff]
    %v4301 = vld [vmem:[%s6 + $0xa8] sm:$0xff]
    %v4302 = vld [vmem:[%s6 + $0xb0] sm:$0xff]
    %v4303 = vld [vmem:[%s6 + $0xb8] sm:$0xff]
    %v4304 = vld [vmem:[%s6 + $0xc0] sm:$0xff]
    %v4305 = vld [vmem:[%s6 + $0xc8] sm:$0xff]
    %v4306 = vld [vmem:[%s6 + $0xd0] sm:$0xff]
    %v4307 = vld [vmem:[%s6 + $0xd8] sm:$0xff]
    %v4308 = vld [vmem:[%s6 + $0xe0] sm:$0xff]
    %v4309 = vld [vmem:[%s6 + $0xe8] sm:$0xff]
    %v4310 = vld [vmem:[%s6 + $0xf0] sm:$0xff]
    %v4311 = vld [vmem:[%s6 + $0xf8] sm:$0xff]
    %v4312 = vld [vmem:[%s6 + $0x100] sm:$0xff]
    %v4313 = vld [vmem:[%s6 + $0x108] sm:$0xff]
    %v4314 = vld [vmem:[%s6 + $0x110] sm:$0xff]
    %v4315 = vld [vmem:[%s6 + $0x118] sm:$0xff]
    %v4316 = vld [vmem:[%s6 + $0x120] sm:$0xff]
    %v4317 = vld [vmem:[%s6 + $0x128] sm:$0xff]
    %v4318 = vld [vmem:[%s6 + $0x130] sm:$0xff]
    %v4319 = vld [vmem:[%s6 + $0x138] sm:$0xff]
    %v4320 = vld [vmem:[%s6 + $0x140] sm:$0xff]
    %v4321 = vld [vmem:[%s6 + $0x148] sm:$0xff]
    %v4322 = vld [vmem:[%s6 + $0x150] sm:$0xff]
    %v4323 = vld [vmem:[%s6 + $0x158] sm:$0xff]
    %v4324 = vld [vmem:[%s6 + $0x160] sm:$0xff]
    %v4325 = vld [vmem:[%s6 + $0x168] sm:$0xff]
    %v4326 = vld [vmem:[%s6 + $0x170] sm:$0xff]
    %v4327 = vld [vmem:[%s6 + $0x178] sm:$0xff]
    %v4328 = vld [vmem:[%s6 + $0x180] sm:$0xff]
    %v4329 = vld [vmem:[%s6 + $0x188] sm:$0xff]
    %v4330 = vld [vmem:[%s6 + $0x190] sm:$0xff]
    %v4331 = vld [vmem:[%s6 + $0x198] sm:$0xff]
    %v4332 = vld [vmem:[%s6 + $0x1a0] sm:$0xff]
    %v4333 = vld [vmem:[%s6 + $0x1a8] sm:$0xff]
    %v4334 = vld [vmem:[%s6 + $0x1b0] sm:$0xff]
    %v4335 = vld [vmem:[%s6 + $0x1b8] sm:$0xff]
    %v4336 = vld [vmem:[%s6 + $0x1c0] sm:$0xff]
    %v4337 = vld [vmem:[%s6 + $0x1c8] sm:$0xff]
    %v4338 = vld [vmem:[%s6 + $0x1d0] sm:$0xff]
    %v4339 = vld [vmem:[%s6 + $0x1d8] sm:$0xff]
    %v4340 = vld [vmem:[%s6 + $0x1e0] sm:$0xff]
    %v4341 = vld [vmem:[%s6 + $0x1e8] sm:$0xff]
    %v4342 = vld [vmem:[%s6 + $0x1f0] sm:$0xff]
    %v4343 = vld [vmem:[%s6 + $0x1f8] sm:$0xff]
    %v4344 = vld [vmem:[%s6 + $0x200] sm:$0xff]
    %v4345 = vld [vmem:[%s6 + $0x208] sm:$0xff]
    %v4346 = vld [vmem:[%s6 + $0x210] sm:$0xff]
    %v4347 = vld [vmem:[%s6 + $0x218] sm:$0xff]
    %v4348 = vld [vmem:[%s6 + $0x220] sm:$0xff]
    %v4349 = vld [vmem:[%s6 + $0x228] sm:$0xff]
    %v4350 = vld [vmem:[%s6 + $0x230] sm:$0xff]
    %v4351 = vld [vmem:[%s6 + $0x238] sm:$0xff]
    %v4352 = vld [vmem:[%s6 + $0x240] sm:$0xff]
    %v4353 = vld [vmem:[%s6 + $0x248] sm:$0xff]
    %v4354 = vld [vmem:[%s6 + $0x250] sm:$0xff]
    %v4355 = vld [vmem:[%s6 + $0x258] sm:$0xff]
    %v4356 = vld [vmem:[%s6 + $0x260] sm:$0xff]
    %v4357 = vld [vmem:[%s6 + $0x268] sm:$0xff]
    %v4358 = vld [vmem:[%s6 + $0x270] sm:$0xff]
    %v4359 = vld [vmem:[%s6 + $0x278] sm:$0xff]
    %v4360 = vld [vmem:[%s6 + $0x280] sm:$0xff]
    %v4361 = vld [vmem:[%s6 + $0x288] sm:$0xff]
    %v4362 = vld [vmem:[%s6 + $0x290] sm:$0xff]
    %v4363 = vld [vmem:[%s6 + $0x298] sm:$0xff]
    %v4364 = vld [vmem:[%s6 + $0x2a0] sm:$0xff]
    %v4365 = vld [vmem:[%s6 + $0x2a8] sm:$0xff]
    %v4366 = vld [vmem:[%s6 + $0x2b0] sm:$0xff]
    %v4367 = vld [vmem:[%s6 + $0x2b8] sm:$0xff]
    %v4368 = vld [vmem:[%s6 + $0x2c0] sm:$0xff]
    %v4369 = vld [vmem:[%s6 + $0x2c8] sm:$0xff]
    %v4370 = vld [vmem:[%s6 + $0x2d0] sm:$0xff]
    %v4371 = vld [vmem:[%s6 + $0x2d8] sm:$0xff]
    %v4372 = vld [vmem:[%s6 + $0x2e0] sm:$0xff]
    %v4373 = vld [vmem:[%s6 + $0x2e8] sm:$0xff]
    %v4374 = vld [vmem:[%s6 + $0x2f0] sm:$0xff]
    %v4375 = vld [vmem:[%s6 + $0x2f8] sm:$0xff]
    %v4376 = vld [vmem:[%s6 + $0x300] sm:$0xff]
    %v4377 = vld [vmem:[%s6 + $0x308] sm:$0xff]
    %v4378 = vld [vmem:[%s6 + $0x310] sm:$0xff]
    %v4379 = vld [vmem:[%s6 + $0x318] sm:$0xff]
    %v4380 = vld [vmem:[%s6 + $0x320] sm:$0xff]
    %v4381 = vld [vmem:[%s6 + $0x328] sm:$0xff]
    %v4382 = vld [vmem:[%s6 + $0x330] sm:$0xff]
    %v4383 = vld [vmem:[%s6 + $0x338] sm:$0xff]
    %v4384 = vld [vmem:[%s6 + $0x340] sm:$0xff]
    %v4385 = vld [vmem:[%s6 + $0x348] sm:$0xff]
    %v4386 = vld [vmem:[%s6 + $0x350] sm:$0xff]
    %v4387 = vld [vmem:[%s6 + $0x358] sm:$0xff]
    %v4388 = vld [vmem:[%s6 + $0x360] sm:$0xff]
    %v4389 = vld [vmem:[%s6 + $0x368] sm:$0xff]
    %v4390 = vld [vmem:[%s6 + $0x370] sm:$0xff]
    %v4391 = vld [vmem:[%s6 + $0x378] sm:$0xff]
    %v4392 = vld [vmem:[%s6 + $0x380] sm:$0xff]
    %v4393 = vld [vmem:[%s6 + $0x388] sm:$0xff]
    %v4394 = vld [vmem:[%s6 + $0x390] sm:$0xff]
    %v4395 = vld [vmem:[%s6 + $0x398] sm:$0xff]
    %v4396 = vld [vmem:[%s6 + $0x3a0] sm:$0xff]
    %v4397 = vld [vmem:[%s6 + $0x3a8] sm:$0xff]
    %v4398 = vld [vmem:[%s6 + $0x3b0] sm:$0xff]
    %v4399 = vld [vmem:[%s6 + $0x3b8] sm:$0xff]
    %v4400 = vld [vmem:[%s6 + $0x3c0] sm:$0xff]
    %v4401 = vld [vmem:[%s6 + $0x3c8] sm:$0xff]
    %v4402 = vld [vmem:[%s6 + $0x3d0] sm:$0xff]
    %v4403 = vld [vmem:[%s6 + $0x3d8] sm:$0xff]
    %v4404 = vld [vmem:[%s6 + $0x3e0] sm:$0xff]
    %v4405 = vld [vmem:[%s6 + $0x3e8] sm:$0xff]
    %v4406 = vld [vmem:[%s6 + $0x3f0] sm:$0xff]
    %v4407 = vld [vmem:[%s6 + $0x3f8] sm:$0xff]
    %v4408 = vld [vmem:[%s6 + $0x400] sm:$0xff]
    %v4409 = vld [vmem:[%s6 + $0x408] sm:$0xff]
    %v4410 = vld [vmem:[%s6 + $0x410] sm:$0xff]
    %v4411 = vld [vmem:[%s6 + $0x418] sm:$0xff]
    %v4412 = vld [vmem:[%s6 + $0x420] sm:$0xff]
    %v4413 = vld [vmem:[%s6 + $0x428] sm:$0xff]
    %v4414 = vld [vmem:[%s6 + $0x430] sm:$0xff]
    %v4415 = vld [vmem:[%s6 + $0x438] sm:$0xff]
    %v4416 = vld [vmem:[%s6 + $0x440] sm:$0xff]
    %v4417 = vld [vmem:[%s6 + $0x448] sm:$0xff]
    %v4418 = vld [vmem:[%s6 + $0x450] sm:$0xff]
    %v4419 = vld [vmem:[%s6 + $0x458] sm:$0xff]
    %v4420 = vld [vmem:[%s6 + $0x460] sm:$0xff]
    %v4421 = vld [vmem:[%s6 + $0x468] sm:$0xff]
    %v4422 = vld [vmem:[%s6 + $0x470] sm:$0xff]
    %v4423 = vld [vmem:[%s6 + $0x478] sm:$0xff]
    %v4424 = vld [vmem:[%s6 + $0x480] sm:$0xff]
    %v4425 = vld [vmem:[%s6 + $0x488] sm:$0xff]
    %v4426 = vld [vmem:[%s6 + $0x490] sm:$0xff]
    %v4427 = vld [vmem:[%s6 + $0x498] sm:$0xff]
    %v4428 = vld [vmem:[%s6 + $0x4a0] sm:$0xff]
    %v4429 = vld [vmem:[%s6 + $0x4a8] sm:$0xff]
    %v4430 = vld [vmem:[%s6 + $0x4b0] sm:$0xff]
    %v4431 = vld [vmem:[%s6 + $0x4b8] sm:$0xff]
    %v4432 = vld [vmem:[%s6 + $0x4c0] sm:$0xff]
    %v4433 = vld [vmem:[%s6 + $0x4c8] sm:$0xff]
    %v4434 = vld [vmem:[%s6 + $0x4d0] sm:$0xff]
    %v4435 = vld [vmem:[%s6 + $0x4d8] sm:$0xff]
    %v4436 = vld [vmem:[%s6 + $0x4e0] sm:$0xff]
    %v4437 = vld [vmem:[%s6 + $0x4e8] sm:$0xff]
    %v4438 = vld [vmem:[%s6 + $0x4f0] sm:$0xff]
    %v4439 = vld [vmem:[%s6 + $0x4f8] sm:$0xff]
    %v4440 = vld [vmem:[%s6 + $0x500] sm:$0xff]
    %v4441 = vld [vmem:[%s6 + $0x508] sm:$0xff]
    %v4442 = vld [vmem:[%s6 + $0x510] sm:$0xff]
    %v4443 = vld [vmem:[%s6 + $0x518] sm:$0xff]
    %v4444 = vld [vmem:[%s6 + $0x520] sm:$0xff]
    %v4445 = vld [vmem:[%s6 + $0x528] sm:$0xff]
    %v4446 = vld [vmem:[%s6 + $0x530] sm:$0xff]
    %v4447 = vld [vmem:[%s6 + $0x538] sm:$0xff]
    %v4448 = vld [vmem:[%s6 + $0x540] sm:$0xff]
    %v4449 = vld [vmem:[%s6 + $0x548] sm:$0xff]
    %v4450 = vld [vmem:[%s6 + $0x550] sm:$0xff]
    %v4451 = vld [vmem:[%s6 + $0x558] sm:$0xff]
    %v4452 = vld [vmem:[%s6 + $0x560] sm:$0xff]
    %v4453 = vld [vmem:[%s6 + $0x568] sm:$0xff]
    %v4454 = vld [vmem:[%s6 + $0x570] sm:$0xff]
    %v4455 = vld [vmem:[%s6 + $0x578] sm:$0xff]
    %v4456 = vld [vmem:[%s6 + $0x580] sm:$0xff]
    %v4457 = vld [vmem:[%s6 + $0x588] sm:$0xff]
    %v4458 = vld [vmem:[%s6 + $0x590] sm:$0xff]
    %v4459 = vld [vmem:[%s6 + $0x598] sm:$0xff]
    %v4460 = vld [vmem:[%s6 + $0x5a0] sm:$0xff]
    %v4461 = vld [vmem:[%s6 + $0x5a8] sm:$0xff]
    %v4462 = vld [vmem:[%s6 + $0x5b0] sm:$0xff]
    %v4463 = vld [vmem:[%s6 + $0x5b8] sm:$0xff]
    %v4464 = vld [vmem:[%s6 + $0x5c0] sm:$0xff]
    %v4465 = vld [vmem:[%s6 + $0x5c8] sm:$0xff]
    %v4466 = vld [vmem:[%s6 + $0x5d0] sm:$0xff]
    %v4467 = vld [vmem:[%s6 + $0x5d8] sm:$0xff]
    %v4468 = vld [vmem:[%s6 + $0x5e0] sm:$0xff]
    %v4469 = vld [vmem:[%s6 + $0x5e8] sm:$0xff]
    %v4470 = vld [vmem:[%s6 + $0x5f0] sm:$0xff]
    %v4471 = vld [vmem:[%s6 + $0x5f8] sm:$0xff]
    %v4472 = vld [vmem:[%s6 + $0x600] sm:$0xff]
    %v4473 = vld [vmem:[%s6 + $0x608] sm:$0xff]
    %v4474 = vld [vmem:[%s6 + $0x610] sm:$0xff]
    %v4475 = vld [vmem:[%s6 + $0x618] sm:$0xff]
    %v4476 = vld [vmem:[%s6 + $0x620] sm:$0xff]
    %v4477 = vld [vmem:[%s6 + $0x628] sm:$0xff]
    %v4478 = vld [vmem:[%s6 + $0x630] sm:$0xff]
    %v4479 = vld [vmem:[%s6 + $0x638] sm:$0xff]
    %v4480 = vld [vmem:[%s6 + $0x640] sm:$0xff]
    %v4481 = vld [vmem:[%s6 + $0x648] sm:$0xff]
    %v4482 = vld [vmem:[%s6 + $0x650] sm:$0xff]
    %v4483 = vld [vmem:[%s6 + $0x658] sm:$0xff]
    %v4484 = vld [vmem:[%s6 + $0x660] sm:$0xff]
    %v4485 = vld [vmem:[%s6 + $0x668] sm:$0xff]
    %v4486 = vld [vmem:[%s6 + $0x670] sm:$0xff]
    %v4487 = vld [vmem:[%s6 + $0x678] sm:$0xff]
    %v4488 = vld [vmem:[%s6 + $0x680] sm:$0xff]
    %v4489 = vld [vmem:[%s6 + $0x688] sm:$0xff]
    %v4490 = vld [vmem:[%s6 + $0x690] sm:$0xff]
    %v4491 = vld [vmem:[%s6 + $0x698] sm:$0xff]
    %v4492 = vld [vmem:[%s6 + $0x6a0] sm:$0xff]
    %v4493 = vld [vmem:[%s6 + $0x6a8] sm:$0xff]
    %v4494 = vld [vmem:[%s6 + $0x6b0] sm:$0xff]
    %v4495 = vld [vmem:[%s6 + $0x6b8] sm:$0xff]
    %v4496 = vld [vmem:[%s6 + $0x6c0] sm:$0xff]
    %v4497 = vld [vmem:[%s6 + $0x6c8] sm:$0xff]
    %v4498 = vld [vmem:[%s6 + $0x6d0] sm:$0xff]
    %v4499 = vld [vmem:[%s6 + $0x6d8] sm:$0xff]
    %v4500 = vld [vmem:[%s6 + $0x6e0] sm:$0xff]
    %v4501 = vld [vmem:[%s6 + $0x6e8] sm:$0xff]
    %v4502 = vld [vmem:[%s6 + $0x6f0] sm:$0xff]
    %v4503 = vld [vmem:[%s6 + $0x6f8] sm:$0xff]
    %v4504 = vld [vmem:[%s6 + $0x700] sm:$0xff]
    %v4505 = vld [vmem:[%s6 + $0x708] sm:$0xff]
    %v4506 = vld [vmem:[%s6 + $0x710] sm:$0xff]
    %v4507 = vld [vmem:[%s6 + $0x718] sm:$0xff]
    %v4508 = vld [vmem:[%s6 + $0x720] sm:$0xff]
    %v4509 = vld [vmem:[%s6 + $0x728] sm:$0xff]
    %v4510 = vld [vmem:[%s6 + $0x730] sm:$0xff]
    %v4511 = vld [vmem:[%s6 + $0x738] sm:$0xff]
    %v4512 = vld [vmem:[%s6 + $0x740] sm:$0xff]
    %v4513 = vld [vmem:[%s6 + $0x748] sm:$0xff]
    %v4514 = vld [vmem:[%s6 + $0x750] sm:$0xff]
    %v4515 = vld [vmem:[%s6 + $0x758] sm:$0xff]
    %v4516 = vld [vmem:[%s6 + $0x760] sm:$0xff]
    %v4517 = vld [vmem:[%s6 + $0x768] sm:$0xff]
    %v4518 = vld [vmem:[%s6 + $0x770] sm:$0xff]
    %v4519 = vld [vmem:[%s6 + $0x778] sm:$0xff]
    %v4520 = vld [vmem:[%s6 + $0x780] sm:$0xff]
    %v4521 = vld [vmem:[%s6 + $0x788] sm:$0xff]
    %v4522 = vld [vmem:[%s6 + $0x790] sm:$0xff]
    %v4523 = vld [vmem:[%s6 + $0x798] sm:$0xff]
    %v4524 = vld [vmem:[%s6 + $0x7a0] sm:$0xff]
    %v4525 = vld [vmem:[%s6 + $0x7a8] sm:$0xff]
    %v4526 = vld [vmem:[%s6 + $0x7b0] sm:$0xff]
    %v4527 = vld [vmem:[%s6 + $0x7b8] sm:$0xff]
    %v4528 = vld [vmem:[%s6 + $0x7c0] sm:$0xff]
    %v4529 = vld [vmem:[%s6 + $0x7c8] sm:$0xff]
    %v4530 = vld [vmem:[%s6 + $0x7d0] sm:$0xff]
    %v4531 = vld [vmem:[%s6 + $0x7d8] sm:$0xff]
    %v4532 = vld [vmem:[%s6 + $0x7e0] sm:$0xff]
    %v4533 = vld [vmem:[%s6 + $0x7e8] sm:$0xff]
    %v4534 = vld [vmem:[%s6 + $0x7f0] sm:$0xff]
    %v4535 = vld [vmem:[%s6 + $0x7f8] sm:$0xff]
    %v4536 = vld [vmem:[%s6 + $0x800] sm:$0xff]
    %v4537 = vld [vmem:[%s6 + $0x808] sm:$0xff]
    %v4538 = vld [vmem:[%s6 + $0x810] sm:$0xff]
    %v4539 = vld [vmem:[%s6 + $0x818] sm:$0xff]
    %v4540 = vld [vmem:[%s6 + $0x820] sm:$0xff]
    %v4541 = vld [vmem:[%s6 + $0x828] sm:$0xff]
    %v4542 = vld [vmem:[%s6 + $0x830] sm:$0xff]
    %v4543 = vld [vmem:[%s6 + $0x838] sm:$0xff]
    %v4544 = vld [vmem:[%s6 + $0x840] sm:$0xff]
    %v4545 = vld [vmem:[%s6 + $0x848] sm:$0xff]
    %v4546 = vld [vmem:[%s6 + $0x850] sm:$0xff]
    %v4547 = vld [vmem:[%s6 + $0x858] sm:$0xff]
    %v4548 = vld [vmem:[%s6 + $0x860] sm:$0xff]
    %v4549 = vld [vmem:[%s6 + $0x868] sm:$0xff]
    %v4550 = vld [vmem:[%s6 + $0x870] sm:$0xff]
    %v4551 = vld [vmem:[%s6 + $0x878] sm:$0xff]
    %v4552 = vld [vmem:[%s6 + $0x880] sm:$0xff]
    %v4553 = vld [vmem:[%s6 + $0x888] sm:$0xff]
    %v4554 = vld [vmem:[%s6 + $0x890] sm:$0xff]
    %v4555 = vld [vmem:[%s6 + $0x898] sm:$0xff]
    %v4556 = vld [vmem:[%s6 + $0x8a0] sm:$0xff]
    %v4557 = vld [vmem:[%s6 + $0x8a8] sm:$0xff]
    %v4558 = vld [vmem:[%s6 + $0x8b0] sm:$0xff]
    %v4559 = vld [vmem:[%s6 + $0x8b8] sm:$0xff]
    %v4560 = vld [vmem:[%s6 + $0x8c0] sm:$0xff]
    %v4561 = vld [vmem:[%s6 + $0x8c8] sm:$0xff]
    %v4562 = vld [vmem:[%s6 + $0x8d0] sm:$0xff]
    %v4563 = vld [vmem:[%s6 + $0x8d8] sm:$0xff]
    %v4564 = vld [vmem:[%s6 + $0x8e0] sm:$0xff]
    %v4565 = vld [vmem:[%s6 + $0x8e8] sm:$0xff]
    %v4566 = vld [vmem:[%s6 + $0x8f0] sm:$0xff]
    %v4567 = vld [vmem:[%s6 + $0x8f8] sm:$0xff]
    %v4568 = vld [vmem:[%s6 + $0x900] sm:$0xff]
    %v4569 = vld [vmem:[%s6 + $0x908] sm:$0xff]
    %v4570 = vld [vmem:[%s6 + $0x910] sm:$0xff]
    %v4571 = vld [vmem:[%s6 + $0x918] sm:$0xff]
    %v4572 = vld [vmem:[%s6 + $0x920] sm:$0xff]
    %v4573 = vld [vmem:[%s6 + $0x928] sm:$0xff]
    %v4574 = vld [vmem:[%s6 + $0x930] sm:$0xff]
    %v4575 = vld [vmem:[%s6 + $0x938] sm:$0xff]
    %v4576 = vld [vmem:[%s6 + $0x940] sm:$0xff]
    %v4577 = vld [vmem:[%s6 + $0x948] sm:$0xff]
    %v4578 = vld [vmem:[%s6 + $0x950] sm:$0xff]
    %v4579 = vld [vmem:[%s6 + $0x958] sm:$0xff]
    %v4580 = vld [vmem:[%s6 + $0x960] sm:$0xff]
    %v4581 = vld [vmem:[%s6 + $0x968] sm:$0xff]
    %v4582 = vld [vmem:[%s6 + $0x970] sm:$0xff]
    %v4583 = vld [vmem:[%s6 + $0x978] sm:$0xff]
    %v4584 = vld [vmem:[%s6 + $0x980] sm:$0xff]
    %v4585 = vld [vmem:[%s6 + $0x988] sm:$0xff]
    %v4586 = vld [vmem:[%s6 + $0x990] sm:$0xff]
    %v4587 = vld [vmem:[%s6 + $0x998] sm:$0xff]
    %v4588 = vld [vmem:[%s6 + $0x9a0] sm:$0xff]
    %v4589 = vld [vmem:[%s6 + $0x9a8] sm:$0xff]
    %v4590 = vld [vmem:[%s6 + $0x9b0] sm:$0xff]
    %v4591 = vld [vmem:[%s6 + $0x9b8] sm:$0xff]
    %v4592 = vld [vmem:[%s6 + $0x9c0] sm:$0xff]
    %v4593 = vld [vmem:[%s6 + $0x9c8] sm:$0xff]
    %v4594 = vld [vmem:[%s6 + $0x9d0] sm:$0xff]
    %v4595 = vld [vmem:[%s6 + $0x9d8] sm:$0xff]
    %v4596 = vld [vmem:[%s6 + $0x9e0] sm:$0xff]
    %v4597 = vld [vmem:[%s6 + $0x9e8] sm:$0xff]
    %v4598 = vld [vmem:[%s6 + $0x9f0] sm:$0xff]
    %v4599 = vld [vmem:[%s6 + $0x9f8] sm:$0xff]
    %v4600 = vld [vmem:[%s6 + $0xa00] sm:$0xff]
    %v4601 = vld [vmem:[%s6 + $0xa08] sm:$0xff]
    %v4602 = vld [vmem:[%s6 + $0xa10] sm:$0xff]
    %v4603 = vld [vmem:[%s6 + $0xa18] sm:$0xff]
    %v4604 = vld [vmem:[%s6 + $0xa20] sm:$0xff]
    %v4605 = vld [vmem:[%s6 + $0xa28] sm:$0xff]
    %v4606 = vld [vmem:[%s6 + $0xa30] sm:$0xff]
    %v4607 = vld [vmem:[%s6 + $0xa38] sm:$0xff]
    %v4608 = vld [vmem:[%s6 + $0xa40] sm:$0xff]
    %v4609 = vld [vmem:[%s6 + $0xa48] sm:$0xff]
    %v4610 = vld [vmem:[%s6 + $0xa50] sm:$0xff]
    %v4611 = vld [vmem:[%s6 + $0xa58] sm:$0xff]
    %v4612 = vld [vmem:[%s6 + $0xa60] sm:$0xff]
    %v4613 = vld [vmem:[%s6 + $0xa68] sm:$0xff]
    %v4614 = vld [vmem:[%s6 + $0xa70] sm:$0xff]
    %v4615 = vld [vmem:[%s6 + $0xa78] sm:$0xff]
    %v4616 = vld [vmem:[%s6 + $0xa80] sm:$0xff]
    %v4617 = vld [vmem:[%s6 + $0xa88] sm:$0xff]
    %v4618 = vld [vmem:[%s6 + $0xa90] sm:$0xff]
    %v4619 = vld [vmem:[%s6 + $0xa98] sm:$0xff]
    %v4620 = vld [vmem:[%s6 + $0xaa0] sm:$0xff]
    %v4621 = vld [vmem:[%s6 + $0xaa8] sm:$0xff]
    %v4622 = vld [vmem:[%s6 + $0xab0] sm:$0xff]
    %v4623 = vld [vmem:[%s6 + $0xab8] sm:$0xff]
    %v4624 = vld [vmem:[%s6 + $0xac0] sm:$0xff]
    %v4625 = vld [vmem:[%s6 + $0xac8] sm:$0xff]
    %v4626 = vld [vmem:[%s6 + $0xad0] sm:$0xff]
    %v4627 = vld [vmem:[%s6 + $0xad8] sm:$0xff]
    %v4628 = vld [vmem:[%s6 + $0xae0] sm:$0xff]
    %v4629 = vld [vmem:[%s6 + $0xae8] sm:$0xff]
    %v4630 = vld [vmem:[%s6 + $0xaf0] sm:$0xff]
    %v4631 = vld [vmem:[%s6 + $0xaf8] sm:$0xff]
    %v4632 = vld [vmem:[%s6 + $0xb00] sm:$0xff]
    %v4633 = vld [vmem:[%s6 + $0xb08] sm:$0xff]
    %v4634 = vld [vmem:[%s6 + $0xb10] sm:$0xff]
    %v4635 = vld [vmem:[%s6 + $0xb18] sm:$0xff]
    %v4636 = vld [vmem:[%s6 + $0xb20] sm:$0xff]
    %v4637 = vld [vmem:[%s6 + $0xb28] sm:$0xff]
    %v4638 = vld [vmem:[%s6 + $0xb30] sm:$0xff]
    %v4639 = vld [vmem:[%s6 + $0xb38] sm:$0xff]
    %v4640 = vld [vmem:[%s6 + $0xb40] sm:$0xff]
    %v4641 = vld [vmem:[%s6 + $0xb48] sm:$0xff]
    %v4642 = vld [vmem:[%s6 + $0xb50] sm:$0xff]
    %v4643 = vld [vmem:[%s6 + $0xb58] sm:$0xff]
    %v4644 = vld [vmem:[%s6 + $0xb60] sm:$0xff]
    %v4645 = vld [vmem:[%s6 + $0xb68] sm:$0xff]
    %v4646 = vld [vmem:[%s6 + $0xb70] sm:$0xff]
    %v4647 = vld [vmem:[%s6 + $0xb78] sm:$0xff]
    %v4648 = vld [vmem:[%s6 + $0xb80] sm:$0xff]
    %v4649 = vld [vmem:[%s6 + $0xb88] sm:$0xff]
    %v4650 = vld [vmem:[%s6 + $0xb90] sm:$0xff]
    %v4651 = vld [vmem:[%s6 + $0xb98] sm:$0xff]
    %v4652 = vld [vmem:[%s6 + $0xba0] sm:$0xff]
    %v4653 = vld [vmem:[%s6 + $0xba8] sm:$0xff]
    %v4654 = vld [vmem:[%s6 + $0xbb0] sm:$0xff]
    %v4655 = vld [vmem:[%s6 + $0xbb8] sm:$0xff]
    %v4656 = vld [vmem:[%s6 + $0xbc0] sm:$0xff]
    %v4657 = vld [vmem:[%s6 + $0xbc8] sm:$0xff]
    %v4658 = vld [vmem:[%s6 + $0xbd0] sm:$0xff]
    %v4659 = vld [vmem:[%s6 + $0xbd8] sm:$0xff]
    %v4660 = vld [vmem:[%s6 + $0xbe0] sm:$0xff]
    %v4661 = vld [vmem:[%s6 + $0xbe8] sm:$0xff]
    %v4662 = vld [vmem:[%s6 + $0xbf0] sm:$0xff]
    %v4663 = vld [vmem:[%s6 + $0xbf8] sm:$0xff]
    %v4664 = vld [vmem:[%s6 + $0xc00] sm:$0xff]
    %v4665 = vld [vmem:[%s6 + $0xc08] sm:$0xff]
    %v4666 = vld [vmem:[%s6 + $0xc10] sm:$0xff]
    %v4667 = vld [vmem:[%s6 + $0xc18] sm:$0xff]
    %v4668 = vld [vmem:[%s6 + $0xc20] sm:$0xff]
    %v4669 = vld [vmem:[%s6 + $0xc28] sm:$0xff]
    %v4670 = vld [vmem:[%s6 + $0xc30] sm:$0xff]
    %v4671 = vld [vmem:[%s6 + $0xc38] sm:$0xff]
    %v4672 = vld [vmem:[%s6 + $0xc40] sm:$0xff]
    %v4673 = vld [vmem:[%s6 + $0xc48] sm:$0xff]
    %v4674 = vld [vmem:[%s6 + $0xc50] sm:$0xff]
    %v4675 = vld [vmem:[%s6 + $0xc58] sm:$0xff]
    %v4676 = vld [vmem:[%s6 + $0xc60] sm:$0xff]
    %v4677 = vld [vmem:[%s6 + $0xc68] sm:$0xff]
    %v4678 = vld [vmem:[%s6 + $0xc70] sm:$0xff]
    %v4679 = vld [vmem:[%s6 + $0xc78] sm:$0xff]
    %v4680 = vld [vmem:[%s6 + $0xc80] sm:$0xff]
    %v4681 = vld [vmem:[%s6 + $0xc88] sm:$0xff]
    %v4682 = vld [vmem:[%s6 + $0xc90] sm:$0xff]
    %v4683 = vld [vmem:[%s6 + $0xc98] sm:$0xff]
    %v4684 = vld [vmem:[%s6 + $0xca0] sm:$0xff]
    %v4685 = vld [vmem:[%s6 + $0xca8] sm:$0xff]
    %v4686 = vld [vmem:[%s6 + $0xcb0] sm:$0xff]
    %v4687 = vld [vmem:[%s6 + $0xcb8] sm:$0xff]
    %v4688 = vld [vmem:[%s6 + $0xcc0] sm:$0xff]
    %v4689 = vld [vmem:[%s6 + $0xcc8] sm:$0xff]
    %v4690 = vld [vmem:[%s6 + $0xcd0] sm:$0xff]
    %v4691 = vld [vmem:[%s6 + $0xcd8] sm:$0xff]
    %v4692 = vld [vmem:[%s6 + $0xce0] sm:$0xff]
    %v4693 = vld [vmem:[%s6 + $0xce8] sm:$0xff]
    %v4694 = vld [vmem:[%s6 + $0xcf0] sm:$0xff]
    %v4695 = vld [vmem:[%s6 + $0xcf8] sm:$0xff]
    %v4696 = vld [vmem:[%s6 + $0xd00] sm:$0xff]
    %v4697 = vld [vmem:[%s6 + $0xd08] sm:$0xff]
    %v4698 = vld [vmem:[%s6 + $0xd10] sm:$0xff]
    %v4699 = vld [vmem:[%s6 + $0xd18] sm:$0xff]
    %v4700 = vld [vmem:[%s6 + $0xd20] sm:$0xff]
    %v4701 = vld [vmem:[%s6 + $0xd28] sm:$0xff]
    %v4702 = vld [vmem:[%s6 + $0xd30] sm:$0xff]
    %v4703 = vld [vmem:[%s6 + $0xd38] sm:$0xff]
    %v4704 = vld [vmem:[%s6 + $0xd40] sm:$0xff]
    %v4705 = vld [vmem:[%s6 + $0xd48] sm:$0xff]
    %v4706 = vld [vmem:[%s6 + $0xd50] sm:$0xff]
    %v4707 = vld [vmem:[%s6 + $0xd58] sm:$0xff]
    %v4708 = vld [vmem:[%s6 + $0xd60] sm:$0xff]
    %v4709 = vld [vmem:[%s6 + $0xd68] sm:$0xff]
    %v4710 = vld [vmem:[%s6 + $0xd70] sm:$0xff]
    %v4711 = vld [vmem:[%s6 + $0xd78] sm:$0xff]
    %v4712 = vld [vmem:[%s6 + $0xd80] sm:$0xff]
    %v4713 = vld [vmem:[%s6 + $0xd88] sm:$0xff]
    %v4714 = vld [vmem:[%s6 + $0xd90] sm:$0xff]
    %v4715 = vld [vmem:[%s6 + $0xd98] sm:$0xff]
    %v4716 = vld [vmem:[%s6 + $0xda0] sm:$0xff]
    %v4717 = vld [vmem:[%s6 + $0xda8] sm:$0xff]
    %v4718 = vld [vmem:[%s6 + $0xdb0] sm:$0xff]
    %v4719 = vld [vmem:[%s6 + $0xdb8] sm:$0xff]
    %v4720 = vld [vmem:[%s6 + $0xdc0] sm:$0xff]
    %v4721 = vld [vmem:[%s6 + $0xdc8] sm:$0xff]
    %v4722 = vld [vmem:[%s6 + $0xdd0] sm:$0xff]
    %v4723 = vld [vmem:[%s6 + $0xdd8] sm:$0xff]
    %v4724 = vld [vmem:[%s6 + $0xde0] sm:$0xff]
    %v4725 = vld [vmem:[%s6 + $0xde8] sm:$0xff]
    %v4726 = vld [vmem:[%s6 + $0xdf0] sm:$0xff]
    %v4727 = vld [vmem:[%s6 + $0xdf8] sm:$0xff]
    %v4728 = vld [vmem:[%s6 + $0xe00] sm:$0xff]
    %v4729 = vld [vmem:[%s6 + $0xe08] sm:$0xff]
    %v4730 = vld [vmem:[%s6 + $0xe10] sm:$0xff]
    %v4731 = vld [vmem:[%s6 + $0xe18] sm:$0xff]
    %v4732 = vld [vmem:[%s6 + $0xe20] sm:$0xff]
    %v4733 = vld [vmem:[%s6 + $0xe28] sm:$0xff]
    %v4734 = vld [vmem:[%s6 + $0xe30] sm:$0xff]
    %v4735 = vld [vmem:[%s6 + $0xe38] sm:$0xff]
    %v4736 = vld [vmem:[%s6 + $0xe40] sm:$0xff]
    %v4737 = vld [vmem:[%s6 + $0xe48] sm:$0xff]
    %v4738 = vld [vmem:[%s6 + $0xe50] sm:$0xff]
    %v4739 = vld [vmem:[%s6 + $0xe58] sm:$0xff]
    %v4740 = vld [vmem:[%s6 + $0xe60] sm:$0xff]
    %v4741 = vld [vmem:[%s6 + $0xe68] sm:$0xff]
    %v4742 = vld [vmem:[%s6 + $0xe70] sm:$0xff]
    %v4743 = vld [vmem:[%s6 + $0xe78] sm:$0xff]
    %v4744 = vld [vmem:[%s6 + $0xe80] sm:$0xff]
    %v4745 = vld [vmem:[%s6 + $0xe88] sm:$0xff]
    %v4746 = vld [vmem:[%s6 + $0xe90] sm:$0xff]
    %v4747 = vld [vmem:[%s6 + $0xe98] sm:$0xff]
    %v4748 = vld [vmem:[%s6 + $0xea0] sm:$0xff]
    %v4749 = vld [vmem:[%s6 + $0xea8] sm:$0xff]
    %v4750 = vld [vmem:[%s6 + $0xeb0] sm:$0xff]
    %v4751 = vld [vmem:[%s6 + $0xeb8] sm:$0xff]
    %v4752 = vld [vmem:[%s6 + $0xec0] sm:$0xff]
    %v4753 = vld [vmem:[%s6 + $0xec8] sm:$0xff]
    %v4754 = vld [vmem:[%s6 + $0xed0] sm:$0xff]
    %v4755 = vld [vmem:[%s6 + $0xed8] sm:$0xff]
    %v4756 = vld [vmem:[%s6 + $0xee0] sm:$0xff]
    %v4757 = vld [vmem:[%s6 + $0xee8] sm:$0xff]
    %v4758 = vld [vmem:[%s6 + $0xef0] sm:$0xff]
    %v4759 = vld [vmem:[%s6 + $0xef8] sm:$0xff]
    %v4760 = vld [vmem:[%s6 + $0xf00] sm:$0xff]
    %v4761 = vld [vmem:[%s6 + $0xf08] sm:$0xff]
    %v4762 = vld [vmem:[%s6 + $0xf10] sm:$0xff]
    %v4763 = vld [vmem:[%s6 + $0xf18] sm:$0xff]
    %v4764 = vld [vmem:[%s6 + $0xf20] sm:$0xff]
    %v4765 = vld [vmem:[%s6 + $0xf28] sm:$0xff]
    %v4766 = vld [vmem:[%s6 + $0xf30] sm:$0xff]
    %v4767 = vld [vmem:[%s6 + $0xf38] sm:$0xff]
    %v4768 = vld [vmem:[%s6 + $0xf40] sm:$0xff]
    %v4769 = vld [vmem:[%s6 + $0xf48] sm:$0xff]
    %v4770 = vld [vmem:[%s6 + $0xf50] sm:$0xff]
    %v4771 = vld [vmem:[%s6 + $0xf58] sm:$0xff]
    %v4772 = vld [vmem:[%s6 + $0xf60] sm:$0xff]
    %v4773 = vld [vmem:[%s6 + $0xf68] sm:$0xff]
    %v4774 = vld [vmem:[%s6 + $0xf70] sm:$0xff]
    %v4775 = vld [vmem:[%s6 + $0xf78] sm:$0xff]
    %v4776 = vld [vmem:[%s6 + $0xf80] sm:$0xff]
    %v4777 = vld [vmem:[%s6 + $0xf88] sm:$0xff]
    %v4778 = vld [vmem:[%s6 + $0xf90] sm:$0xff]
    %v4779 = vld [vmem:[%s6 + $0xf98] sm:$0xff]
    %v4780 = vld [vmem:[%s6 + $0xfa0] sm:$0xff]
    %v4781 = vld [vmem:[%s6 + $0xfa8] sm:$0xff]
    %v4782 = vld [vmem:[%s6 + $0xfb0] sm:$0xff]
    %v4783 = vld [vmem:[%s6 + $0xfb8] sm:$0xff]
    %v4784 = vld [vmem:[%s6 + $0xfc0] sm:$0xff]
    %v4785 = vld [vmem:[%s6 + $0xfc8] sm:$0xff]
    %v4786 = vld [vmem:[%s6 + $0xfd0] sm:$0xff]
    %v4787 = vld [vmem:[%s6 + $0xfd8] sm:$0xff]
    %v4788 = vld [vmem:[%s6 + $0xfe0] sm:$0xff]
    %v4789 = vld [vmem:[%s6 + $0xfe8] sm:$0xff]
    %v4790 = vld [vmem:[%s6 + $0xff0] sm:$0xff]
    %v4791 = vld [vmem:[%s6 + $0xff8] sm:$0xff]
    %v4792 = vpack.c.bf16 %v4281, %v4280
    %v4793 = vpack.c.bf16 %v4283, %v4282
    %v4794 = vpack.c.bf16 %v4285, %v4284
    %v4795 = vpack.c.bf16 %v4287, %v4286
    %v4796 = vpack.c.bf16 %v4289, %v4288
    %v4797 = vpack.c.bf16 %v4291, %v4290
    %v4798 = vpack.c.bf16 %v4293, %v4292
    %v4799 = vpack.c.bf16 %v4295, %v4294
    %v4800 = vpack.c.bf16 %v4297, %v4296
    %v4801 = vpack.c.bf16 %v4299, %v4298
    %v4802 = vpack.c.bf16 %v4301, %v4300
    %v4803 = vpack.c.bf16 %v4303, %v4302
    %v4804 = vpack.c.bf16 %v4305, %v4304
    %v4805 = vpack.c.bf16 %v4307, %v4306
    %v4806 = vpack.c.bf16 %v4309, %v4308
    %v4807 = vpack.c.bf16 %v4311, %v4310
    %v4808 = vpack.c.bf16 %v4313, %v4312
    %v4809 = vpack.c.bf16 %v4315, %v4314
    %v4810 = vpack.c.bf16 %v4317, %v4316
    %v4811 = vpack.c.bf16 %v4319, %v4318
    %v4812 = vpack.c.bf16 %v4321, %v4320
    %v4813 = vpack.c.bf16 %v4323, %v4322
    %v4814 = vpack.c.bf16 %v4325, %v4324
    %v4815 = vpack.c.bf16 %v4327, %v4326
    %v4816 = vpack.c.bf16 %v4329, %v4328
    %v4817 = vpack.c.bf16 %v4331, %v4330
    %v4818 = vpack.c.bf16 %v4333, %v4332
    %v4819 = vpack.c.bf16 %v4335, %v4334
    %v4820 = vpack.c.bf16 %v4337, %v4336
    %v4821 = vpack.c.bf16 %v4339, %v4338
    %v4822 = vpack.c.bf16 %v4341, %v4340
    %v4823 = vpack.c.bf16 %v4343, %v4342
    %v4824 = vpack.c.bf16 %v4345, %v4344
    %v4825 = vpack.c.bf16 %v4347, %v4346
    %v4826 = vpack.c.bf16 %v4349, %v4348
    %v4827 = vpack.c.bf16 %v4351, %v4350
    %v4828 = vpack.c.bf16 %v4353, %v4352
    %v4829 = vpack.c.bf16 %v4355, %v4354
    %v4830 = vpack.c.bf16 %v4357, %v4356
    %v4831 = vpack.c.bf16 %v4359, %v4358
    %v4832 = vpack.c.bf16 %v4361, %v4360
    %v4833 = vpack.c.bf16 %v4363, %v4362
    %v4834 = vpack.c.bf16 %v4365, %v4364
    %v4835 = vpack.c.bf16 %v4367, %v4366
    %v4836 = vpack.c.bf16 %v4369, %v4368
    %v4837 = vpack.c.bf16 %v4371, %v4370
    %v4838 = vpack.c.bf16 %v4373, %v4372
    %v4839 = vpack.c.bf16 %v4375, %v4374
    %v4840 = vpack.c.bf16 %v4377, %v4376
    %v4841 = vpack.c.bf16 %v4379, %v4378
    %v4842 = vpack.c.bf16 %v4381, %v4380
    %v4843 = vpack.c.bf16 %v4383, %v4382
    %v4844 = vpack.c.bf16 %v4385, %v4384
    %v4845 = vpack.c.bf16 %v4387, %v4386
    %v4846 = vpack.c.bf16 %v4389, %v4388
    %v4847 = vpack.c.bf16 %v4391, %v4390
    %v4848 = vpack.c.bf16 %v4393, %v4392
    %v4849 = vpack.c.bf16 %v4395, %v4394
    %v4850 = vpack.c.bf16 %v4397, %v4396
    %v4851 = vpack.c.bf16 %v4399, %v4398
    %v4852 = vpack.c.bf16 %v4401, %v4400
    %v4853 = vpack.c.bf16 %v4403, %v4402
    %v4854 = vpack.c.bf16 %v4405, %v4404
    %v4855 = vpack.c.bf16 %v4407, %v4406
    %v4856 = vpack.c.bf16 %v4409, %v4408
    %v4857 = vpack.c.bf16 %v4411, %v4410
    %v4858 = vpack.c.bf16 %v4413, %v4412
    %v4859 = vpack.c.bf16 %v4415, %v4414
    %v4860 = vpack.c.bf16 %v4417, %v4416
    %v4861 = vpack.c.bf16 %v4419, %v4418
    %v4862 = vpack.c.bf16 %v4421, %v4420
    %v4863 = vpack.c.bf16 %v4423, %v4422
    %v4864 = vpack.c.bf16 %v4425, %v4424
    %v4865 = vpack.c.bf16 %v4427, %v4426
    %v4866 = vpack.c.bf16 %v4429, %v4428
    %v4867 = vpack.c.bf16 %v4431, %v4430
    %v4868 = vpack.c.bf16 %v4433, %v4432
    %v4869 = vpack.c.bf16 %v4435, %v4434
    %v4870 = vpack.c.bf16 %v4437, %v4436
    %v4871 = vpack.c.bf16 %v4439, %v4438
    %v4872 = vpack.c.bf16 %v4441, %v4440
    %v4873 = vpack.c.bf16 %v4443, %v4442
    %v4874 = vpack.c.bf16 %v4445, %v4444
    %v4875 = vpack.c.bf16 %v4447, %v4446
    %v4876 = vpack.c.bf16 %v4449, %v4448
    %v4877 = vpack.c.bf16 %v4451, %v4450
    %v4878 = vpack.c.bf16 %v4453, %v4452
    %v4879 = vpack.c.bf16 %v4455, %v4454
    %v4880 = vpack.c.bf16 %v4457, %v4456
    %v4881 = vpack.c.bf16 %v4459, %v4458
    %v4882 = vpack.c.bf16 %v4461, %v4460
    %v4883 = vpack.c.bf16 %v4463, %v4462
    %v4884 = vpack.c.bf16 %v4465, %v4464
    %v4885 = vpack.c.bf16 %v4467, %v4466
    %v4886 = vpack.c.bf16 %v4469, %v4468
    %v4887 = vpack.c.bf16 %v4471, %v4470
    %v4888 = vpack.c.bf16 %v4473, %v4472
    %v4889 = vpack.c.bf16 %v4475, %v4474
    %v4890 = vpack.c.bf16 %v4477, %v4476
    %v4891 = vpack.c.bf16 %v4479, %v4478
    %v4892 = vpack.c.bf16 %v4481, %v4480
    %v4893 = vpack.c.bf16 %v4483, %v4482
    %v4894 = vpack.c.bf16 %v4485, %v4484
    %v4895 = vpack.c.bf16 %v4487, %v4486
    %v4896 = vpack.c.bf16 %v4489, %v4488
    %v4897 = vpack.c.bf16 %v4491, %v4490
    %v4898 = vpack.c.bf16 %v4493, %v4492
    %v4899 = vpack.c.bf16 %v4495, %v4494
    %v4900 = vpack.c.bf16 %v4497, %v4496
    %v4901 = vpack.c.bf16 %v4499, %v4498
    %v4902 = vpack.c.bf16 %v4501, %v4500
    %v4903 = vpack.c.bf16 %v4503, %v4502
    %v4904 = vpack.c.bf16 %v4505, %v4504
    %v4905 = vpack.c.bf16 %v4507, %v4506
    %v4906 = vpack.c.bf16 %v4509, %v4508
    %v4907 = vpack.c.bf16 %v4511, %v4510
    %v4908 = vpack.c.bf16 %v4513, %v4512
    %v4909 = vpack.c.bf16 %v4515, %v4514
    %v4910 = vpack.c.bf16 %v4517, %v4516
    %v4911 = vpack.c.bf16 %v4519, %v4518
    %v4912 = vpack.c.bf16 %v4521, %v4520
    %v4913 = vpack.c.bf16 %v4523, %v4522
    %v4914 = vpack.c.bf16 %v4525, %v4524
    %v4915 = vpack.c.bf16 %v4527, %v4526
    %v4916 = vpack.c.bf16 %v4529, %v4528
    %v4917 = vpack.c.bf16 %v4531, %v4530
    %v4918 = vpack.c.bf16 %v4533, %v4532
    %v4919 = vpack.c.bf16 %v4535, %v4534
    %v4920 = vpack.c.bf16 %v4537, %v4536
    %v4921 = vpack.c.bf16 %v4539, %v4538
    %v4922 = vpack.c.bf16 %v4541, %v4540
    %v4923 = vpack.c.bf16 %v4543, %v4542
    %v4924 = vpack.c.bf16 %v4545, %v4544
    %v4925 = vpack.c.bf16 %v4547, %v4546
    %v4926 = vpack.c.bf16 %v4549, %v4548
    %v4927 = vpack.c.bf16 %v4551, %v4550
    %v4928 = vpack.c.bf16 %v4553, %v4552
    %v4929 = vpack.c.bf16 %v4555, %v4554
    %v4930 = vpack.c.bf16 %v4557, %v4556
    %v4931 = vpack.c.bf16 %v4559, %v4558
    %v4932 = vpack.c.bf16 %v4561, %v4560
    %v4933 = vpack.c.bf16 %v4563, %v4562
    %v4934 = vpack.c.bf16 %v4565, %v4564
    %v4935 = vpack.c.bf16 %v4567, %v4566
    %v4936 = vpack.c.bf16 %v4569, %v4568
    %v4937 = vpack.c.bf16 %v4571, %v4570
    %v4938 = vpack.c.bf16 %v4573, %v4572
    %v4939 = vpack.c.bf16 %v4575, %v4574
    %v4940 = vpack.c.bf16 %v4577, %v4576
    %v4941 = vpack.c.bf16 %v4579, %v4578
    %v4942 = vpack.c.bf16 %v4581, %v4580
    %v4943 = vpack.c.bf16 %v4583, %v4582
    %v4944 = vpack.c.bf16 %v4585, %v4584
    %v4945 = vpack.c.bf16 %v4587, %v4586
    %v4946 = vpack.c.bf16 %v4589, %v4588
    %v4947 = vpack.c.bf16 %v4591, %v4590
    %v4948 = vpack.c.bf16 %v4593, %v4592
    %v4949 = vpack.c.bf16 %v4595, %v4594
    %v4950 = vpack.c.bf16 %v4597, %v4596
    %v4951 = vpack.c.bf16 %v4599, %v4598
    %v4952 = vpack.c.bf16 %v4601, %v4600
    %v4953 = vpack.c.bf16 %v4603, %v4602
    %v4954 = vpack.c.bf16 %v4605, %v4604
    %v4955 = vpack.c.bf16 %v4607, %v4606
    %v4956 = vpack.c.bf16 %v4609, %v4608
    %v4957 = vpack.c.bf16 %v4611, %v4610
    %v4958 = vpack.c.bf16 %v4613, %v4612
    %v4959 = vpack.c.bf16 %v4615, %v4614
    %v4960 = vpack.c.bf16 %v4617, %v4616
    %v4961 = vpack.c.bf16 %v4619, %v4618
    %v4962 = vpack.c.bf16 %v4621, %v4620
    %v4963 = vpack.c.bf16 %v4623, %v4622
    %v4964 = vpack.c.bf16 %v4625, %v4624
    %v4965 = vpack.c.bf16 %v4627, %v4626
    %v4966 = vpack.c.bf16 %v4629, %v4628
    %v4967 = vpack.c.bf16 %v4631, %v4630
    %v4968 = vpack.c.bf16 %v4633, %v4632
    %v4969 = vpack.c.bf16 %v4635, %v4634
    %v4970 = vpack.c.bf16 %v4637, %v4636
    %v4971 = vpack.c.bf16 %v4639, %v4638
    %v4972 = vpack.c.bf16 %v4641, %v4640
    %v4973 = vpack.c.bf16 %v4643, %v4642
    %v4974 = vpack.c.bf16 %v4645, %v4644
    %v4975 = vpack.c.bf16 %v4647, %v4646
    %v4976 = vpack.c.bf16 %v4649, %v4648
    %v4977 = vpack.c.bf16 %v4651, %v4650
    %v4978 = vpack.c.bf16 %v4653, %v4652
    %v4979 = vpack.c.bf16 %v4655, %v4654
    %v4980 = vpack.c.bf16 %v4657, %v4656
    %v4981 = vpack.c.bf16 %v4659, %v4658
    %v4982 = vpack.c.bf16 %v4661, %v4660
    %v4983 = vpack.c.bf16 %v4663, %v4662
    %v4984 = vpack.c.bf16 %v4665, %v4664
    %v4985 = vpack.c.bf16 %v4667, %v4666
    %v4986 = vpack.c.bf16 %v4669, %v4668
    %v4987 = vpack.c.bf16 %v4671, %v4670
    %v4988 = vpack.c.bf16 %v4673, %v4672
    %v4989 = vpack.c.bf16 %v4675, %v4674
    %v4990 = vpack.c.bf16 %v4677, %v4676
    %v4991 = vpack.c.bf16 %v4679, %v4678
    %v4992 = vpack.c.bf16 %v4681, %v4680
    %v4993 = vpack.c.bf16 %v4683, %v4682
    %v4994 = vpack.c.bf16 %v4685, %v4684
    %v4995 = vpack.c.bf16 %v4687, %v4686
    %v4996 = vpack.c.bf16 %v4689, %v4688
    %v4997 = vpack.c.bf16 %v4691, %v4690
    %v4998 = vpack.c.bf16 %v4693, %v4692
    %v4999 = vpack.c.bf16 %v4695, %v4694
    %v5000 = vpack.c.bf16 %v4697, %v4696
    %v5001 = vpack.c.bf16 %v4699, %v4698
    %v5002 = vpack.c.bf16 %v4701, %v4700
    %v5003 = vpack.c.bf16 %v4703, %v4702
    %v5004 = vpack.c.bf16 %v4705, %v4704
    %v5005 = vpack.c.bf16 %v4707, %v4706
    %v5006 = vpack.c.bf16 %v4709, %v4708
    %v5007 = vpack.c.bf16 %v4711, %v4710
    %v5008 = vpack.c.bf16 %v4713, %v4712
    %v5009 = vpack.c.bf16 %v4715, %v4714
    %v5010 = vpack.c.bf16 %v4717, %v4716
    %v5011 = vpack.c.bf16 %v4719, %v4718
    %v5012 = vpack.c.bf16 %v4721, %v4720
    %v5013 = vpack.c.bf16 %v4723, %v4722
    %v5014 = vpack.c.bf16 %v4725, %v4724
    %v5015 = vpack.c.bf16 %v4727, %v4726
    %v5016 = vpack.c.bf16 %v4729, %v4728
    %v5017 = vpack.c.bf16 %v4731, %v4730
    %v5018 = vpack.c.bf16 %v4733, %v4732
    %v5019 = vpack.c.bf16 %v4735, %v4734
    %v5020 = vpack.c.bf16 %v4737, %v4736
    %v5021 = vpack.c.bf16 %v4739, %v4738
    %v5022 = vpack.c.bf16 %v4741, %v4740
    %v5023 = vpack.c.bf16 %v4743, %v4742
    %v5024 = vpack.c.bf16 %v4745, %v4744
    %v5025 = vpack.c.bf16 %v4747, %v4746
    %v5026 = vpack.c.bf16 %v4749, %v4748
    %v5027 = vpack.c.bf16 %v4751, %v4750
    %v5028 = vpack.c.bf16 %v4753, %v4752
    %v5029 = vpack.c.bf16 %v4755, %v4754
    %v5030 = vpack.c.bf16 %v4757, %v4756
    %v5031 = vpack.c.bf16 %v4759, %v4758
    %v5032 = vpack.c.bf16 %v4761, %v4760
    %v5033 = vpack.c.bf16 %v4763, %v4762
    %v5034 = vpack.c.bf16 %v4765, %v4764
    %v5035 = vpack.c.bf16 %v4767, %v4766
    %v5036 = vpack.c.bf16 %v4769, %v4768
    %v5037 = vpack.c.bf16 %v4771, %v4770
    %v5038 = vpack.c.bf16 %v4773, %v4772
    %v5039 = vpack.c.bf16 %v4775, %v4774
    %v5040 = vpack.c.bf16 %v4777, %v4776
    %v5041 = vpack.c.bf16 %v4779, %v4778
    %v5042 = vpack.c.bf16 %v4781, %v4780
    %v5043 = vpack.c.bf16 %v4783, %v4782
    %v5044 = vpack.c.bf16 %v4785, %v4784
    %v5045 = vpack.c.bf16 %v4787, %v4786
    %v5046 = vpack.c.bf16 %v4789, %v4788
    %v5047 = vpack.c.bf16 %v4791, %v4790
    %v5048 = vld [vmem:[%s7] sm:$0x1]
    %v5050 = vlaneseq
    %v5051 = vshrl.u32 %v5050, 7
    %v5052 = vsub.s32 0, %v5051
    %v5053 = vrot.slane %v5048, %v5052
    %5055 = vmatprep.subr.bf16.mxu0 0
    %5056 = vmatpush1.bf16.msra.mxu0 %v4792
    %5057 = vmatprep.subr.bf16.mxu0 0
    %5058 = vmatpush1.bf16.msra.mxu0 %v4793
    %5059 = vmatprep.subr.bf16.mxu0 0
    %5060 = vmatpush1.bf16.msra.mxu0 %v4794
    %5061 = vmatprep.subr.bf16.mxu0 0
    %5062 = vmatpush1.bf16.msra.mxu0 %v4795
    %5063 = vmatprep.subr.bf16.mxu0 0
    %5064 = vmatpush1.bf16.msra.mxu0 %v4796
    %5065 = vmatprep.subr.bf16.mxu0 0
    %5066 = vmatpush1.bf16.msra.mxu0 %v4797
    %5067 = vmatprep.subr.bf16.mxu0 0
    %5068 = vmatpush1.bf16.msra.mxu0 %v4798
    %5069 = vmatprep.subr.bf16.mxu0 0
    %5070 = vmatpush1.bf16.msra.mxu0 %v4799
    %5071 = vmatprep.subr.bf16.mxu0 0
    %5072 = vmatpush1.bf16.msra.mxu0 %v4800
    %5073 = vmatprep.subr.bf16.mxu0 0
    %5074 = vmatpush1.bf16.msra.mxu0 %v4801
    %5075 = vmatprep.subr.bf16.mxu0 0
    %5076 = vmatpush1.bf16.msra.mxu0 %v4802
    %5077 = vmatprep.subr.bf16.mxu0 0
    %5078 = vmatpush1.bf16.msra.mxu0 %v4803
    %5079 = vmatprep.subr.bf16.mxu0 0
    %5080 = vmatpush1.bf16.msra.mxu0 %v4804
    %5081 = vmatprep.subr.bf16.mxu0 0
    %5082 = vmatpush1.bf16.msra.mxu0 %v4805
    %5083 = vmatprep.subr.bf16.mxu0 0
    %5084 = vmatpush1.bf16.msra.mxu0 %v4806
    %5085 = vmatprep.subr.bf16.mxu0 0
    %5086 = vmatpush1.bf16.msra.mxu0 %v4807
    %5087 = vmatprep.mubr.bf16.mxu0 %v4249
    %5088 = vmatmul.mubr.bf16.gmra.mrb[0].mxu0 %v4248
    %v5089 = vpop.f32.mrb[0].mxu0
    %v5090 = vadd.f32 %v5053, %v5089
    %v5091 = vpop.f32.mrb[0].mxu0
    %v5092 = vpop.f32.mrb[0].mxu0
    %v5093 = vpop.f32.mrb[0].mxu0
    %5094 = vdwg.mxu0
    %5095 = vmatprep.subr.bf16.mxu0 0
    %5096 = vmatpush1.bf16.msra.mxu0 %v4808
    %5097 = vmatprep.subr.bf16.mxu0 0
    %5098 = vmatpush1.bf16.msra.mxu0 %v4809
    %5099 = vmatprep.subr.bf16.mxu0 0
    %5100 = vmatpush1.bf16.msra.mxu0 %v4810
    %5101 = vmatprep.subr.bf16.mxu0 0
    %5102 = vmatpush1.bf16.msra.mxu0 %v4811
    %5103 = vmatprep.subr.bf16.mxu0 0
    %5104 = vmatpush1.bf16.msra.mxu0 %v4812
    %5105 = vmatprep.subr.bf16.mxu0 0
    %5106 = vmatpush1.bf16.msra.mxu0 %v4813
    %5107 = vmatprep.subr.bf16.mxu0 0
    %5108 = vmatpush1.bf16.msra.mxu0 %v4814
    %5109 = vmatprep.subr.bf16.mxu0 0
    %5110 = vmatpush1.bf16.msra.mxu0 %v4815
    %5111 = vmatprep.subr.bf16.mxu0 0
    %5112 = vmatpush1.bf16.msra.mxu0 %v4816
    %5113 = vmatprep.subr.bf16.mxu0 0
    %5114 = vmatpush1.bf16.msra.mxu0 %v4817
    %5115 = vmatprep.subr.bf16.mxu0 0
    %5116 = vmatpush1.bf16.msra.mxu0 %v4818
    %5117 = vmatprep.subr.bf16.mxu0 0
    %5118 = vmatpush1.bf16.msra.mxu0 %v4819
    %5119 = vmatprep.subr.bf16.mxu0 0
    %5120 = vmatpush1.bf16.msra.mxu0 %v4820
    %5121 = vmatprep.subr.bf16.mxu0 0
    %5122 = vmatpush1.bf16.msra.mxu0 %v4821
    %5123 = vmatprep.subr.bf16.mxu0 0
    %5124 = vmatpush1.bf16.msra.mxu0 %v4822
    %5125 = vmatprep.subr.bf16.mxu0 0
    %5126 = vmatpush1.bf16.msra.mxu0 %v4823
    %5127 = vmatprep.mubr.bf16.mxu0 %v4251
    %5128 = vmatmul.mubr.bf16.gmra.mrb[0].mxu0 %v4250
    %v5129 = vpop.f32.mrb[0].mxu0
    %v5130 = vadd.f32 %v5090, %v5129
    %v5131 = vpop.f32.mrb[0].mxu0
    %v5132 = vpop.f32.mrb[0].mxu0
    %v5133 = vpop.f32.mrb[0].mxu0
    %5134 = vdwg.mxu0
    %5135 = vmatprep.subr.bf16.mxu0 0
    %5136 = vmatpush1.bf16.msra.mxu0 %v4824
    %5137 = vmatprep.subr.bf16.mxu0 0
    %5138 = vmatpush1.bf16.msra.mxu0 %v4825
    %5139 = vmatprep.subr.bf16.mxu0 0
    %5140 = vmatpush1.bf16.msra.mxu0 %v4826
    %5141 = vmatprep.subr.bf16.mxu0 0
    %5142 = vmatpush1.bf16.msra.mxu0 %v4827
    %5143 = vmatprep.subr.bf16.mxu0 0
    %5144 = vmatpush1.bf16.msra.mxu0 %v4828
    %5145 = vmatprep.subr.bf16.mxu0 0
    %5146 = vmatpush1.bf16.msra.mxu0 %v4829
    %5147 = vmatprep.subr.bf16.mxu0 0
    %5148 = vmatpush1.bf16.msra.mxu0 %v4830
    %5149 = vmatprep.subr.bf16.mxu0 0
    %5150 = vmatpush1.bf16.msra.mxu0 %v4831
    %5151 = vmatprep.subr.bf16.mxu0 0
    %5152 = vmatpush1.bf16.msra.mxu0 %v4832
    %5153 = vmatprep.subr.bf16.mxu0 0
    %5154 = vmatpush1.bf16.msra.mxu0 %v4833
    %5155 = vmatprep.subr.bf16.mxu0 0
    %5156 = vmatpush1.bf16.msra.mxu0 %v4834
    %5157 = vmatprep.subr.bf16.mxu0 0
    %5158 = vmatpush1.bf16.msra.mxu0 %v4835
    %5159 = vmatprep.subr.bf16.mxu0 0
    %5160 = vmatpush1.bf16.msra.mxu0 %v4836
    %5161 = vmatprep.subr.bf16.mxu0 0
    %5162 = vmatpush1.bf16.msra.mxu0 %v4837
    %5163 = vmatprep.subr.bf16.mxu0 0
    %5164 = vmatpush1.bf16.msra.mxu0 %v4838
    %5165 = vmatprep.subr.bf16.mxu0 0
    %5166 = vmatpush1.bf16.msra.mxu0 %v4839
    %5167 = vmatprep.mubr.bf16.mxu0 %v4253
    %5168 = vmatmul.mubr.bf16.gmra.mrb[0].mxu0 %v4252
    %v5169 = vpop.f32.mrb[0].mxu0
    %v5170 = vadd.f32 %v5130, %v5169
    %v5171 = vpop.f32.mrb[0].mxu0
    %v5172 = vpop.f32.mrb[0].mxu0
    %v5173 = vpop.f32.mrb[0].mxu0
    %5174 = vdwg.mxu0
    %5175 = vmatprep.subr.bf16.mxu0 0
    %5176 = vmatpush1.bf16.msra.mxu0 %v4840
    %5177 = vmatprep.subr.bf16.mxu0 0
    %5178 = vmatpush1.bf16.msra.mxu0 %v4841
    %5179 = vmatprep.subr.bf16.mxu0 0
    %5180 = vmatpush1.bf16.msra.mxu0 %v4842
    %5181 = vmatprep.subr.bf16.mxu0 0
    %5182 = vmatpush1.bf16.msra.mxu0 %v4843
    %5183 = vmatprep.subr.bf16.mxu0 0
    %5184 = vmatpush1.bf16.msra.mxu0 %v4844
    %5185 = vmatprep.subr.bf16.mxu0 0
    %5186 = vmatpush1.bf16.msra.mxu0 %v4845
    %5187 = vmatprep.subr.bf16.mxu0 0
    %5188 = vmatpush1.bf16.msra.mxu0 %v4846
    %5189 = vmatprep.subr.bf16.mxu0 0
    %5190 = vmatpush1.bf16.msra.mxu0 %v4847
    %5191 = vmatprep.subr.bf16.mxu0 0
    %5192 = vmatpush1.bf16.msra.mxu0 %v4848
    %5193 = vmatprep.subr.bf16.mxu0 0
    %5194 = vmatpush1.bf16.msra.mxu0 %v4849
    %5195 = vmatprep.subr.bf16.mxu0 0
    %5196 = vmatpush1.bf16.msra.mxu0 %v4850
    %5197 = vmatprep.subr.bf16.mxu0 0
    %5198 = vmatpush1.bf16.msra.mxu0 %v4851
    %5199 = vmatprep.subr.bf16.mxu0 0
    %5200 = vmatpush1.bf16.msra.mxu0 %v4852
    %5201 = vmatprep.subr.bf16.mxu0 0
    %5202 = vmatpush1.bf16.msra.mxu0 %v4853
    %5203 = vmatprep.subr.bf16.mxu0 0
    %5204 = vmatpush1.bf16.msra.mxu0 %v4854
    %5205 = vmatprep.subr.bf16.mxu0 0
    %5206 = vmatpush1.bf16.msra.mxu0 %v4855
    %5207 = vmatprep.mubr.bf16.mxu0 %v4255
    %5208 = vmatmul.mubr.bf16.gmra.mrb[0].mxu0 %v4254
    %v5209 = vpop.f32.mrb[0].mxu0
    %v5210 = vadd.f32 %v5170, %v5209
    %v5211 = vpop.f32.mrb[0].mxu0
    %v5212 = vpop.f32.mrb[0].mxu0
    %v5213 = vpop.f32.mrb[0].mxu0
    %5214 = vdwg.mxu0
    %5215 = vmatprep.subr.bf16.mxu0 0
    %5216 = vmatpush1.bf16.msra.mxu0 %v4856
    %5217 = vmatprep.subr.bf16.mxu0 0
    %5218 = vmatpush1.bf16.msra.mxu0 %v4857
    %5219 = vmatprep.subr.bf16.mxu0 0
    %5220 = vmatpush1.bf16.msra.mxu0 %v4858
    %5221 = vmatprep.subr.bf16.mxu0 0
    %5222 = vmatpush1.bf16.msra.mxu0 %v4859
    %5223 = vmatprep.subr.bf16.mxu0 0
    %5224 = vmatpush1.bf16.msra.mxu0 %v4860
    %5225 = vmatprep.subr.bf16.mxu0 0
    %5226 = vmatpush1.bf16.msra.mxu0 %v4861
    %5227 = vmatprep.subr.bf16.mxu0 0
    %5228 = vmatpush1.bf16.msra.mxu0 %v4862
    %5229 = vmatprep.subr.bf16.mxu0 0
    %5230 = vmatpush1.bf16.msra.mxu0 %v4863
    %5231 = vmatprep.subr.bf16.mxu0 0
    %5232 = vmatpush1.bf16.msra.mxu0 %v4864
    %5233 = vmatprep.subr.bf16.mxu0 0
    %5234 = vmatpush1.bf16.msra.mxu0 %v4865
    %5235 = vmatprep.subr.bf16.mxu0 0
    %5236 = vmatpush1.bf16.msra.mxu0 %v4866
    %5237 = vmatprep.subr.bf16.mxu0 0
    %5238 = vmatpush1.bf16.msra.mxu0 %v4867
    %5239 = vmatprep.subr.bf16.mxu0 0
    %5240 = vmatpush1.bf16.msra.mxu0 %v4868
    %5241 = vmatprep.subr.bf16.mxu0 0
    %5242 = vmatpush1.bf16.msra.mxu0 %v4869
    %5243 = vmatprep.subr.bf16.mxu0 0
    %5244 = vmatpush1.bf16.msra.mxu0 %v4870
    %5245 = vmatprep.subr.bf16.mxu0 0
    %5246 = vmatpush1.bf16.msra.mxu0 %v4871
    %5247 = vmatprep.mubr.bf16.mxu0 %v4257
    %5248 = vmatmul.mubr.bf16.gmra.mrb[0].mxu0 %v4256
    %v5249 = vpop.f32.mrb[0].mxu0
    %v5250 = vadd.f32 %v5210, %v5249
    %v5251 = vpop.f32.mrb[0].mxu0
    %v5252 = vpop.f32.mrb[0].mxu0
    %v5253 = vpop.f32.mrb[0].mxu0
    %5254 = vdwg.mxu0
    %5255 = vmatprep.subr.bf16.mxu0 0
    %5256 = vmatpush1.bf16.msra.mxu0 %v4872
    %5257 = vmatprep.subr.bf16.mxu0 0
    %5258 = vmatpush1.bf16.msra.mxu0 %v4873
    %5259 = vmatprep.subr.bf16.mxu0 0
    %5260 = vmatpush1.bf16.msra.mxu0 %v4874
    %5261 = vmatprep.subr.bf16.mxu0 0
    %5262 = vmatpush1.bf16.msra.mxu0 %v4875
    %5263 = vmatprep.subr.bf16.mxu0 0
    %5264 = vmatpush1.bf16.msra.mxu0 %v4876
    %5265 = vmatprep.subr.bf16.mxu0 0
    %5266 = vmatpush1.bf16.msra.mxu0 %v4877
    %5267 = vmatprep.subr.bf16.mxu0 0
    %5268 = vmatpush1.bf16.msra.mxu0 %v4878
    %5269 = vmatprep.subr.bf16.mxu0 0
    %5270 = vmatpush1.bf16.msra.mxu0 %v4879
    %5271 = vmatprep.subr.bf16.mxu0 0
    %5272 = vmatpush1.bf16.msra.mxu0 %v4880
    %5273 = vmatprep.subr.bf16.mxu0 0
    %5274 = vmatpush1.bf16.msra.mxu0 %v4881
    %5275 = vmatprep.subr.bf16.mxu0 0
    %5276 = vmatpush1.bf16.msra.mxu0 %v4882
    %5277 = vmatprep.subr.bf16.mxu0 0
    %5278 = vmatpush1.bf16.msra.mxu0 %v4883
    %5279 = vmatprep.subr.bf16.mxu0 0
    %5280 = vmatpush1.bf16.msra.mxu0 %v4884
    %5281 = vmatprep.subr.bf16.mxu0 0
    %5282 = vmatpush1.bf16.msra.mxu0 %v4885
    %5283 = vmatprep.subr.bf16.mxu0 0
    %5284 = vmatpush1.bf16.msra.mxu0 %v4886
    %5285 = vmatprep.subr.bf16.mxu0 0
    %5286 = vmatpush1.bf16.msra.mxu0 %v4887
    %5287 = vmatprep.mubr.bf16.mxu0 %v4259
    %5288 = vmatmul.mubr.bf16.gmra.mrb[0].mxu0 %v4258
    %v5289 = vpop.f32.mrb[0].mxu0
    %v5290 = vadd.f32 %v5250, %v5289
    %v5291 = vpop.f32.mrb[0].mxu0
    %v5292 = vpop.f32.mrb[0].mxu0
    %v5293 = vpop.f32.mrb[0].mxu0
    %5294 = vdwg.mxu0
    %5295 = vmatprep.subr.bf16.mxu0 0
    %5296 = vmatpush1.bf16.msra.mxu0 %v4888
    %5297 = vmatprep.subr.bf16.mxu0 0
    %5298 = vmatpush1.bf16.msra.mxu0 %v4889
    %5299 = vmatprep.subr.bf16.mxu0 0
    %5300 = vmatpush1.bf16.msra.mxu0 %v4890
    %5301 = vmatprep.subr.bf16.mxu0 0
    %5302 = vmatpush1.bf16.msra.mxu0 %v4891
    %5303 = vmatprep.subr.bf16.mxu0 0
    %5304 = vmatpush1.bf16.msra.mxu0 %v4892
    %5305 = vmatprep.subr.bf16.mxu0 0
    %5306 = vmatpush1.bf16.msra.mxu0 %v4893
    %5307 = vmatprep.subr.bf16.mxu0 0
    %5308 = vmatpush1.bf16.msra.mxu0 %v4894
    %5309 = vmatprep.subr.bf16.mxu0 0
    %5310 = vmatpush1.bf16.msra.mxu0 %v4895
    %5311 = vmatprep.subr.bf16.mxu0 0
    %5312 = vmatpush1.bf16.msra.mxu0 %v4896
    %5313 = vmatprep.subr.bf16.mxu0 0
    %5314 = vmatpush1.bf16.msra.mxu0 %v4897
    %5315 = vmatprep.subr.bf16.mxu0 0
    %5316 = vmatpush1.bf16.msra.mxu0 %v4898
    %5317 = vmatprep.subr.bf16.mxu0 0
    %5318 = vmatpush1.bf16.msra.mxu0 %v4899
    %5319 = vmatprep.subr.bf16.mxu0 0
    %5320 = vmatpush1.bf16.msra.mxu0 %v4900
    %5321 = vmatprep.subr.bf16.mxu0 0
    %5322 = vmatpush1.bf16.msra.mxu0 %v4901
    %5323 = vmatprep.subr.bf16.mxu0 0
    %5324 = vmatpush1.bf16.msra.mxu0 %v4902
    %5325 = vmatprep.subr.bf16.mxu0 0
    %5326 = vmatpush1.bf16.msra.mxu0 %v4903
    %5327 = vmatprep.mubr.bf16.mxu0 %v4261
    %5328 = vmatmul.mubr.bf16.gmra.mrb[0].mxu0 %v4260
    %v5329 = vpop.f32.mrb[0].mxu0
    %v5330 = vadd.f32 %v5290, %v5329
    %v5331 = vpop.f32.mrb[0].mxu0
    %v5332 = vpop.f32.mrb[0].mxu0
    %v5333 = vpop.f32.mrb[0].mxu0
    %5334 = vdwg.mxu0
    %5335 = vmatprep.subr.bf16.mxu0 0
    %5336 = vmatpush1.bf16.msra.mxu0 %v4904
    %5337 = vmatprep.subr.bf16.mxu0 0
    %5338 = vmatpush1.bf16.msra.mxu0 %v4905
    %5339 = vmatprep.subr.bf16.mxu0 0
    %5340 = vmatpush1.bf16.msra.mxu0 %v4906
    %5341 = vmatprep.subr.bf16.mxu0 0
    %5342 = vmatpush1.bf16.msra.mxu0 %v4907
    %5343 = vmatprep.subr.bf16.mxu0 0
    %5344 = vmatpush1.bf16.msra.mxu0 %v4908
    %5345 = vmatprep.subr.bf16.mxu0 0
    %5346 = vmatpush1.bf16.msra.mxu0 %v4909
    %5347 = vmatprep.subr.bf16.mxu0 0
    %5348 = vmatpush1.bf16.msra.mxu0 %v4910
    %5349 = vmatprep.subr.bf16.mxu0 0
    %5350 = vmatpush1.bf16.msra.mxu0 %v4911
    %5351 = vmatprep.subr.bf16.mxu0 0
    %5352 = vmatpush1.bf16.msra.mxu0 %v4912
    %5353 = vmatprep.subr.bf16.mxu0 0
    %5354 = vmatpush1.bf16.msra.mxu0 %v4913
    %5355 = vmatprep.subr.bf16.mxu0 0
    %5356 = vmatpush1.bf16.msra.mxu0 %v4914
    %5357 = vmatprep.subr.bf16.mxu0 0
    %5358 = vmatpush1.bf16.msra.mxu0 %v4915
    %5359 = vmatprep.subr.bf16.mxu0 0
    %5360 = vmatpush1.bf16.msra.mxu0 %v4916
    %5361 = vmatprep.subr.bf16.mxu0 0
    %5362 = vmatpush1.bf16.msra.mxu0 %v4917
    %5363 = vmatprep.subr.bf16.mxu0 0
    %5364 = vmatpush1.bf16.msra.mxu0 %v4918
    %5365 = vmatprep.subr.bf16.mxu0 0
    %5366 = vmatpush1.bf16.msra.mxu0 %v4919
    %5367 = vmatprep.mubr.bf16.mxu0 %v4263
    %5368 = vmatmul.mubr.bf16.gmra.mrb[0].mxu0 %v4262
    %v5369 = vpop.f32.mrb[0].mxu0
    %v5370 = vadd.f32 %v5330, %v5369
    %v5371 = vpop.f32.mrb[0].mxu0
    %v5372 = vpop.f32.mrb[0].mxu0
    %v5373 = vpop.f32.mrb[0].mxu0
    %5374 = vdwg.mxu0
    %5375 = vmatprep.subr.bf16.mxu0 0
    %5376 = vmatpush1.bf16.msra.mxu0 %v4920
    %5377 = vmatprep.subr.bf16.mxu0 0
    %5378 = vmatpush1.bf16.msra.mxu0 %v4921
    %5379 = vmatprep.subr.bf16.mxu0 0
    %5380 = vmatpush1.bf16.msra.mxu0 %v4922
    %5381 = vmatprep.subr.bf16.mxu0 0
    %5382 = vmatpush1.bf16.msra.mxu0 %v4923
    %5383 = vmatprep.subr.bf16.mxu0 0
    %5384 = vmatpush1.bf16.msra.mxu0 %v4924
    %5385 = vmatprep.subr.bf16.mxu0 0
    %5386 = vmatpush1.bf16.msra.mxu0 %v4925
    %5387 = vmatprep.subr.bf16.mxu0 0
    %5388 = vmatpush1.bf16.msra.mxu0 %v4926
    %5389 = vmatprep.subr.bf16.mxu0 0
    %5390 = vmatpush1.bf16.msra.mxu0 %v4927
    %5391 = vmatprep.subr.bf16.mxu0 0
    %5392 = vmatpush1.bf16.msra.mxu0 %v4928
    %5393 = vmatprep.subr.bf16.mxu0 0
    %5394 = vmatpush1.bf16.msra.mxu0 %v4929
    %5395 = vmatprep.subr.bf16.mxu0 0
    %5396 = vmatpush1.bf16.msra.mxu0 %v4930
    %5397 = vmatprep.subr.bf16.mxu0 0
    %5398 = vmatpush1.bf16.msra.mxu0 %v4931
    %5399 = vmatprep.subr.bf16.mxu0 0
    %5400 = vmatpush1.bf16.msra.mxu0 %v4932
    %5401 = vmatprep.subr.bf16.mxu0 0
    %5402 = vmatpush1.bf16.msra.mxu0 %v4933
    %5403 = vmatprep.subr.bf16.mxu0 0
    %5404 = vmatpush1.bf16.msra.mxu0 %v4934
    %5405 = vmatprep.subr.bf16.mxu0 0
    %5406 = vmatpush1.bf16.msra.mxu0 %v4935
    %5407 = vmatprep.mubr.bf16.mxu0 %v4265
    %5408 = vmatmul.mubr.bf16.gmra.mrb[0].mxu0 %v4264
    %v5409 = vpop.f32.mrb[0].mxu0
    %v5410 = vadd.f32 %v5370, %v5409
    %v5411 = vpop.f32.mrb[0].mxu0
    %v5412 = vpop.f32.mrb[0].mxu0
    %v5413 = vpop.f32.mrb[0].mxu0
    %5414 = vdwg.mxu0
    %5415 = vmatprep.subr.bf16.mxu0 0
    %5416 = vmatpush1.bf16.msra.mxu0 %v4936
    %5417 = vmatprep.subr.bf16.mxu0 0
    %5418 = vmatpush1.bf16.msra.mxu0 %v4937
    %5419 = vmatprep.subr.bf16.mxu0 0
    %5420 = vmatpush1.bf16.msra.mxu0 %v4938
    %5421 = vmatprep.subr.bf16.mxu0 0
    %5422 = vmatpush1.bf16.msra.mxu0 %v4939
    %5423 = vmatprep.subr.bf16.mxu0 0
    %5424 = vmatpush1.bf16.msra.mxu0 %v4940
    %5425 = vmatprep.subr.bf16.mxu0 0
    %5426 = vmatpush1.bf16.msra.mxu0 %v4941
    %5427 = vmatprep.subr.bf16.mxu0 0
    %5428 = vmatpush1.bf16.msra.mxu0 %v4942
    %5429 = vmatprep.subr.bf16.mxu0 0
    %5430 = vmatpush1.bf16.msra.mxu0 %v4943
    %5431 = vmatprep.subr.bf16.mxu0 0
    %5432 = vmatpush1.bf16.msra.mxu0 %v4944
    %5433 = vmatprep.subr.bf16.mxu0 0
    %5434 = vmatpush1.bf16.msra.mxu0 %v4945
    %5435 = vmatprep.subr.bf16.mxu0 0
    %5436 = vmatpush1.bf16.msra.mxu0 %v4946
    %5437 = vmatprep.subr.bf16.mxu0 0
    %5438 = vmatpush1.bf16.msra.mxu0 %v4947
    %5439 = vmatprep.subr.bf16.mxu0 0
    %5440 = vmatpush1.bf16.msra.mxu0 %v4948
    %5441 = vmatprep.subr.bf16.mxu0 0
    %5442 = vmatpush1.bf16.msra.mxu0 %v4949
    %5443 = vmatprep.subr.bf16.mxu0 0
    %5444 = vmatpush1.bf16.msra.mxu0 %v4950
    %5445 = vmatprep.subr.bf16.mxu0 0
    %5446 = vmatpush1.bf16.msra.mxu0 %v4951
    %5447 = vmatprep.mubr.bf16.mxu0 %v4267
    %5448 = vmatmul.mubr.bf16.gmra.mrb[0].mxu0 %v4266
    %v5449 = vpop.f32.mrb[0].mxu0
    %v5450 = vadd.f32 %v5410, %v5449
    %v5451 = vpop.f32.mrb[0].mxu0
    %v5452 = vpop.f32.mrb[0].mxu0
    %v5453 = vpop.f32.mrb[0].mxu0
    %5454 = vdwg.mxu0
    %5455 = vmatprep.subr.bf16.mxu0 0
    %5456 = vmatpush1.bf16.msra.mxu0 %v4952
    %5457 = vmatprep.subr.bf16.mxu0 0
    %5458 = vmatpush1.bf16.msra.mxu0 %v4953
    %5459 = vmatprep.subr.bf16.mxu0 0
    %5460 = vmatpush1.bf16.msra.mxu0 %v4954
    %5461 = vmatprep.subr.bf16.mxu0 0
    %5462 = vmatpush1.bf16.msra.mxu0 %v4955
    %5463 = vmatprep.subr.bf16.mxu0 0
    %5464 = vmatpush1.bf16.msra.mxu0 %v4956
    %5465 = vmatprep.subr.bf16.mxu0 0
    %5466 = vmatpush1.bf16.msra.mxu0 %v4957
    %5467 = vmatprep.subr.bf16.mxu0 0
    %5468 = vmatpush1.bf16.msra.mxu0 %v4958
    %5469 = vmatprep.subr.bf16.mxu0 0
    %5470 = vmatpush1.bf16.msra.mxu0 %v4959
    %5471 = vmatprep.subr.bf16.mxu0 0
    %5472 = vmatpush1.bf16.msra.mxu0 %v4960
    %5473 = vmatprep.subr.bf16.mxu0 0
    %5474 = vmatpush1.bf16.msra.mxu0 %v4961
    %5475 = vmatprep.subr.bf16.mxu0 0
    %5476 = vmatpush1.bf16.msra.mxu0 %v4962
    %5477 = vmatprep.subr.bf16.mxu0 0
    %5478 = vmatpush1.bf16.msra.mxu0 %v4963
    %5479 = vmatprep.subr.bf16.mxu0 0
    %5480 = vmatpush1.bf16.msra.mxu0 %v4964
    %5481 = vmatprep.subr.bf16.mxu0 0
    %5482 = vmatpush1.bf16.msra.mxu0 %v4965
    %5483 = vmatprep.subr.bf16.mxu0 0
    %5484 = vmatpush1.bf16.msra.mxu0 %v4966
    %5485 = vmatprep.subr.bf16.mxu0 0
    %5486 = vmatpush1.bf16.msra.mxu0 %v4967
    %5487 = vmatprep.mubr.bf16.mxu0 %v4269
    %5488 = vmatmul.mubr.bf16.gmra.mrb[0].mxu0 %v4268
    %v5489 = vpop.f32.mrb[0].mxu0
    %v5490 = vadd.f32 %v5450, %v5489
    %v5491 = vpop.f32.mrb[0].mxu0
    %v5492 = vpop.f32.mrb[0].mxu0
    %v5493 = vpop.f32.mrb[0].mxu0
    %5494 = vdwg.mxu0
    %5495 = vmatprep.subr.bf16.mxu0 0
    %5496 = vmatpush1.bf16.msra.mxu0 %v4968
    %5497 = vmatprep.subr.bf16.mxu0 0
    %5498 = vmatpush1.bf16.msra.mxu0 %v4969
    %5499 = vmatprep.subr.bf16.mxu0 0
    %5500 = vmatpush1.bf16.msra.mxu0 %v4970
    %5501 = vmatprep.subr.bf16.mxu0 0
    %5502 = vmatpush1.bf16.msra.mxu0 %v4971
    %5503 = vmatprep.subr.bf16.mxu0 0
    %5504 = vmatpush1.bf16.msra.mxu0 %v4972
    %5505 = vmatprep.subr.bf16.mxu0 0
    %5506 = vmatpush1.bf16.msra.mxu0 %v4973
    %5507 = vmatprep.subr.bf16.mxu0 0
    %5508 = vmatpush1.bf16.msra.mxu0 %v4974
    %5509 = vmatprep.subr.bf16.mxu0 0
    %5510 = vmatpush1.bf16.msra.mxu0 %v4975
    %5511 = vmatprep.subr.bf16.mxu0 0
    %5512 = vmatpush1.bf16.msra.mxu0 %v4976
    %5513 = vmatprep.subr.bf16.mxu0 0
    %5514 = vmatpush1.bf16.msra.mxu0 %v4977
    %5515 = vmatprep.subr.bf16.mxu0 0
    %5516 = vmatpush1.bf16.msra.mxu0 %v4978
    %5517 = vmatprep.subr.bf16.mxu0 0
    %5518 = vmatpush1.bf16.msra.mxu0 %v4979
    %5519 = vmatprep.subr.bf16.mxu0 0
    %5520 = vmatpush1.bf16.msra.mxu0 %v4980
    %5521 = vmatprep.subr.bf16.mxu0 0
    %5522 = vmatpush1.bf16.msra.mxu0 %v4981
    %5523 = vmatprep.subr.bf16.mxu0 0
    %5524 = vmatpush1.bf16.msra.mxu0 %v4982
    %5525 = vmatprep.subr.bf16.mxu0 0
    %5526 = vmatpush1.bf16.msra.mxu0 %v4983
    %5527 = vmatprep.mubr.bf16.mxu0 %v4271
    %5528 = vmatmul.mubr.bf16.gmra.mrb[0].mxu0 %v4270
    %v5529 = vpop.f32.mrb[0].mxu0
    %v5530 = vadd.f32 %v5490, %v5529
    %v5531 = vpop.f32.mrb[0].mxu0
    %v5532 = vpop.f32.mrb[0].mxu0
    %v5533 = vpop.f32.mrb[0].mxu0
    %5534 = vdwg.mxu0
    %5535 = vmatprep.subr.bf16.mxu0 0
    %5536 = vmatpush1.bf16.msra.mxu0 %v4984
    %5537 = vmatprep.subr.bf16.mxu0 0
    %5538 = vmatpush1.bf16.msra.mxu0 %v4985
    %5539 = vmatprep.subr.bf16.mxu0 0
    %5540 = vmatpush1.bf16.msra.mxu0 %v4986
    %5541 = vmatprep.subr.bf16.mxu0 0
    %5542 = vmatpush1.bf16.msra.mxu0 %v4987
    %5543 = vmatprep.subr.bf16.mxu0 0
    %5544 = vmatpush1.bf16.msra.mxu0 %v4988
    %5545 = vmatprep.subr.bf16.mxu0 0
    %5546 = vmatpush1.bf16.msra.mxu0 %v4989
    %5547 = vmatprep.subr.bf16.mxu0 0
    %5548 = vmatpush1.bf16.msra.mxu0 %v4990
    %5549 = vmatprep.subr.bf16.mxu0 0
    %5550 = vmatpush1.bf16.msra.mxu0 %v4991
    %5551 = vmatprep.subr.bf16.mxu0 0
    %5552 = vmatpush1.bf16.msra.mxu0 %v4992
    %5553 = vmatprep.subr.bf16.mxu0 0
    %5554 = vmatpush1.bf16.msra.mxu0 %v4993
    %5555 = vmatprep.subr.bf16.mxu0 0
    %5556 = vmatpush1.bf16.msra.mxu0 %v4994
    %5557 = vmatprep.subr.bf16.mxu0 0
    %5558 = vmatpush1.bf16.msra.mxu0 %v4995
    %5559 = vmatprep.subr.bf16.mxu0 0
    %5560 = vmatpush1.bf16.msra.mxu0 %v4996
    %5561 = vmatprep.subr.bf16.mxu0 0
    %5562 = vmatpush1.bf16.msra.mxu0 %v4997
    %5563 = vmatprep.subr.bf16.mxu0 0
    %5564 = vmatpush1.bf16.msra.mxu0 %v4998
    %5565 = vmatprep.subr.bf16.mxu0 0
    %5566 = vmatpush1.bf16.msra.mxu0 %v4999
    %5567 = vmatprep.mubr.bf16.mxu0 %v4273
    %5568 = vmatmul.mubr.bf16.gmra.mrb[0].mxu0 %v4272
    %v5569 = vpop.f32.mrb[0].mxu0
    %v5570 = vadd.f32 %v5530, %v5569
    %v5571 = vpop.f32.mrb[0].mxu0
    %v5572 = vpop.f32.mrb[0].mxu0
    %v5573 = vpop.f32.mrb[0].mxu0
    %5574 = vdwg.mxu0
    %5575 = vmatprep.subr.bf16.mxu0 0
    %5576 = vmatpush1.bf16.msra.mxu0 %v5000
    %5577 = vmatprep.subr.bf16.mxu0 0
    %5578 = vmatpush1.bf16.msra.mxu0 %v5001
    %5579 = vmatprep.subr.bf16.mxu0 0
    %5580 = vmatpush1.bf16.msra.mxu0 %v5002
    %5581 = vmatprep.subr.bf16.mxu0 0
    %5582 = vmatpush1.bf16.msra.mxu0 %v5003
    %5583 = vmatprep.subr.bf16.mxu0 0
    %5584 = vmatpush1.bf16.msra.mxu0 %v5004
    %5585 = vmatprep.subr.bf16.mxu0 0
    %5586 = vmatpush1.bf16.msra.mxu0 %v5005
    %5587 = vmatprep.subr.bf16.mxu0 0
    %5588 = vmatpush1.bf16.msra.mxu0 %v5006
    %5589 = vmatprep.subr.bf16.mxu0 0
    %5590 = vmatpush1.bf16.msra.mxu0 %v5007
    %5591 = vmatprep.subr.bf16.mxu0 0
    %5592 = vmatpush1.bf16.msra.mxu0 %v5008
    %5593 = vmatprep.subr.bf16.mxu0 0
    %5594 = vmatpush1.bf16.msra.mxu0 %v5009
    %5595 = vmatprep.subr.bf16.mxu0 0
    %5596 = vmatpush1.bf16.msra.mxu0 %v5010
    %5597 = vmatprep.subr.bf16.mxu0 0
    %5598 = vmatpush1.bf16.msra.mxu0 %v5011
    %5599 = vmatprep.subr.bf16.mxu0 0
    %5600 = vmatpush1.bf16.msra.mxu0 %v5012
    %5601 = vmatprep.subr.bf16.mxu0 0
    %5602 = vmatpush1.bf16.msra.mxu0 %v5013
    %5603 = vmatprep.subr.bf16.mxu0 0
    %5604 = vmatpush1.bf16.msra.mxu0 %v5014
    %5605 = vmatprep.subr.bf16.mxu0 0
    %5606 = vmatpush1.bf16.msra.mxu0 %v5015
    %5607 = vmatprep.mubr.bf16.mxu0 %v4275
    %5608 = vmatmul.mubr.bf16.gmra.mrb[0].mxu0 %v4274
    %v5609 = vpop.f32.mrb[0].mxu0
    %v5610 = vadd.f32 %v5570, %v5609
    %v5611 = vpop.f32.mrb[0].mxu0
    %v5612 = vpop.f32.mrb[0].mxu0
    %v5613 = vpop.f32.mrb[0].mxu0
    %5614 = vdwg.mxu0
    %5615 = vmatprep.subr.bf16.mxu0 0
    %5616 = vmatpush1.bf16.msra.mxu0 %v5016
    %5617 = vmatprep.subr.bf16.mxu0 0
    %5618 = vmatpush1.bf16.msra.mxu0 %v5017
    %5619 = vmatprep.subr.bf16.mxu0 0
    %5620 = vmatpush1.bf16.msra.mxu0 %v5018
    %5621 = vmatprep.subr.bf16.mxu0 0
    %5622 = vmatpush1.bf16.msra.mxu0 %v5019
    %5623 = vmatprep.subr.bf16.mxu0 0
    %5624 = vmatpush1.bf16.msra.mxu0 %v5020
    %5625 = vmatprep.subr.bf16.mxu0 0
    %5626 = vmatpush1.bf16.msra.mxu0 %v5021
    %5627 = vmatprep.subr.bf16.mxu0 0
    %5628 = vmatpush1.bf16.msra.mxu0 %v5022
    %5629 = vmatprep.subr.bf16.mxu0 0
    %5630 = vmatpush1.bf16.msra.mxu0 %v5023
    %5631 = vmatprep.subr.bf16.mxu0 0
    %5632 = vmatpush1.bf16.msra.mxu0 %v5024
    %5633 = vmatprep.subr.bf16.mxu0 0
    %5634 = vmatpush1.bf16.msra.mxu0 %v5025
    %5635 = vmatprep.subr.bf16.mxu0 0
    %5636 = vmatpush1.bf16.msra.mxu0 %v5026
    %5637 = vmatprep.subr.bf16.mxu0 0
    %5638 = vmatpush1.bf16.msra.mxu0 %v5027
    %5639 = vmatprep.subr.bf16.mxu0 0
    %5640 = vmatpush1.bf16.msra.mxu0 %v5028
    %5641 = vmatprep.subr.bf16.mxu0 0
    %5642 = vmatpush1.bf16.msra.mxu0 %v5029
    %5643 = vmatprep.subr.bf16.mxu0 0
    %5644 = vmatpush1.bf16.msra.mxu0 %v5030
    %5645 = vmatprep.subr.bf16.mxu0 0
    %5646 = vmatpush1.bf16.msra.mxu0 %v5031
    %5647 = vmatprep.mubr.bf16.mxu0 %v4277
    %5648 = vmatmul.mubr.bf16.gmra.mrb[0].mxu0 %v4276
    %v5649 = vpop.f32.mrb[0].mxu0
    %v5650 = vadd.f32 %v5610, %v5649
    %v5651 = vpop.f32.mrb[0].mxu0
    %v5652 = vpop.f32.mrb[0].mxu0
    %v5653 = vpop.f32.mrb[0].mxu0
    %5654 = vdwg.mxu0
    %5655 = vmatprep.subr.bf16.mxu0 0
    %5656 = vmatpush1.bf16.msra.mxu0 %v5032
    %5657 = vmatprep.subr.bf16.mxu0 0
    %5658 = vmatpush1.bf16.msra.mxu0 %v5033
    %5659 = vmatprep.subr.bf16.mxu0 0
    %5660 = vmatpush1.bf16.msra.mxu0 %v5034
    %5661 = vmatprep.subr.bf16.mxu0 0
    %5662 = vmatpush1.bf16.msra.mxu0 %v5035
    %5663 = vmatprep.subr.bf16.mxu0 0
    %5664 = vmatpush1.bf16.msra.mxu0 %v5036
    %5665 = vmatprep.subr.bf16.mxu0 0
    %5666 = vmatpush1.bf16.msra.mxu0 %v5037
    %5667 = vmatprep.subr.bf16.mxu0 0
    %5668 = vmatpush1.bf16.msra.mxu0 %v5038
    %5669 = vmatprep.subr.bf16.mxu0 0
    %5670 = vmatpush1.bf16.msra.mxu0 %v5039
    %5671 = vmatprep.subr.bf16.mxu0 0
    %5672 = vmatpush1.bf16.msra.mxu0 %v5040
    %5673 = vmatprep.subr.bf16.mxu0 0
    %5674 = vmatpush1.bf16.msra.mxu0 %v5041
    %5675 = vmatprep.subr.bf16.mxu0 0
    %5676 = vmatpush1.bf16.msra.mxu0 %v5042
    %5677 = vmatprep.subr.bf16.mxu0 0
    %5678 = vmatpush1.bf16.msra.mxu0 %v5043
    %5679 = vmatprep.subr.bf16.mxu0 0
    %5680 = vmatpush1.bf16.msra.mxu0 %v5044
    %5681 = vmatprep.subr.bf16.mxu0 0
    %5682 = vmatpush1.bf16.msra.mxu0 %v5045
    %5683 = vmatprep.subr.bf16.mxu0 0
    %5684 = vmatpush1.bf16.msra.mxu0 %v5046
    %5685 = vmatprep.subr.bf16.mxu0 0
    %5686 = vmatpush1.bf16.msra.mxu0 %v5047
    %5687 = vmatprep.mubr.bf16.mxu0 %v4279
    %5688 = vmatmul.mubr.bf16.gmra.mrb[0].mxu0 %v4278
    %v5689 = vpop.f32.mrb[0].mxu0
    %v5690 = vadd.f32 %v5650, %v5689
    %v5691 = vpop.f32.mrb[0].mxu0
    %v5692 = vpop.f32.mrb[0].mxu0
    %v5693 = vpop.f32.mrb[0].mxu0
    %5694 = vdwg.mxu0
    %v5695 = vmax.f32 %v5690, 0.0
    %5696 = vst.msk [vmem:[#allocation11] sm:$0x3] %vm1147, %v5695
    // Predicated region
    $region38: #{agent_id_stacked_feature_extractor.1} parent=1 // pred_check
      _
    $region39: #{agent_id_stacked_feature_extractor.1} parent=1 // pred_check_branch
      %5698 = sbr.rel (0) target = $region41
    $region40: #{agent_id_stacked_feature_extractor.1} parent=1 // pred_region
      %s5700 = ssub.s32 32, 32
      %5701 = vsyncadd [#allocation9], %s5700
      %s5703 = sshll.u32 [#allocation11], 4
      %s5704 = int_to_ptr.vmem [resolvable:$true] %s5703
      %5706 = dma.vmem_to_hbm [thread:$0]  %s5704, 32, %s8, [#allocation9]
    $region41: #{agent_id_stacked_feature_extractor.1} parent=1 // pred_fallthru
      _
    // Predicated region
    $region42: #{agent_id_stacked_feature_extractor.1} parent=1 // pred_check
      _
    $region43: #{agent_id_stacked_feature_extractor.1} parent=1 // pred_check_branch
      %5708 = sbr.rel (0) target = $region45
    $region44: #{agent_id_stacked_feature_extractor.1} parent=1 // pred_region
      %5709 = dma.done [#allocation9], 32
    $region45: #{agent_id_stacked_feature_extractor.1} parent=1 // pred_fallthru
      _
    %5710 = vsyncpa [#allocation9], 1
    %5711 = vsyncpa [#allocation10], 1

</llo_original>
